<compile_context>
chip_gen: v7x
topology: tpu7x:2x2x1
jax: 0.10.0
libtpu: 0.0.40
codegen_flags: <defaults>
</compile_context>

<pallas_src>
import jax
import jax.numpy as jnp
from jax.experimental import pallas as pl
from jax.experimental.pallas import tpu as pltpu

FEAT_DIM = 2560
BOTTLENECK = 128
NUM_CLASSES = 10
NUM_CLASSES_PAD = 128          # lane-dense classifier width; cols 10..127 are zeros
IN_FLAT = 4 * 16 * 16          # flattened NCHW input dim for the stub teacher


def _round_up(x, m):
    return (x + m - 1) // m * m


def _fused_kernel(x_ref, wf_ref, b1_ref, w2_ref, b2_ref, wc_ref, bc_ref, o_ref):
    # Adapter layer 1 with the frozen teacher folded in:
    #   h = relu((x @ W_teacher) @ W1 + b1) == relu(x @ (W_teacher @ W1) + b1)
    x = x_ref[...]                                                          # [tb, 1024] bf16
    h = jnp.dot(x, wf_ref[...], preferred_element_type=jnp.float32) + b1_ref[...]
    h = jnp.maximum(h, 0.0)                                                 # [tb, 128] f32
    # (Dropout(0.5) is identity in eval mode)

    # Adapter layer 2: Linear(128 -> 2560) + ReLU
    a = jnp.dot(h.astype(jnp.bfloat16), w2_ref[...],
                preferred_element_type=jnp.float32) + b2_ref[...]
    a = jnp.maximum(a, 0.0)                                                 # [tb, 2560] f32
    # (Dropout(0.5) is identity in eval mode)

    # Classifier: Linear(2560 -> 10), padded to 128 lanes for a dense (unmasked) store.
    o_ref[...] = jnp.dot(a.astype(jnp.bfloat16), wc_ref[...],
                         preferred_element_type=jnp.float32) + bc_ref[...]


def model_forward(x_nchw, w_fused, b1, w2, b2, wc_pad, bc_pad, *, tile_b=256):
    """x_nchw: [B, C, H, W] -> logits [B, NUM_CLASSES] f32."""
    B = x_nchw.shape[0]
    x_flat = x_nchw.reshape(B, -1).astype(jnp.bfloat16)                     # [B, 1024] bf16
    k_in = x_flat.shape[1]

    # Batch tile: multiple of 16 (bf16 sublane). Prefer >= 2 grid steps so both
    # TensorCores get work on v7x; cap at tile_b (256) to fit v7x's 64 MiB VMEM.
    tile_b = min(tile_b, _round_up(pl.cdiv(max(B, 1), 2), 16))
    tile_b = max(tile_b, 16)
    b_pad = _round_up(max(B, 1), tile_b)
    if b_pad != B:
        x_flat = jnp.pad(x_flat, ((0, b_pad - B), (0, 0)))
    grid = (b_pad // tile_b,)

    # Advisory cost for XLA scheduling around the custom call.
    flops = 2 * b_pad * (k_in * BOTTLENECK + BOTTLENECK * FEAT_DIM + FEAT_DIM * NUM_CLASSES_PAD)
    bytes_accessed = (2 * (w_fused.size + w2.size + wc_pad.size)            # bf16 weights
                      + 4 * (b1.size + b2.size + bc_pad.size)               # f32 biases
                      + b_pad * (2 * k_in + 4 * NUM_CLASSES_PAD))           # streamed in/out
    cost = pl.CostEstimate(flops=flops, transcendentals=0, bytes_accessed=bytes_accessed)

    const2d = lambda i: (0, 0)

    def call(weight_pipeline_mode):
        extra = {} if weight_pipeline_mode is None else {"pipeline_mode": weight_pipeline_mode}
        wspec = lambda a: pl.BlockSpec(a.shape, const2d, **extra)           # resident weights
        return pl.pallas_call(
            _fused_kernel,
            out_shape=jax.ShapeDtypeStruct((b_pad, NUM_CLASSES_PAD), jnp.float32),
            grid=grid,
            in_specs=[
                pl.BlockSpec((tile_b, k_in), lambda i: (i, 0)),             # streamed x tile
                wspec(w_fused), wspec(b1), wspec(w2),
                wspec(b2), wspec(wc_pad), wspec(bc_pad),
            ],
            out_specs=pl.BlockSpec((tile_b, NUM_CLASSES_PAD), lambda i: (i, 0)),
            compiler_params=pltpu.CompilerParams(
                dimension_semantics=("parallel",),
                vmem_limit_bytes=32 << 20,
            ),
            cost_estimate=cost,
        )(x_flat, w_fused, b1, w2, b2, wc_pad, bc_pad)

    try:
        out = call(pl.Buffered(1))      # single-buffer the resident weights
    except Exception:
        out = call(None)                # fallback: default double-buffering
    return out[:B, :NUM_CLASSES]


def init_params(key):
    """Deterministic parameter init (shapes from BaselineAdapter100.__init__)."""
    ks = jax.random.split(key, 8)
    scale = lambda fan_in: 1.0 / jnp.sqrt(jnp.float32(fan_in))
    # Linear weights stored as [in, out] (transposed from PyTorch's [out, in]).
    w1 = jax.random.uniform(ks[0], (FEAT_DIM, BOTTLENECK), jnp.float32, -1, 1) * scale(FEAT_DIM)
    b1 = jax.random.uniform(ks[1], (1, BOTTLENECK), jnp.float32, -1, 1) * scale(FEAT_DIM)
    w2 = (jax.random.uniform(ks[2], (BOTTLENECK, FEAT_DIM), jnp.float32, -1, 1)
          * scale(BOTTLENECK)).astype(jnp.bfloat16)
    b2 = jax.random.uniform(ks[3], (1, FEAT_DIM), jnp.float32, -1, 1) * scale(BOTTLENECK)
    wc = jax.random.uniform(ks[4], (FEAT_DIM, NUM_CLASSES), jnp.float32, -1, 1) * scale(FEAT_DIM)
    bc = jax.random.uniform(ks[5], (1, NUM_CLASSES), jnp.float32, -1, 1) * scale(FEAT_DIM)
    # Lane-dense padding of the classifier (extra columns are exact zeros).
    wc_pad = (jnp.zeros((FEAT_DIM, NUM_CLASSES_PAD), jnp.float32)
              .at[:, :NUM_CLASSES].set(wc)).astype(jnp.bfloat16)
    bc_pad = jnp.zeros((1, NUM_CLASSES_PAD), jnp.float32).at[:, :NUM_CLASSES].set(bc)
    # TODO(synk): the real teacher model is external/unspecified; stubbed as a frozen
    # linear feature projector of the flattened input.
    w_teacher = jax.random.normal(ks[6], (IN_FLAT, FEAT_DIM), jnp.float32) * 0.02
    # Fold the frozen teacher projection into the first adapter layer (exact:
    # no nonlinearity between them). [1024, 2560] @ [2560, 128] -> [1024, 128].
    w_fused = jnp.dot(w_teacher, w1, preferred_element_type=jnp.float32).astype(jnp.bfloat16)
    return w_fused, b1, w2, b2, wc_pad, bc_pad


def reference_forward(x_nchw, w_fused, b1, w2, b2, wc_pad, bc_pad):
    """Plain-JAX reference mirroring the kernel numerics (bf16 operands, f32 accum)."""
    B = x_nchw.shape[0]
    x = x_nchw.reshape(B, -1).astype(jnp.bfloat16)
    h = jnp.maximum(jnp.dot(x, w_fused, preferred_element_type=jnp.float32) + b1, 0.0)
    a = jnp.maximum(jnp.dot(h.astype(jnp.bfloat16), w2,
                            preferred_element_type=jnp.float32) + b2, 0.0)
    out = jnp.dot(a.astype(jnp.bfloat16), wc_pad,
                  preferred_element_type=jnp.float32) + bc_pad
    return out[:, :NUM_CLASSES]


if __name__ == "__main__":
    key = jax.random.PRNGKey(0)
    k_params, k_x = jax.random.split(key)
    params = init_params(k_params)

    # Small NCHW input consistent with a conv teacher: [B=2, C=4, H=16, W=16].
    x = jax.random.normal(k_x, (2, 4, 16, 16), jnp.float32)

    logits = model_forward(x, *params)                                       # [2, 10]
    logits = jax.block_until_ready(logits)

    ref = reference_forward(x, *params)
    assert logits.shape == (2, NUM_CLASSES)
    assert jnp.allclose(logits, ref, rtol=1e-2, atol=1e-2), "mismatch vs reference"

    print("KERNEL_OK")
</pallas_src>

<mosaic_0001>
module attributes {stable_mosaic.version = 11 : i64} {
  func.func @_fused_kernel(%arg0: i32, %arg1: memref<16x1024xbf16, #tpu.memory_space<vmem>>, %arg2: memref<1024x128xbf16, #tpu.memory_space<vmem>>, %arg3: memref<1x128xf32, #tpu.memory_space<vmem>>, %arg4: memref<128x2560xbf16, #tpu.memory_space<vmem>>, %arg5: memref<1x2560xf32, #tpu.memory_space<vmem>>, %arg6: memref<2560x128xbf16, #tpu.memory_space<vmem>>, %arg7: memref<1x128xf32, #tpu.memory_space<vmem>>, %arg8: memref<16x128xf32, #tpu.memory_space<vmem>>) attributes {dimension_semantics = [#tpu.dimension_semantics<parallel>], iteration_bounds = array<i64: 1>, scalar_prefetch = 0 : i64, scratch_operands = 0 : i64, tpu.core_type = #tpu.core_type<tc>, window_params = [{transform_indices = @transform_0, window_bounds = array<i64: 16, 1024>}, {pipeline_mode = #tpu.pipeline_mode<synchronous>, transform_indices = @transform_1, window_bounds = array<i64: 1024, 128>}, {pipeline_mode = #tpu.pipeline_mode<synchronous>, transform_indices = @transform_2, window_bounds = array<i64: 1, 128>}, {pipeline_mode = #tpu.pipeline_mode<synchronous>, transform_indices = @transform_3, window_bounds = array<i64: 128, 2560>}, {pipeline_mode = #tpu.pipeline_mode<synchronous>, transform_indices = @transform_4, window_bounds = array<i64: 1, 2560>}, {pipeline_mode = #tpu.pipeline_mode<synchronous>, transform_indices = @transform_5, window_bounds = array<i64: 2560, 128>}, {pipeline_mode = #tpu.pipeline_mode<synchronous>, transform_indices = @transform_6, window_bounds = array<i64: 1, 128>}, {transform_indices = @transform_7, window_bounds = array<i64: 16, 128>}]} {
    %c0 = arith.constant 0 : index
    %c0_0 = arith.constant 0 : index
    %0 = vector.load %arg1[%c0, %c0_0] : memref<16x1024xbf16, #tpu.memory_space<vmem>>, vector<16x1024xbf16>
    %c0_1 = arith.constant 0 : index
    %c0_2 = arith.constant 0 : index
    %1 = vector.load %arg2[%c0_1, %c0_2] : memref<1024x128xbf16, #tpu.memory_space<vmem>>, vector<1024x128xbf16>
    %cst = arith.constant dense<0.000000e+00> : vector<16x128xf32>
    %2 = tpu.matmul %0, %1, %cst {dimension_numbers = #tpu.dot_dimension_numbers<[1], [0], [0], [1], [0, 0, 1, 1], [], []>} : vector<16x1024xbf16>, vector<1024x128xbf16>, vector<16x128xf32> -> vector<16x128xf32>
    %c0_3 = arith.constant 0 : index
    %c0_4 = arith.constant 0 : index
    %3 = vector.load %arg3[%c0_3, %c0_4] : memref<1x128xf32, #tpu.memory_space<vmem>>, vector<1x128xf32>
    %4 = vector.broadcast %3 : vector<1x128xf32> to vector<16x128xf32>
    %5 = arith.addf %2, %4 : vector<16x128xf32>
    %cst_5 = arith.constant 0.000000e+00 : f32
    %6 = vector.broadcast %cst_5 : f32 to vector<16x128xf32>
    %7 = arith.maximumf %5, %6 : vector<16x128xf32>
    %8 = arith.truncf %7 : vector<16x128xf32> to vector<16x128xbf16>
    %c0_6 = arith.constant 0 : index
    %c0_7 = arith.constant 0 : index
    %9 = vector.load %arg4[%c0_6, %c0_7] : memref<128x2560xbf16, #tpu.memory_space<vmem>>, vector<128x2560xbf16>
    %cst_8 = arith.constant dense<0.000000e+00> : vector<16x2560xf32>
    %10 = tpu.matmul %8, %9, %cst_8 {dimension_numbers = #tpu.dot_dimension_numbers<[1], [0], [0], [1], [0, 0, 1, 1], [], []>} : vector<16x128xbf16>, vector<128x2560xbf16>, vector<16x2560xf32> -> vector<16x2560xf32>
    %c0_9 = arith.constant 0 : index
    %c0_10 = arith.constant 0 : index
    %11 = vector.load %arg5[%c0_9, %c0_10] : memref<1x2560xf32, #tpu.memory_space<vmem>>, vector<1x2560xf32>
    %12 = vector.broadcast %11 : vector<1x2560xf32> to vector<16x2560xf32>
    %13 = arith.addf %10, %12 : vector<16x2560xf32>
    %cst_11 = arith.constant 0.000000e+00 : f32
    %14 = vector.broadcast %cst_11 : f32 to vector<16x2560xf32>
    %15 = arith.maximumf %13, %14 : vector<16x2560xf32>
    %16 = arith.truncf %15 : vector<16x2560xf32> to vector<16x2560xbf16>
    %c0_12 = arith.constant 0 : index
    %c0_13 = arith.constant 0 : index
    %17 = vector.load %arg6[%c0_12, %c0_13] : memref<2560x128xbf16, #tpu.memory_space<vmem>>, vector<2560x128xbf16>
    %cst_14 = arith.constant dense<0.000000e+00> : vector<16x128xf32>
    %18 = tpu.matmul %16, %17, %cst_14 {dimension_numbers = #tpu.dot_dimension_numbers<[1], [0], [0], [1], [0, 0, 1, 1], [], []>} : vector<16x2560xbf16>, vector<2560x128xbf16>, vector<16x128xf32> -> vector<16x128xf32>
    %c0_15 = arith.constant 0 : index
    %c0_16 = arith.constant 0 : index
    %19 = vector.load %arg7[%c0_15, %c0_16] : memref<1x128xf32, #tpu.memory_space<vmem>>, vector<1x128xf32>
    %20 = vector.broadcast %19 : vector<1x128xf32> to vector<16x128xf32>
    %21 = arith.addf %18, %20 : vector<16x128xf32>
    %c0_17 = arith.constant 0 : index
    %c0_18 = arith.constant 0 : index
    %22 = vector.load %arg8[%c0_17, %c0_18] : memref<16x128xf32, #tpu.memory_space<vmem>>, vector<16x128xf32>
    tpu.vector_store %arg8[%c0_17, %c0_18], %21 {strides = array<i32>} : memref<16x128xf32, #tpu.memory_space<vmem>>, vector<16x128xf32>,
    return
  }
  func.func @transform_0(%arg0: i32) -> (i32, i32) {
    %c0_i32 = arith.constant 0 : i32
    %c0_i32_0 = arith.constant 0 : i32
    return %arg0, %c0_i32 : i32, i32
  }
  func.func @transform_1(%arg0: i32) -> (i32, i32) {
    %c0_i32 = arith.constant 0 : i32
    %c0_i32_0 = arith.constant 0 : i32
    %c0_i32_1 = arith.constant 0 : i32
    return %c0_i32, %c0_i32_0 : i32, i32
  }
  func.func @transform_2(%arg0: i32) -> (i32, i32) {
    %c0_i32 = arith.constant 0 : i32
    %c0_i32_0 = arith.constant 0 : i32
    %c0_i32_1 = arith.constant 0 : i32
    return %c0_i32, %c0_i32_0 : i32, i32
  }
  func.func @transform_3(%arg0: i32) -> (i32, i32) {
    %c0_i32 = arith.constant 0 : i32
    %c0_i32_0 = arith.constant 0 : i32
    %c0_i32_1 = arith.constant 0 : i32
    return %c0_i32, %c0_i32_0 : i32, i32
  }
  func.func @transform_4(%arg0: i32) -> (i32, i32) {
    %c0_i32 = arith.constant 0 : i32
    %c0_i32_0 = arith.constant 0 : i32
    %c0_i32_1 = arith.constant 0 : i32
    return %c0_i32, %c0_i32_0 : i32, i32
  }
  func.func @transform_5(%arg0: i32) -> (i32, i32) {
    %c0_i32 = arith.constant 0 : i32
    %c0_i32_0 = arith.constant 0 : i32
    %c0_i32_1 = arith.constant 0 : i32
    return %c0_i32, %c0_i32_0 : i32, i32
  }
  func.func @transform_6(%arg0: i32) -> (i32, i32) {
    %c0_i32 = arith.constant 0 : i32
    %c0_i32_0 = arith.constant 0 : i32
    %c0_i32_1 = arith.constant 0 : i32
    return %c0_i32, %c0_i32_0 : i32, i32
  }
  func.func @transform_7(%arg0: i32) -> (i32, i32) {
    %c0_i32 = arith.constant 0 : i32
    %c0_i32_0 = arith.constant 0 : i32
    return %arg0, %c0_i32 : i32, i32
  }
}

module attributes {stable_mosaic.version = 11 : i64} {
  func.func @_fused_kernel(%arg0: i32, %arg1: memref<16x1024xbf16, #tpu.memory_space<vmem>>, %arg2: memref<1024x128xbf16, #tpu.memory_space<vmem>>, %arg3: memref<1x128xf32, #tpu.memory_space<vmem>>, %arg4: memref<128x2560xbf16, #tpu.memory_space<vmem>>, %arg5: memref<1x2560xf32, #tpu.memory_space<vmem>>, %arg6: memref<2560x128xbf16, #tpu.memory_space<vmem>>, %arg7: memref<1x128xf32, #tpu.memory_space<vmem>>, %arg8: memref<16x128xf32, #tpu.memory_space<vmem>>) attributes {dimension_semantics = [#tpu.dimension_semantics<parallel>], iteration_bounds = array<i64: 1>, scalar_prefetch = 0 : i64, scratch_operands = 0 : i64, tpu.core_type = #tpu.core_type<tc>, window_params = [{transform_indices = @transform_0, window_bounds = array<i64: 16, 1024>}, {pipeline_mode = #tpu.pipeline_mode<synchronous>, transform_indices = @transform_1, window_bounds = array<i64: 1024, 128>}, {pipeline_mode = #tpu.pipeline_mode<synchronous>, transform_indices = @transform_2, window_bounds = array<i64: 1, 128>}, {pipeline_mode = #tpu.pipeline_mode<synchronous>, transform_indices = @transform_3, window_bounds = array<i64: 128, 2560>}, {pipeline_mode = #tpu.pipeline_mode<synchronous>, transform_indices = @transform_4, window_bounds = array<i64: 1, 2560>}, {pipeline_mode = #tpu.pipeline_mode<synchronous>, transform_indices = @transform_5, window_bounds = array<i64: 2560, 128>}, {pipeline_mode = #tpu.pipeline_mode<synchronous>, transform_indices = @transform_6, window_bounds = array<i64: 1, 128>}, {transform_indices = @transform_7, window_bounds = array<i64: 16, 128>}]} {
    %c0 = arith.constant 0 : index
    %c0_0 = arith.constant 0 : index
    %0 = vector.load %arg1[%c0, %c0_0] : memref<16x1024xbf16, #tpu.memory_space<vmem>>, vector<16x1024xbf16>
    %c0_1 = arith.constant 0 : index
    %c0_2 = arith.constant 0 : index
    %1 = vector.load %arg2[%c0_1, %c0_2] : memref<1024x128xbf16, #tpu.memory_space<vmem>>, vector<1024x128xbf16>
    %cst = arith.constant dense<0.000000e+00> : vector<16x128xf32>
    %2 = tpu.matmul %0, %1, %cst {dimension_numbers = #tpu.dot_dimension_numbers<[1], [0], [0], [1], [0, 0, 1, 1], [], []>} : vector<16x1024xbf16>, vector<1024x128xbf16>, vector<16x128xf32> -> vector<16x128xf32>
    %c0_3 = arith.constant 0 : index
    %c0_4 = arith.constant 0 : index
    %3 = vector.load %arg3[%c0_3, %c0_4] : memref<1x128xf32, #tpu.memory_space<vmem>>, vector<1x128xf32>
    %4 = vector.broadcast %3 : vector<1x128xf32> to vector<16x128xf32>
    %5 = arith.addf %2, %4 : vector<16x128xf32>
    %cst_5 = arith.constant 0.000000e+00 : f32
    %6 = vector.broadcast %cst_5 : f32 to vector<16x128xf32>
    %7 = arith.maximumf %5, %6 : vector<16x128xf32>
    %8 = arith.truncf %7 : vector<16x128xf32> to vector<16x128xbf16>
    %c0_6 = arith.constant 0 : index
    %c0_7 = arith.constant 0 : index
    %9 = vector.load %arg4[%c0_6, %c0_7] : memref<128x2560xbf16, #tpu.memory_space<vmem>>, vector<128x2560xbf16>
    %cst_8 = arith.constant dense<0.000000e+00> : vector<16x2560xf32>
    %10 = tpu.matmul %8, %9, %cst_8 {dimension_numbers = #tpu.dot_dimension_numbers<[1], [0], [0], [1], [0, 0, 1, 1], [], []>} : vector<16x128xbf16>, vector<128x2560xbf16>, vector<16x2560xf32> -> vector<16x2560xf32>
    %c0_9 = arith.constant 0 : index
    %c0_10 = arith.constant 0 : index
    %11 = vector.load %arg5[%c0_9, %c0_10] : memref<1x2560xf32, #tpu.memory_space<vmem>>, vector<1x2560xf32>
    %12 = vector.broadcast %11 : vector<1x2560xf32> to vector<16x2560xf32>
    %13 = arith.addf %10, %12 : vector<16x2560xf32>
    %cst_11 = arith.constant 0.000000e+00 : f32
    %14 = vector.broadcast %cst_11 : f32 to vector<16x2560xf32>
    %15 = arith.maximumf %13, %14 : vector<16x2560xf32>
    %16 = arith.truncf %15 : vector<16x2560xf32> to vector<16x2560xbf16>
    %c0_12 = arith.constant 0 : index
    %c0_13 = arith.constant 0 : index
    %17 = vector.load %arg6[%c0_12, %c0_13] : memref<2560x128xbf16, #tpu.memory_space<vmem>>, vector<2560x128xbf16>
    %cst_14 = arith.constant dense<0.000000e+00> : vector<16x128xf32>
    %18 = tpu.matmul %16, %17, %cst_14 {dimension_numbers = #tpu.dot_dimension_numbers<[1], [0], [0], [1], [0, 0, 1, 1], [], []>} : vector<16x2560xbf16>, vector<2560x128xbf16>, vector<16x128xf32> -> vector<16x128xf32>
    %c0_15 = arith.constant 0 : index
    %c0_16 = arith.constant 0 : index
    %19 = vector.load %arg7[%c0_15, %c0_16] : memref<1x128xf32, #tpu.memory_space<vmem>>, vector<1x128xf32>
    %20 = vector.broadcast %19 : vector<1x128xf32> to vector<16x128xf32>
    %21 = arith.addf %18, %20 : vector<16x128xf32>
    %c0_17 = arith.constant 0 : index
    %c0_18 = arith.constant 0 : index
    %22 = vector.load %arg8[%c0_17, %c0_18] : memref<16x128xf32, #tpu.memory_space<vmem>>, vector<16x128xf32>
    tpu.vector_store %arg8[%c0_17, %c0_18], %21 {strides = array<i32>} : memref<16x128xf32, #tpu.memory_space<vmem>>, vector<16x128xf32>,
    return
  }
  func.func @transform_0(%arg0: i32) -> (i32, i32) {
    %c0_i32 = arith.constant 0 : i32
    %c0_i32_0 = arith.constant 0 : i32
    return %arg0, %c0_i32 : i32, i32
  }
  func.func @transform_1(%arg0: i32) -> (i32, i32) {
    %c0_i32 = arith.constant 0 : i32
    %c0_i32_0 = arith.constant 0 : i32
    %c0_i32_1 = arith.constant 0 : i32
    return %c0_i32, %c0_i32_0 : i32, i32
  }
  func.func @transform_2(%arg0: i32) -> (i32, i32) {
    %c0_i32 = arith.constant 0 : i32
    %c0_i32_0 = arith.constant 0 : i32
    %c0_i32_1 = arith.constant 0 : i32
    return %c0_i32, %c0_i32_0 : i32, i32
  }
  func.func @transform_3(%arg0: i32) -> (i32, i32) {
    %c0_i32 = arith.constant 0 : i32
    %c0_i32_0 = arith.constant 0 : i32
    %c0_i32_1 = arith.constant 0 : i32
    return %c0_i32, %c0_i32_0 : i32, i32
  }
  func.func @transform_4(%arg0: i32) -> (i32, i32) {
    %c0_i32 = arith.constant 0 : i32
    %c0_i32_0 = arith.constant 0 : i32
    %c0_i32_1 = arith.constant 0 : i32
    return %c0_i32, %c0_i32_0 : i32, i32
  }
  func.func @transform_5(%arg0: i32) -> (i32, i32) {
    %c0_i32 = arith.constant 0 : i32
    %c0_i32_0 = arith.constant 0 : i32
    %c0_i32_1 = arith.constant 0 : i32
    return %c0_i32, %c0_i32_0 : i32, i32
  }
  func.func @transform_6(%arg0: i32) -> (i32, i32) {
    %c0_i32 = arith.constant 0 : i32
    %c0_i32_0 = arith.constant 0 : i32
    %c0_i32_1 = arith.constant 0 : i32
    return %c0_i32, %c0_i32_0 : i32, i32
  }
  func.func @transform_7(%arg0: i32) -> (i32, i32) {
    %c0_i32 = arith.constant 0 : i32
    %c0_i32_0 = arith.constant 0 : i32
    return %arg0, %c0_i32 : i32, i32
  }
}

</mosaic_0001>

<llo_original>
// kernel: tpu_custom_call.1
$region0: #{tpu_custom_call.1}
  #allocation0 [shape = 'u32[]', space=smem, size = 0x4, offset = 0x4, fixed_abs, tag = 'smem constant byte address 0x4 - core index']
  #allocation1 [shape = 'u32[144,128]{1,0:T(1,128)}', space=vmem, size = 0x12000, scoped, tag = 'internal scratch']
  %s0 = inlined_call_operand.hbm [shape: bf16[16,1024], index: 0, kind: input, shape index: {}]
  %s1 = inlined_call_operand.hbm [shape: bf16[1024,128], index: 1, kind: input, shape index: {}]
  %s2 = inlined_call_operand.vmem [shape: f32[1,128], index: 2, kind: input, shape index: {}]
  %s3 = inlined_call_operand.hbm [shape: bf16[128,2560], index: 3, kind: input, shape index: {}]
  %s4 = inlined_call_operand.hbm [shape: f32[1,2560], index: 4, kind: input, shape index: {}]
  %s5 = inlined_call_operand.hbm [shape: bf16[2560,128], index: 5, kind: input, shape index: {}]
  %s6 = inlined_call_operand.vmem [shape: f32[1,128], index: 6, kind: input, shape index: {}]
  %s7 = inlined_call_operand.hbm [shape: f32[16,128], index: 7, kind: output, shape index: {}]
  %s8 = sld [smem:[#allocation0]]
  $region58: #{tpu_custom_call.1} parent=0
    _
  %s10 = ssub.s32 1, %s8
  %s11 = scalar_select 0, %s10, %s8
  $region1: #{tpu_custom_call.1} parent=0
    #allocation2 [shape = 'u8[32768]{0}', space=vmem, size = 0x8000, scoped, tag = 'input window, operand 0, single buffered']
    #allocation3 [shape = 's32[1]{0}', space=sflag, size = 0x4, scoped, tag = 'scoped memory for tpu_custom_call.1']
    #allocation4 [shape = 's32[1]{0}', space=sflag, size = 0x4, scoped, tag = 'scoped memory for tpu_custom_call.1']
    #allocation5 [shape = 'u8[262144]{0}', space=vmem, size = 0x40000, scoped, tag = 'input window, operand 1, single buffered']
    #allocation6 [shape = 's32[1]{0}', space=sflag, size = 0x4, scoped, tag = 'scoped memory for tpu_custom_call.1']
    #allocation7 [shape = 'u8[655360]{0}', space=vmem, size = 0xa0000, scoped, tag = 'input window, operand 3, single buffered']
    #allocation8 [shape = 'u8[10240]{0}', space=vmem, size = 0x2800, scoped, tag = 'input window, operand 4, single buffered']
    #allocation9 [shape = 's32[1]{0}', space=sflag, size = 0x4, scoped, tag = 'scoped memory for tpu_custom_call.1']
    #allocation10 [shape = 'u8[655360]{0}', space=vmem, size = 0xa0000, scoped, tag = 'input window, operand 5, single buffered']
    #allocation11 [shape = 'u8[8192]{0}', space=vmem, size = 0x2000, scoped, tag = 'output window, operand 0, single buffered']
    %12 = vsyncpa [#allocation3], 0
    %13 = vsyncpa [#allocation6], 0
    %14 = vsyncpa [#allocation9], 0
    %15 = vsyncpa [#allocation4], 0
    // Predicated region
    $region2: #{tpu_custom_call.1} parent=1 // pred_check
      _
    $region3: #{tpu_custom_call.1} parent=1 // pred_check_branch
      %17 = sbr.rel (0) target = $region5
    $region4: #{tpu_custom_call.1} parent=1 // pred_region
      %s19 = ssub.s32 1024, 1024
      %20 = vsyncadd [#allocation3], %s19
      %s21 = sshll.u32 [#allocation2], 4
      %s22 = int_to_ptr.vmem [resolvable:$true] %s21
      %27 = dma.hbm_to_vmem [thread:$0]  %s0, 1024, %s22, [#allocation3], 512, 512, 32
    $region5: #{tpu_custom_call.1} parent=1 // pred_fallthru
      _
    // Predicated region
    $region6: #{tpu_custom_call.1} parent=1 // pred_check
      _
    $region7: #{tpu_custom_call.1} parent=1 // pred_check_branch
      %29 = sbr.rel (0) target = $region9
    $region8: #{tpu_custom_call.1} parent=1 // pred_region
      %s31 = ssub.s32 8192, 8192
      %32 = vsyncadd [#allocation6], %s31
      %s33 = sshll.u32 [#allocation5], 4
      %s34 = int_to_ptr.vmem [resolvable:$true] %s33
      %39 = dma.hbm_to_vmem [thread:$0]  %s1, 8192, %s34, [#allocation6], 64, 64, 4
    $region9: #{tpu_custom_call.1} parent=1 // pred_fallthru
      _
    // Predicated region
    $region10: #{tpu_custom_call.1} parent=1 // pred_check
      _
    $region11: #{tpu_custom_call.1} parent=1 // pred_check_branch
      %41 = sbr.rel (0) target = $region13
    $region12: #{tpu_custom_call.1} parent=1 // pred_region
      _
    $region13: #{tpu_custom_call.1} parent=1 // pred_fallthru
      _
    // Predicated region
    $region14: #{tpu_custom_call.1} parent=1 // pred_check
      _
    $region15: #{tpu_custom_call.1} parent=1 // pred_check_branch
      %43 = sbr.rel (0) target = $region17
    $region16: #{tpu_custom_call.1} parent=1 // pred_region
      %s45 = ssub.s32 20480, 20480
      %46 = vsyncadd [#allocation6], %s45
      %s47 = sshll.u32 [#allocation7], 4
      %s48 = int_to_ptr.vmem [resolvable:$true] %s47
      %53 = dma.hbm_to_vmem [thread:$0]  %s3, 20480, %s48, [#allocation6], 1280, 1280, 80
    $region17: #{tpu_custom_call.1} parent=1 // pred_fallthru
      _
    // Predicated region
    $region18: #{tpu_custom_call.1} parent=1 // pred_check
      _
    $region19: #{tpu_custom_call.1} parent=1 // pred_check_branch
      %55 = sbr.rel (0) target = $region21
    $region20: #{tpu_custom_call.1} parent=1 // pred_region
      %s57 = ssub.s32 320, 320
      %58 = vsyncadd [#allocation9], %s57
      %s60 = sshll.u32 [#allocation8], 4
      %s61 = int_to_ptr.vmem [resolvable:$true] %s60
      %63 = dma.hbm_to_vmem [thread:$0]  %s4, 320, %s61, [#allocation9]
    $region21: #{tpu_custom_call.1} parent=1 // pred_fallthru
      _
    // Predicated region
    $region22: #{tpu_custom_call.1} parent=1 // pred_check
      _
    $region23: #{tpu_custom_call.1} parent=1 // pred_check_branch
      %65 = sbr.rel (0) target = $region25
    $region24: #{tpu_custom_call.1} parent=1 // pred_region
      %s67 = ssub.s32 20480, 20480
      %68 = vsyncadd [#allocation9], %s67
      %s69 = sshll.u32 [#allocation10], 4
      %s70 = int_to_ptr.vmem [resolvable:$true] %s69
      %75 = dma.hbm_to_vmem [thread:$0]  %s5, 20480, %s70, [#allocation9], 64, 64, 4
    $region25: #{tpu_custom_call.1} parent=1 // pred_fallthru
      _
    // Predicated region
    $region26: #{tpu_custom_call.1} parent=1 // pred_check
      _
    $region27: #{tpu_custom_call.1} parent=1 // pred_check_branch
      %77 = sbr.rel (0) target = $region29
    $region28: #{tpu_custom_call.1} parent=1 // pred_region
      _
    $region29: #{tpu_custom_call.1} parent=1 // pred_fallthru
      _
    // Predicated region
    $region30: #{tpu_custom_call.1} parent=1 // pred_check
      _
    $region31: #{tpu_custom_call.1} parent=1 // pred_check_branch
      %79 = sbr.rel (0) target = $region33
    $region32: #{tpu_custom_call.1} parent=1 // pred_region
      %80 = dma.done [#allocation3], 1024
    $region33: #{tpu_custom_call.1} parent=1 // pred_fallthru
      _
    // Predicated region
    $region34: #{tpu_custom_call.1} parent=1 // pred_check
      _
    $region35: #{tpu_custom_call.1} parent=1 // pred_check_branch
      %82 = sbr.rel (0) target = $region37
    $region36: #{tpu_custom_call.1} parent=1 // pred_region
      %83 = dma.done [#allocation6], 8192
    $region37: #{tpu_custom_call.1} parent=1 // pred_fallthru
      _
    // Predicated region
    $region38: #{tpu_custom_call.1} parent=1 // pred_check
      _
    $region39: #{tpu_custom_call.1} parent=1 // pred_check_branch
      %85 = sbr.rel (0) target = $region41
    $region40: #{tpu_custom_call.1} parent=1 // pred_region
      %86 = dma.done [#allocation6], 20480
    $region41: #{tpu_custom_call.1} parent=1 // pred_fallthru
      _
    // Predicated region
    $region42: #{tpu_custom_call.1} parent=1 // pred_check
      _
    $region43: #{tpu_custom_call.1} parent=1 // pred_check_branch
      %88 = sbr.rel (0) target = $region45
    $region44: #{tpu_custom_call.1} parent=1 // pred_region
      %89 = dma.done [#allocation9], 320
    $region45: #{tpu_custom_call.1} parent=1 // pred_fallthru
      _
    // Predicated region
    $region46: #{tpu_custom_call.1} parent=1 // pred_check
      _
    $region47: #{tpu_custom_call.1} parent=1 // pred_check_branch
      %91 = sbr.rel (0) target = $region49
    $region48: #{tpu_custom_call.1} parent=1 // pred_region
      %92 = dma.done [#allocation9], 20480
    $region49: #{tpu_custom_call.1} parent=1 // pred_fallthru
      _
    %v94 = vld [vmem:[#allocation2] sm:$0xff]
    %v95 = vld [vmem:[#allocation2 + $0x8] sm:$0xff]
    %v96 = vld [vmem:[#allocation2 + $0x10] sm:$0xff]
    %v97 = vld [vmem:[#allocation2 + $0x18] sm:$0xff]
    %v98 = vld [vmem:[#allocation2 + $0x20] sm:$0xff]
    %v99 = vld [vmem:[#allocation2 + $0x28] sm:$0xff]
    %v100 = vld [vmem:[#allocation2 + $0x30] sm:$0xff]
    %v101 = vld [vmem:[#allocation2 + $0x38] sm:$0xff]
    %v102 = vld [vmem:[#allocation5] sm:$0xf]
    %v103 = vld [vmem:[#allocation5 + $0x4] sm:$0xf]
    %v104 = vld [vmem:[#allocation5 + $0x8] sm:$0xf]
    %v105 = vld [vmem:[#allocation5 + $0xc] sm:$0xf]
    %v106 = vld [vmem:[#allocation5 + $0x10] sm:$0xf]
    %v107 = vld [vmem:[#allocation5 + $0x14] sm:$0xf]
    %v108 = vld [vmem:[#allocation5 + $0x18] sm:$0xf]
    %v109 = vld [vmem:[#allocation5 + $0x1c] sm:$0xf]
    %v110 = vld [vmem:[#allocation5 + $0x20] sm:$0xf]
    %v111 = vld [vmem:[#allocation5 + $0x24] sm:$0xf]
    %v112 = vld [vmem:[#allocation5 + $0x28] sm:$0xf]
    %v113 = vld [vmem:[#allocation5 + $0x2c] sm:$0xf]
    %v114 = vld [vmem:[#allocation5 + $0x30] sm:$0xf]
    %v115 = vld [vmem:[#allocation5 + $0x34] sm:$0xf]
    %v116 = vld [vmem:[#allocation5 + $0x38] sm:$0xf]
    %v117 = vld [vmem:[#allocation5 + $0x3c] sm:$0xf]
    %v118 = vld [vmem:[#allocation5 + $0x40] sm:$0xf]
    %v119 = vld [vmem:[#allocation5 + $0x44] sm:$0xf]
    %v120 = vld [vmem:[#allocation5 + $0x48] sm:$0xf]
    %v121 = vld [vmem:[#allocation5 + $0x4c] sm:$0xf]
    %v122 = vld [vmem:[#allocation5 + $0x50] sm:$0xf]
    %v123 = vld [vmem:[#allocation5 + $0x54] sm:$0xf]
    %v124 = vld [vmem:[#allocation5 + $0x58] sm:$0xf]
    %v125 = vld [vmem:[#allocation5 + $0x5c] sm:$0xf]
    %v126 = vld [vmem:[#allocation5 + $0x60] sm:$0xf]
    %v127 = vld [vmem:[#allocation5 + $0x64] sm:$0xf]
    %v128 = vld [vmem:[#allocation5 + $0x68] sm:$0xf]
    %v129 = vld [vmem:[#allocation5 + $0x6c] sm:$0xf]
    %v130 = vld [vmem:[#allocation5 + $0x70] sm:$0xf]
    %v131 = vld [vmem:[#allocation5 + $0x74] sm:$0xf]
    %v132 = vld [vmem:[#allocation5 + $0x78] sm:$0xf]
    %v133 = vld [vmem:[#allocation5 + $0x7c] sm:$0xf]
    %v134 = vld [vmem:[#allocation5 + $0x80] sm:$0xf]
    %v135 = vld [vmem:[#allocation5 + $0x84] sm:$0xf]
    %v136 = vld [vmem:[#allocation5 + $0x88] sm:$0xf]
    %v137 = vld [vmem:[#allocation5 + $0x8c] sm:$0xf]
    %v138 = vld [vmem:[#allocation5 + $0x90] sm:$0xf]
    %v139 = vld [vmem:[#allocation5 + $0x94] sm:$0xf]
    %v140 = vld [vmem:[#allocation5 + $0x98] sm:$0xf]
    %v141 = vld [vmem:[#allocation5 + $0x9c] sm:$0xf]
    %v142 = vld [vmem:[#allocation5 + $0xa0] sm:$0xf]
    %v143 = vld [vmem:[#allocation5 + $0xa4] sm:$0xf]
    %v144 = vld [vmem:[#allocation5 + $0xa8] sm:$0xf]
    %v145 = vld [vmem:[#allocation5 + $0xac] sm:$0xf]
    %v146 = vld [vmem:[#allocation5 + $0xb0] sm:$0xf]
    %v147 = vld [vmem:[#allocation5 + $0xb4] sm:$0xf]
    %v148 = vld [vmem:[#allocation5 + $0xb8] sm:$0xf]
    %v149 = vld [vmem:[#allocation5 + $0xbc] sm:$0xf]
    %v150 = vld [vmem:[#allocation5 + $0xc0] sm:$0xf]
    %v151 = vld [vmem:[#allocation5 + $0xc4] sm:$0xf]
    %v152 = vld [vmem:[#allocation5 + $0xc8] sm:$0xf]
    %v153 = vld [vmem:[#allocation5 + $0xcc] sm:$0xf]
    %v154 = vld [vmem:[#allocation5 + $0xd0] sm:$0xf]
    %v155 = vld [vmem:[#allocation5 + $0xd4] sm:$0xf]
    %v156 = vld [vmem:[#allocation5 + $0xd8] sm:$0xf]
    %v157 = vld [vmem:[#allocation5 + $0xdc] sm:$0xf]
    %v158 = vld [vmem:[#allocation5 + $0xe0] sm:$0xf]
    %v159 = vld [vmem:[#allocation5 + $0xe4] sm:$0xf]
    %v160 = vld [vmem:[#allocation5 + $0xe8] sm:$0xf]
    %v161 = vld [vmem:[#allocation5 + $0xec] sm:$0xf]
    %v162 = vld [vmem:[#allocation5 + $0xf0] sm:$0xf]
    %v163 = vld [vmem:[#allocation5 + $0xf4] sm:$0xf]
    %v164 = vld [vmem:[#allocation5 + $0xf8] sm:$0xf]
    %v165 = vld [vmem:[#allocation5 + $0xfc] sm:$0xf]
    %v166 = vld [vmem:[#allocation5 + $0x100] sm:$0xf]
    %v167 = vld [vmem:[#allocation5 + $0x104] sm:$0xf]
    %v168 = vld [vmem:[#allocation5 + $0x108] sm:$0xf]
    %v169 = vld [vmem:[#allocation5 + $0x10c] sm:$0xf]
    %v170 = vld [vmem:[#allocation5 + $0x110] sm:$0xf]
    %v171 = vld [vmem:[#allocation5 + $0x114] sm:$0xf]
    %v172 = vld [vmem:[#allocation5 + $0x118] sm:$0xf]
    %v173 = vld [vmem:[#allocation5 + $0x11c] sm:$0xf]
    %v174 = vld [vmem:[#allocation5 + $0x120] sm:$0xf]
    %v175 = vld [vmem:[#allocation5 + $0x124] sm:$0xf]
    %v176 = vld [vmem:[#allocation5 + $0x128] sm:$0xf]
    %v177 = vld [vmem:[#allocation5 + $0x12c] sm:$0xf]
    %v178 = vld [vmem:[#allocation5 + $0x130] sm:$0xf]
    %v179 = vld [vmem:[#allocation5 + $0x134] sm:$0xf]
    %v180 = vld [vmem:[#allocation5 + $0x138] sm:$0xf]
    %v181 = vld [vmem:[#allocation5 + $0x13c] sm:$0xf]
    %v182 = vld [vmem:[#allocation5 + $0x140] sm:$0xf]
    %v183 = vld [vmem:[#allocation5 + $0x144] sm:$0xf]
    %v184 = vld [vmem:[#allocation5 + $0x148] sm:$0xf]
    %v185 = vld [vmem:[#allocation5 + $0x14c] sm:$0xf]
    %v186 = vld [vmem:[#allocation5 + $0x150] sm:$0xf]
    %v187 = vld [vmem:[#allocation5 + $0x154] sm:$0xf]
    %v188 = vld [vmem:[#allocation5 + $0x158] sm:$0xf]
    %v189 = vld [vmem:[#allocation5 + $0x15c] sm:$0xf]
    %v190 = vld [vmem:[#allocation5 + $0x160] sm:$0xf]
    %v191 = vld [vmem:[#allocation5 + $0x164] sm:$0xf]
    %v192 = vld [vmem:[#allocation5 + $0x168] sm:$0xf]
    %v193 = vld [vmem:[#allocation5 + $0x16c] sm:$0xf]
    %v194 = vld [vmem:[#allocation5 + $0x170] sm:$0xf]
    %v195 = vld [vmem:[#allocation5 + $0x174] sm:$0xf]
    %v196 = vld [vmem:[#allocation5 + $0x178] sm:$0xf]
    %v197 = vld [vmem:[#allocation5 + $0x17c] sm:$0xf]
    %v198 = vld [vmem:[#allocation5 + $0x180] sm:$0xf]
    %v199 = vld [vmem:[#allocation5 + $0x184] sm:$0xf]
    %v200 = vld [vmem:[#allocation5 + $0x188] sm:$0xf]
    %v201 = vld [vmem:[#allocation5 + $0x18c] sm:$0xf]
    %v202 = vld [vmem:[#allocation5 + $0x190] sm:$0xf]
    %v203 = vld [vmem:[#allocation5 + $0x194] sm:$0xf]
    %v204 = vld [vmem:[#allocation5 + $0x198] sm:$0xf]
    %v205 = vld [vmem:[#allocation5 + $0x19c] sm:$0xf]
    %v206 = vld [vmem:[#allocation5 + $0x1a0] sm:$0xf]
    %v207 = vld [vmem:[#allocation5 + $0x1a4] sm:$0xf]
    %v208 = vld [vmem:[#allocation5 + $0x1a8] sm:$0xf]
    %v209 = vld [vmem:[#allocation5 + $0x1ac] sm:$0xf]
    %v210 = vld [vmem:[#allocation5 + $0x1b0] sm:$0xf]
    %v211 = vld [vmem:[#allocation5 + $0x1b4] sm:$0xf]
    %v212 = vld [vmem:[#allocation5 + $0x1b8] sm:$0xf]
    %v213 = vld [vmem:[#allocation5 + $0x1bc] sm:$0xf]
    %v214 = vld [vmem:[#allocation5 + $0x1c0] sm:$0xf]
    %v215 = vld [vmem:[#allocation5 + $0x1c4] sm:$0xf]
    %v216 = vld [vmem:[#allocation5 + $0x1c8] sm:$0xf]
    %v217 = vld [vmem:[#allocation5 + $0x1cc] sm:$0xf]
    %v218 = vld [vmem:[#allocation5 + $0x1d0] sm:$0xf]
    %v219 = vld [vmem:[#allocation5 + $0x1d4] sm:$0xf]
    %v220 = vld [vmem:[#allocation5 + $0x1d8] sm:$0xf]
    %v221 = vld [vmem:[#allocation5 + $0x1dc] sm:$0xf]
    %v222 = vld [vmem:[#allocation5 + $0x1e0] sm:$0xf]
    %v223 = vld [vmem:[#allocation5 + $0x1e4] sm:$0xf]
    %v224 = vld [vmem:[#allocation5 + $0x1e8] sm:$0xf]
    %v225 = vld [vmem:[#allocation5 + $0x1ec] sm:$0xf]
    %v226 = vld [vmem:[#allocation5 + $0x1f0] sm:$0xf]
    %v227 = vld [vmem:[#allocation5 + $0x1f4] sm:$0xf]
    %v228 = vld [vmem:[#allocation5 + $0x1f8] sm:$0xf]
    %v229 = vld [vmem:[#allocation5 + $0x1fc] sm:$0xf]
    %v230 = vld [vmem:[%s2] sm:$0x1]
    %v232 = vlaneseq
    %v233 = vshrl.u32 %v232, 7
    %v234 = vsub.s32 0, %v233
    %v235 = vrot.slane %v230, %v234
    %v245 = vunpack.c.l.b16 %v94
    %v246 = vunpack.c.h.b16 %v94
    %v247 = vunpack.c.l.b16 %v95
    %v248 = vunpack.c.h.b16 %v95
    %v249 = vunpack.c.l.b16 %v96
    %v250 = vunpack.c.h.b16 %v96
    %v251 = vunpack.c.l.b16 %v97
    %v252 = vunpack.c.h.b16 %v97
    %v253 = vunpack.c.l.b16 %v98
    %v254 = vunpack.c.h.b16 %v98
    %v255 = vunpack.c.l.b16 %v99
    %v256 = vunpack.c.h.b16 %v99
    %v257 = vunpack.c.l.b16 %v100
    %v258 = vunpack.c.h.b16 %v100
    %v259 = vunpack.c.l.b16 %v101
    %v260 = vunpack.c.h.b16 %v101
    %v261 = vpack.c.b16 %v253, %v245
    %v262 = vpack.c.b16 %v254, %v246
    %v263 = vpack.c.b16 %v255, %v247
    %v264 = vpack.c.b16 %v256, %v248
    %v265 = vpack.c.b16 %v257, %v249
    %v266 = vpack.c.b16 %v258, %v250
    %v267 = vpack.c.b16 %v259, %v251
    %v268 = vpack.c.b16 %v260, %v252
    %v405 = vunpack.c.l.b16 %v102
    %v406 = vunpack.c.l.b16 %v103
    %v407 = vunpack.c.l.b16 %v104
    %v408 = vunpack.c.l.b16 %v105
    %v409 = vunpack.c.l.b16 %v106
    %v410 = vunpack.c.l.b16 %v107
    %v411 = vunpack.c.l.b16 %v108
    %v412 = vunpack.c.l.b16 %v109
    %v413 = vunpack.c.l.b16 %v110
    %v414 = vunpack.c.l.b16 %v111
    %v415 = vunpack.c.l.b16 %v112
    %v416 = vunpack.c.l.b16 %v113
    %v417 = vunpack.c.l.b16 %v114
    %v418 = vunpack.c.l.b16 %v115
    %v419 = vunpack.c.l.b16 %v116
    %v420 = vunpack.c.l.b16 %v117
    %v421 = vunpack.c.l.b16 %v118
    %v422 = vunpack.c.l.b16 %v119
    %v423 = vunpack.c.l.b16 %v120
    %v424 = vunpack.c.l.b16 %v121
    %v425 = vunpack.c.l.b16 %v122
    %v426 = vunpack.c.l.b16 %v123
    %v427 = vunpack.c.l.b16 %v124
    %v428 = vunpack.c.l.b16 %v125
    %v429 = vunpack.c.l.b16 %v126
    %v430 = vunpack.c.l.b16 %v127
    %v431 = vunpack.c.l.b16 %v128
    %v432 = vunpack.c.l.b16 %v129
    %v433 = vunpack.c.l.b16 %v130
    %v434 = vunpack.c.l.b16 %v131
    %v435 = vunpack.c.l.b16 %v132
    %v436 = vunpack.c.l.b16 %v133
    %v437 = vunpack.c.l.b16 %v134
    %v438 = vunpack.c.l.b16 %v135
    %v439 = vunpack.c.l.b16 %v136
    %v440 = vunpack.c.l.b16 %v137
    %v441 = vunpack.c.l.b16 %v138
    %v442 = vunpack.c.l.b16 %v139
    %v443 = vunpack.c.l.b16 %v140
    %v444 = vunpack.c.l.b16 %v141
    %v445 = vunpack.c.l.b16 %v142
    %v446 = vunpack.c.l.b16 %v143
    %v447 = vunpack.c.l.b16 %v144
    %v448 = vunpack.c.l.b16 %v145
    %v449 = vunpack.c.l.b16 %v146
    %v450 = vunpack.c.l.b16 %v147
    %v451 = vunpack.c.l.b16 %v148
    %v452 = vunpack.c.l.b16 %v149
    %v453 = vunpack.c.l.b16 %v150
    %v454 = vunpack.c.l.b16 %v151
    %v455 = vunpack.c.l.b16 %v152
    %v456 = vunpack.c.l.b16 %v153
    %v457 = vunpack.c.l.b16 %v154
    %v458 = vunpack.c.l.b16 %v155
    %v459 = vunpack.c.l.b16 %v156
    %v460 = vunpack.c.l.b16 %v157
    %v461 = vunpack.c.l.b16 %v158
    %v462 = vunpack.c.l.b16 %v159
    %v463 = vunpack.c.l.b16 %v160
    %v464 = vunpack.c.l.b16 %v161
    %v465 = vunpack.c.l.b16 %v162
    %v466 = vunpack.c.l.b16 %v163
    %v467 = vunpack.c.l.b16 %v164
    %v468 = vunpack.c.l.b16 %v165
    %v469 = vunpack.c.l.b16 %v166
    %v470 = vunpack.c.l.b16 %v167
    %v471 = vunpack.c.l.b16 %v168
    %v472 = vunpack.c.l.b16 %v169
    %v473 = vunpack.c.l.b16 %v170
    %v474 = vunpack.c.l.b16 %v171
    %v475 = vunpack.c.l.b16 %v172
    %v476 = vunpack.c.l.b16 %v173
    %v477 = vunpack.c.l.b16 %v174
    %v478 = vunpack.c.l.b16 %v175
    %v479 = vunpack.c.l.b16 %v176
    %v480 = vunpack.c.l.b16 %v177
    %v481 = vunpack.c.l.b16 %v178
    %v482 = vunpack.c.l.b16 %v179
    %v483 = vunpack.c.l.b16 %v180
    %v484 = vunpack.c.l.b16 %v181
    %v485 = vunpack.c.l.b16 %v182
    %v486 = vunpack.c.l.b16 %v183
    %v487 = vunpack.c.l.b16 %v184
    %v488 = vunpack.c.l.b16 %v185
    %v489 = vunpack.c.l.b16 %v186
    %v490 = vunpack.c.l.b16 %v187
    %v491 = vunpack.c.l.b16 %v188
    %v492 = vunpack.c.l.b16 %v189
    %v493 = vunpack.c.l.b16 %v190
    %v494 = vunpack.c.l.b16 %v191
    %v495 = vunpack.c.l.b16 %v192
    %v496 = vunpack.c.l.b16 %v193
    %v497 = vunpack.c.l.b16 %v194
    %v498 = vunpack.c.l.b16 %v195
    %v499 = vunpack.c.l.b16 %v196
    %v500 = vunpack.c.l.b16 %v197
    %v501 = vunpack.c.l.b16 %v198
    %v502 = vunpack.c.l.b16 %v199
    %v503 = vunpack.c.l.b16 %v200
    %v504 = vunpack.c.l.b16 %v201
    %v505 = vunpack.c.l.b16 %v202
    %v506 = vunpack.c.l.b16 %v203
    %v507 = vunpack.c.l.b16 %v204
    %v508 = vunpack.c.l.b16 %v205
    %v509 = vunpack.c.l.b16 %v206
    %v510 = vunpack.c.l.b16 %v207
    %v511 = vunpack.c.l.b16 %v208
    %v512 = vunpack.c.l.b16 %v209
    %v513 = vunpack.c.l.b16 %v210
    %v514 = vunpack.c.l.b16 %v211
    %v515 = vunpack.c.l.b16 %v212
    %v516 = vunpack.c.l.b16 %v213
    %v517 = vunpack.c.l.b16 %v214
    %v518 = vunpack.c.l.b16 %v215
    %v519 = vunpack.c.l.b16 %v216
    %v520 = vunpack.c.l.b16 %v217
    %v521 = vunpack.c.l.b16 %v218
    %v522 = vunpack.c.l.b16 %v219
    %v523 = vunpack.c.l.b16 %v220
    %v524 = vunpack.c.l.b16 %v221
    %v525 = vunpack.c.l.b16 %v222
    %v526 = vunpack.c.l.b16 %v223
    %v527 = vunpack.c.l.b16 %v224
    %v528 = vunpack.c.l.b16 %v225
    %v529 = vunpack.c.l.b16 %v226
    %v530 = vunpack.c.l.b16 %v227
    %v531 = vunpack.c.l.b16 %v228
    %v532 = vunpack.c.l.b16 %v229
    %v533 = vpack.c.b16 %v406, %v405
    %v534 = vpack.c.b16 %v408, %v407
    %v535 = vpack.c.b16 %v410, %v409
    %v536 = vpack.c.b16 %v412, %v411
    %v537 = vpack.c.b16 %v414, %v413
    %v538 = vpack.c.b16 %v416, %v415
    %v539 = vpack.c.b16 %v418, %v417
    %v540 = vpack.c.b16 %v420, %v419
    %v541 = vpack.c.b16 %v422, %v421
    %v542 = vpack.c.b16 %v424, %v423
    %v543 = vpack.c.b16 %v426, %v425
    %v544 = vpack.c.b16 %v428, %v427
    %v545 = vpack.c.b16 %v430, %v429
    %v546 = vpack.c.b16 %v432, %v431
    %v547 = vpack.c.b16 %v434, %v433
    %v548 = vpack.c.b16 %v436, %v435
    %v549 = vpack.c.b16 %v438, %v437
    %v550 = vpack.c.b16 %v440, %v439
    %v551 = vpack.c.b16 %v442, %v441
    %v552 = vpack.c.b16 %v444, %v443
    %v553 = vpack.c.b16 %v446, %v445
    %v554 = vpack.c.b16 %v448, %v447
    %v555 = vpack.c.b16 %v450, %v449
    %v556 = vpack.c.b16 %v452, %v451
    %v557 = vpack.c.b16 %v454, %v453
    %v558 = vpack.c.b16 %v456, %v455
    %v559 = vpack.c.b16 %v458, %v457
    %v560 = vpack.c.b16 %v460, %v459
    %v561 = vpack.c.b16 %v462, %v461
    %v562 = vpack.c.b16 %v464, %v463
    %v563 = vpack.c.b16 %v466, %v465
    %v564 = vpack.c.b16 %v468, %v467
    %v565 = vpack.c.b16 %v470, %v469
    %v566 = vpack.c.b16 %v472, %v471
    %v567 = vpack.c.b16 %v474, %v473
    %v568 = vpack.c.b16 %v476, %v475
    %v569 = vpack.c.b16 %v478, %v477
    %v570 = vpack.c.b16 %v480, %v479
    %v571 = vpack.c.b16 %v482, %v481
    %v572 = vpack.c.b16 %v484, %v483
    %v573 = vpack.c.b16 %v486, %v485
    %v574 = vpack.c.b16 %v488, %v487
    %v575 = vpack.c.b16 %v490, %v489
    %v576 = vpack.c.b16 %v492, %v491
    %v577 = vpack.c.b16 %v494, %v493
    %v578 = vpack.c.b16 %v496, %v495
    %v579 = vpack.c.b16 %v498, %v497
    %v580 = vpack.c.b16 %v500, %v499
    %v581 = vpack.c.b16 %v502, %v501
    %v582 = vpack.c.b16 %v504, %v503
    %v583 = vpack.c.b16 %v506, %v505
    %v584 = vpack.c.b16 %v508, %v507
    %v585 = vpack.c.b16 %v510, %v509
    %v586 = vpack.c.b16 %v512, %v511
    %v587 = vpack.c.b16 %v514, %v513
    %v588 = vpack.c.b16 %v516, %v515
    %v589 = vpack.c.b16 %v518, %v517
    %v590 = vpack.c.b16 %v520, %v519
    %v591 = vpack.c.b16 %v522, %v521
    %v592 = vpack.c.b16 %v524, %v523
    %v593 = vpack.c.b16 %v526, %v525
    %v594 = vpack.c.b16 %v528, %v527
    %v595 = vpack.c.b16 %v530, %v529
    %v596 = vpack.c.b16 %v532, %v531
    %661 = vmatprep.subr.bf16.mxu0 0
    %662 = vmatpush1.bf16.msra.mxu0 %v533
    %663 = vmatprep.subr.bf16.mxu0 0
    %664 = vmatpush1.bf16.msra.mxu0 %v534
    %665 = vmatprep.subr.bf16.mxu0 0
    %666 = vmatpush1.bf16.msra.mxu0 %v535
    %667 = vmatprep.subr.bf16.mxu0 0
    %668 = vmatpush1.bf16.msra.mxu0 %v536
    %669 = vmatprep.subr.bf16.mxu0 0
    %670 = vmatpush1.bf16.msra.mxu0 %v537
    %671 = vmatprep.subr.bf16.mxu0 0
    %672 = vmatpush1.bf16.msra.mxu0 %v538
    %673 = vmatprep.subr.bf16.mxu0 0
    %674 = vmatpush1.bf16.msra.mxu0 %v539
    %675 = vmatprep.subr.bf16.mxu0 0
    %676 = vmatpush1.bf16.msra.mxu0 %v540
    %677 = vmatprep.subr.bf16.mxu0 0
    %678 = vmatpush1.bf16.msra.mxu0 %v541
    %679 = vmatprep.subr.bf16.mxu0 0
    %680 = vmatpush1.bf16.msra.mxu0 %v542
    %681 = vmatprep.subr.bf16.mxu0 0
    %682 = vmatpush1.bf16.msra.mxu0 %v543
    %683 = vmatprep.subr.bf16.mxu0 0
    %684 = vmatpush1.bf16.msra.mxu0 %v544
    %685 = vmatprep.subr.bf16.mxu0 0
    %686 = vmatpush1.bf16.msra.mxu0 %v545
    %687 = vmatprep.subr.bf16.mxu0 0
    %688 = vmatpush1.bf16.msra.mxu0 %v546
    %689 = vmatprep.subr.bf16.mxu0 0
    %690 = vmatpush1.bf16.msra.mxu0 %v547
    %691 = vmatprep.subr.bf16.mxu0 0
    %692 = vmatpush1.bf16.msra.mxu0 %v548
    %693 = vmatprep.mubr.bf16.mxu0 %v262
    %694 = vmatmul.mubr.bf16.gmra.mrb[0].mxu0 %v261
    %v695 = vpop.f32.mrb[0].mxu0
    %v696 = vadd.f32 %v235, %v695
    %v697 = vpop.f32.mrb[0].mxu0
    %v698 = vpop.f32.mrb[0].mxu0
    %v699 = vadd.f32 %v235, %v698
    %v700 = vpop.f32.mrb[0].mxu0
    %701 = vdwg.mxu0
    %702 = vmatprep.subr.bf16.mxu0 0
    %703 = vmatpush1.bf16.msra.mxu0 %v549
    %704 = vmatprep.subr.bf16.mxu0 0
    %705 = vmatpush1.bf16.msra.mxu0 %v550
    %706 = vmatprep.subr.bf16.mxu0 0
    %707 = vmatpush1.bf16.msra.mxu0 %v551
    %708 = vmatprep.subr.bf16.mxu0 0
    %709 = vmatpush1.bf16.msra.mxu0 %v552
    %710 = vmatprep.subr.bf16.mxu0 0
    %711 = vmatpush1.bf16.msra.mxu0 %v553
    %712 = vmatprep.subr.bf16.mxu0 0
    %713 = vmatpush1.bf16.msra.mxu0 %v554
    %714 = vmatprep.subr.bf16.mxu0 0
    %715 = vmatpush1.bf16.msra.mxu0 %v555
    %716 = vmatprep.subr.bf16.mxu0 0
    %717 = vmatpush1.bf16.msra.mxu0 %v556
    %718 = vmatprep.subr.bf16.mxu0 0
    %719 = vmatpush1.bf16.msra.mxu0 %v557
    %720 = vmatprep.subr.bf16.mxu0 0
    %721 = vmatpush1.bf16.msra.mxu0 %v558
    %722 = vmatprep.subr.bf16.mxu0 0
    %723 = vmatpush1.bf16.msra.mxu0 %v559
    %724 = vmatprep.subr.bf16.mxu0 0
    %725 = vmatpush1.bf16.msra.mxu0 %v560
    %726 = vmatprep.subr.bf16.mxu0 0
    %727 = vmatpush1.bf16.msra.mxu0 %v561
    %728 = vmatprep.subr.bf16.mxu0 0
    %729 = vmatpush1.bf16.msra.mxu0 %v562
    %730 = vmatprep.subr.bf16.mxu0 0
    %731 = vmatpush1.bf16.msra.mxu0 %v563
    %732 = vmatprep.subr.bf16.mxu0 0
    %733 = vmatpush1.bf16.msra.mxu0 %v564
    %734 = vmatprep.mubr.bf16.mxu0 %v264
    %735 = vmatmul.mubr.bf16.gmra.mrb[0].mxu0 %v263
    %v736 = vpop.f32.mrb[0].mxu0
    %v737 = vadd.f32 %v696, %v736
    %v738 = vpop.f32.mrb[0].mxu0
    %v739 = vpop.f32.mrb[0].mxu0
    %v740 = vadd.f32 %v699, %v739
    %v741 = vpop.f32.mrb[0].mxu0
    %742 = vdwg.mxu0
    %743 = vmatprep.subr.bf16.mxu0 0
    %744 = vmatpush1.bf16.msra.mxu0 %v565
    %745 = vmatprep.subr.bf16.mxu0 0
    %746 = vmatpush1.bf16.msra.mxu0 %v566
    %747 = vmatprep.subr.bf16.mxu0 0
    %748 = vmatpush1.bf16.msra.mxu0 %v567
    %749 = vmatprep.subr.bf16.mxu0 0
    %750 = vmatpush1.bf16.msra.mxu0 %v568
    %751 = vmatprep.subr.bf16.mxu0 0
    %752 = vmatpush1.bf16.msra.mxu0 %v569
    %753 = vmatprep.subr.bf16.mxu0 0
    %754 = vmatpush1.bf16.msra.mxu0 %v570
    %755 = vmatprep.subr.bf16.mxu0 0
    %756 = vmatpush1.bf16.msra.mxu0 %v571
    %757 = vmatprep.subr.bf16.mxu0 0
    %758 = vmatpush1.bf16.msra.mxu0 %v572
    %759 = vmatprep.subr.bf16.mxu0 0
    %760 = vmatpush1.bf16.msra.mxu0 %v573
    %761 = vmatprep.subr.bf16.mxu0 0
    %762 = vmatpush1.bf16.msra.mxu0 %v574
    %763 = vmatprep.subr.bf16.mxu0 0
    %764 = vmatpush1.bf16.msra.mxu0 %v575
    %765 = vmatprep.subr.bf16.mxu0 0
    %766 = vmatpush1.bf16.msra.mxu0 %v576
    %767 = vmatprep.subr.bf16.mxu0 0
    %768 = vmatpush1.bf16.msra.mxu0 %v577
    %769 = vmatprep.subr.bf16.mxu0 0
    %770 = vmatpush1.bf16.msra.mxu0 %v578
    %771 = vmatprep.subr.bf16.mxu0 0
    %772 = vmatpush1.bf16.msra.mxu0 %v579
    %773 = vmatprep.subr.bf16.mxu0 0
    %774 = vmatpush1.bf16.msra.mxu0 %v580
    %775 = vmatprep.mubr.bf16.mxu0 %v266
    %776 = vmatmul.mubr.bf16.gmra.mrb[0].mxu0 %v265
    %v777 = vpop.f32.mrb[0].mxu0
    %v778 = vadd.f32 %v737, %v777
    %v779 = vpop.f32.mrb[0].mxu0
    %v780 = vpop.f32.mrb[0].mxu0
    %v781 = vadd.f32 %v740, %v780
    %v782 = vpop.f32.mrb[0].mxu0
    %783 = vdwg.mxu0
    %784 = vmatprep.subr.bf16.mxu0 0
    %785 = vmatpush1.bf16.msra.mxu0 %v581
    %786 = vmatprep.subr.bf16.mxu0 0
    %787 = vmatpush1.bf16.msra.mxu0 %v582
    %788 = vmatprep.subr.bf16.mxu0 0
    %789 = vmatpush1.bf16.msra.mxu0 %v583
    %790 = vmatprep.subr.bf16.mxu0 0
    %791 = vmatpush1.bf16.msra.mxu0 %v584
    %792 = vmatprep.subr.bf16.mxu0 0
    %793 = vmatpush1.bf16.msra.mxu0 %v585
    %794 = vmatprep.subr.bf16.mxu0 0
    %795 = vmatpush1.bf16.msra.mxu0 %v586
    %796 = vmatprep.subr.bf16.mxu0 0
    %797 = vmatpush1.bf16.msra.mxu0 %v587
    %798 = vmatprep.subr.bf16.mxu0 0
    %799 = vmatpush1.bf16.msra.mxu0 %v588
    %800 = vmatprep.subr.bf16.mxu0 0
    %801 = vmatpush1.bf16.msra.mxu0 %v589
    %802 = vmatprep.subr.bf16.mxu0 0
    %803 = vmatpush1.bf16.msra.mxu0 %v590
    %804 = vmatprep.subr.bf16.mxu0 0
    %805 = vmatpush1.bf16.msra.mxu0 %v591
    %806 = vmatprep.subr.bf16.mxu0 0
    %807 = vmatpush1.bf16.msra.mxu0 %v592
    %808 = vmatprep.subr.bf16.mxu0 0
    %809 = vmatpush1.bf16.msra.mxu0 %v593
    %810 = vmatprep.subr.bf16.mxu0 0
    %811 = vmatpush1.bf16.msra.mxu0 %v594
    %812 = vmatprep.subr.bf16.mxu0 0
    %813 = vmatpush1.bf16.msra.mxu0 %v595
    %814 = vmatprep.subr.bf16.mxu0 0
    %815 = vmatpush1.bf16.msra.mxu0 %v596
    %816 = vmatprep.mubr.bf16.mxu0 %v268
    %817 = vmatmul.mubr.bf16.gmra.mrb[0].mxu0 %v267
    %v818 = vpop.f32.mrb[0].mxu0
    %v819 = vadd.f32 %v778, %v818
    %v820 = vpop.f32.mrb[0].mxu0
    %v821 = vpop.f32.mrb[0].mxu0
    %v822 = vadd.f32 %v781, %v821
    %v823 = vpop.f32.mrb[0].mxu0
    %824 = vdwg.mxu0
    %v825 = vmax.f32 %v819, 0.0
    %v826 = vmax.f32 %v822, 0.0
    %v827 = vpack.c.bf16 %v826, %v825
    %v828 = vld [vmem:[#allocation7] sm:$0xff]
    %v829 = vld [vmem:[#allocation7 + $0x8] sm:$0xff]
    %v830 = vld [vmem:[#allocation7 + $0x10] sm:$0xff]
    %v831 = vld [vmem:[#allocation7 + $0x18] sm:$0xff]
    %v832 = vld [vmem:[#allocation7 + $0x20] sm:$0xff]
    %v833 = vld [vmem:[#allocation7 + $0x28] sm:$0xff]
    %v834 = vld [vmem:[#allocation7 + $0x30] sm:$0xff]
    %v835 = vld [vmem:[#allocation7 + $0x38] sm:$0xff]
    %v836 = vld [vmem:[#allocation7 + $0x40] sm:$0xff]
    %v837 = vld [vmem:[#allocation7 + $0x48] sm:$0xff]
    %v838 = vld [vmem:[#allocation7 + $0x50] sm:$0xff]
    %v839 = vld [vmem:[#allocation7 + $0x58] sm:$0xff]
    %v840 = vld [vmem:[#allocation7 + $0x60] sm:$0xff]
    %v841 = vld [vmem:[#allocation7 + $0x68] sm:$0xff]
    %v842 = vld [vmem:[#allocation7 + $0x70] sm:$0xff]
    %v843 = vld [vmem:[#allocation7 + $0x78] sm:$0xff]
    %v844 = vld [vmem:[#allocation7 + $0x80] sm:$0xff]
    %v845 = vld [vmem:[#allocation7 + $0x88] sm:$0xff]
    %v846 = vld [vmem:[#allocation7 + $0x90] sm:$0xff]
    %v847 = vld [vmem:[#allocation7 + $0x98] sm:$0xff]
    %v848 = vld [vmem:[#allocation7 + $0xa0] sm:$0xff]
    %v849 = vld [vmem:[#allocation7 + $0xa8] sm:$0xff]
    %v850 = vld [vmem:[#allocation7 + $0xb0] sm:$0xff]
    %v851 = vld [vmem:[#allocation7 + $0xb8] sm:$0xff]
    %v852 = vld [vmem:[#allocation7 + $0xc0] sm:$0xff]
    %v853 = vld [vmem:[#allocation7 + $0xc8] sm:$0xff]
    %v854 = vld [vmem:[#allocation7 + $0xd0] sm:$0xff]
    %v855 = vld [vmem:[#allocation7 + $0xd8] sm:$0xff]
    %v856 = vld [vmem:[#allocation7 + $0xe0] sm:$0xff]
    %v857 = vld [vmem:[#allocation7 + $0xe8] sm:$0xff]
    %v858 = vld [vmem:[#allocation7 + $0xf0] sm:$0xff]
    %v859 = vld [vmem:[#allocation7 + $0xf8] sm:$0xff]
    %v860 = vld [vmem:[#allocation7 + $0x100] sm:$0xff]
    %v861 = vld [vmem:[#allocation7 + $0x108] sm:$0xff]
    %v862 = vld [vmem:[#allocation7 + $0x110] sm:$0xff]
    %v863 = vld [vmem:[#allocation7 + $0x118] sm:$0xff]
    %v864 = vld [vmem:[#allocation7 + $0x120] sm:$0xff]
    %v865 = vld [vmem:[#allocation7 + $0x128] sm:$0xff]
    %v866 = vld [vmem:[#allocation7 + $0x130] sm:$0xff]
    %v867 = vld [vmem:[#allocation7 + $0x138] sm:$0xff]
    %v868 = vld [vmem:[#allocation7 + $0x140] sm:$0xff]
    %v869 = vld [vmem:[#allocation7 + $0x148] sm:$0xff]
    %v870 = vld [vmem:[#allocation7 + $0x150] sm:$0xff]
    %v871 = vld [vmem:[#allocation7 + $0x158] sm:$0xff]
    %v872 = vld [vmem:[#allocation7 + $0x160] sm:$0xff]
    %v873 = vld [vmem:[#allocation7 + $0x168] sm:$0xff]
    %v874 = vld [vmem:[#allocation7 + $0x170] sm:$0xff]
    %v875 = vld [vmem:[#allocation7 + $0x178] sm:$0xff]
    %v876 = vld [vmem:[#allocation7 + $0x180] sm:$0xff]
    %v877 = vld [vmem:[#allocation7 + $0x188] sm:$0xff]
    %v878 = vld [vmem:[#allocation7 + $0x190] sm:$0xff]
    %v879 = vld [vmem:[#allocation7 + $0x198] sm:$0xff]
    %v880 = vld [vmem:[#allocation7 + $0x1a0] sm:$0xff]
    %v881 = vld [vmem:[#allocation7 + $0x1a8] sm:$0xff]
    %v882 = vld [vmem:[#allocation7 + $0x1b0] sm:$0xff]
    %v883 = vld [vmem:[#allocation7 + $0x1b8] sm:$0xff]
    %v884 = vld [vmem:[#allocation7 + $0x1c0] sm:$0xff]
    %v885 = vld [vmem:[#allocation7 + $0x1c8] sm:$0xff]
    %v886 = vld [vmem:[#allocation7 + $0x1d0] sm:$0xff]
    %v887 = vld [vmem:[#allocation7 + $0x1d8] sm:$0xff]
    %v888 = vld [vmem:[#allocation7 + $0x1e0] sm:$0xff]
    %v889 = vld [vmem:[#allocation7 + $0x1e8] sm:$0xff]
    %v890 = vld [vmem:[#allocation7 + $0x1f0] sm:$0xff]
    %v891 = vld [vmem:[#allocation7 + $0x1f8] sm:$0xff]
    %v892 = vld [vmem:[#allocation7 + $0x200] sm:$0xff]
    %v893 = vld [vmem:[#allocation7 + $0x208] sm:$0xff]
    %v894 = vld [vmem:[#allocation7 + $0x210] sm:$0xff]
    %v895 = vld [vmem:[#allocation7 + $0x218] sm:$0xff]
    %v896 = vld [vmem:[#allocation7 + $0x220] sm:$0xff]
    %v897 = vld [vmem:[#allocation7 + $0x228] sm:$0xff]
    %v898 = vld [vmem:[#allocation7 + $0x230] sm:$0xff]
    %v899 = vld [vmem:[#allocation7 + $0x238] sm:$0xff]
    %v900 = vld [vmem:[#allocation7 + $0x240] sm:$0xff]
    %v901 = vld [vmem:[#allocation7 + $0x248] sm:$0xff]
    %v902 = vld [vmem:[#allocation7 + $0x250] sm:$0xff]
    %v903 = vld [vmem:[#allocation7 + $0x258] sm:$0xff]
    %v904 = vld [vmem:[#allocation7 + $0x260] sm:$0xff]
    %v905 = vld [vmem:[#allocation7 + $0x268] sm:$0xff]
    %v906 = vld [vmem:[#allocation7 + $0x270] sm:$0xff]
    %v907 = vld [vmem:[#allocation7 + $0x278] sm:$0xff]
    %v908 = vld [vmem:[#allocation7 + $0x280] sm:$0xff]
    %v909 = vld [vmem:[#allocation7 + $0x288] sm:$0xff]
    %v910 = vld [vmem:[#allocation7 + $0x290] sm:$0xff]
    %v911 = vld [vmem:[#allocation7 + $0x298] sm:$0xff]
    %v912 = vld [vmem:[#allocation7 + $0x2a0] sm:$0xff]
    %v913 = vld [vmem:[#allocation7 + $0x2a8] sm:$0xff]
    %v914 = vld [vmem:[#allocation7 + $0x2b0] sm:$0xff]
    %v915 = vld [vmem:[#allocation7 + $0x2b8] sm:$0xff]
    %v916 = vld [vmem:[#allocation7 + $0x2c0] sm:$0xff]
    %v917 = vld [vmem:[#allocation7 + $0x2c8] sm:$0xff]
    %v918 = vld [vmem:[#allocation7 + $0x2d0] sm:$0xff]
    %v919 = vld [vmem:[#allocation7 + $0x2d8] sm:$0xff]
    %v920 = vld [vmem:[#allocation7 + $0x2e0] sm:$0xff]
    %v921 = vld [vmem:[#allocation7 + $0x2e8] sm:$0xff]
    %v922 = vld [vmem:[#allocation7 + $0x2f0] sm:$0xff]
    %v923 = vld [vmem:[#allocation7 + $0x2f8] sm:$0xff]
    %v924 = vld [vmem:[#allocation7 + $0x300] sm:$0xff]
    %v925 = vld [vmem:[#allocation7 + $0x308] sm:$0xff]
    %v926 = vld [vmem:[#allocation7 + $0x310] sm:$0xff]
    %v927 = vld [vmem:[#allocation7 + $0x318] sm:$0xff]
    %v928 = vld [vmem:[#allocation7 + $0x320] sm:$0xff]
    %v929 = vld [vmem:[#allocation7 + $0x328] sm:$0xff]
    %v930 = vld [vmem:[#allocation7 + $0x330] sm:$0xff]
    %v931 = vld [vmem:[#allocation7 + $0x338] sm:$0xff]
    %v932 = vld [vmem:[#allocation7 + $0x340] sm:$0xff]
    %v933 = vld [vmem:[#allocation7 + $0x348] sm:$0xff]
    %v934 = vld [vmem:[#allocation7 + $0x350] sm:$0xff]
    %v935 = vld [vmem:[#allocation7 + $0x358] sm:$0xff]
    %v936 = vld [vmem:[#allocation7 + $0x360] sm:$0xff]
    %v937 = vld [vmem:[#allocation7 + $0x368] sm:$0xff]
    %v938 = vld [vmem:[#allocation7 + $0x370] sm:$0xff]
    %v939 = vld [vmem:[#allocation7 + $0x378] sm:$0xff]
    %v940 = vld [vmem:[#allocation7 + $0x380] sm:$0xff]
    %v941 = vld [vmem:[#allocation7 + $0x388] sm:$0xff]
    %v942 = vld [vmem:[#allocation7 + $0x390] sm:$0xff]
    %v943 = vld [vmem:[#allocation7 + $0x398] sm:$0xff]
    %v944 = vld [vmem:[#allocation7 + $0x3a0] sm:$0xff]
    %v945 = vld [vmem:[#allocation7 + $0x3a8] sm:$0xff]
    %v946 = vld [vmem:[#allocation7 + $0x3b0] sm:$0xff]
    %v947 = vld [vmem:[#allocation7 + $0x3b8] sm:$0xff]
    %v948 = vld [vmem:[#allocation7 + $0x3c0] sm:$0xff]
    %v949 = vld [vmem:[#allocation7 + $0x3c8] sm:$0xff]
    %v950 = vld [vmem:[#allocation7 + $0x3d0] sm:$0xff]
    %v951 = vld [vmem:[#allocation7 + $0x3d8] sm:$0xff]
    %v952 = vld [vmem:[#allocation7 + $0x3e0] sm:$0xff]
    %v953 = vld [vmem:[#allocation7 + $0x3e8] sm:$0xff]
    %v954 = vld [vmem:[#allocation7 + $0x3f0] sm:$0xff]
    %v955 = vld [vmem:[#allocation7 + $0x3f8] sm:$0xff]
    %v956 = vld [vmem:[#allocation7 + $0x400] sm:$0xff]
    %v957 = vld [vmem:[#allocation7 + $0x408] sm:$0xff]
    %v958 = vld [vmem:[#allocation7 + $0x410] sm:$0xff]
    %v959 = vld [vmem:[#allocation7 + $0x418] sm:$0xff]
    %v960 = vld [vmem:[#allocation7 + $0x420] sm:$0xff]
    %v961 = vld [vmem:[#allocation7 + $0x428] sm:$0xff]
    %v962 = vld [vmem:[#allocation7 + $0x430] sm:$0xff]
    %v963 = vld [vmem:[#allocation7 + $0x438] sm:$0xff]
    %v964 = vld [vmem:[#allocation7 + $0x440] sm:$0xff]
    %v965 = vld [vmem:[#allocation7 + $0x448] sm:$0xff]
    %v966 = vld [vmem:[#allocation7 + $0x450] sm:$0xff]
    %v967 = vld [vmem:[#allocation7 + $0x458] sm:$0xff]
    %v968 = vld [vmem:[#allocation7 + $0x460] sm:$0xff]
    %v969 = vld [vmem:[#allocation7 + $0x468] sm:$0xff]
    %v970 = vld [vmem:[#allocation7 + $0x470] sm:$0xff]
    %v971 = vld [vmem:[#allocation7 + $0x478] sm:$0xff]
    %v972 = vld [vmem:[#allocation7 + $0x480] sm:$0xff]
    %v973 = vld [vmem:[#allocation7 + $0x488] sm:$0xff]
    %v974 = vld [vmem:[#allocation7 + $0x490] sm:$0xff]
    %v975 = vld [vmem:[#allocation7 + $0x498] sm:$0xff]
    %v976 = vld [vmem:[#allocation7 + $0x4a0] sm:$0xff]
    %v977 = vld [vmem:[#allocation7 + $0x4a8] sm:$0xff]
    %v978 = vld [vmem:[#allocation7 + $0x4b0] sm:$0xff]
    %v979 = vld [vmem:[#allocation7 + $0x4b8] sm:$0xff]
    %v980 = vld [vmem:[#allocation7 + $0x4c0] sm:$0xff]
    %v981 = vld [vmem:[#allocation7 + $0x4c8] sm:$0xff]
    %v982 = vld [vmem:[#allocation7 + $0x4d0] sm:$0xff]
    %v983 = vld [vmem:[#allocation7 + $0x4d8] sm:$0xff]
    %v984 = vld [vmem:[#allocation7 + $0x4e0] sm:$0xff]
    %v985 = vld [vmem:[#allocation7 + $0x4e8] sm:$0xff]
    %v986 = vld [vmem:[#allocation7 + $0x4f0] sm:$0xff]
    %v987 = vld [vmem:[#allocation7 + $0x4f8] sm:$0xff]
    %v988 = vld [vmem:[#allocation8] sm:$0xff]
    %v989 = vld [vmem:[#allocation8 + $0x8] sm:$0xff]
    %v990 = vld [vmem:[#allocation8 + $0x10] sm:$0xf]
    %v994 = vlaneseq
    %v995 = vshrl.u32 %v994, 7
    %v996 = vsub.s32 0, %v995
    %v997 = vrot.slane %v988, %v996
    %v998 = vlaneseq
    %v999 = vshrl.u32 %v998, 7
    %v1000 = vsub.s32 1, %v999
    %v1001 = vrot.slane %v988, %v1000
    %v1002 = vlaneseq
    %v1003 = vshrl.u32 %v1002, 7
    %v1004 = vsub.s32 2, %v1003
    %v1005 = vrot.slane %v988, %v1004
    %v1006 = vlaneseq
    %v1007 = vshrl.u32 %v1006, 7
    %v1008 = vsub.s32 3, %v1007
    %v1009 = vrot.slane %v988, %v1008
    %v1010 = vlaneseq
    %v1011 = vshrl.u32 %v1010, 7
    %v1012 = vsub.s32 4, %v1011
    %v1013 = vrot.slane %v988, %v1012
    %v1014 = vlaneseq
    %v1015 = vshrl.u32 %v1014, 7
    %v1016 = vsub.s32 5, %v1015
    %v1017 = vrot.slane %v988, %v1016
    %v1018 = vlaneseq
    %v1019 = vshrl.u32 %v1018, 7
    %v1020 = vsub.s32 6, %v1019
    %v1021 = vrot.slane %v988, %v1020
    %v1022 = vlaneseq
    %v1023 = vshrl.u32 %v1022, 7
    %v1024 = vsub.s32 7, %v1023
    %v1025 = vrot.slane %v988, %v1024
    %v1026 = vlaneseq
    %v1027 = vshrl.u32 %v1026, 7
    %v1028 = vsub.s32 0, %v1027
    %v1029 = vrot.slane %v989, %v1028
    %v1030 = vlaneseq
    %v1031 = vshrl.u32 %v1030, 7
    %v1032 = vsub.s32 1, %v1031
    %v1033 = vrot.slane %v989, %v1032
    %v1034 = vlaneseq
    %v1035 = vshrl.u32 %v1034, 7
    %v1036 = vsub.s32 2, %v1035
    %v1037 = vrot.slane %v989, %v1036
    %v1038 = vlaneseq
    %v1039 = vshrl.u32 %v1038, 7
    %v1040 = vsub.s32 3, %v1039
    %v1041 = vrot.slane %v989, %v1040
    %v1042 = vlaneseq
    %v1043 = vshrl.u32 %v1042, 7
    %v1044 = vsub.s32 4, %v1043
    %v1045 = vrot.slane %v989, %v1044
    %v1046 = vlaneseq
    %v1047 = vshrl.u32 %v1046, 7
    %v1048 = vsub.s32 5, %v1047
    %v1049 = vrot.slane %v989, %v1048
    %v1050 = vlaneseq
    %v1051 = vshrl.u32 %v1050, 7
    %v1052 = vsub.s32 6, %v1051
    %v1053 = vrot.slane %v989, %v1052
    %v1054 = vlaneseq
    %v1055 = vshrl.u32 %v1054, 7
    %v1056 = vsub.s32 7, %v1055
    %v1057 = vrot.slane %v989, %v1056
    %v1058 = vlaneseq
    %v1059 = vshrl.u32 %v1058, 7
    %v1060 = vsub.s32 0, %v1059
    %v1061 = vrot.slane %v990, %v1060
    %v1062 = vlaneseq
    %v1063 = vshrl.u32 %v1062, 7
    %v1064 = vsub.s32 1, %v1063
    %v1065 = vrot.slane %v990, %v1064
    %v1066 = vlaneseq
    %v1067 = vshrl.u32 %v1066, 7
    %v1068 = vsub.s32 2, %v1067
    %v1069 = vrot.slane %v990, %v1068
    %v1070 = vlaneseq
    %v1071 = vshrl.u32 %v1070, 7
    %v1072 = vsub.s32 3, %v1071
    %v1073 = vrot.slane %v990, %v1072
    %v1254 = vunpack.c.l.b16 %v828
    %v1255 = vunpack.c.h.b16 %v828
    %v1256 = vunpack.c.l.b16 %v829
    %v1257 = vunpack.c.h.b16 %v829
    %v1258 = vunpack.c.l.b16 %v830
    %v1259 = vunpack.c.h.b16 %v830
    %v1260 = vunpack.c.l.b16 %v831
    %v1261 = vunpack.c.h.b16 %v831
    %v1262 = vunpack.c.l.b16 %v832
    %v1263 = vunpack.c.h.b16 %v832
    %v1264 = vunpack.c.l.b16 %v833
    %v1265 = vunpack.c.h.b16 %v833
    %v1266 = vunpack.c.l.b16 %v834
    %v1267 = vunpack.c.h.b16 %v834
    %v1268 = vunpack.c.l.b16 %v835
    %v1269 = vunpack.c.h.b16 %v835
    %v1270 = vunpack.c.l.b16 %v836
    %v1271 = vunpack.c.h.b16 %v836
    %v1272 = vunpack.c.l.b16 %v837
    %v1273 = vunpack.c.h.b16 %v837
    %v1274 = vunpack.c.l.b16 %v838
    %v1275 = vunpack.c.h.b16 %v838
    %v1276 = vunpack.c.l.b16 %v839
    %v1277 = vunpack.c.h.b16 %v839
    %v1278 = vunpack.c.l.b16 %v840
    %v1279 = vunpack.c.h.b16 %v840
    %v1280 = vunpack.c.l.b16 %v841
    %v1281 = vunpack.c.h.b16 %v841
    %v1282 = vunpack.c.l.b16 %v842
    %v1283 = vunpack.c.h.b16 %v842
    %v1284 = vunpack.c.l.b16 %v843
    %v1285 = vunpack.c.h.b16 %v843
    %v1286 = vunpack.c.l.b16 %v844
    %v1287 = vunpack.c.h.b16 %v844
    %v1288 = vunpack.c.l.b16 %v845
    %v1289 = vunpack.c.h.b16 %v845
    %v1290 = vunpack.c.l.b16 %v846
    %v1291 = vunpack.c.h.b16 %v846
    %v1292 = vunpack.c.l.b16 %v847
    %v1293 = vunpack.c.h.b16 %v847
    %v1294 = vunpack.c.l.b16 %v848
    %v1295 = vunpack.c.h.b16 %v848
    %v1296 = vunpack.c.l.b16 %v849
    %v1297 = vunpack.c.h.b16 %v849
    %v1298 = vunpack.c.l.b16 %v850
    %v1299 = vunpack.c.h.b16 %v850
    %v1300 = vunpack.c.l.b16 %v851
    %v1301 = vunpack.c.h.b16 %v851
    %v1302 = vunpack.c.l.b16 %v852
    %v1303 = vunpack.c.h.b16 %v852
    %v1304 = vunpack.c.l.b16 %v853
    %v1305 = vunpack.c.h.b16 %v853
    %v1306 = vunpack.c.l.b16 %v854
    %v1307 = vunpack.c.h.b16 %v854
    %v1308 = vunpack.c.l.b16 %v855
    %v1309 = vunpack.c.h.b16 %v855
    %v1310 = vunpack.c.l.b16 %v856
    %v1311 = vunpack.c.h.b16 %v856
    %v1312 = vunpack.c.l.b16 %v857
    %v1313 = vunpack.c.h.b16 %v857
    %v1314 = vunpack.c.l.b16 %v858
    %v1315 = vunpack.c.h.b16 %v858
    %v1316 = vunpack.c.l.b16 %v859
    %v1317 = vunpack.c.h.b16 %v859
    %v1318 = vunpack.c.l.b16 %v860
    %v1319 = vunpack.c.h.b16 %v860
    %v1320 = vunpack.c.l.b16 %v861
    %v1321 = vunpack.c.h.b16 %v861
    %v1322 = vunpack.c.l.b16 %v862
    %v1323 = vunpack.c.h.b16 %v862
    %v1324 = vunpack.c.l.b16 %v863
    %v1325 = vunpack.c.h.b16 %v863
    %v1326 = vunpack.c.l.b16 %v864
    %v1327 = vunpack.c.h.b16 %v864
    %v1328 = vunpack.c.l.b16 %v865
    %v1329 = vunpack.c.h.b16 %v865
    %v1330 = vunpack.c.l.b16 %v866
    %v1331 = vunpack.c.h.b16 %v866
    %v1332 = vunpack.c.l.b16 %v867
    %v1333 = vunpack.c.h.b16 %v867
    %v1334 = vunpack.c.l.b16 %v868
    %v1335 = vunpack.c.h.b16 %v868
    %v1336 = vunpack.c.l.b16 %v869
    %v1337 = vunpack.c.h.b16 %v869
    %v1338 = vunpack.c.l.b16 %v870
    %v1339 = vunpack.c.h.b16 %v870
    %v1340 = vunpack.c.l.b16 %v871
    %v1341 = vunpack.c.h.b16 %v871
    %v1342 = vunpack.c.l.b16 %v872
    %v1343 = vunpack.c.h.b16 %v872
    %v1344 = vunpack.c.l.b16 %v873
    %v1345 = vunpack.c.h.b16 %v873
    %v1346 = vunpack.c.l.b16 %v874
    %v1347 = vunpack.c.h.b16 %v874
    %v1348 = vunpack.c.l.b16 %v875
    %v1349 = vunpack.c.h.b16 %v875
    %v1350 = vunpack.c.l.b16 %v876
    %v1351 = vunpack.c.h.b16 %v876
    %v1352 = vunpack.c.l.b16 %v877
    %v1353 = vunpack.c.h.b16 %v877
    %v1354 = vunpack.c.l.b16 %v878
    %v1355 = vunpack.c.h.b16 %v878
    %v1356 = vunpack.c.l.b16 %v879
    %v1357 = vunpack.c.h.b16 %v879
    %v1358 = vunpack.c.l.b16 %v880
    %v1359 = vunpack.c.h.b16 %v880
    %v1360 = vunpack.c.l.b16 %v881
    %v1361 = vunpack.c.h.b16 %v881
    %v1362 = vunpack.c.l.b16 %v882
    %v1363 = vunpack.c.h.b16 %v882
    %v1364 = vunpack.c.l.b16 %v883
    %v1365 = vunpack.c.h.b16 %v883
    %v1366 = vunpack.c.l.b16 %v884
    %v1367 = vunpack.c.h.b16 %v884
    %v1368 = vunpack.c.l.b16 %v885
    %v1369 = vunpack.c.h.b16 %v885
    %v1370 = vunpack.c.l.b16 %v886
    %v1371 = vunpack.c.h.b16 %v886
    %v1372 = vunpack.c.l.b16 %v887
    %v1373 = vunpack.c.h.b16 %v887
    %v1374 = vunpack.c.l.b16 %v888
    %v1375 = vunpack.c.h.b16 %v888
    %v1376 = vunpack.c.l.b16 %v889
    %v1377 = vunpack.c.h.b16 %v889
    %v1378 = vunpack.c.l.b16 %v890
    %v1379 = vunpack.c.h.b16 %v890
    %v1380 = vunpack.c.l.b16 %v891
    %v1381 = vunpack.c.h.b16 %v891
    %v1382 = vunpack.c.l.b16 %v892
    %v1383 = vunpack.c.h.b16 %v892
    %v1384 = vunpack.c.l.b16 %v893
    %v1385 = vunpack.c.h.b16 %v893
    %v1386 = vunpack.c.l.b16 %v894
    %v1387 = vunpack.c.h.b16 %v894
    %v1388 = vunpack.c.l.b16 %v895
    %v1389 = vunpack.c.h.b16 %v895
    %v1390 = vunpack.c.l.b16 %v896
    %v1391 = vunpack.c.h.b16 %v896
    %v1392 = vunpack.c.l.b16 %v897
    %v1393 = vunpack.c.h.b16 %v897
    %v1394 = vunpack.c.l.b16 %v898
    %v1395 = vunpack.c.h.b16 %v898
    %v1396 = vunpack.c.l.b16 %v899
    %v1397 = vunpack.c.h.b16 %v899
    %v1398 = vunpack.c.l.b16 %v900
    %v1399 = vunpack.c.h.b16 %v900
    %v1400 = vunpack.c.l.b16 %v901
    %v1401 = vunpack.c.h.b16 %v901
    %v1402 = vunpack.c.l.b16 %v902
    %v1403 = vunpack.c.h.b16 %v902
    %v1404 = vunpack.c.l.b16 %v903
    %v1405 = vunpack.c.h.b16 %v903
    %v1406 = vunpack.c.l.b16 %v904
    %v1407 = vunpack.c.h.b16 %v904
    %v1408 = vunpack.c.l.b16 %v905
    %v1409 = vunpack.c.h.b16 %v905
    %v1410 = vunpack.c.l.b16 %v906
    %v1411 = vunpack.c.h.b16 %v906
    %v1412 = vunpack.c.l.b16 %v907
    %v1413 = vunpack.c.h.b16 %v907
    %v1414 = vunpack.c.l.b16 %v908
    %v1415 = vunpack.c.h.b16 %v908
    %v1416 = vunpack.c.l.b16 %v909
    %v1417 = vunpack.c.h.b16 %v909
    %v1418 = vunpack.c.l.b16 %v910
    %v1419 = vunpack.c.h.b16 %v910
    %v1420 = vunpack.c.l.b16 %v911
    %v1421 = vunpack.c.h.b16 %v911
    %v1422 = vunpack.c.l.b16 %v912
    %v1423 = vunpack.c.h.b16 %v912
    %v1424 = vunpack.c.l.b16 %v913
    %v1425 = vunpack.c.h.b16 %v913
    %v1426 = vunpack.c.l.b16 %v914
    %v1427 = vunpack.c.h.b16 %v914
    %v1428 = vunpack.c.l.b16 %v915
    %v1429 = vunpack.c.h.b16 %v915
    %v1430 = vunpack.c.l.b16 %v916
    %v1431 = vunpack.c.h.b16 %v916
    %v1432 = vunpack.c.l.b16 %v917
    %v1433 = vunpack.c.h.b16 %v917
    %v1434 = vunpack.c.l.b16 %v918
    %v1435 = vunpack.c.h.b16 %v918
    %v1436 = vunpack.c.l.b16 %v919
    %v1437 = vunpack.c.h.b16 %v919
    %v1438 = vunpack.c.l.b16 %v920
    %v1439 = vunpack.c.h.b16 %v920
    %v1440 = vunpack.c.l.b16 %v921
    %v1441 = vunpack.c.h.b16 %v921
    %v1442 = vunpack.c.l.b16 %v922
    %v1443 = vunpack.c.h.b16 %v922
    %v1444 = vunpack.c.l.b16 %v923
    %v1445 = vunpack.c.h.b16 %v923
    %v1446 = vunpack.c.l.b16 %v924
    %v1447 = vunpack.c.h.b16 %v924
    %v1448 = vunpack.c.l.b16 %v925
    %v1449 = vunpack.c.h.b16 %v925
    %v1450 = vunpack.c.l.b16 %v926
    %v1451 = vunpack.c.h.b16 %v926
    %v1452 = vunpack.c.l.b16 %v927
    %v1453 = vunpack.c.h.b16 %v927
    %v1454 = vunpack.c.l.b16 %v928
    %v1455 = vunpack.c.h.b16 %v928
    %v1456 = vunpack.c.l.b16 %v929
    %v1457 = vunpack.c.h.b16 %v929
    %v1458 = vunpack.c.l.b16 %v930
    %v1459 = vunpack.c.h.b16 %v930
    %v1460 = vunpack.c.l.b16 %v931
    %v1461 = vunpack.c.h.b16 %v931
    %v1462 = vunpack.c.l.b16 %v932
    %v1463 = vunpack.c.h.b16 %v932
    %v1464 = vunpack.c.l.b16 %v933
    %v1465 = vunpack.c.h.b16 %v933
    %v1466 = vunpack.c.l.b16 %v934
    %v1467 = vunpack.c.h.b16 %v934
    %v1468 = vunpack.c.l.b16 %v935
    %v1469 = vunpack.c.h.b16 %v935
    %v1470 = vunpack.c.l.b16 %v936
    %v1471 = vunpack.c.h.b16 %v936
    %v1472 = vunpack.c.l.b16 %v937
    %v1473 = vunpack.c.h.b16 %v937
    %v1474 = vunpack.c.l.b16 %v938
    %v1475 = vunpack.c.h.b16 %v938
    %v1476 = vunpack.c.l.b16 %v939
    %v1477 = vunpack.c.h.b16 %v939
    %v1478 = vunpack.c.l.b16 %v940
    %v1479 = vunpack.c.h.b16 %v940
    %v1480 = vunpack.c.l.b16 %v941
    %v1481 = vunpack.c.h.b16 %v941
    %v1482 = vunpack.c.l.b16 %v942
    %v1483 = vunpack.c.h.b16 %v942
    %v1484 = vunpack.c.l.b16 %v943
    %v1485 = vunpack.c.h.b16 %v943
    %v1486 = vunpack.c.l.b16 %v944
    %v1487 = vunpack.c.h.b16 %v944
    %v1488 = vunpack.c.l.b16 %v945
    %v1489 = vunpack.c.h.b16 %v945
    %v1490 = vunpack.c.l.b16 %v946
    %v1491 = vunpack.c.h.b16 %v946
    %v1492 = vunpack.c.l.b16 %v947
    %v1493 = vunpack.c.h.b16 %v947
    %v1494 = vunpack.c.l.b16 %v948
    %v1495 = vunpack.c.h.b16 %v948
    %v1496 = vunpack.c.l.b16 %v949
    %v1497 = vunpack.c.h.b16 %v949
    %v1498 = vunpack.c.l.b16 %v950
    %v1499 = vunpack.c.h.b16 %v950
    %v1500 = vunpack.c.l.b16 %v951
    %v1501 = vunpack.c.h.b16 %v951
    %v1502 = vunpack.c.l.b16 %v952
    %v1503 = vunpack.c.h.b16 %v952
    %v1504 = vunpack.c.l.b16 %v953
    %v1505 = vunpack.c.h.b16 %v953
    %v1506 = vunpack.c.l.b16 %v954
    %v1507 = vunpack.c.h.b16 %v954
    %v1508 = vunpack.c.l.b16 %v955
    %v1509 = vunpack.c.h.b16 %v955
    %v1510 = vunpack.c.l.b16 %v956
    %v1511 = vunpack.c.h.b16 %v956
    %v1512 = vunpack.c.l.b16 %v957
    %v1513 = vunpack.c.h.b16 %v957
    %v1514 = vunpack.c.l.b16 %v958
    %v1515 = vunpack.c.h.b16 %v958
    %v1516 = vunpack.c.l.b16 %v959
    %v1517 = vunpack.c.h.b16 %v959
    %v1518 = vunpack.c.l.b16 %v960
    %v1519 = vunpack.c.h.b16 %v960
    %v1520 = vunpack.c.l.b16 %v961
    %v1521 = vunpack.c.h.b16 %v961
    %v1522 = vunpack.c.l.b16 %v962
    %v1523 = vunpack.c.h.b16 %v962
    %v1524 = vunpack.c.l.b16 %v963
    %v1525 = vunpack.c.h.b16 %v963
    %v1526 = vunpack.c.l.b16 %v964
    %v1527 = vunpack.c.h.b16 %v964
    %v1528 = vunpack.c.l.b16 %v965
    %v1529 = vunpack.c.h.b16 %v965
    %v1530 = vunpack.c.l.b16 %v966
    %v1531 = vunpack.c.h.b16 %v966
    %v1532 = vunpack.c.l.b16 %v967
    %v1533 = vunpack.c.h.b16 %v967
    %v1534 = vunpack.c.l.b16 %v968
    %v1535 = vunpack.c.h.b16 %v968
    %v1536 = vunpack.c.l.b16 %v969
    %v1537 = vunpack.c.h.b16 %v969
    %v1538 = vunpack.c.l.b16 %v970
    %v1539 = vunpack.c.h.b16 %v970
    %v1540 = vunpack.c.l.b16 %v971
    %v1541 = vunpack.c.h.b16 %v971
    %v1542 = vunpack.c.l.b16 %v972
    %v1543 = vunpack.c.h.b16 %v972
    %v1544 = vunpack.c.l.b16 %v973
    %v1545 = vunpack.c.h.b16 %v973
    %v1546 = vunpack.c.l.b16 %v974
    %v1547 = vunpack.c.h.b16 %v974
    %v1548 = vunpack.c.l.b16 %v975
    %v1549 = vunpack.c.h.b16 %v975
    %v1550 = vunpack.c.l.b16 %v976
    %v1551 = vunpack.c.h.b16 %v976
    %v1552 = vunpack.c.l.b16 %v977
    %v1553 = vunpack.c.h.b16 %v977
    %v1554 = vunpack.c.l.b16 %v978
    %v1555 = vunpack.c.h.b16 %v978
    %v1556 = vunpack.c.l.b16 %v979
    %v1557 = vunpack.c.h.b16 %v979
    %v1558 = vunpack.c.l.b16 %v980
    %v1559 = vunpack.c.h.b16 %v980
    %v1560 = vunpack.c.l.b16 %v981
    %v1561 = vunpack.c.h.b16 %v981
    %v1562 = vunpack.c.l.b16 %v982
    %v1563 = vunpack.c.h.b16 %v982
    %v1564 = vunpack.c.l.b16 %v983
    %v1565 = vunpack.c.h.b16 %v983
    %v1566 = vunpack.c.l.b16 %v984
    %v1567 = vunpack.c.h.b16 %v984
    %v1568 = vunpack.c.l.b16 %v985
    %v1569 = vunpack.c.h.b16 %v985
    %v1570 = vunpack.c.l.b16 %v986
    %v1571 = vunpack.c.h.b16 %v986
    %v1572 = vunpack.c.l.b16 %v987
    %v1573 = vunpack.c.h.b16 %v987
    %v1574 = vpack.c.b16 %v1274, %v1254
    %v1575 = vpack.c.b16 %v1275, %v1255
    %v1576 = vpack.c.b16 %v1276, %v1256
    %v1577 = vpack.c.b16 %v1277, %v1257
    %v1578 = vpack.c.b16 %v1278, %v1258
    %v1579 = vpack.c.b16 %v1279, %v1259
    %v1580 = vpack.c.b16 %v1280, %v1260
    %v1581 = vpack.c.b16 %v1281, %v1261
    %v1582 = vpack.c.b16 %v1282, %v1262
    %v1583 = vpack.c.b16 %v1283, %v1263
    %v1584 = vpack.c.b16 %v1284, %v1264
    %v1585 = vpack.c.b16 %v1285, %v1265
    %v1586 = vpack.c.b16 %v1286, %v1266
    %v1587 = vpack.c.b16 %v1287, %v1267
    %v1588 = vpack.c.b16 %v1288, %v1268
    %v1589 = vpack.c.b16 %v1289, %v1269
    %v1590 = vpack.c.b16 %v1290, %v1270
    %v1591 = vpack.c.b16 %v1291, %v1271
    %v1592 = vpack.c.b16 %v1292, %v1272
    %v1593 = vpack.c.b16 %v1293, %v1273
    %v1594 = vpack.c.b16 %v1314, %v1294
    %v1595 = vpack.c.b16 %v1315, %v1295
    %v1596 = vpack.c.b16 %v1316, %v1296
    %v1597 = vpack.c.b16 %v1317, %v1297
    %v1598 = vpack.c.b16 %v1318, %v1298
    %v1599 = vpack.c.b16 %v1319, %v1299
    %v1600 = vpack.c.b16 %v1320, %v1300
    %v1601 = vpack.c.b16 %v1321, %v1301
    %v1602 = vpack.c.b16 %v1322, %v1302
    %v1603 = vpack.c.b16 %v1323, %v1303
    %v1604 = vpack.c.b16 %v1324, %v1304
    %v1605 = vpack.c.b16 %v1325, %v1305
    %v1606 = vpack.c.b16 %v1326, %v1306
    %v1607 = vpack.c.b16 %v1327, %v1307
    %v1608 = vpack.c.b16 %v1328, %v1308
    %v1609 = vpack.c.b16 %v1329, %v1309
    %v1610 = vpack.c.b16 %v1330, %v1310
    %v1611 = vpack.c.b16 %v1331, %v1311
    %v1612 = vpack.c.b16 %v1332, %v1312
    %v1613 = vpack.c.b16 %v1333, %v1313
    %v1614 = vpack.c.b16 %v1354, %v1334
    %v1615 = vpack.c.b16 %v1355, %v1335
    %v1616 = vpack.c.b16 %v1356, %v1336
    %v1617 = vpack.c.b16 %v1357, %v1337
    %v1618 = vpack.c.b16 %v1358, %v1338
    %v1619 = vpack.c.b16 %v1359, %v1339
    %v1620 = vpack.c.b16 %v1360, %v1340
    %v1621 = vpack.c.b16 %v1361, %v1341
    %v1622 = vpack.c.b16 %v1362, %v1342
    %v1623 = vpack.c.b16 %v1363, %v1343
    %v1624 = vpack.c.b16 %v1364, %v1344
    %v1625 = vpack.c.b16 %v1365, %v1345
    %v1626 = vpack.c.b16 %v1366, %v1346
    %v1627 = vpack.c.b16 %v1367, %v1347
    %v1628 = vpack.c.b16 %v1368, %v1348
    %v1629 = vpack.c.b16 %v1369, %v1349
    %v1630 = vpack.c.b16 %v1370, %v1350
    %v1631 = vpack.c.b16 %v1371, %v1351
    %v1632 = vpack.c.b16 %v1372, %v1352
    %v1633 = vpack.c.b16 %v1373, %v1353
    %v1634 = vpack.c.b16 %v1394, %v1374
    %v1635 = vpack.c.b16 %v1395, %v1375
    %v1636 = vpack.c.b16 %v1396, %v1376
    %v1637 = vpack.c.b16 %v1397, %v1377
    %v1638 = vpack.c.b16 %v1398, %v1378
    %v1639 = vpack.c.b16 %v1399, %v1379
    %v1640 = vpack.c.b16 %v1400, %v1380
    %v1641 = vpack.c.b16 %v1401, %v1381
    %v1642 = vpack.c.b16 %v1402, %v1382
    %v1643 = vpack.c.b16 %v1403, %v1383
    %v1644 = vpack.c.b16 %v1404, %v1384
    %v1645 = vpack.c.b16 %v1405, %v1385
    %v1646 = vpack.c.b16 %v1406, %v1386
    %v1647 = vpack.c.b16 %v1407, %v1387
    %v1648 = vpack.c.b16 %v1408, %v1388
    %v1649 = vpack.c.b16 %v1409, %v1389
    %v1650 = vpack.c.b16 %v1410, %v1390
    %v1651 = vpack.c.b16 %v1411, %v1391
    %v1652 = vpack.c.b16 %v1412, %v1392
    %v1653 = vpack.c.b16 %v1413, %v1393
    %v1654 = vpack.c.b16 %v1434, %v1414
    %v1655 = vpack.c.b16 %v1435, %v1415
    %v1656 = vpack.c.b16 %v1436, %v1416
    %v1657 = vpack.c.b16 %v1437, %v1417
    %v1658 = vpack.c.b16 %v1438, %v1418
    %v1659 = vpack.c.b16 %v1439, %v1419
    %v1660 = vpack.c.b16 %v1440, %v1420
    %v1661 = vpack.c.b16 %v1441, %v1421
    %v1662 = vpack.c.b16 %v1442, %v1422
    %v1663 = vpack.c.b16 %v1443, %v1423
    %v1664 = vpack.c.b16 %v1444, %v1424
    %v1665 = vpack.c.b16 %v1445, %v1425
    %v1666 = vpack.c.b16 %v1446, %v1426
    %v1667 = vpack.c.b16 %v1447, %v1427
    %v1668 = vpack.c.b16 %v1448, %v1428
    %v1669 = vpack.c.b16 %v1449, %v1429
    %v1670 = vpack.c.b16 %v1450, %v1430
    %v1671 = vpack.c.b16 %v1451, %v1431
    %v1672 = vpack.c.b16 %v1452, %v1432
    %v1673 = vpack.c.b16 %v1453, %v1433
    %v1674 = vpack.c.b16 %v1474, %v1454
    %v1675 = vpack.c.b16 %v1475, %v1455
    %v1676 = vpack.c.b16 %v1476, %v1456
    %v1677 = vpack.c.b16 %v1477, %v1457
    %v1678 = vpack.c.b16 %v1478, %v1458
    %v1679 = vpack.c.b16 %v1479, %v1459
    %v1680 = vpack.c.b16 %v1480, %v1460
    %v1681 = vpack.c.b16 %v1481, %v1461
    %v1682 = vpack.c.b16 %v1482, %v1462
    %v1683 = vpack.c.b16 %v1483, %v1463
    %v1684 = vpack.c.b16 %v1484, %v1464
    %v1685 = vpack.c.b16 %v1485, %v1465
    %v1686 = vpack.c.b16 %v1486, %v1466
    %v1687 = vpack.c.b16 %v1487, %v1467
    %v1688 = vpack.c.b16 %v1488, %v1468
    %v1689 = vpack.c.b16 %v1489, %v1469
    %v1690 = vpack.c.b16 %v1490, %v1470
    %v1691 = vpack.c.b16 %v1491, %v1471
    %v1692 = vpack.c.b16 %v1492, %v1472
    %v1693 = vpack.c.b16 %v1493, %v1473
    %v1694 = vpack.c.b16 %v1514, %v1494
    %v1695 = vpack.c.b16 %v1515, %v1495
    %v1696 = vpack.c.b16 %v1516, %v1496
    %v1697 = vpack.c.b16 %v1517, %v1497
    %v1698 = vpack.c.b16 %v1518, %v1498
    %v1699 = vpack.c.b16 %v1519, %v1499
    %v1700 = vpack.c.b16 %v1520, %v1500
    %v1701 = vpack.c.b16 %v1521, %v1501
    %v1702 = vpack.c.b16 %v1522, %v1502
    %v1703 = vpack.c.b16 %v1523, %v1503
    %v1704 = vpack.c.b16 %v1524, %v1504
    %v1705 = vpack.c.b16 %v1525, %v1505
    %v1706 = vpack.c.b16 %v1526, %v1506
    %v1707 = vpack.c.b16 %v1527, %v1507
    %v1708 = vpack.c.b16 %v1528, %v1508
    %v1709 = vpack.c.b16 %v1529, %v1509
    %v1710 = vpack.c.b16 %v1530, %v1510
    %v1711 = vpack.c.b16 %v1531, %v1511
    %v1712 = vpack.c.b16 %v1532, %v1512
    %v1713 = vpack.c.b16 %v1533, %v1513
    %v1714 = vpack.c.b16 %v1554, %v1534
    %v1715 = vpack.c.b16 %v1555, %v1535
    %v1716 = vpack.c.b16 %v1556, %v1536
    %v1717 = vpack.c.b16 %v1557, %v1537
    %v1718 = vpack.c.b16 %v1558, %v1538
    %v1719 = vpack.c.b16 %v1559, %v1539
    %v1720 = vpack.c.b16 %v1560, %v1540
    %v1721 = vpack.c.b16 %v1561, %v1541
    %v1722 = vpack.c.b16 %v1562, %v1542
    %v1723 = vpack.c.b16 %v1563, %v1543
    %v1724 = vpack.c.b16 %v1564, %v1544
    %v1725 = vpack.c.b16 %v1565, %v1545
    %v1726 = vpack.c.b16 %v1566, %v1546
    %v1727 = vpack.c.b16 %v1567, %v1547
    %v1728 = vpack.c.b16 %v1568, %v1548
    %v1729 = vpack.c.b16 %v1569, %v1549
    %v1730 = vpack.c.b16 %v1570, %v1550
    %v1731 = vpack.c.b16 %v1571, %v1551
    %v1732 = vpack.c.b16 %v1572, %v1552
    %v1733 = vpack.c.b16 %v1573, %v1553
    %1894 = vmatprep.subr.bf16.mxu0 %v1575
    %1895 = vmatpush1.bf16.msra.mxu0 %v1574
    %1896 = vmatprep.subr.bf16.mxu0 %v1595
    %1897 = vmatpush1.bf16.msra.mxu0 %v1594
    %1898 = vmatprep.subr.bf16.mxu0 %v1615
    %1899 = vmatpush1.bf16.msra.mxu0 %v1614
    %1900 = vmatprep.subr.bf16.mxu0 %v1635
    %1901 = vmatpush1.bf16.msra.mxu0 %v1634
    %1902 = vmatprep.subr.bf16.mxu0 %v1655
    %1903 = vmatpush1.bf16.msra.mxu0 %v1654
    %1904 = vmatprep.subr.bf16.mxu0 %v1675
    %1905 = vmatpush1.bf16.msra.mxu0 %v1674
    %1906 = vmatprep.subr.bf16.mxu0 %v1695
    %1907 = vmatpush1.bf16.msra.mxu0 %v1694
    %1908 = vmatprep.subr.bf16.mxu0 %v1715
    %1909 = vmatpush1.bf16.msra.mxu0 %v1714
    %1910 = vmatprep.subr.bf16.mxu0 0
    %1911 = vmatpush1.bf16.msra.mxu0 0
    %1912 = vmatprep.subr.bf16.mxu0 0
    %1913 = vmatpush1.bf16.msra.mxu0 0
    %1914 = vmatprep.subr.bf16.mxu0 0
    %1915 = vmatpush1.bf16.msra.mxu0 0
    %1916 = vmatprep.subr.bf16.mxu0 0
    %1917 = vmatpush1.bf16.msra.mxu0 0
    %1918 = vmatprep.subr.bf16.mxu0 0
    %1919 = vmatpush1.bf16.msra.mxu0 0
    %1920 = vmatprep.subr.bf16.mxu0 0
    %1921 = vmatpush1.bf16.msra.mxu0 0
    %1922 = vmatprep.subr.bf16.mxu0 0
    %1923 = vmatpush1.bf16.msra.mxu0 0
    %1924 = vmatprep.subr.bf16.mxu0 0
    %1925 = vmatpush1.bf16.msra.mxu0 0
    %1926 = vmatprep.mubr.bf16.mxu0 0
    %1927 = vmatmul.mubr.bf16.gmra.mrb[0].mxu0 %v827
    %v1928 = vpop.f32.mrb[0].mxu0
    %v1929 = vadd.f32 %v997, %v1928
    %v1930 = vpop.f32.mrb[0].mxu0
    %v1931 = vadd.f32 %v1001, %v1930
    %v1932 = vpop.f32.mrb[0].mxu0
    %v1933 = vadd.f32 %v997, %v1932
    %v1934 = vpop.f32.mrb[0].mxu0
    %v1935 = vadd.f32 %v1001, %v1934
    %1936 = vdwg.mxu0
    %1937 = vmatprep.subr.bf16.mxu0 %v1577
    %1938 = vmatpush1.bf16.msra.mxu0 %v1576
    %1939 = vmatprep.subr.bf16.mxu0 %v1597
    %1940 = vmatpush1.bf16.msra.mxu0 %v1596
    %1941 = vmatprep.subr.bf16.mxu0 %v1617
    %1942 = vmatpush1.bf16.msra.mxu0 %v1616
    %1943 = vmatprep.subr.bf16.mxu0 %v1637
    %1944 = vmatpush1.bf16.msra.mxu0 %v1636
    %1945 = vmatprep.subr.bf16.mxu0 %v1657
    %1946 = vmatpush1.bf16.msra.mxu0 %v1656
    %1947 = vmatprep.subr.bf16.mxu0 %v1677
    %1948 = vmatpush1.bf16.msra.mxu0 %v1676
    %1949 = vmatprep.subr.bf16.mxu0 %v1697
    %1950 = vmatpush1.bf16.msra.mxu0 %v1696
    %1951 = vmatprep.subr.bf16.mxu0 %v1717
    %1952 = vmatpush1.bf16.msra.mxu0 %v1716
    %1953 = vmatprep.subr.bf16.mxu0 0
    %1954 = vmatpush1.bf16.msra.mxu0 0
    %1955 = vmatprep.subr.bf16.mxu0 0
    %1956 = vmatpush1.bf16.msra.mxu0 0
    %1957 = vmatprep.subr.bf16.mxu0 0
    %1958 = vmatpush1.bf16.msra.mxu0 0
    %1959 = vmatprep.subr.bf16.mxu0 0
    %1960 = vmatpush1.bf16.msra.mxu0 0
    %1961 = vmatprep.subr.bf16.mxu0 0
    %1962 = vmatpush1.bf16.msra.mxu0 0
    %1963 = vmatprep.subr.bf16.mxu0 0
    %1964 = vmatpush1.bf16.msra.mxu0 0
    %1965 = vmatprep.subr.bf16.mxu0 0
    %1966 = vmatpush1.bf16.msra.mxu0 0
    %1967 = vmatprep.subr.bf16.mxu0 0
    %1968 = vmatpush1.bf16.msra.mxu0 0
    %1969 = vmatprep.mubr.bf16.mxu0 0
    %1970 = vmatmul.mubr.bf16.gmra.mrb[0].mxu0 %v827
    %v1971 = vpop.f32.mrb[0].mxu0
    %v1972 = vadd.f32 %v1005, %v1971
    %v1973 = vpop.f32.mrb[0].mxu0
    %v1974 = vadd.f32 %v1009, %v1973
    %v1975 = vpop.f32.mrb[0].mxu0
    %v1976 = vadd.f32 %v1005, %v1975
    %v1977 = vpop.f32.mrb[0].mxu0
    %v1978 = vadd.f32 %v1009, %v1977
    %1979 = vdwg.mxu0
    %1980 = vmatprep.subr.bf16.mxu0 %v1579
    %1981 = vmatpush1.bf16.msra.mxu0 %v1578
    %1982 = vmatprep.subr.bf16.mxu0 %v1599
    %1983 = vmatpush1.bf16.msra.mxu0 %v1598
    %1984 = vmatprep.subr.bf16.mxu0 %v1619
    %1985 = vmatpush1.bf16.msra.mxu0 %v1618
    %1986 = vmatprep.subr.bf16.mxu0 %v1639
    %1987 = vmatpush1.bf16.msra.mxu0 %v1638
    %1988 = vmatprep.subr.bf16.mxu0 %v1659
    %1989 = vmatpush1.bf16.msra.mxu0 %v1658
    %1990 = vmatprep.subr.bf16.mxu0 %v1679
    %1991 = vmatpush1.bf16.msra.mxu0 %v1678
    %1992 = vmatprep.subr.bf16.mxu0 %v1699
    %1993 = vmatpush1.bf16.msra.mxu0 %v1698
    %1994 = vmatprep.subr.bf16.mxu0 %v1719
    %1995 = vmatpush1.bf16.msra.mxu0 %v1718
    %1996 = vmatprep.subr.bf16.mxu0 0
    %1997 = vmatpush1.bf16.msra.mxu0 0
    %1998 = vmatprep.subr.bf16.mxu0 0
    %1999 = vmatpush1.bf16.msra.mxu0 0
    %2000 = vmatprep.subr.bf16.mxu0 0
    %2001 = vmatpush1.bf16.msra.mxu0 0
    %2002 = vmatprep.subr.bf16.mxu0 0
    %2003 = vmatpush1.bf16.msra.mxu0 0
    %2004 = vmatprep.subr.bf16.mxu0 0
    %2005 = vmatpush1.bf16.msra.mxu0 0
    %2006 = vmatprep.subr.bf16.mxu0 0
    %2007 = vmatpush1.bf16.msra.mxu0 0
    %2008 = vmatprep.subr.bf16.mxu0 0
    %2009 = vmatpush1.bf16.msra.mxu0 0
    %2010 = vmatprep.subr.bf16.mxu0 0
    %2011 = vmatpush1.bf16.msra.mxu0 0
    %2012 = vmatprep.mubr.bf16.mxu0 0
    %2013 = vmatmul.mubr.bf16.gmra.mrb[0].mxu0 %v827
    %v2014 = vpop.f32.mrb[0].mxu0
    %v2015 = vadd.f32 %v1013, %v2014
    %v2016 = vpop.f32.mrb[0].mxu0
    %v2017 = vadd.f32 %v1017, %v2016
    %v2018 = vpop.f32.mrb[0].mxu0
    %v2019 = vadd.f32 %v1013, %v2018
    %v2020 = vpop.f32.mrb[0].mxu0
    %v2021 = vadd.f32 %v1017, %v2020
    %2022 = vdwg.mxu0
    %2023 = vmatprep.subr.bf16.mxu0 %v1581
    %2024 = vmatpush1.bf16.msra.mxu0 %v1580
    %2025 = vmatprep.subr.bf16.mxu0 %v1601
    %2026 = vmatpush1.bf16.msra.mxu0 %v1600
    %2027 = vmatprep.subr.bf16.mxu0 %v1621
    %2028 = vmatpush1.bf16.msra.mxu0 %v1620
    %2029 = vmatprep.subr.bf16.mxu0 %v1641
    %2030 = vmatpush1.bf16.msra.mxu0 %v1640
    %2031 = vmatprep.subr.bf16.mxu0 %v1661
    %2032 = vmatpush1.bf16.msra.mxu0 %v1660
    %2033 = vmatprep.subr.bf16.mxu0 %v1681
    %2034 = vmatpush1.bf16.msra.mxu0 %v1680
    %2035 = vmatprep.subr.bf16.mxu0 %v1701
    %2036 = vmatpush1.bf16.msra.mxu0 %v1700
    %2037 = vmatprep.subr.bf16.mxu0 %v1721
    %2038 = vmatpush1.bf16.msra.mxu0 %v1720
    %2039 = vmatprep.subr.bf16.mxu0 0
    %2040 = vmatpush1.bf16.msra.mxu0 0
    %2041 = vmatprep.subr.bf16.mxu0 0
    %2042 = vmatpush1.bf16.msra.mxu0 0
    %2043 = vmatprep.subr.bf16.mxu0 0
    %2044 = vmatpush1.bf16.msra.mxu0 0
    %2045 = vmatprep.subr.bf16.mxu0 0
    %2046 = vmatpush1.bf16.msra.mxu0 0
    %2047 = vmatprep.subr.bf16.mxu0 0
    %2048 = vmatpush1.bf16.msra.mxu0 0
    %2049 = vmatprep.subr.bf16.mxu0 0
    %2050 = vmatpush1.bf16.msra.mxu0 0
    %2051 = vmatprep.subr.bf16.mxu0 0
    %2052 = vmatpush1.bf16.msra.mxu0 0
    %2053 = vmatprep.subr.bf16.mxu0 0
    %2054 = vmatpush1.bf16.msra.mxu0 0
    %2055 = vmatprep.mubr.bf16.mxu0 0
    %2056 = vmatmul.mubr.bf16.gmra.mrb[0].mxu0 %v827
    %v2057 = vpop.f32.mrb[0].mxu0
    %v2058 = vadd.f32 %v1021, %v2057
    %v2059 = vpop.f32.mrb[0].mxu0
    %v2060 = vadd.f32 %v1025, %v2059
    %v2061 = vpop.f32.mrb[0].mxu0
    %v2062 = vadd.f32 %v1021, %v2061
    %v2063 = vpop.f32.mrb[0].mxu0
    %v2064 = vadd.f32 %v1025, %v2063
    %2065 = vdwg.mxu0
    %2066 = vmatprep.subr.bf16.mxu0 %v1583
    %2067 = vmatpush1.bf16.msra.mxu0 %v1582
    %2068 = vmatprep.subr.bf16.mxu0 %v1603
    %2069 = vmatpush1.bf16.msra.mxu0 %v1602
    %2070 = vmatprep.subr.bf16.mxu0 %v1623
    %2071 = vmatpush1.bf16.msra.mxu0 %v1622
    %2072 = vmatprep.subr.bf16.mxu0 %v1643
    %2073 = vmatpush1.bf16.msra.mxu0 %v1642
    %2074 = vmatprep.subr.bf16.mxu0 %v1663
    %2075 = vmatpush1.bf16.msra.mxu0 %v1662
    %2076 = vmatprep.subr.bf16.mxu0 %v1683
    %2077 = vmatpush1.bf16.msra.mxu0 %v1682
    %2078 = vmatprep.subr.bf16.mxu0 %v1703
    %2079 = vmatpush1.bf16.msra.mxu0 %v1702
    %2080 = vmatprep.subr.bf16.mxu0 %v1723
    %2081 = vmatpush1.bf16.msra.mxu0 %v1722
    %2082 = vmatprep.subr.bf16.mxu0 0
    %2083 = vmatpush1.bf16.msra.mxu0 0
    %2084 = vmatprep.subr.bf16.mxu0 0
    %2085 = vmatpush1.bf16.msra.mxu0 0
    %2086 = vmatprep.subr.bf16.mxu0 0
    %2087 = vmatpush1.bf16.msra.mxu0 0
    %2088 = vmatprep.subr.bf16.mxu0 0
    %2089 = vmatpush1.bf16.msra.mxu0 0
    %2090 = vmatprep.subr.bf16.mxu0 0
    %2091 = vmatpush1.bf16.msra.mxu0 0
    %2092 = vmatprep.subr.bf16.mxu0 0
    %2093 = vmatpush1.bf16.msra.mxu0 0
    %2094 = vmatprep.subr.bf16.mxu0 0
    %2095 = vmatpush1.bf16.msra.mxu0 0
    %2096 = vmatprep.subr.bf16.mxu0 0
    %2097 = vmatpush1.bf16.msra.mxu0 0
    %2098 = vmatprep.mubr.bf16.mxu0 0
    %2099 = vmatmul.mubr.bf16.gmra.mrb[0].mxu0 %v827
    %v2100 = vpop.f32.mrb[0].mxu0
    %v2101 = vadd.f32 %v1029, %v2100
    %v2102 = vpop.f32.mrb[0].mxu0
    %v2103 = vadd.f32 %v1033, %v2102
    %v2104 = vpop.f32.mrb[0].mxu0
    %v2105 = vadd.f32 %v1029, %v2104
    %v2106 = vpop.f32.mrb[0].mxu0
    %v2107 = vadd.f32 %v1033, %v2106
    %2108 = vdwg.mxu0
    %2109 = vmatprep.subr.bf16.mxu0 %v1585
    %2110 = vmatpush1.bf16.msra.mxu0 %v1584
    %2111 = vmatprep.subr.bf16.mxu0 %v1605
    %2112 = vmatpush1.bf16.msra.mxu0 %v1604
    %2113 = vmatprep.subr.bf16.mxu0 %v1625
    %2114 = vmatpush1.bf16.msra.mxu0 %v1624
    %2115 = vmatprep.subr.bf16.mxu0 %v1645
    %2116 = vmatpush1.bf16.msra.mxu0 %v1644
    %2117 = vmatprep.subr.bf16.mxu0 %v1665
    %2118 = vmatpush1.bf16.msra.mxu0 %v1664
    %2119 = vmatprep.subr.bf16.mxu0 %v1685
    %2120 = vmatpush1.bf16.msra.mxu0 %v1684
    %2121 = vmatprep.subr.bf16.mxu0 %v1705
    %2122 = vmatpush1.bf16.msra.mxu0 %v1704
    %2123 = vmatprep.subr.bf16.mxu0 %v1725
    %2124 = vmatpush1.bf16.msra.mxu0 %v1724
    %2125 = vmatprep.subr.bf16.mxu0 0
    %2126 = vmatpush1.bf16.msra.mxu0 0
    %2127 = vmatprep.subr.bf16.mxu0 0
    %2128 = vmatpush1.bf16.msra.mxu0 0
    %2129 = vmatprep.subr.bf16.mxu0 0
    %2130 = vmatpush1.bf16.msra.mxu0 0
    %2131 = vmatprep.subr.bf16.mxu0 0
    %2132 = vmatpush1.bf16.msra.mxu0 0
    %2133 = vmatprep.subr.bf16.mxu0 0
    %2134 = vmatpush1.bf16.msra.mxu0 0
    %2135 = vmatprep.subr.bf16.mxu0 0
    %2136 = vmatpush1.bf16.msra.mxu0 0
    %2137 = vmatprep.subr.bf16.mxu0 0
    %2138 = vmatpush1.bf16.msra.mxu0 0
    %2139 = vmatprep.subr.bf16.mxu0 0
    %2140 = vmatpush1.bf16.msra.mxu0 0
    %2141 = vmatprep.mubr.bf16.mxu0 0
    %2142 = vmatmul.mubr.bf16.gmra.mrb[0].mxu0 %v827
    %v2143 = vpop.f32.mrb[0].mxu0
    %v2144 = vadd.f32 %v1037, %v2143
    %v2145 = vpop.f32.mrb[0].mxu0
    %v2146 = vadd.f32 %v1041, %v2145
    %v2147 = vpop.f32.mrb[0].mxu0
    %v2148 = vadd.f32 %v1037, %v2147
    %v2149 = vpop.f32.mrb[0].mxu0
    %v2150 = vadd.f32 %v1041, %v2149
    %2151 = vdwg.mxu0
    %2152 = vmatprep.subr.bf16.mxu0 %v1587
    %2153 = vmatpush1.bf16.msra.mxu0 %v1586
    %2154 = vmatprep.subr.bf16.mxu0 %v1607
    %2155 = vmatpush1.bf16.msra.mxu0 %v1606
    %2156 = vmatprep.subr.bf16.mxu0 %v1627
    %2157 = vmatpush1.bf16.msra.mxu0 %v1626
    %2158 = vmatprep.subr.bf16.mxu0 %v1647
    %2159 = vmatpush1.bf16.msra.mxu0 %v1646
    %2160 = vmatprep.subr.bf16.mxu0 %v1667
    %2161 = vmatpush1.bf16.msra.mxu0 %v1666
    %2162 = vmatprep.subr.bf16.mxu0 %v1687
    %2163 = vmatpush1.bf16.msra.mxu0 %v1686
    %2164 = vmatprep.subr.bf16.mxu0 %v1707
    %2165 = vmatpush1.bf16.msra.mxu0 %v1706
    %2166 = vmatprep.subr.bf16.mxu0 %v1727
    %2167 = vmatpush1.bf16.msra.mxu0 %v1726
    %2168 = vmatprep.subr.bf16.mxu0 0
    %2169 = vmatpush1.bf16.msra.mxu0 0
    %2170 = vmatprep.subr.bf16.mxu0 0
    %2171 = vmatpush1.bf16.msra.mxu0 0
    %2172 = vmatprep.subr.bf16.mxu0 0
    %2173 = vmatpush1.bf16.msra.mxu0 0
    %2174 = vmatprep.subr.bf16.mxu0 0
    %2175 = vmatpush1.bf16.msra.mxu0 0
    %2176 = vmatprep.subr.bf16.mxu0 0
    %2177 = vmatpush1.bf16.msra.mxu0 0
    %2178 = vmatprep.subr.bf16.mxu0 0
    %2179 = vmatpush1.bf16.msra.mxu0 0
    %2180 = vmatprep.subr.bf16.mxu0 0
    %2181 = vmatpush1.bf16.msra.mxu0 0
    %2182 = vmatprep.subr.bf16.mxu0 0
    %2183 = vmatpush1.bf16.msra.mxu0 0
    %2184 = vmatprep.mubr.bf16.mxu0 0
    %2185 = vmatmul.mubr.bf16.gmra.mrb[0].mxu0 %v827
    %v2186 = vpop.f32.mrb[0].mxu0
    %v2187 = vadd.f32 %v1045, %v2186
    %v2188 = vpop.f32.mrb[0].mxu0
    %v2189 = vadd.f32 %v1049, %v2188
    %v2190 = vpop.f32.mrb[0].mxu0
    %v2191 = vadd.f32 %v1045, %v2190
    %v2192 = vpop.f32.mrb[0].mxu0
    %v2193 = vadd.f32 %v1049, %v2192
    %2194 = vdwg.mxu0
    %2195 = vmatprep.subr.bf16.mxu0 %v1589
    %2196 = vmatpush1.bf16.msra.mxu0 %v1588
    %2197 = vmatprep.subr.bf16.mxu0 %v1609
    %2198 = vmatpush1.bf16.msra.mxu0 %v1608
    %2199 = vmatprep.subr.bf16.mxu0 %v1629
    %2200 = vmatpush1.bf16.msra.mxu0 %v1628
    %2201 = vmatprep.subr.bf16.mxu0 %v1649
    %2202 = vmatpush1.bf16.msra.mxu0 %v1648
    %2203 = vmatprep.subr.bf16.mxu0 %v1669
    %2204 = vmatpush1.bf16.msra.mxu0 %v1668
    %2205 = vmatprep.subr.bf16.mxu0 %v1689
    %2206 = vmatpush1.bf16.msra.mxu0 %v1688
    %2207 = vmatprep.subr.bf16.mxu0 %v1709
    %2208 = vmatpush1.bf16.msra.mxu0 %v1708
    %2209 = vmatprep.subr.bf16.mxu0 %v1729
    %2210 = vmatpush1.bf16.msra.mxu0 %v1728
    %2211 = vmatprep.subr.bf16.mxu0 0
    %2212 = vmatpush1.bf16.msra.mxu0 0
    %2213 = vmatprep.subr.bf16.mxu0 0
    %2214 = vmatpush1.bf16.msra.mxu0 0
    %2215 = vmatprep.subr.bf16.mxu0 0
    %2216 = vmatpush1.bf16.msra.mxu0 0
    %2217 = vmatprep.subr.bf16.mxu0 0
    %2218 = vmatpush1.bf16.msra.mxu0 0
    %2219 = vmatprep.subr.bf16.mxu0 0
    %2220 = vmatpush1.bf16.msra.mxu0 0
    %2221 = vmatprep.subr.bf16.mxu0 0
    %2222 = vmatpush1.bf16.msra.mxu0 0
    %2223 = vmatprep.subr.bf16.mxu0 0
    %2224 = vmatpush1.bf16.msra.mxu0 0
    %2225 = vmatprep.subr.bf16.mxu0 0
    %2226 = vmatpush1.bf16.msra.mxu0 0
    %2227 = vmatprep.mubr.bf16.mxu0 0
    %2228 = vmatmul.mubr.bf16.gmra.mrb[0].mxu0 %v827
    %v2229 = vpop.f32.mrb[0].mxu0
    %v2230 = vadd.f32 %v1053, %v2229
    %v2231 = vpop.f32.mrb[0].mxu0
    %v2232 = vadd.f32 %v1057, %v2231
    %v2233 = vpop.f32.mrb[0].mxu0
    %v2234 = vadd.f32 %v1053, %v2233
    %v2235 = vpop.f32.mrb[0].mxu0
    %v2236 = vadd.f32 %v1057, %v2235
    %2237 = vdwg.mxu0
    %2238 = vmatprep.subr.bf16.mxu0 %v1591
    %2239 = vmatpush1.bf16.msra.mxu0 %v1590
    %2240 = vmatprep.subr.bf16.mxu0 %v1611
    %2241 = vmatpush1.bf16.msra.mxu0 %v1610
    %2242 = vmatprep.subr.bf16.mxu0 %v1631
    %2243 = vmatpush1.bf16.msra.mxu0 %v1630
    %2244 = vmatprep.subr.bf16.mxu0 %v1651
    %2245 = vmatpush1.bf16.msra.mxu0 %v1650
    %2246 = vmatprep.subr.bf16.mxu0 %v1671
    %2247 = vmatpush1.bf16.msra.mxu0 %v1670
    %2248 = vmatprep.subr.bf16.mxu0 %v1691
    %2249 = vmatpush1.bf16.msra.mxu0 %v1690
    %2250 = vmatprep.subr.bf16.mxu0 %v1711
    %2251 = vmatpush1.bf16.msra.mxu0 %v1710
    %2252 = vmatprep.subr.bf16.mxu0 %v1731
    %2253 = vmatpush1.bf16.msra.mxu0 %v1730
    %2254 = vmatprep.subr.bf16.mxu0 0
    %2255 = vmatpush1.bf16.msra.mxu0 0
    %2256 = vmatprep.subr.bf16.mxu0 0
    %2257 = vmatpush1.bf16.msra.mxu0 0
    %2258 = vmatprep.subr.bf16.mxu0 0
    %2259 = vmatpush1.bf16.msra.mxu0 0
    %2260 = vmatprep.subr.bf16.mxu0 0
    %2261 = vmatpush1.bf16.msra.mxu0 0
    %2262 = vmatprep.subr.bf16.mxu0 0
    %2263 = vmatpush1.bf16.msra.mxu0 0
    %2264 = vmatprep.subr.bf16.mxu0 0
    %2265 = vmatpush1.bf16.msra.mxu0 0
    %2266 = vmatprep.subr.bf16.mxu0 0
    %2267 = vmatpush1.bf16.msra.mxu0 0
    %2268 = vmatprep.subr.bf16.mxu0 0
    %2269 = vmatpush1.bf16.msra.mxu0 0
    %2270 = vmatprep.mubr.bf16.mxu0 0
    %2271 = vmatmul.mubr.bf16.gmra.mrb[0].mxu0 %v827
    %v2272 = vpop.f32.mrb[0].mxu0
    %v2273 = vadd.f32 %v1061, %v2272
    %v2274 = vpop.f32.mrb[0].mxu0
    %v2275 = vadd.f32 %v1065, %v2274
    %v2276 = vpop.f32.mrb[0].mxu0
    %v2277 = vadd.f32 %v1061, %v2276
    %v2278 = vpop.f32.mrb[0].mxu0
    %v2279 = vadd.f32 %v1065, %v2278
    %2280 = vdwg.mxu0
    %2281 = vmatprep.subr.bf16.mxu0 %v1593
    %2282 = vmatpush1.bf16.msra.mxu0 %v1592
    %2283 = vmatprep.subr.bf16.mxu0 %v1613
    %2284 = vmatpush1.bf16.msra.mxu0 %v1612
    %2285 = vmatprep.subr.bf16.mxu0 %v1633
    %2286 = vmatpush1.bf16.msra.mxu0 %v1632
    %2287 = vmatprep.subr.bf16.mxu0 %v1653
    %2288 = vmatpush1.bf16.msra.mxu0 %v1652
    %2289 = vmatprep.subr.bf16.mxu0 %v1673
    %2290 = vmatpush1.bf16.msra.mxu0 %v1672
    %2291 = vmatprep.subr.bf16.mxu0 %v1693
    %2292 = vmatpush1.bf16.msra.mxu0 %v1692
    %2293 = vmatprep.subr.bf16.mxu0 %v1713
    %2294 = vmatpush1.bf16.msra.mxu0 %v1712
    %2295 = vmatprep.subr.bf16.mxu0 %v1733
    %2296 = vmatpush1.bf16.msra.mxu0 %v1732
    %2297 = vmatprep.subr.bf16.mxu0 0
    %2298 = vmatpush1.bf16.msra.mxu0 0
    %2299 = vmatprep.subr.bf16.mxu0 0
    %2300 = vmatpush1.bf16.msra.mxu0 0
    %2301 = vmatprep.subr.bf16.mxu0 0
    %2302 = vmatpush1.bf16.msra.mxu0 0
    %2303 = vmatprep.subr.bf16.mxu0 0
    %2304 = vmatpush1.bf16.msra.mxu0 0
    %2305 = vmatprep.subr.bf16.mxu0 0
    %2306 = vmatpush1.bf16.msra.mxu0 0
    %2307 = vmatprep.subr.bf16.mxu0 0
    %2308 = vmatpush1.bf16.msra.mxu0 0
    %2309 = vmatprep.subr.bf16.mxu0 0
    %2310 = vmatpush1.bf16.msra.mxu0 0
    %2311 = vmatprep.subr.bf16.mxu0 0
    %2312 = vmatpush1.bf16.msra.mxu0 0
    %2313 = vmatprep.mubr.bf16.mxu0 0
    %2314 = vmatmul.mubr.bf16.gmra.mrb[0].mxu0 %v827
    %v2315 = vpop.f32.mrb[0].mxu0
    %v2316 = vadd.f32 %v1069, %v2315
    %v2317 = vpop.f32.mrb[0].mxu0
    %v2318 = vadd.f32 %v1073, %v2317
    %v2319 = vpop.f32.mrb[0].mxu0
    %v2320 = vadd.f32 %v1069, %v2319
    %v2321 = vpop.f32.mrb[0].mxu0
    %v2322 = vadd.f32 %v1073, %v2321
    %2323 = vdwg.mxu0
    %v2324 = vmax.f32 %v1929, 0.0
    %v2325 = vmax.f32 %v1931, 0.0
    %v2326 = vmax.f32 %v1972, 0.0
    %v2327 = vmax.f32 %v1974, 0.0
    %v2328 = vmax.f32 %v2015, 0.0
    %v2329 = vmax.f32 %v2017, 0.0
    %v2330 = vmax.f32 %v2058, 0.0
    %v2331 = vmax.f32 %v2060, 0.0
    %v2332 = vmax.f32 %v2101, 0.0
    %v2333 = vmax.f32 %v2103, 0.0
    %v2334 = vmax.f32 %v2144, 0.0
    %v2335 = vmax.f32 %v2146, 0.0
    %v2336 = vmax.f32 %v2187, 0.0
    %v2337 = vmax.f32 %v2189, 0.0
    %v2338 = vmax.f32 %v2230, 0.0
    %v2339 = vmax.f32 %v2232, 0.0
    %v2340 = vmax.f32 %v2273, 0.0
    %v2341 = vmax.f32 %v2275, 0.0
    %v2342 = vmax.f32 %v2316, 0.0
    %v2343 = vmax.f32 %v2318, 0.0
    %v2344 = vmax.f32 %v1933, 0.0
    %v2345 = vmax.f32 %v1935, 0.0
    %v2346 = vmax.f32 %v1976, 0.0
    %v2347 = vmax.f32 %v1978, 0.0
    %v2348 = vmax.f32 %v2019, 0.0
    %v2349 = vmax.f32 %v2021, 0.0
    %v2350 = vmax.f32 %v2062, 0.0
    %v2351 = vmax.f32 %v2064, 0.0
    %v2352 = vmax.f32 %v2105, 0.0
    %v2353 = vmax.f32 %v2107, 0.0
    %v2354 = vmax.f32 %v2148, 0.0
    %v2355 = vmax.f32 %v2150, 0.0
    %v2356 = vmax.f32 %v2191, 0.0
    %v2357 = vmax.f32 %v2193, 0.0
    %v2358 = vmax.f32 %v2234, 0.0
    %v2359 = vmax.f32 %v2236, 0.0
    %v2360 = vmax.f32 %v2277, 0.0
    %v2361 = vmax.f32 %v2279, 0.0
    %v2362 = vmax.f32 %v2320, 0.0
    %v2363 = vmax.f32 %v2322, 0.0
    %v2364 = vpack.c.bf16 %v2344, %v2324
    %v2365 = vpack.c.bf16 %v2345, %v2325
    %v2366 = vpack.c.bf16 %v2346, %v2326
    %v2367 = vpack.c.bf16 %v2347, %v2327
    %v2368 = vpack.c.bf16 %v2348, %v2328
    %v2369 = vpack.c.bf16 %v2349, %v2329
    %v2370 = vpack.c.bf16 %v2350, %v2330
    %v2371 = vpack.c.bf16 %v2351, %v2331
    %v2372 = vpack.c.bf16 %v2352, %v2332
    %v2373 = vpack.c.bf16 %v2353, %v2333
    %v2374 = vpack.c.bf16 %v2354, %v2334
    %v2375 = vpack.c.bf16 %v2355, %v2335
    %v2376 = vpack.c.bf16 %v2356, %v2336
    %v2377 = vpack.c.bf16 %v2357, %v2337
    %v2378 = vpack.c.bf16 %v2358, %v2338
    %v2379 = vpack.c.bf16 %v2359, %v2339
    %v2380 = vpack.c.bf16 %v2360, %v2340
    %v2381 = vpack.c.bf16 %v2361, %v2341
    %v2382 = vpack.c.bf16 %v2362, %v2342
    %v2383 = vpack.c.bf16 %v2363, %v2343
    %v2384 = vld [vmem:[#allocation10] sm:$0xf]
    %v2385 = vld [vmem:[#allocation10 + $0x4] sm:$0xf]
    %v2386 = vld [vmem:[#allocation10 + $0x8] sm:$0xf]
    %v2387 = vld [vmem:[#allocation10 + $0xc] sm:$0xf]
    %v2388 = vld [vmem:[#allocation10 + $0x10] sm:$0xf]
    %v2389 = vld [vmem:[#allocation10 + $0x14] sm:$0xf]
    %v2390 = vld [vmem:[#allocation10 + $0x18] sm:$0xf]
    %v2391 = vld [vmem:[#allocation10 + $0x1c] sm:$0xf]
    %v2392 = vld [vmem:[#allocation10 + $0x20] sm:$0xf]
    %v2393 = vld [vmem:[#allocation10 + $0x24] sm:$0xf]
    %v2394 = vld [vmem:[#allocation10 + $0x28] sm:$0xf]
    %v2395 = vld [vmem:[#allocation10 + $0x2c] sm:$0xf]
    %v2396 = vld [vmem:[#allocation10 + $0x30] sm:$0xf]
    %v2397 = vld [vmem:[#allocation10 + $0x34] sm:$0xf]
    %v2398 = vld [vmem:[#allocation10 + $0x38] sm:$0xf]
    %v2399 = vld [vmem:[#allocation10 + $0x3c] sm:$0xf]
    %v2400 = vld [vmem:[#allocation10 + $0x40] sm:$0xf]
    %v2401 = vld [vmem:[#allocation10 + $0x44] sm:$0xf]
    %v2402 = vld [vmem:[#allocation10 + $0x48] sm:$0xf]
    %v2403 = vld [vmem:[#allocation10 + $0x4c] sm:$0xf]
    %v2404 = vld [vmem:[#allocation10 + $0x50] sm:$0xf]
    %v2405 = vld [vmem:[#allocation10 + $0x54] sm:$0xf]
    %v2406 = vld [vmem:[#allocation10 + $0x58] sm:$0xf]
    %v2407 = vld [vmem:[#allocation10 + $0x5c] sm:$0xf]
    %v2408 = vld [vmem:[#allocation10 + $0x60] sm:$0xf]
    %v2409 = vld [vmem:[#allocation10 + $0x64] sm:$0xf]
    %v2410 = vld [vmem:[#allocation10 + $0x68] sm:$0xf]
    %v2411 = vld [vmem:[#allocation10 + $0x6c] sm:$0xf]
    %v2412 = vld [vmem:[#allocation10 + $0x70] sm:$0xf]
    %v2413 = vld [vmem:[#allocation10 + $0x74] sm:$0xf]
    %v2414 = vld [vmem:[#allocation10 + $0x78] sm:$0xf]
    %v2415 = vld [vmem:[#allocation10 + $0x7c] sm:$0xf]
    %v2416 = vld [vmem:[#allocation10 + $0x80] sm:$0xf]
    %v2417 = vld [vmem:[#allocation10 + $0x84] sm:$0xf]
    %v2418 = vld [vmem:[#allocation10 + $0x88] sm:$0xf]
    %v2419 = vld [vmem:[#allocation10 + $0x8c] sm:$0xf]
    %v2420 = vld [vmem:[#allocation10 + $0x90] sm:$0xf]
    %v2421 = vld [vmem:[#allocation10 + $0x94] sm:$0xf]
    %v2422 = vld [vmem:[#allocation10 + $0x98] sm:$0xf]
    %v2423 = vld [vmem:[#allocation10 + $0x9c] sm:$0xf]
    %v2424 = vld [vmem:[#allocation10 + $0xa0] sm:$0xf]
    %v2425 = vld [vmem:[#allocation10 + $0xa4] sm:$0xf]
    %v2426 = vld [vmem:[#allocation10 + $0xa8] sm:$0xf]
    %v2427 = vld [vmem:[#allocation10 + $0xac] sm:$0xf]
    %v2428 = vld [vmem:[#allocation10 + $0xb0] sm:$0xf]
    %v2429 = vld [vmem:[#allocation10 + $0xb4] sm:$0xf]
    %v2430 = vld [vmem:[#allocation10 + $0xb8] sm:$0xf]
    %v2431 = vld [vmem:[#allocation10 + $0xbc] sm:$0xf]
    %v2432 = vld [vmem:[#allocation10 + $0xc0] sm:$0xf]
    %v2433 = vld [vmem:[#allocation10 + $0xc4] sm:$0xf]
    %v2434 = vld [vmem:[#allocation10 + $0xc8] sm:$0xf]
    %v2435 = vld [vmem:[#allocation10 + $0xcc] sm:$0xf]
    %v2436 = vld [vmem:[#allocation10 + $0xd0] sm:$0xf]
    %v2437 = vld [vmem:[#allocation10 + $0xd4] sm:$0xf]
    %v2438 = vld [vmem:[#allocation10 + $0xd8] sm:$0xf]
    %v2439 = vld [vmem:[#allocation10 + $0xdc] sm:$0xf]
    %v2440 = vld [vmem:[#allocation10 + $0xe0] sm:$0xf]
    %v2441 = vld [vmem:[#allocation10 + $0xe4] sm:$0xf]
    %v2442 = vld [vmem:[#allocation10 + $0xe8] sm:$0xf]
    %v2443 = vld [vmem:[#allocation10 + $0xec] sm:$0xf]
    %v2444 = vld [vmem:[#allocation10 + $0xf0] sm:$0xf]
    %v2445 = vld [vmem:[#allocation10 + $0xf4] sm:$0xf]
    %v2446 = vld [vmem:[#allocation10 + $0xf8] sm:$0xf]
    %v2447 = vld [vmem:[#allocation10 + $0xfc] sm:$0xf]
    %v2448 = vld [vmem:[#allocation10 + $0x100] sm:$0xf]
    %v2449 = vld [vmem:[#allocation10 + $0x104] sm:$0xf]
    %v2450 = vld [vmem:[#allocation10 + $0x108] sm:$0xf]
    %v2451 = vld [vmem:[#allocation10 + $0x10c] sm:$0xf]
    %v2452 = vld [vmem:[#allocation10 + $0x110] sm:$0xf]
    %v2453 = vld [vmem:[#allocation10 + $0x114] sm:$0xf]
    %v2454 = vld [vmem:[#allocation10 + $0x118] sm:$0xf]
    %v2455 = vld [vmem:[#allocation10 + $0x11c] sm:$0xf]
    %v2456 = vld [vmem:[#allocation10 + $0x120] sm:$0xf]
    %v2457 = vld [vmem:[#allocation10 + $0x124] sm:$0xf]
    %v2458 = vld [vmem:[#allocation10 + $0x128] sm:$0xf]
    %v2459 = vld [vmem:[#allocation10 + $0x12c] sm:$0xf]
    %v2460 = vld [vmem:[#allocation10 + $0x130] sm:$0xf]
    %v2461 = vld [vmem:[#allocation10 + $0x134] sm:$0xf]
    %v2462 = vld [vmem:[#allocation10 + $0x138] sm:$0xf]
    %v2463 = vld [vmem:[#allocation10 + $0x13c] sm:$0xf]
    %v2464 = vld [vmem:[#allocation10 + $0x140] sm:$0xf]
    %v2465 = vld [vmem:[#allocation10 + $0x144] sm:$0xf]
    %v2466 = vld [vmem:[#allocation10 + $0x148] sm:$0xf]
    %v2467 = vld [vmem:[#allocation10 + $0x14c] sm:$0xf]
    %v2468 = vld [vmem:[#allocation10 + $0x150] sm:$0xf]
    %v2469 = vld [vmem:[#allocation10 + $0x154] sm:$0xf]
    %v2470 = vld [vmem:[#allocation10 + $0x158] sm:$0xf]
    %v2471 = vld [vmem:[#allocation10 + $0x15c] sm:$0xf]
    %v2472 = vld [vmem:[#allocation10 + $0x160] sm:$0xf]
    %v2473 = vld [vmem:[#allocation10 + $0x164] sm:$0xf]
    %v2474 = vld [vmem:[#allocation10 + $0x168] sm:$0xf]
    %v2475 = vld [vmem:[#allocation10 + $0x16c] sm:$0xf]
    %v2476 = vld [vmem:[#allocation10 + $0x170] sm:$0xf]
    %v2477 = vld [vmem:[#allocation10 + $0x174] sm:$0xf]
    %v2478 = vld [vmem:[#allocation10 + $0x178] sm:$0xf]
    %v2479 = vld [vmem:[#allocation10 + $0x17c] sm:$0xf]
    %v2480 = vld [vmem:[#allocation10 + $0x180] sm:$0xf]
    %v2481 = vld [vmem:[#allocation10 + $0x184] sm:$0xf]
    %v2482 = vld [vmem:[#allocation10 + $0x188] sm:$0xf]
    %v2483 = vld [vmem:[#allocation10 + $0x18c] sm:$0xf]
    %v2484 = vld [vmem:[#allocation10 + $0x190] sm:$0xf]
    %v2485 = vld [vmem:[#allocation10 + $0x194] sm:$0xf]
    %v2486 = vld [vmem:[#allocation10 + $0x198] sm:$0xf]
    %v2487 = vld [vmem:[#allocation10 + $0x19c] sm:$0xf]
    %v2488 = vld [vmem:[#allocation10 + $0x1a0] sm:$0xf]
    %v2489 = vld [vmem:[#allocation10 + $0x1a4] sm:$0xf]
    %v2490 = vld [vmem:[#allocation10 + $0x1a8] sm:$0xf]
    %v2491 = vld [vmem:[#allocation10 + $0x1ac] sm:$0xf]
    %v2492 = vld [vmem:[#allocation10 + $0x1b0] sm:$0xf]
    %v2493 = vld [vmem:[#allocation10 + $0x1b4] sm:$0xf]
    %v2494 = vld [vmem:[#allocation10 + $0x1b8] sm:$0xf]
    %v2495 = vld [vmem:[#allocation10 + $0x1bc] sm:$0xf]
    %v2496 = vld [vmem:[#allocation10 + $0x1c0] sm:$0xf]
    %v2497 = vld [vmem:[#allocation10 + $0x1c4] sm:$0xf]
    %v2498 = vld [vmem:[#allocation10 + $0x1c8] sm:$0xf]
    %v2499 = vld [vmem:[#allocation10 + $0x1cc] sm:$0xf]
    %v2500 = vld [vmem:[#allocation10 + $0x1d0] sm:$0xf]
    %v2501 = vld [vmem:[#allocation10 + $0x1d4] sm:$0xf]
    %v2502 = vld [vmem:[#allocation10 + $0x1d8] sm:$0xf]
    %v2503 = vld [vmem:[#allocation10 + $0x1dc] sm:$0xf]
    %v2504 = vld [vmem:[#allocation10 + $0x1e0] sm:$0xf]
    %v2505 = vld [vmem:[#allocation10 + $0x1e4] sm:$0xf]
    %v2506 = vld [vmem:[#allocation10 + $0x1e8] sm:$0xf]
    %v2507 = vld [vmem:[#allocation10 + $0x1ec] sm:$0xf]
    %v2508 = vld [vmem:[#allocation10 + $0x1f0] sm:$0xf]
    %v2509 = vld [vmem:[#allocation10 + $0x1f4] sm:$0xf]
    %v2510 = vld [vmem:[#allocation10 + $0x1f8] sm:$0xf]
    %v2511 = vld [vmem:[#allocation10 + $0x1fc] sm:$0xf]
    %v2512 = vld [vmem:[#allocation10 + $0x200] sm:$0xf]
    %v2513 = vld [vmem:[#allocation10 + $0x204] sm:$0xf]
    %v2514 = vld [vmem:[#allocation10 + $0x208] sm:$0xf]
    %v2515 = vld [vmem:[#allocation10 + $0x20c] sm:$0xf]
    %v2516 = vld [vmem:[#allocation10 + $0x210] sm:$0xf]
    %v2517 = vld [vmem:[#allocation10 + $0x214] sm:$0xf]
    %v2518 = vld [vmem:[#allocation10 + $0x218] sm:$0xf]
    %v2519 = vld [vmem:[#allocation10 + $0x21c] sm:$0xf]
    %v2520 = vld [vmem:[#allocation10 + $0x220] sm:$0xf]
    %v2521 = vld [vmem:[#allocation10 + $0x224] sm:$0xf]
    %v2522 = vld [vmem:[#allocation10 + $0x228] sm:$0xf]
    %v2523 = vld [vmem:[#allocation10 + $0x22c] sm:$0xf]
    %v2524 = vld [vmem:[#allocation10 + $0x230] sm:$0xf]
    %v2525 = vld [vmem:[#allocation10 + $0x234] sm:$0xf]
    %v2526 = vld [vmem:[#allocation10 + $0x238] sm:$0xf]
    %v2527 = vld [vmem:[#allocation10 + $0x23c] sm:$0xf]
    %v2528 = vld [vmem:[#allocation10 + $0x240] sm:$0xf]
    %v2529 = vld [vmem:[#allocation10 + $0x244] sm:$0xf]
    %v2530 = vld [vmem:[#allocation10 + $0x248] sm:$0xf]
    %v2531 = vld [vmem:[#allocation10 + $0x24c] sm:$0xf]
    %v2532 = vld [vmem:[#allocation10 + $0x250] sm:$0xf]
    %v2533 = vld [vmem:[#allocation10 + $0x254] sm:$0xf]
    %v2534 = vld [vmem:[#allocation10 + $0x258] sm:$0xf]
    %v2535 = vld [vmem:[#allocation10 + $0x25c] sm:$0xf]
    %v2536 = vld [vmem:[#allocation10 + $0x260] sm:$0xf]
    %v2537 = vld [vmem:[#allocation10 + $0x264] sm:$0xf]
    %v2538 = vld [vmem:[#allocation10 + $0x268] sm:$0xf]
    %v2539 = vld [vmem:[#allocation10 + $0x26c] sm:$0xf]
    %v2540 = vld [vmem:[#allocation10 + $0x270] sm:$0xf]
    %v2541 = vld [vmem:[#allocation10 + $0x274] sm:$0xf]
    %v2542 = vld [vmem:[#allocation10 + $0x278] sm:$0xf]
    %v2543 = vld [vmem:[#allocation10 + $0x27c] sm:$0xf]
    %v2544 = vld [vmem:[#allocation10 + $0x280] sm:$0xf]
    %v2545 = vld [vmem:[#allocation10 + $0x284] sm:$0xf]
    %v2546 = vld [vmem:[#allocation10 + $0x288] sm:$0xf]
    %v2547 = vld [vmem:[#allocation10 + $0x28c] sm:$0xf]
    %v2548 = vld [vmem:[#allocation10 + $0x290] sm:$0xf]
    %v2549 = vld [vmem:[#allocation10 + $0x294] sm:$0xf]
    %v2550 = vld [vmem:[#allocation10 + $0x298] sm:$0xf]
    %v2551 = vld [vmem:[#allocation10 + $0x29c] sm:$0xf]
    %v2552 = vld [vmem:[#allocation10 + $0x2a0] sm:$0xf]
    %v2553 = vld [vmem:[#allocation10 + $0x2a4] sm:$0xf]
    %v2554 = vld [vmem:[#allocation10 + $0x2a8] sm:$0xf]
    %v2555 = vld [vmem:[#allocation10 + $0x2ac] sm:$0xf]
    %v2556 = vld [vmem:[#allocation10 + $0x2b0] sm:$0xf]
    %v2557 = vld [vmem:[#allocation10 + $0x2b4] sm:$0xf]
    %v2558 = vld [vmem:[#allocation10 + $0x2b8] sm:$0xf]
    %v2559 = vld [vmem:[#allocation10 + $0x2bc] sm:$0xf]
    %v2560 = vld [vmem:[#allocation10 + $0x2c0] sm:$0xf]
    %v2561 = vld [vmem:[#allocation10 + $0x2c4] sm:$0xf]
    %v2562 = vld [vmem:[#allocation10 + $0x2c8] sm:$0xf]
    %v2563 = vld [vmem:[#allocation10 + $0x2cc] sm:$0xf]
    %v2564 = vld [vmem:[#allocation10 + $0x2d0] sm:$0xf]
    %v2565 = vld [vmem:[#allocation10 + $0x2d4] sm:$0xf]
    %v2566 = vld [vmem:[#allocation10 + $0x2d8] sm:$0xf]
    %v2567 = vld [vmem:[#allocation10 + $0x2dc] sm:$0xf]
    %v2568 = vld [vmem:[#allocation10 + $0x2e0] sm:$0xf]
    %v2569 = vld [vmem:[#allocation10 + $0x2e4] sm:$0xf]
    %v2570 = vld [vmem:[#allocation10 + $0x2e8] sm:$0xf]
    %v2571 = vld [vmem:[#allocation10 + $0x2ec] sm:$0xf]
    %v2572 = vld [vmem:[#allocation10 + $0x2f0] sm:$0xf]
    %v2573 = vld [vmem:[#allocation10 + $0x2f4] sm:$0xf]
    %v2574 = vld [vmem:[#allocation10 + $0x2f8] sm:$0xf]
    %v2575 = vld [vmem:[#allocation10 + $0x2fc] sm:$0xf]
    %v2576 = vld [vmem:[#allocation10 + $0x300] sm:$0xf]
    %v2577 = vld [vmem:[#allocation10 + $0x304] sm:$0xf]
    %v2578 = vld [vmem:[#allocation10 + $0x308] sm:$0xf]
    %v2579 = vld [vmem:[#allocation10 + $0x30c] sm:$0xf]
    %v2580 = vld [vmem:[#allocation10 + $0x310] sm:$0xf]
    %v2581 = vld [vmem:[#allocation10 + $0x314] sm:$0xf]
    %v2582 = vld [vmem:[#allocation10 + $0x318] sm:$0xf]
    %v2583 = vld [vmem:[#allocation10 + $0x31c] sm:$0xf]
    %v2584 = vld [vmem:[#allocation10 + $0x320] sm:$0xf]
    %v2585 = vld [vmem:[#allocation10 + $0x324] sm:$0xf]
    %v2586 = vld [vmem:[#allocation10 + $0x328] sm:$0xf]
    %v2587 = vld [vmem:[#allocation10 + $0x32c] sm:$0xf]
    %v2588 = vld [vmem:[#allocation10 + $0x330] sm:$0xf]
    %v2589 = vld [vmem:[#allocation10 + $0x334] sm:$0xf]
    %v2590 = vld [vmem:[#allocation10 + $0x338] sm:$0xf]
    %v2591 = vld [vmem:[#allocation10 + $0x33c] sm:$0xf]
    %v2592 = vld [vmem:[#allocation10 + $0x340] sm:$0xf]
    %v2593 = vld [vmem:[#allocation10 + $0x344] sm:$0xf]
    %v2594 = vld [vmem:[#allocation10 + $0x348] sm:$0xf]
    %v2595 = vld [vmem:[#allocation10 + $0x34c] sm:$0xf]
    %v2596 = vld [vmem:[#allocation10 + $0x350] sm:$0xf]
    %v2597 = vld [vmem:[#allocation10 + $0x354] sm:$0xf]
    %v2598 = vld [vmem:[#allocation10 + $0x358] sm:$0xf]
    %v2599 = vld [vmem:[#allocation10 + $0x35c] sm:$0xf]
    %v2600 = vld [vmem:[#allocation10 + $0x360] sm:$0xf]
    %v2601 = vld [vmem:[#allocation10 + $0x364] sm:$0xf]
    %v2602 = vld [vmem:[#allocation10 + $0x368] sm:$0xf]
    %v2603 = vld [vmem:[#allocation10 + $0x36c] sm:$0xf]
    %v2604 = vld [vmem:[#allocation10 + $0x370] sm:$0xf]
    %v2605 = vld [vmem:[#allocation10 + $0x374] sm:$0xf]
    %v2606 = vld [vmem:[#allocation10 + $0x378] sm:$0xf]
    %v2607 = vld [vmem:[#allocation10 + $0x37c] sm:$0xf]
    %v2608 = vld [vmem:[#allocation10 + $0x380] sm:$0xf]
    %v2609 = vld [vmem:[#allocation10 + $0x384] sm:$0xf]
    %v2610 = vld [vmem:[#allocation10 + $0x388] sm:$0xf]
    %v2611 = vld [vmem:[#allocation10 + $0x38c] sm:$0xf]
    %v2612 = vld [vmem:[#allocation10 + $0x390] sm:$0xf]
    %v2613 = vld [vmem:[#allocation10 + $0x394] sm:$0xf]
    %v2614 = vld [vmem:[#allocation10 + $0x398] sm:$0xf]
    %v2615 = vld [vmem:[#allocation10 + $0x39c] sm:$0xf]
    %v2616 = vld [vmem:[#allocation10 + $0x3a0] sm:$0xf]
    %v2617 = vld [vmem:[#allocation10 + $0x3a4] sm:$0xf]
    %v2618 = vld [vmem:[#allocation10 + $0x3a8] sm:$0xf]
    %v2619 = vld [vmem:[#allocation10 + $0x3ac] sm:$0xf]
    %v2620 = vld [vmem:[#allocation10 + $0x3b0] sm:$0xf]
    %v2621 = vld [vmem:[#allocation10 + $0x3b4] sm:$0xf]
    %v2622 = vld [vmem:[#allocation10 + $0x3b8] sm:$0xf]
    %v2623 = vld [vmem:[#allocation10 + $0x3bc] sm:$0xf]
    %v2624 = vld [vmem:[#allocation10 + $0x3c0] sm:$0xf]
    %v2625 = vld [vmem:[#allocation10 + $0x3c4] sm:$0xf]
    %v2626 = vld [vmem:[#allocation10 + $0x3c8] sm:$0xf]
    %v2627 = vld [vmem:[#allocation10 + $0x3cc] sm:$0xf]
    %v2628 = vld [vmem:[#allocation10 + $0x3d0] sm:$0xf]
    %v2629 = vld [vmem:[#allocation10 + $0x3d4] sm:$0xf]
    %v2630 = vld [vmem:[#allocation10 + $0x3d8] sm:$0xf]
    %v2631 = vld [vmem:[#allocation10 + $0x3dc] sm:$0xf]
    %v2632 = vld [vmem:[#allocation10 + $0x3e0] sm:$0xf]
    %v2633 = vld [vmem:[#allocation10 + $0x3e4] sm:$0xf]
    %v2634 = vld [vmem:[#allocation10 + $0x3e8] sm:$0xf]
    %v2635 = vld [vmem:[#allocation10 + $0x3ec] sm:$0xf]
    %v2636 = vld [vmem:[#allocation10 + $0x3f0] sm:$0xf]
    %v2637 = vld [vmem:[#allocation10 + $0x3f4] sm:$0xf]
    %v2638 = vld [vmem:[#allocation10 + $0x3f8] sm:$0xf]
    %v2639 = vld [vmem:[#allocation10 + $0x3fc] sm:$0xf]
    %v2640 = vld [vmem:[#allocation10 + $0x400] sm:$0xf]
    %v2641 = vld [vmem:[#allocation10 + $0x404] sm:$0xf]
    %v2642 = vld [vmem:[#allocation10 + $0x408] sm:$0xf]
    %v2643 = vld [vmem:[#allocation10 + $0x40c] sm:$0xf]
    %v2644 = vld [vmem:[#allocation10 + $0x410] sm:$0xf]
    %v2645 = vld [vmem:[#allocation10 + $0x414] sm:$0xf]
    %v2646 = vld [vmem:[#allocation10 + $0x418] sm:$0xf]
    %v2647 = vld [vmem:[#allocation10 + $0x41c] sm:$0xf]
    %v2648 = vld [vmem:[#allocation10 + $0x420] sm:$0xf]
    %v2649 = vld [vmem:[#allocation10 + $0x424] sm:$0xf]
    %v2650 = vld [vmem:[#allocation10 + $0x428] sm:$0xf]
    %v2651 = vld [vmem:[#allocation10 + $0x42c] sm:$0xf]
    %v2652 = vld [vmem:[#allocation10 + $0x430] sm:$0xf]
    %v2653 = vld [vmem:[#allocation10 + $0x434] sm:$0xf]
    %v2654 = vld [vmem:[#allocation10 + $0x438] sm:$0xf]
    %v2655 = vld [vmem:[#allocation10 + $0x43c] sm:$0xf]
    %v2656 = vld [vmem:[#allocation10 + $0x440] sm:$0xf]
    %v2657 = vld [vmem:[#allocation10 + $0x444] sm:$0xf]
    %v2658 = vld [vmem:[#allocation10 + $0x448] sm:$0xf]
    %v2659 = vld [vmem:[#allocation10 + $0x44c] sm:$0xf]
    %v2660 = vld [vmem:[#allocation10 + $0x450] sm:$0xf]
    %v2661 = vld [vmem:[#allocation10 + $0x454] sm:$0xf]
    %v2662 = vld [vmem:[#allocation10 + $0x458] sm:$0xf]
    %v2663 = vld [vmem:[#allocation10 + $0x45c] sm:$0xf]
    %v2664 = vld [vmem:[#allocation10 + $0x460] sm:$0xf]
    %v2665 = vld [vmem:[#allocation10 + $0x464] sm:$0xf]
    %v2666 = vld [vmem:[#allocation10 + $0x468] sm:$0xf]
    %v2667 = vld [vmem:[#allocation10 + $0x46c] sm:$0xf]
    %v2668 = vld [vmem:[#allocation10 + $0x470] sm:$0xf]
    %v2669 = vld [vmem:[#allocation10 + $0x474] sm:$0xf]
    %v2670 = vld [vmem:[#allocation10 + $0x478] sm:$0xf]
    %v2671 = vld [vmem:[#allocation10 + $0x47c] sm:$0xf]
    %v2672 = vld [vmem:[#allocation10 + $0x480] sm:$0xf]
    %v2673 = vld [vmem:[#allocation10 + $0x484] sm:$0xf]
    %v2674 = vld [vmem:[#allocation10 + $0x488] sm:$0xf]
    %v2675 = vld [vmem:[#allocation10 + $0x48c] sm:$0xf]
    %v2676 = vld [vmem:[#allocation10 + $0x490] sm:$0xf]
    %v2677 = vld [vmem:[#allocation10 + $0x494] sm:$0xf]
    %v2678 = vld [vmem:[#allocation10 + $0x498] sm:$0xf]
    %v2679 = vld [vmem:[#allocation10 + $0x49c] sm:$0xf]
    %v2680 = vld [vmem:[#allocation10 + $0x4a0] sm:$0xf]
    %v2681 = vld [vmem:[#allocation10 + $0x4a4] sm:$0xf]
    %v2682 = vld [vmem:[#allocation10 + $0x4a8] sm:$0xf]
    %v2683 = vld [vmem:[#allocation10 + $0x4ac] sm:$0xf]
    %v2684 = vld [vmem:[#allocation10 + $0x4b0] sm:$0xf]
    %v2685 = vld [vmem:[#allocation10 + $0x4b4] sm:$0xf]
    %v2686 = vld [vmem:[#allocation10 + $0x4b8] sm:$0xf]
    %v2687 = vld [vmem:[#allocation10 + $0x4bc] sm:$0xf]
    %v2688 = vld [vmem:[#allocation10 + $0x4c0] sm:$0xf]
    %v2689 = vld [vmem:[#allocation10 + $0x4c4] sm:$0xf]
    %v2690 = vld [vmem:[#allocation10 + $0x4c8] sm:$0xf]
    %v2691 = vld [vmem:[#allocation10 + $0x4cc] sm:$0xf]
    %v2692 = vld [vmem:[#allocation10 + $0x4d0] sm:$0xf]
    %v2693 = vld [vmem:[#allocation10 + $0x4d4] sm:$0xf]
    %v2694 = vld [vmem:[#allocation10 + $0x4d8] sm:$0xf]
    %v2695 = vld [vmem:[#allocation10 + $0x4dc] sm:$0xf]
    %v2696 = vld [vmem:[#allocation10 + $0x4e0] sm:$0xf]
    %v2697 = vld [vmem:[#allocation10 + $0x4e4] sm:$0xf]
    %v2698 = vld [vmem:[#allocation10 + $0x4e8] sm:$0xf]
    %v2699 = vld [vmem:[#allocation10 + $0x4ec] sm:$0xf]
    %v2700 = vld [vmem:[#allocation10 + $0x4f0] sm:$0xf]
    %v2701 = vld [vmem:[#allocation10 + $0x4f4] sm:$0xf]
    %v2702 = vld [vmem:[#allocation10 + $0x4f8] sm:$0xf]
    %v2703 = vld [vmem:[#allocation10 + $0x4fc] sm:$0xf]
    %v2704 = vld [vmem:[%s6] sm:$0x1]
    %v2706 = vlaneseq
    %v2707 = vshrl.u32 %v2706, 7
    %v2708 = vsub.s32 0, %v2707
    %v2709 = vrot.slane %v2704, %v2708
    %v3031 = vunpack.c.l.b16 %v2384
    %v3032 = vunpack.c.l.b16 %v2385
    %v3033 = vunpack.c.l.b16 %v2386
    %v3034 = vunpack.c.l.b16 %v2387
    %v3035 = vunpack.c.l.b16 %v2388
    %v3036 = vunpack.c.l.b16 %v2389
    %v3037 = vunpack.c.l.b16 %v2390
    %v3038 = vunpack.c.l.b16 %v2391
    %v3039 = vunpack.c.l.b16 %v2392
    %v3040 = vunpack.c.l.b16 %v2393
    %v3041 = vunpack.c.l.b16 %v2394
    %v3042 = vunpack.c.l.b16 %v2395
    %v3043 = vunpack.c.l.b16 %v2396
    %v3044 = vunpack.c.l.b16 %v2397
    %v3045 = vunpack.c.l.b16 %v2398
    %v3046 = vunpack.c.l.b16 %v2399
    %v3047 = vunpack.c.l.b16 %v2400
    %v3048 = vunpack.c.l.b16 %v2401
    %v3049 = vunpack.c.l.b16 %v2402
    %v3050 = vunpack.c.l.b16 %v2403
    %v3051 = vunpack.c.l.b16 %v2404
    %v3052 = vunpack.c.l.b16 %v2405
    %v3053 = vunpack.c.l.b16 %v2406
    %v3054 = vunpack.c.l.b16 %v2407
    %v3055 = vunpack.c.l.b16 %v2408
    %v3056 = vunpack.c.l.b16 %v2409
    %v3057 = vunpack.c.l.b16 %v2410
    %v3058 = vunpack.c.l.b16 %v2411
    %v3059 = vunpack.c.l.b16 %v2412
    %v3060 = vunpack.c.l.b16 %v2413
    %v3061 = vunpack.c.l.b16 %v2414
    %v3062 = vunpack.c.l.b16 %v2415
    %v3063 = vunpack.c.l.b16 %v2416
    %v3064 = vunpack.c.l.b16 %v2417
    %v3065 = vunpack.c.l.b16 %v2418
    %v3066 = vunpack.c.l.b16 %v2419
    %v3067 = vunpack.c.l.b16 %v2420
    %v3068 = vunpack.c.l.b16 %v2421
    %v3069 = vunpack.c.l.b16 %v2422
    %v3070 = vunpack.c.l.b16 %v2423
    %v3071 = vunpack.c.l.b16 %v2424
    %v3072 = vunpack.c.l.b16 %v2425
    %v3073 = vunpack.c.l.b16 %v2426
    %v3074 = vunpack.c.l.b16 %v2427
    %v3075 = vunpack.c.l.b16 %v2428
    %v3076 = vunpack.c.l.b16 %v2429
    %v3077 = vunpack.c.l.b16 %v2430
    %v3078 = vunpack.c.l.b16 %v2431
    %v3079 = vunpack.c.l.b16 %v2432
    %v3080 = vunpack.c.l.b16 %v2433
    %v3081 = vunpack.c.l.b16 %v2434
    %v3082 = vunpack.c.l.b16 %v2435
    %v3083 = vunpack.c.l.b16 %v2436
    %v3084 = vunpack.c.l.b16 %v2437
    %v3085 = vunpack.c.l.b16 %v2438
    %v3086 = vunpack.c.l.b16 %v2439
    %v3087 = vunpack.c.l.b16 %v2440
    %v3088 = vunpack.c.l.b16 %v2441
    %v3089 = vunpack.c.l.b16 %v2442
    %v3090 = vunpack.c.l.b16 %v2443
    %v3091 = vunpack.c.l.b16 %v2444
    %v3092 = vunpack.c.l.b16 %v2445
    %v3093 = vunpack.c.l.b16 %v2446
    %v3094 = vunpack.c.l.b16 %v2447
    %v3095 = vunpack.c.l.b16 %v2448
    %v3096 = vunpack.c.l.b16 %v2449
    %v3097 = vunpack.c.l.b16 %v2450
    %v3098 = vunpack.c.l.b16 %v2451
    %v3099 = vunpack.c.l.b16 %v2452
    %v3100 = vunpack.c.l.b16 %v2453
    %v3101 = vunpack.c.l.b16 %v2454
    %v3102 = vunpack.c.l.b16 %v2455
    %v3103 = vunpack.c.l.b16 %v2456
    %v3104 = vunpack.c.l.b16 %v2457
    %v3105 = vunpack.c.l.b16 %v2458
    %v3106 = vunpack.c.l.b16 %v2459
    %v3107 = vunpack.c.l.b16 %v2460
    %v3108 = vunpack.c.l.b16 %v2461
    %v3109 = vunpack.c.l.b16 %v2462
    %v3110 = vunpack.c.l.b16 %v2463
    %v3111 = vunpack.c.l.b16 %v2464
    %v3112 = vunpack.c.l.b16 %v2465
    %v3113 = vunpack.c.l.b16 %v2466
    %v3114 = vunpack.c.l.b16 %v2467
    %v3115 = vunpack.c.l.b16 %v2468
    %v3116 = vunpack.c.l.b16 %v2469
    %v3117 = vunpack.c.l.b16 %v2470
    %v3118 = vunpack.c.l.b16 %v2471
    %v3119 = vunpack.c.l.b16 %v2472
    %v3120 = vunpack.c.l.b16 %v2473
    %v3121 = vunpack.c.l.b16 %v2474
    %v3122 = vunpack.c.l.b16 %v2475
    %v3123 = vunpack.c.l.b16 %v2476
    %v3124 = vunpack.c.l.b16 %v2477
    %v3125 = vunpack.c.l.b16 %v2478
    %v3126 = vunpack.c.l.b16 %v2479
    %v3127 = vunpack.c.l.b16 %v2480
    %v3128 = vunpack.c.l.b16 %v2481
    %v3129 = vunpack.c.l.b16 %v2482
    %v3130 = vunpack.c.l.b16 %v2483
    %v3131 = vunpack.c.l.b16 %v2484
    %v3132 = vunpack.c.l.b16 %v2485
    %v3133 = vunpack.c.l.b16 %v2486
    %v3134 = vunpack.c.l.b16 %v2487
    %v3135 = vunpack.c.l.b16 %v2488
    %v3136 = vunpack.c.l.b16 %v2489
    %v3137 = vunpack.c.l.b16 %v2490
    %v3138 = vunpack.c.l.b16 %v2491
    %v3139 = vunpack.c.l.b16 %v2492
    %v3140 = vunpack.c.l.b16 %v2493
    %v3141 = vunpack.c.l.b16 %v2494
    %v3142 = vunpack.c.l.b16 %v2495
    %v3143 = vunpack.c.l.b16 %v2496
    %v3144 = vunpack.c.l.b16 %v2497
    %v3145 = vunpack.c.l.b16 %v2498
    %v3146 = vunpack.c.l.b16 %v2499
    %v3147 = vunpack.c.l.b16 %v2500
    %v3148 = vunpack.c.l.b16 %v2501
    %v3149 = vunpack.c.l.b16 %v2502
    %v3150 = vunpack.c.l.b16 %v2503
    %v3151 = vunpack.c.l.b16 %v2504
    %v3152 = vunpack.c.l.b16 %v2505
    %v3153 = vunpack.c.l.b16 %v2506
    %v3154 = vunpack.c.l.b16 %v2507
    %v3155 = vunpack.c.l.b16 %v2508
    %v3156 = vunpack.c.l.b16 %v2509
    %v3157 = vunpack.c.l.b16 %v2510
    %v3158 = vunpack.c.l.b16 %v2511
    %v3159 = vunpack.c.l.b16 %v2512
    %v3160 = vunpack.c.l.b16 %v2513
    %v3161 = vunpack.c.l.b16 %v2514
    %v3162 = vunpack.c.l.b16 %v2515
    %v3163 = vunpack.c.l.b16 %v2516
    %v3164 = vunpack.c.l.b16 %v2517
    %v3165 = vunpack.c.l.b16 %v2518
    %v3166 = vunpack.c.l.b16 %v2519
    %v3167 = vunpack.c.l.b16 %v2520
    %v3168 = vunpack.c.l.b16 %v2521
    %v3169 = vunpack.c.l.b16 %v2522
    %v3170 = vunpack.c.l.b16 %v2523
    %v3171 = vunpack.c.l.b16 %v2524
    %v3172 = vunpack.c.l.b16 %v2525
    %v3173 = vunpack.c.l.b16 %v2526
    %v3174 = vunpack.c.l.b16 %v2527
    %v3175 = vunpack.c.l.b16 %v2528
    %v3176 = vunpack.c.l.b16 %v2529
    %v3177 = vunpack.c.l.b16 %v2530
    %v3178 = vunpack.c.l.b16 %v2531
    %v3179 = vunpack.c.l.b16 %v2532
    %v3180 = vunpack.c.l.b16 %v2533
    %v3181 = vunpack.c.l.b16 %v2534
    %v3182 = vunpack.c.l.b16 %v2535
    %v3183 = vunpack.c.l.b16 %v2536
    %v3184 = vunpack.c.l.b16 %v2537
    %v3185 = vunpack.c.l.b16 %v2538
    %v3186 = vunpack.c.l.b16 %v2539
    %v3187 = vunpack.c.l.b16 %v2540
    %v3188 = vunpack.c.l.b16 %v2541
    %v3189 = vunpack.c.l.b16 %v2542
    %v3190 = vunpack.c.l.b16 %v2543
    %v3191 = vunpack.c.l.b16 %v2544
    %v3192 = vunpack.c.l.b16 %v2545
    %v3193 = vunpack.c.l.b16 %v2546
    %v3194 = vunpack.c.l.b16 %v2547
    %v3195 = vunpack.c.l.b16 %v2548
    %v3196 = vunpack.c.l.b16 %v2549
    %v3197 = vunpack.c.l.b16 %v2550
    %v3198 = vunpack.c.l.b16 %v2551
    %v3199 = vunpack.c.l.b16 %v2552
    %v3200 = vunpack.c.l.b16 %v2553
    %v3201 = vunpack.c.l.b16 %v2554
    %v3202 = vunpack.c.l.b16 %v2555
    %v3203 = vunpack.c.l.b16 %v2556
    %v3204 = vunpack.c.l.b16 %v2557
    %v3205 = vunpack.c.l.b16 %v2558
    %v3206 = vunpack.c.l.b16 %v2559
    %v3207 = vunpack.c.l.b16 %v2560
    %v3208 = vunpack.c.l.b16 %v2561
    %v3209 = vunpack.c.l.b16 %v2562
    %v3210 = vunpack.c.l.b16 %v2563
    %v3211 = vunpack.c.l.b16 %v2564
    %v3212 = vunpack.c.l.b16 %v2565
    %v3213 = vunpack.c.l.b16 %v2566
    %v3214 = vunpack.c.l.b16 %v2567
    %v3215 = vunpack.c.l.b16 %v2568
    %v3216 = vunpack.c.l.b16 %v2569
    %v3217 = vunpack.c.l.b16 %v2570
    %v3218 = vunpack.c.l.b16 %v2571
    %v3219 = vunpack.c.l.b16 %v2572
    %v3220 = vunpack.c.l.b16 %v2573
    %v3221 = vunpack.c.l.b16 %v2574
    %v3222 = vunpack.c.l.b16 %v2575
    %v3223 = vunpack.c.l.b16 %v2576
    %v3224 = vunpack.c.l.b16 %v2577
    %v3225 = vunpack.c.l.b16 %v2578
    %v3226 = vunpack.c.l.b16 %v2579
    %v3227 = vunpack.c.l.b16 %v2580
    %v3228 = vunpack.c.l.b16 %v2581
    %v3229 = vunpack.c.l.b16 %v2582
    %v3230 = vunpack.c.l.b16 %v2583
    %v3231 = vunpack.c.l.b16 %v2584
    %v3232 = vunpack.c.l.b16 %v2585
    %v3233 = vunpack.c.l.b16 %v2586
    %v3234 = vunpack.c.l.b16 %v2587
    %v3235 = vunpack.c.l.b16 %v2588
    %v3236 = vunpack.c.l.b16 %v2589
    %v3237 = vunpack.c.l.b16 %v2590
    %v3238 = vunpack.c.l.b16 %v2591
    %v3239 = vunpack.c.l.b16 %v2592
    %v3240 = vunpack.c.l.b16 %v2593
    %v3241 = vunpack.c.l.b16 %v2594
    %v3242 = vunpack.c.l.b16 %v2595
    %v3243 = vunpack.c.l.b16 %v2596
    %v3244 = vunpack.c.l.b16 %v2597
    %v3245 = vunpack.c.l.b16 %v2598
    %v3246 = vunpack.c.l.b16 %v2599
    %v3247 = vunpack.c.l.b16 %v2600
    %v3248 = vunpack.c.l.b16 %v2601
    %v3249 = vunpack.c.l.b16 %v2602
    %v3250 = vunpack.c.l.b16 %v2603
    %v3251 = vunpack.c.l.b16 %v2604
    %v3252 = vunpack.c.l.b16 %v2605
    %v3253 = vunpack.c.l.b16 %v2606
    %v3254 = vunpack.c.l.b16 %v2607
    %v3255 = vunpack.c.l.b16 %v2608
    %v3256 = vunpack.c.l.b16 %v2609
    %v3257 = vunpack.c.l.b16 %v2610
    %v3258 = vunpack.c.l.b16 %v2611
    %v3259 = vunpack.c.l.b16 %v2612
    %v3260 = vunpack.c.l.b16 %v2613
    %v3261 = vunpack.c.l.b16 %v2614
    %v3262 = vunpack.c.l.b16 %v2615
    %v3263 = vunpack.c.l.b16 %v2616
    %v3264 = vunpack.c.l.b16 %v2617
    %v3265 = vunpack.c.l.b16 %v2618
    %v3266 = vunpack.c.l.b16 %v2619
    %v3267 = vunpack.c.l.b16 %v2620
    %v3268 = vunpack.c.l.b16 %v2621
    %v3269 = vunpack.c.l.b16 %v2622
    %v3270 = vunpack.c.l.b16 %v2623
    %v3271 = vunpack.c.l.b16 %v2624
    %v3272 = vunpack.c.l.b16 %v2625
    %v3273 = vunpack.c.l.b16 %v2626
    %v3274 = vunpack.c.l.b16 %v2627
    %v3275 = vunpack.c.l.b16 %v2628
    %v3276 = vunpack.c.l.b16 %v2629
    %v3277 = vunpack.c.l.b16 %v2630
    %v3278 = vunpack.c.l.b16 %v2631
    %v3279 = vunpack.c.l.b16 %v2632
    %v3280 = vunpack.c.l.b16 %v2633
    %v3281 = vunpack.c.l.b16 %v2634
    %v3282 = vunpack.c.l.b16 %v2635
    %v3283 = vunpack.c.l.b16 %v2636
    %v3284 = vunpack.c.l.b16 %v2637
    %v3285 = vunpack.c.l.b16 %v2638
    %v3286 = vunpack.c.l.b16 %v2639
    %v3287 = vunpack.c.l.b16 %v2640
    %v3288 = vunpack.c.l.b16 %v2641
    %v3289 = vunpack.c.l.b16 %v2642
    %v3290 = vunpack.c.l.b16 %v2643
    %v3291 = vunpack.c.l.b16 %v2644
    %v3292 = vunpack.c.l.b16 %v2645
    %v3293 = vunpack.c.l.b16 %v2646
    %v3294 = vunpack.c.l.b16 %v2647
    %v3295 = vunpack.c.l.b16 %v2648
    %v3296 = vunpack.c.l.b16 %v2649
    %v3297 = vunpack.c.l.b16 %v2650
    %v3298 = vunpack.c.l.b16 %v2651
    %v3299 = vunpack.c.l.b16 %v2652
    %v3300 = vunpack.c.l.b16 %v2653
    %v3301 = vunpack.c.l.b16 %v2654
    %v3302 = vunpack.c.l.b16 %v2655
    %v3303 = vunpack.c.l.b16 %v2656
    %v3304 = vunpack.c.l.b16 %v2657
    %v3305 = vunpack.c.l.b16 %v2658
    %v3306 = vunpack.c.l.b16 %v2659
    %v3307 = vunpack.c.l.b16 %v2660
    %v3308 = vunpack.c.l.b16 %v2661
    %v3309 = vunpack.c.l.b16 %v2662
    %v3310 = vunpack.c.l.b16 %v2663
    %v3311 = vunpack.c.l.b16 %v2664
    %v3312 = vunpack.c.l.b16 %v2665
    %v3313 = vunpack.c.l.b16 %v2666
    %v3314 = vunpack.c.l.b16 %v2667
    %v3315 = vunpack.c.l.b16 %v2668
    %v3316 = vunpack.c.l.b16 %v2669
    %v3317 = vunpack.c.l.b16 %v2670
    %v3318 = vunpack.c.l.b16 %v2671
    %v3319 = vunpack.c.l.b16 %v2672
    %v3320 = vunpack.c.l.b16 %v2673
    %v3321 = vunpack.c.l.b16 %v2674
    %v3322 = vunpack.c.l.b16 %v2675
    %v3323 = vunpack.c.l.b16 %v2676
    %v3324 = vunpack.c.l.b16 %v2677
    %v3325 = vunpack.c.l.b16 %v2678
    %v3326 = vunpack.c.l.b16 %v2679
    %v3327 = vunpack.c.l.b16 %v2680
    %v3328 = vunpack.c.l.b16 %v2681
    %v3329 = vunpack.c.l.b16 %v2682
    %v3330 = vunpack.c.l.b16 %v2683
    %v3331 = vunpack.c.l.b16 %v2684
    %v3332 = vunpack.c.l.b16 %v2685
    %v3333 = vunpack.c.l.b16 %v2686
    %v3334 = vunpack.c.l.b16 %v2687
    %v3335 = vunpack.c.l.b16 %v2688
    %v3336 = vunpack.c.l.b16 %v2689
    %v3337 = vunpack.c.l.b16 %v2690
    %v3338 = vunpack.c.l.b16 %v2691
    %v3339 = vunpack.c.l.b16 %v2692
    %v3340 = vunpack.c.l.b16 %v2693
    %v3341 = vunpack.c.l.b16 %v2694
    %v3342 = vunpack.c.l.b16 %v2695
    %v3343 = vunpack.c.l.b16 %v2696
    %v3344 = vunpack.c.l.b16 %v2697
    %v3345 = vunpack.c.l.b16 %v2698
    %v3346 = vunpack.c.l.b16 %v2699
    %v3347 = vunpack.c.l.b16 %v2700
    %v3348 = vunpack.c.l.b16 %v2701
    %v3349 = vunpack.c.l.b16 %v2702
    %v3350 = vunpack.c.l.b16 %v2703
    %v3351 = vpack.c.b16 %v3032, %v3031
    %v3352 = vpack.c.b16 %v3034, %v3033
    %v3353 = vpack.c.b16 %v3036, %v3035
    %v3354 = vpack.c.b16 %v3038, %v3037
    %v3355 = vpack.c.b16 %v3040, %v3039
    %v3356 = vpack.c.b16 %v3042, %v3041
    %v3357 = vpack.c.b16 %v3044, %v3043
    %v3358 = vpack.c.b16 %v3046, %v3045
    %v3359 = vpack.c.b16 %v3048, %v3047
    %v3360 = vpack.c.b16 %v3050, %v3049
    %v3361 = vpack.c.b16 %v3052, %v3051
    %v3362 = vpack.c.b16 %v3054, %v3053
    %v3363 = vpack.c.b16 %v3056, %v3055
    %v3364 = vpack.c.b16 %v3058, %v3057
    %v3365 = vpack.c.b16 %v3060, %v3059
    %v3366 = vpack.c.b16 %v3062, %v3061
    %v3367 = vpack.c.b16 %v3064, %v3063
    %v3368 = vpack.c.b16 %v3066, %v3065
    %v3369 = vpack.c.b16 %v3068, %v3067
    %v3370 = vpack.c.b16 %v3070, %v3069
    %v3371 = vpack.c.b16 %v3072, %v3071
    %v3372 = vpack.c.b16 %v3074, %v3073
    %v3373 = vpack.c.b16 %v3076, %v3075
    %v3374 = vpack.c.b16 %v3078, %v3077
    %v3375 = vpack.c.b16 %v3080, %v3079
    %v3376 = vpack.c.b16 %v3082, %v3081
    %v3377 = vpack.c.b16 %v3084, %v3083
    %v3378 = vpack.c.b16 %v3086, %v3085
    %v3379 = vpack.c.b16 %v3088, %v3087
    %v3380 = vpack.c.b16 %v3090, %v3089
    %v3381 = vpack.c.b16 %v3092, %v3091
    %v3382 = vpack.c.b16 %v3094, %v3093
    %v3383 = vpack.c.b16 %v3096, %v3095
    %v3384 = vpack.c.b16 %v3098, %v3097
    %v3385 = vpack.c.b16 %v3100, %v3099
    %v3386 = vpack.c.b16 %v3102, %v3101
    %v3387 = vpack.c.b16 %v3104, %v3103
    %v3388 = vpack.c.b16 %v3106, %v3105
    %v3389 = vpack.c.b16 %v3108, %v3107
    %v3390 = vpack.c.b16 %v3110, %v3109
    %v3391 = vpack.c.b16 %v3112, %v3111
    %v3392 = vpack.c.b16 %v3114, %v3113
    %v3393 = vpack.c.b16 %v3116, %v3115
    %v3394 = vpack.c.b16 %v3118, %v3117
    %v3395 = vpack.c.b16 %v3120, %v3119
    %v3396 = vpack.c.b16 %v3122, %v3121
    %v3397 = vpack.c.b16 %v3124, %v3123
    %v3398 = vpack.c.b16 %v3126, %v3125
    %v3399 = vpack.c.b16 %v3128, %v3127
    %v3400 = vpack.c.b16 %v3130, %v3129
    %v3401 = vpack.c.b16 %v3132, %v3131
    %v3402 = vpack.c.b16 %v3134, %v3133
    %v3403 = vpack.c.b16 %v3136, %v3135
    %v3404 = vpack.c.b16 %v3138, %v3137
    %v3405 = vpack.c.b16 %v3140, %v3139
    %v3406 = vpack.c.b16 %v3142, %v3141
    %v3407 = vpack.c.b16 %v3144, %v3143
    %v3408 = vpack.c.b16 %v3146, %v3145
    %v3409 = vpack.c.b16 %v3148, %v3147
    %v3410 = vpack.c.b16 %v3150, %v3149
    %v3411 = vpack.c.b16 %v3152, %v3151
    %v3412 = vpack.c.b16 %v3154, %v3153
    %v3413 = vpack.c.b16 %v3156, %v3155
    %v3414 = vpack.c.b16 %v3158, %v3157
    %v3415 = vpack.c.b16 %v3160, %v3159
    %v3416 = vpack.c.b16 %v3162, %v3161
    %v3417 = vpack.c.b16 %v3164, %v3163
    %v3418 = vpack.c.b16 %v3166, %v3165
    %v3419 = vpack.c.b16 %v3168, %v3167
    %v3420 = vpack.c.b16 %v3170, %v3169
    %v3421 = vpack.c.b16 %v3172, %v3171
    %v3422 = vpack.c.b16 %v3174, %v3173
    %v3423 = vpack.c.b16 %v3176, %v3175
    %v3424 = vpack.c.b16 %v3178, %v3177
    %v3425 = vpack.c.b16 %v3180, %v3179
    %v3426 = vpack.c.b16 %v3182, %v3181
    %v3427 = vpack.c.b16 %v3184, %v3183
    %v3428 = vpack.c.b16 %v3186, %v3185
    %v3429 = vpack.c.b16 %v3188, %v3187
    %v3430 = vpack.c.b16 %v3190, %v3189
    %v3431 = vpack.c.b16 %v3192, %v3191
    %v3432 = vpack.c.b16 %v3194, %v3193
    %v3433 = vpack.c.b16 %v3196, %v3195
    %v3434 = vpack.c.b16 %v3198, %v3197
    %v3435 = vpack.c.b16 %v3200, %v3199
    %v3436 = vpack.c.b16 %v3202, %v3201
    %v3437 = vpack.c.b16 %v3204, %v3203
    %v3438 = vpack.c.b16 %v3206, %v3205
    %v3439 = vpack.c.b16 %v3208, %v3207
    %v3440 = vpack.c.b16 %v3210, %v3209
    %v3441 = vpack.c.b16 %v3212, %v3211
    %v3442 = vpack.c.b16 %v3214, %v3213
    %v3443 = vpack.c.b16 %v3216, %v3215
    %v3444 = vpack.c.b16 %v3218, %v3217
    %v3445 = vpack.c.b16 %v3220, %v3219
    %v3446 = vpack.c.b16 %v3222, %v3221
    %v3447 = vpack.c.b16 %v3224, %v3223
    %v3448 = vpack.c.b16 %v3226, %v3225
    %v3449 = vpack.c.b16 %v3228, %v3227
    %v3450 = vpack.c.b16 %v3230, %v3229
    %v3451 = vpack.c.b16 %v3232, %v3231
    %v3452 = vpack.c.b16 %v3234, %v3233
    %v3453 = vpack.c.b16 %v3236, %v3235
    %v3454 = vpack.c.b16 %v3238, %v3237
    %v3455 = vpack.c.b16 %v3240, %v3239
    %v3456 = vpack.c.b16 %v3242, %v3241
    %v3457 = vpack.c.b16 %v3244, %v3243
    %v3458 = vpack.c.b16 %v3246, %v3245
    %v3459 = vpack.c.b16 %v3248, %v3247
    %v3460 = vpack.c.b16 %v3250, %v3249
    %v3461 = vpack.c.b16 %v3252, %v3251
    %v3462 = vpack.c.b16 %v3254, %v3253
    %v3463 = vpack.c.b16 %v3256, %v3255
    %v3464 = vpack.c.b16 %v3258, %v3257
    %v3465 = vpack.c.b16 %v3260, %v3259
    %v3466 = vpack.c.b16 %v3262, %v3261
    %v3467 = vpack.c.b16 %v3264, %v3263
    %v3468 = vpack.c.b16 %v3266, %v3265
    %v3469 = vpack.c.b16 %v3268, %v3267
    %v3470 = vpack.c.b16 %v3270, %v3269
    %v3471 = vpack.c.b16 %v3272, %v3271
    %v3472 = vpack.c.b16 %v3274, %v3273
    %v3473 = vpack.c.b16 %v3276, %v3275
    %v3474 = vpack.c.b16 %v3278, %v3277
    %v3475 = vpack.c.b16 %v3280, %v3279
    %v3476 = vpack.c.b16 %v3282, %v3281
    %v3477 = vpack.c.b16 %v3284, %v3283
    %v3478 = vpack.c.b16 %v3286, %v3285
    %v3479 = vpack.c.b16 %v3288, %v3287
    %v3480 = vpack.c.b16 %v3290, %v3289
    %v3481 = vpack.c.b16 %v3292, %v3291
    %v3482 = vpack.c.b16 %v3294, %v3293
    %v3483 = vpack.c.b16 %v3296, %v3295
    %v3484 = vpack.c.b16 %v3298, %v3297
    %v3485 = vpack.c.b16 %v3300, %v3299
    %v3486 = vpack.c.b16 %v3302, %v3301
    %v3487 = vpack.c.b16 %v3304, %v3303
    %v3488 = vpack.c.b16 %v3306, %v3305
    %v3489 = vpack.c.b16 %v3308, %v3307
    %v3490 = vpack.c.b16 %v3310, %v3309
    %v3491 = vpack.c.b16 %v3312, %v3311
    %v3492 = vpack.c.b16 %v3314, %v3313
    %v3493 = vpack.c.b16 %v3316, %v3315
    %v3494 = vpack.c.b16 %v3318, %v3317
    %v3495 = vpack.c.b16 %v3320, %v3319
    %v3496 = vpack.c.b16 %v3322, %v3321
    %v3497 = vpack.c.b16 %v3324, %v3323
    %v3498 = vpack.c.b16 %v3326, %v3325
    %v3499 = vpack.c.b16 %v3328, %v3327
    %v3500 = vpack.c.b16 %v3330, %v3329
    %v3501 = vpack.c.b16 %v3332, %v3331
    %v3502 = vpack.c.b16 %v3334, %v3333
    %v3503 = vpack.c.b16 %v3336, %v3335
    %v3504 = vpack.c.b16 %v3338, %v3337
    %v3505 = vpack.c.b16 %v3340, %v3339
    %v3506 = vpack.c.b16 %v3342, %v3341
    %v3507 = vpack.c.b16 %v3344, %v3343
    %v3508 = vpack.c.b16 %v3346, %v3345
    %v3509 = vpack.c.b16 %v3348, %v3347
    %v3510 = vpack.c.b16 %v3350, %v3349
    %3671 = vmatprep.subr.bf16.mxu0 0
    %3672 = vmatpush1.bf16.msra.mxu0 %v3351
    %3673 = vmatprep.subr.bf16.mxu0 0
    %3674 = vmatpush1.bf16.msra.mxu0 %v3352
    %3675 = vmatprep.subr.bf16.mxu0 0
    %3676 = vmatpush1.bf16.msra.mxu0 %v3353
    %3677 = vmatprep.subr.bf16.mxu0 0
    %3678 = vmatpush1.bf16.msra.mxu0 %v3354
    %3679 = vmatprep.subr.bf16.mxu0 0
    %3680 = vmatpush1.bf16.msra.mxu0 %v3355
    %3681 = vmatprep.subr.bf16.mxu0 0
    %3682 = vmatpush1.bf16.msra.mxu0 %v3356
    %3683 = vmatprep.subr.bf16.mxu0 0
    %3684 = vmatpush1.bf16.msra.mxu0 %v3357
    %3685 = vmatprep.subr.bf16.mxu0 0
    %3686 = vmatpush1.bf16.msra.mxu0 %v3358
    %3687 = vmatprep.subr.bf16.mxu0 0
    %3688 = vmatpush1.bf16.msra.mxu0 %v3359
    %3689 = vmatprep.subr.bf16.mxu0 0
    %3690 = vmatpush1.bf16.msra.mxu0 %v3360
    %3691 = vmatprep.subr.bf16.mxu0 0
    %3692 = vmatpush1.bf16.msra.mxu0 %v3361
    %3693 = vmatprep.subr.bf16.mxu0 0
    %3694 = vmatpush1.bf16.msra.mxu0 %v3362
    %3695 = vmatprep.subr.bf16.mxu0 0
    %3696 = vmatpush1.bf16.msra.mxu0 %v3363
    %3697 = vmatprep.subr.bf16.mxu0 0
    %3698 = vmatpush1.bf16.msra.mxu0 %v3364
    %3699 = vmatprep.subr.bf16.mxu0 0
    %3700 = vmatpush1.bf16.msra.mxu0 %v3365
    %3701 = vmatprep.subr.bf16.mxu0 0
    %3702 = vmatpush1.bf16.msra.mxu0 %v3366
    %3703 = vmatprep.mubr.bf16.mxu0 %v2365
    %3704 = vmatmul.mubr.bf16.gmra.mrb[0].mxu0 %v2364
    %v3705 = vpop.f32.mrb[0].mxu0
    %v3706 = vadd.f32 %v2709, %v3705
    %v3707 = vpop.f32.mrb[0].mxu0
    %v3708 = vpop.f32.mrb[0].mxu0
    %v3709 = vadd.f32 %v2709, %v3708
    %v3710 = vpop.f32.mrb[0].mxu0
    %3711 = vdwg.mxu0
    %3712 = vmatprep.subr.bf16.mxu0 0
    %3713 = vmatpush1.bf16.msra.mxu0 %v3367
    %3714 = vmatprep.subr.bf16.mxu0 0
    %3715 = vmatpush1.bf16.msra.mxu0 %v3368
    %3716 = vmatprep.subr.bf16.mxu0 0
    %3717 = vmatpush1.bf16.msra.mxu0 %v3369
    %3718 = vmatprep.subr.bf16.mxu0 0
    %3719 = vmatpush1.bf16.msra.mxu0 %v3370
    %3720 = vmatprep.subr.bf16.mxu0 0
    %3721 = vmatpush1.bf16.msra.mxu0 %v3371
    %3722 = vmatprep.subr.bf16.mxu0 0
    %3723 = vmatpush1.bf16.msra.mxu0 %v3372
    %3724 = vmatprep.subr.bf16.mxu0 0
    %3725 = vmatpush1.bf16.msra.mxu0 %v3373
    %3726 = vmatprep.subr.bf16.mxu0 0
    %3727 = vmatpush1.bf16.msra.mxu0 %v3374
    %3728 = vmatprep.subr.bf16.mxu0 0
    %3729 = vmatpush1.bf16.msra.mxu0 %v3375
    %3730 = vmatprep.subr.bf16.mxu0 0
    %3731 = vmatpush1.bf16.msra.mxu0 %v3376
    %3732 = vmatprep.subr.bf16.mxu0 0
    %3733 = vmatpush1.bf16.msra.mxu0 %v3377
    %3734 = vmatprep.subr.bf16.mxu0 0
    %3735 = vmatpush1.bf16.msra.mxu0 %v3378
    %3736 = vmatprep.subr.bf16.mxu0 0
    %3737 = vmatpush1.bf16.msra.mxu0 %v3379
    %3738 = vmatprep.subr.bf16.mxu0 0
    %3739 = vmatpush1.bf16.msra.mxu0 %v3380
    %3740 = vmatprep.subr.bf16.mxu0 0
    %3741 = vmatpush1.bf16.msra.mxu0 %v3381
    %3742 = vmatprep.subr.bf16.mxu0 0
    %3743 = vmatpush1.bf16.msra.mxu0 %v3382
    %3744 = vmatprep.mubr.bf16.mxu0 %v2367
    %3745 = vmatmul.mubr.bf16.gmra.mrb[0].mxu0 %v2366
    %v3746 = vpop.f32.mrb[0].mxu0
    %v3747 = vadd.f32 %v3706, %v3746
    %v3748 = vpop.f32.mrb[0].mxu0
    %v3749 = vpop.f32.mrb[0].mxu0
    %v3750 = vadd.f32 %v3709, %v3749
    %v3751 = vpop.f32.mrb[0].mxu0
    %3752 = vdwg.mxu0
    %3753 = vmatprep.subr.bf16.mxu0 0
    %3754 = vmatpush1.bf16.msra.mxu0 %v3383
    %3755 = vmatprep.subr.bf16.mxu0 0
    %3756 = vmatpush1.bf16.msra.mxu0 %v3384
    %3757 = vmatprep.subr.bf16.mxu0 0
    %3758 = vmatpush1.bf16.msra.mxu0 %v3385
    %3759 = vmatprep.subr.bf16.mxu0 0
    %3760 = vmatpush1.bf16.msra.mxu0 %v3386
    %3761 = vmatprep.subr.bf16.mxu0 0
    %3762 = vmatpush1.bf16.msra.mxu0 %v3387
    %3763 = vmatprep.subr.bf16.mxu0 0
    %3764 = vmatpush1.bf16.msra.mxu0 %v3388
    %3765 = vmatprep.subr.bf16.mxu0 0
    %3766 = vmatpush1.bf16.msra.mxu0 %v3389
    %3767 = vmatprep.subr.bf16.mxu0 0
    %3768 = vmatpush1.bf16.msra.mxu0 %v3390
    %3769 = vmatprep.subr.bf16.mxu0 0
    %3770 = vmatpush1.bf16.msra.mxu0 %v3391
    %3771 = vmatprep.subr.bf16.mxu0 0
    %3772 = vmatpush1.bf16.msra.mxu0 %v3392
    %3773 = vmatprep.subr.bf16.mxu0 0
    %3774 = vmatpush1.bf16.msra.mxu0 %v3393
    %3775 = vmatprep.subr.bf16.mxu0 0
    %3776 = vmatpush1.bf16.msra.mxu0 %v3394
    %3777 = vmatprep.subr.bf16.mxu0 0
    %3778 = vmatpush1.bf16.msra.mxu0 %v3395
    %3779 = vmatprep.subr.bf16.mxu0 0
    %3780 = vmatpush1.bf16.msra.mxu0 %v3396
    %3781 = vmatprep.subr.bf16.mxu0 0
    %3782 = vmatpush1.bf16.msra.mxu0 %v3397
    %3783 = vmatprep.subr.bf16.mxu0 0
    %3784 = vmatpush1.bf16.msra.mxu0 %v3398
    %3785 = vmatprep.mubr.bf16.mxu0 %v2369
    %3786 = vmatmul.mubr.bf16.gmra.mrb[0].mxu0 %v2368
    %v3787 = vpop.f32.mrb[0].mxu0
    %v3788 = vadd.f32 %v3747, %v3787
    %v3789 = vpop.f32.mrb[0].mxu0
    %v3790 = vpop.f32.mrb[0].mxu0
    %v3791 = vadd.f32 %v3750, %v3790
    %v3792 = vpop.f32.mrb[0].mxu0
    %3793 = vdwg.mxu0
    %3794 = vmatprep.subr.bf16.mxu0 0
    %3795 = vmatpush1.bf16.msra.mxu0 %v3399
    %3796 = vmatprep.subr.bf16.mxu0 0
    %3797 = vmatpush1.bf16.msra.mxu0 %v3400
    %3798 = vmatprep.subr.bf16.mxu0 0
    %3799 = vmatpush1.bf16.msra.mxu0 %v3401
    %3800 = vmatprep.subr.bf16.mxu0 0
    %3801 = vmatpush1.bf16.msra.mxu0 %v3402
    %3802 = vmatprep.subr.bf16.mxu0 0
    %3803 = vmatpush1.bf16.msra.mxu0 %v3403
    %3804 = vmatprep.subr.bf16.mxu0 0
    %3805 = vmatpush1.bf16.msra.mxu0 %v3404
    %3806 = vmatprep.subr.bf16.mxu0 0
    %3807 = vmatpush1.bf16.msra.mxu0 %v3405
    %3808 = vmatprep.subr.bf16.mxu0 0
    %3809 = vmatpush1.bf16.msra.mxu0 %v3406
    %3810 = vmatprep.subr.bf16.mxu0 0
    %3811 = vmatpush1.bf16.msra.mxu0 %v3407
    %3812 = vmatprep.subr.bf16.mxu0 0
    %3813 = vmatpush1.bf16.msra.mxu0 %v3408
    %3814 = vmatprep.subr.bf16.mxu0 0
    %3815 = vmatpush1.bf16.msra.mxu0 %v3409
    %3816 = vmatprep.subr.bf16.mxu0 0
    %3817 = vmatpush1.bf16.msra.mxu0 %v3410
    %3818 = vmatprep.subr.bf16.mxu0 0
    %3819 = vmatpush1.bf16.msra.mxu0 %v3411
    %3820 = vmatprep.subr.bf16.mxu0 0
    %3821 = vmatpush1.bf16.msra.mxu0 %v3412
    %3822 = vmatprep.subr.bf16.mxu0 0
    %3823 = vmatpush1.bf16.msra.mxu0 %v3413
    %3824 = vmatprep.subr.bf16.mxu0 0
    %3825 = vmatpush1.bf16.msra.mxu0 %v3414
    %3826 = vmatprep.mubr.bf16.mxu0 %v2371
    %3827 = vmatmul.mubr.bf16.gmra.mrb[0].mxu0 %v2370
    %v3828 = vpop.f32.mrb[0].mxu0
    %v3829 = vadd.f32 %v3788, %v3828
    %v3830 = vpop.f32.mrb[0].mxu0
    %v3831 = vpop.f32.mrb[0].mxu0
    %v3832 = vadd.f32 %v3791, %v3831
    %v3833 = vpop.f32.mrb[0].mxu0
    %3834 = vdwg.mxu0
    %3835 = vmatprep.subr.bf16.mxu0 0
    %3836 = vmatpush1.bf16.msra.mxu0 %v3415
    %3837 = vmatprep.subr.bf16.mxu0 0
    %3838 = vmatpush1.bf16.msra.mxu0 %v3416
    %3839 = vmatprep.subr.bf16.mxu0 0
    %3840 = vmatpush1.bf16.msra.mxu0 %v3417
    %3841 = vmatprep.subr.bf16.mxu0 0
    %3842 = vmatpush1.bf16.msra.mxu0 %v3418
    %3843 = vmatprep.subr.bf16.mxu0 0
    %3844 = vmatpush1.bf16.msra.mxu0 %v3419
    %3845 = vmatprep.subr.bf16.mxu0 0
    %3846 = vmatpush1.bf16.msra.mxu0 %v3420
    %3847 = vmatprep.subr.bf16.mxu0 0
    %3848 = vmatpush1.bf16.msra.mxu0 %v3421
    %3849 = vmatprep.subr.bf16.mxu0 0
    %3850 = vmatpush1.bf16.msra.mxu0 %v3422
    %3851 = vmatprep.subr.bf16.mxu0 0
    %3852 = vmatpush1.bf16.msra.mxu0 %v3423
    %3853 = vmatprep.subr.bf16.mxu0 0
    %3854 = vmatpush1.bf16.msra.mxu0 %v3424
    %3855 = vmatprep.subr.bf16.mxu0 0
    %3856 = vmatpush1.bf16.msra.mxu0 %v3425
    %3857 = vmatprep.subr.bf16.mxu0 0
    %3858 = vmatpush1.bf16.msra.mxu0 %v3426
    %3859 = vmatprep.subr.bf16.mxu0 0
    %3860 = vmatpush1.bf16.msra.mxu0 %v3427
    %3861 = vmatprep.subr.bf16.mxu0 0
    %3862 = vmatpush1.bf16.msra.mxu0 %v3428
    %3863 = vmatprep.subr.bf16.mxu0 0
    %3864 = vmatpush1.bf16.msra.mxu0 %v3429
    %3865 = vmatprep.subr.bf16.mxu0 0
    %3866 = vmatpush1.bf16.msra.mxu0 %v3430
    %3867 = vmatprep.mubr.bf16.mxu0 %v2373
    %3868 = vmatmul.mubr.bf16.gmra.mrb[0].mxu0 %v2372
    %v3869 = vpop.f32.mrb[0].mxu0
    %v3870 = vadd.f32 %v3829, %v3869
    %v3871 = vpop.f32.mrb[0].mxu0
    %v3872 = vpop.f32.mrb[0].mxu0
    %v3873 = vadd.f32 %v3832, %v3872
    %v3874 = vpop.f32.mrb[0].mxu0
    %3875 = vdwg.mxu0
    %3876 = vmatprep.subr.bf16.mxu0 0
    %3877 = vmatpush1.bf16.msra.mxu0 %v3431
    %3878 = vmatprep.subr.bf16.mxu0 0
    %3879 = vmatpush1.bf16.msra.mxu0 %v3432
    %3880 = vmatprep.subr.bf16.mxu0 0
    %3881 = vmatpush1.bf16.msra.mxu0 %v3433
    %3882 = vmatprep.subr.bf16.mxu0 0
    %3883 = vmatpush1.bf16.msra.mxu0 %v3434
    %3884 = vmatprep.subr.bf16.mxu0 0
    %3885 = vmatpush1.bf16.msra.mxu0 %v3435
    %3886 = vmatprep.subr.bf16.mxu0 0
    %3887 = vmatpush1.bf16.msra.mxu0 %v3436
    %3888 = vmatprep.subr.bf16.mxu0 0
    %3889 = vmatpush1.bf16.msra.mxu0 %v3437
    %3890 = vmatprep.subr.bf16.mxu0 0
    %3891 = vmatpush1.bf16.msra.mxu0 %v3438
    %3892 = vmatprep.subr.bf16.mxu0 0
    %3893 = vmatpush1.bf16.msra.mxu0 %v3439
    %3894 = vmatprep.subr.bf16.mxu0 0
    %3895 = vmatpush1.bf16.msra.mxu0 %v3440
    %3896 = vmatprep.subr.bf16.mxu0 0
    %3897 = vmatpush1.bf16.msra.mxu0 %v3441
    %3898 = vmatprep.subr.bf16.mxu0 0
    %3899 = vmatpush1.bf16.msra.mxu0 %v3442
    %3900 = vmatprep.subr.bf16.mxu0 0
    %3901 = vmatpush1.bf16.msra.mxu0 %v3443
    %3902 = vmatprep.subr.bf16.mxu0 0
    %3903 = vmatpush1.bf16.msra.mxu0 %v3444
    %3904 = vmatprep.subr.bf16.mxu0 0
    %3905 = vmatpush1.bf16.msra.mxu0 %v3445
    %3906 = vmatprep.subr.bf16.mxu0 0
    %3907 = vmatpush1.bf16.msra.mxu0 %v3446
    %3908 = vmatprep.mubr.bf16.mxu0 %v2375
    %3909 = vmatmul.mubr.bf16.gmra.mrb[0].mxu0 %v2374
    %v3910 = vpop.f32.mrb[0].mxu0
    %v3911 = vadd.f32 %v3870, %v3910
    %v3912 = vpop.f32.mrb[0].mxu0
    %v3913 = vpop.f32.mrb[0].mxu0
    %v3914 = vadd.f32 %v3873, %v3913
    %v3915 = vpop.f32.mrb[0].mxu0
    %3916 = vdwg.mxu0
    %3917 = vmatprep.subr.bf16.mxu0 0
    %3918 = vmatpush1.bf16.msra.mxu0 %v3447
    %3919 = vmatprep.subr.bf16.mxu0 0
    %3920 = vmatpush1.bf16.msra.mxu0 %v3448
    %3921 = vmatprep.subr.bf16.mxu0 0
    %3922 = vmatpush1.bf16.msra.mxu0 %v3449
    %3923 = vmatprep.subr.bf16.mxu0 0
    %3924 = vmatpush1.bf16.msra.mxu0 %v3450
    %3925 = vmatprep.subr.bf16.mxu0 0
    %3926 = vmatpush1.bf16.msra.mxu0 %v3451
    %3927 = vmatprep.subr.bf16.mxu0 0
    %3928 = vmatpush1.bf16.msra.mxu0 %v3452
    %3929 = vmatprep.subr.bf16.mxu0 0
    %3930 = vmatpush1.bf16.msra.mxu0 %v3453
    %3931 = vmatprep.subr.bf16.mxu0 0
    %3932 = vmatpush1.bf16.msra.mxu0 %v3454
    %3933 = vmatprep.subr.bf16.mxu0 0
    %3934 = vmatpush1.bf16.msra.mxu0 %v3455
    %3935 = vmatprep.subr.bf16.mxu0 0
    %3936 = vmatpush1.bf16.msra.mxu0 %v3456
    %3937 = vmatprep.subr.bf16.mxu0 0
    %3938 = vmatpush1.bf16.msra.mxu0 %v3457
    %3939 = vmatprep.subr.bf16.mxu0 0
    %3940 = vmatpush1.bf16.msra.mxu0 %v3458
    %3941 = vmatprep.subr.bf16.mxu0 0
    %3942 = vmatpush1.bf16.msra.mxu0 %v3459
    %3943 = vmatprep.subr.bf16.mxu0 0
    %3944 = vmatpush1.bf16.msra.mxu0 %v3460
    %3945 = vmatprep.subr.bf16.mxu0 0
    %3946 = vmatpush1.bf16.msra.mxu0 %v3461
    %3947 = vmatprep.subr.bf16.mxu0 0
    %3948 = vmatpush1.bf16.msra.mxu0 %v3462
    %3949 = vmatprep.mubr.bf16.mxu0 %v2377
    %3950 = vmatmul.mubr.bf16.gmra.mrb[0].mxu0 %v2376
    %v3951 = vpop.f32.mrb[0].mxu0
    %v3952 = vadd.f32 %v3911, %v3951
    %v3953 = vpop.f32.mrb[0].mxu0
    %v3954 = vpop.f32.mrb[0].mxu0
    %v3955 = vadd.f32 %v3914, %v3954
    %v3956 = vpop.f32.mrb[0].mxu0
    %3957 = vdwg.mxu0
    %3958 = vmatprep.subr.bf16.mxu0 0
    %3959 = vmatpush1.bf16.msra.mxu0 %v3463
    %3960 = vmatprep.subr.bf16.mxu0 0
    %3961 = vmatpush1.bf16.msra.mxu0 %v3464
    %3962 = vmatprep.subr.bf16.mxu0 0
    %3963 = vmatpush1.bf16.msra.mxu0 %v3465
    %3964 = vmatprep.subr.bf16.mxu0 0
    %3965 = vmatpush1.bf16.msra.mxu0 %v3466
    %3966 = vmatprep.subr.bf16.mxu0 0
    %3967 = vmatpush1.bf16.msra.mxu0 %v3467
    %3968 = vmatprep.subr.bf16.mxu0 0
    %3969 = vmatpush1.bf16.msra.mxu0 %v3468
    %3970 = vmatprep.subr.bf16.mxu0 0
    %3971 = vmatpush1.bf16.msra.mxu0 %v3469
    %3972 = vmatprep.subr.bf16.mxu0 0
    %3973 = vmatpush1.bf16.msra.mxu0 %v3470
    %3974 = vmatprep.subr.bf16.mxu0 0
    %3975 = vmatpush1.bf16.msra.mxu0 %v3471
    %3976 = vmatprep.subr.bf16.mxu0 0
    %3977 = vmatpush1.bf16.msra.mxu0 %v3472
    %3978 = vmatprep.subr.bf16.mxu0 0
    %3979 = vmatpush1.bf16.msra.mxu0 %v3473
    %3980 = vmatprep.subr.bf16.mxu0 0
    %3981 = vmatpush1.bf16.msra.mxu0 %v3474
    %3982 = vmatprep.subr.bf16.mxu0 0
    %3983 = vmatpush1.bf16.msra.mxu0 %v3475
    %3984 = vmatprep.subr.bf16.mxu0 0
    %3985 = vmatpush1.bf16.msra.mxu0 %v3476
    %3986 = vmatprep.subr.bf16.mxu0 0
    %3987 = vmatpush1.bf16.msra.mxu0 %v3477
    %3988 = vmatprep.subr.bf16.mxu0 0
    %3989 = vmatpush1.bf16.msra.mxu0 %v3478
    %3990 = vmatprep.mubr.bf16.mxu0 %v2379
    %3991 = vmatmul.mubr.bf16.gmra.mrb[0].mxu0 %v2378
    %v3992 = vpop.f32.mrb[0].mxu0
    %v3993 = vadd.f32 %v3952, %v3992
    %v3994 = vpop.f32.mrb[0].mxu0
    %v3995 = vpop.f32.mrb[0].mxu0
    %v3996 = vadd.f32 %v3955, %v3995
    %v3997 = vpop.f32.mrb[0].mxu0
    %3998 = vdwg.mxu0
    %3999 = vmatprep.subr.bf16.mxu0 0
    %4000 = vmatpush1.bf16.msra.mxu0 %v3479
    %4001 = vmatprep.subr.bf16.mxu0 0
    %4002 = vmatpush1.bf16.msra.mxu0 %v3480
    %4003 = vmatprep.subr.bf16.mxu0 0
    %4004 = vmatpush1.bf16.msra.mxu0 %v3481
    %4005 = vmatprep.subr.bf16.mxu0 0
    %4006 = vmatpush1.bf16.msra.mxu0 %v3482
    %4007 = vmatprep.subr.bf16.mxu0 0
    %4008 = vmatpush1.bf16.msra.mxu0 %v3483
    %4009 = vmatprep.subr.bf16.mxu0 0
    %4010 = vmatpush1.bf16.msra.mxu0 %v3484
    %4011 = vmatprep.subr.bf16.mxu0 0
    %4012 = vmatpush1.bf16.msra.mxu0 %v3485
    %4013 = vmatprep.subr.bf16.mxu0 0
    %4014 = vmatpush1.bf16.msra.mxu0 %v3486
    %4015 = vmatprep.subr.bf16.mxu0 0
    %4016 = vmatpush1.bf16.msra.mxu0 %v3487
    %4017 = vmatprep.subr.bf16.mxu0 0
    %4018 = vmatpush1.bf16.msra.mxu0 %v3488
    %4019 = vmatprep.subr.bf16.mxu0 0
    %4020 = vmatpush1.bf16.msra.mxu0 %v3489
    %4021 = vmatprep.subr.bf16.mxu0 0
    %4022 = vmatpush1.bf16.msra.mxu0 %v3490
    %4023 = vmatprep.subr.bf16.mxu0 0
    %4024 = vmatpush1.bf16.msra.mxu0 %v3491
    %4025 = vmatprep.subr.bf16.mxu0 0
    %4026 = vmatpush1.bf16.msra.mxu0 %v3492
    %4027 = vmatprep.subr.bf16.mxu0 0
    %4028 = vmatpush1.bf16.msra.mxu0 %v3493
    %4029 = vmatprep.subr.bf16.mxu0 0
    %4030 = vmatpush1.bf16.msra.mxu0 %v3494
    %4031 = vmatprep.mubr.bf16.mxu0 %v2381
    %4032 = vmatmul.mubr.bf16.gmra.mrb[0].mxu0 %v2380
    %v4033 = vpop.f32.mrb[0].mxu0
    %v4034 = vadd.f32 %v3993, %v4033
    %v4035 = vpop.f32.mrb[0].mxu0
    %v4036 = vpop.f32.mrb[0].mxu0
    %v4037 = vadd.f32 %v3996, %v4036
    %v4038 = vpop.f32.mrb[0].mxu0
    %4039 = vdwg.mxu0
    %4040 = vmatprep.subr.bf16.mxu0 0
    %4041 = vmatpush1.bf16.msra.mxu0 %v3495
    %4042 = vmatprep.subr.bf16.mxu0 0
    %4043 = vmatpush1.bf16.msra.mxu0 %v3496
    %4044 = vmatprep.subr.bf16.mxu0 0
    %4045 = vmatpush1.bf16.msra.mxu0 %v3497
    %4046 = vmatprep.subr.bf16.mxu0 0
    %4047 = vmatpush1.bf16.msra.mxu0 %v3498
    %4048 = vmatprep.subr.bf16.mxu0 0
    %4049 = vmatpush1.bf16.msra.mxu0 %v3499
    %4050 = vmatprep.subr.bf16.mxu0 0
    %4051 = vmatpush1.bf16.msra.mxu0 %v3500
    %4052 = vmatprep.subr.bf16.mxu0 0
    %4053 = vmatpush1.bf16.msra.mxu0 %v3501
    %4054 = vmatprep.subr.bf16.mxu0 0
    %4055 = vmatpush1.bf16.msra.mxu0 %v3502
    %4056 = vmatprep.subr.bf16.mxu0 0
    %4057 = vmatpush1.bf16.msra.mxu0 %v3503
    %4058 = vmatprep.subr.bf16.mxu0 0
    %4059 = vmatpush1.bf16.msra.mxu0 %v3504
    %4060 = vmatprep.subr.bf16.mxu0 0
    %4061 = vmatpush1.bf16.msra.mxu0 %v3505
    %4062 = vmatprep.subr.bf16.mxu0 0
    %4063 = vmatpush1.bf16.msra.mxu0 %v3506
    %4064 = vmatprep.subr.bf16.mxu0 0
    %4065 = vmatpush1.bf16.msra.mxu0 %v3507
    %4066 = vmatprep.subr.bf16.mxu0 0
    %4067 = vmatpush1.bf16.msra.mxu0 %v3508
    %4068 = vmatprep.subr.bf16.mxu0 0
    %4069 = vmatpush1.bf16.msra.mxu0 %v3509
    %4070 = vmatprep.subr.bf16.mxu0 0
    %4071 = vmatpush1.bf16.msra.mxu0 %v3510
    %4072 = vmatprep.mubr.bf16.mxu0 %v2383
    %4073 = vmatmul.mubr.bf16.gmra.mrb[0].mxu0 %v2382
    %v4074 = vpop.f32.mrb[0].mxu0
    %v4075 = vadd.f32 %v4034, %v4074
    %v4076 = vpop.f32.mrb[0].mxu0
    %v4077 = vpop.f32.mrb[0].mxu0
    %v4078 = vadd.f32 %v4037, %v4077
    %v4079 = vpop.f32.mrb[0].mxu0
    %4080 = vdwg.mxu0
    %4081 = vst [vmem:[#allocation11] sm:$0xff] %v4075
    %4082 = vst [vmem:[#allocation11 + $0x8] sm:$0xff] %v4078
    // Predicated region
    $region50: #{tpu_custom_call.1} parent=1 // pred_check
      _
    $region51: #{tpu_custom_call.1} parent=1 // pred_check_branch
      %4084 = sbr.rel (0) target = $region53
    $region52: #{tpu_custom_call.1} parent=1 // pred_region
      %s4086 = ssub.s32 256, 256
      %4087 = vsyncadd [#allocation4], %s4086
      %s4088 = sshll.u32 [#allocation11], 4
      %s4089 = int_to_ptr.vmem [resolvable:$true] %s4088
      %4094 = dma.vmem_to_hbm [thread:$0]  %s4089, 256, %s7, [#allocation4], 128, 128, 8
    $region53: #{tpu_custom_call.1} parent=1 // pred_fallthru
      _
    // Predicated region
    $region54: #{tpu_custom_call.1} parent=1 // pred_check
      _
    $region55: #{tpu_custom_call.1} parent=1 // pred_check_branch
      %4096 = sbr.rel (0) target = $region57
    $region56: #{tpu_custom_call.1} parent=1 // pred_region
      %4097 = dma.done [#allocation4], 256
    $region57: #{tpu_custom_call.1} parent=1 // pred_fallthru
      _
    %4098 = vsyncpa [#allocation3], 1
    %4099 = vsyncpa [#allocation6], 1
    %4100 = vsyncpa [#allocation9], 1
    %4101 = vsyncpa [#allocation4], 1

// kernel: tpu_custom_call.1
$region0: #{tpu_custom_call.1}
  #allocation0 [shape = 'u32[]', space=smem, size = 0x4, offset = 0x4, fixed_abs, tag = 'smem constant byte address 0x4 - core index']
  #allocation1 [shape = 'u32[144,128]{1,0:T(1,128)}', space=vmem, size = 0x12000, scoped, tag = 'internal scratch']
  %s0 = inlined_call_operand.hbm [shape: bf16[16,1024], index: 0, kind: input, shape index: {}]
  %s1 = inlined_call_operand.hbm [shape: bf16[1024,128], index: 1, kind: input, shape index: {}]
  %s2 = inlined_call_operand.vmem [shape: f32[1,128], index: 2, kind: input, shape index: {}]
  %s3 = inlined_call_operand.hbm [shape: bf16[128,2560], index: 3, kind: input, shape index: {}]
  %s4 = inlined_call_operand.hbm [shape: f32[1,2560], index: 4, kind: input, shape index: {}]
  %s5 = inlined_call_operand.hbm [shape: bf16[2560,128], index: 5, kind: input, shape index: {}]
  %s6 = inlined_call_operand.vmem [shape: f32[1,128], index: 6, kind: input, shape index: {}]
  %s7 = inlined_call_operand.hbm [shape: f32[16,128], index: 7, kind: output, shape index: {}]
  %s8 = sld [smem:[#allocation0]]
  $region58: #{tpu_custom_call.1} parent=0
    _
  %s10 = ssub.s32 1, %s8
  %s11 = scalar_select 0, %s10, %s8
  $region1: #{tpu_custom_call.1} parent=0
    #allocation2 [shape = 'u8[32768]{0}', space=vmem, size = 0x8000, scoped, tag = 'input window, operand 0, single buffered']
    #allocation3 [shape = 's32[1]{0}', space=sflag, size = 0x4, scoped, tag = 'scoped memory for tpu_custom_call.1']
    #allocation4 [shape = 's32[1]{0}', space=sflag, size = 0x4, scoped, tag = 'scoped memory for tpu_custom_call.1']
    #allocation5 [shape = 'u8[262144]{0}', space=vmem, size = 0x40000, scoped, tag = 'input window, operand 1, single buffered']
    #allocation6 [shape = 's32[1]{0}', space=sflag, size = 0x4, scoped, tag = 'scoped memory for tpu_custom_call.1']
    #allocation7 [shape = 'u8[655360]{0}', space=vmem, size = 0xa0000, scoped, tag = 'input window, operand 3, single buffered']
    #allocation8 [shape = 'u8[10240]{0}', space=vmem, size = 0x2800, scoped, tag = 'input window, operand 4, single buffered']
    #allocation9 [shape = 's32[1]{0}', space=sflag, size = 0x4, scoped, tag = 'scoped memory for tpu_custom_call.1']
    #allocation10 [shape = 'u8[655360]{0}', space=vmem, size = 0xa0000, scoped, tag = 'input window, operand 5, single buffered']
    #allocation11 [shape = 'u8[8192]{0}', space=vmem, size = 0x2000, scoped, tag = 'output window, operand 0, single buffered']
    %12 = vsyncpa [#allocation3], 0
    %13 = vsyncpa [#allocation6], 0
    %14 = vsyncpa [#allocation9], 0
    %15 = vsyncpa [#allocation4], 0
    // Predicated region
    $region2: #{tpu_custom_call.1} parent=1 // pred_check
      _
    $region3: #{tpu_custom_call.1} parent=1 // pred_check_branch
      %17 = sbr.rel (0) target = $region5
    $region4: #{tpu_custom_call.1} parent=1 // pred_region
      %s19 = ssub.s32 1024, 1024
      %20 = vsyncadd [#allocation3], %s19
      %s21 = sshll.u32 [#allocation2], 4
      %s22 = int_to_ptr.vmem [resolvable:$true] %s21
      %27 = dma.hbm_to_vmem [thread:$0]  %s0, 1024, %s22, [#allocation3], 512, 512, 32
    $region5: #{tpu_custom_call.1} parent=1 // pred_fallthru
      _
    // Predicated region
    $region6: #{tpu_custom_call.1} parent=1 // pred_check
      _
    $region7: #{tpu_custom_call.1} parent=1 // pred_check_branch
      %29 = sbr.rel (0) target = $region9
    $region8: #{tpu_custom_call.1} parent=1 // pred_region
      %s31 = ssub.s32 8192, 8192
      %32 = vsyncadd [#allocation6], %s31
      %s33 = sshll.u32 [#allocation5], 4
      %s34 = int_to_ptr.vmem [resolvable:$true] %s33
      %39 = dma.hbm_to_vmem [thread:$0]  %s1, 8192, %s34, [#allocation6], 64, 64, 4
    $region9: #{tpu_custom_call.1} parent=1 // pred_fallthru
      _
    // Predicated region
    $region10: #{tpu_custom_call.1} parent=1 // pred_check
      _
    $region11: #{tpu_custom_call.1} parent=1 // pred_check_branch
      %41 = sbr.rel (0) target = $region13
    $region12: #{tpu_custom_call.1} parent=1 // pred_region
      _
    $region13: #{tpu_custom_call.1} parent=1 // pred_fallthru
      _
    // Predicated region
    $region14: #{tpu_custom_call.1} parent=1 // pred_check
      _
    $region15: #{tpu_custom_call.1} parent=1 // pred_check_branch
      %43 = sbr.rel (0) target = $region17
    $region16: #{tpu_custom_call.1} parent=1 // pred_region
      %s45 = ssub.s32 20480, 20480
      %46 = vsyncadd [#allocation6], %s45
      %s47 = sshll.u32 [#allocation7], 4
      %s48 = int_to_ptr.vmem [resolvable:$true] %s47
      %53 = dma.hbm_to_vmem [thread:$0]  %s3, 20480, %s48, [#allocation6], 1280, 1280, 80
    $region17: #{tpu_custom_call.1} parent=1 // pred_fallthru
      _
    // Predicated region
    $region18: #{tpu_custom_call.1} parent=1 // pred_check
      _
    $region19: #{tpu_custom_call.1} parent=1 // pred_check_branch
      %55 = sbr.rel (0) target = $region21
    $region20: #{tpu_custom_call.1} parent=1 // pred_region
      %s57 = ssub.s32 320, 320
      %58 = vsyncadd [#allocation9], %s57
      %s60 = sshll.u32 [#allocation8], 4
      %s61 = int_to_ptr.vmem [resolvable:$true] %s60
      %63 = dma.hbm_to_vmem [thread:$0]  %s4, 320, %s61, [#allocation9]
    $region21: #{tpu_custom_call.1} parent=1 // pred_fallthru
      _
    // Predicated region
    $region22: #{tpu_custom_call.1} parent=1 // pred_check
      _
    $region23: #{tpu_custom_call.1} parent=1 // pred_check_branch
      %65 = sbr.rel (0) target = $region25
    $region24: #{tpu_custom_call.1} parent=1 // pred_region
      %s67 = ssub.s32 20480, 20480
      %68 = vsyncadd [#allocation9], %s67
      %s69 = sshll.u32 [#allocation10], 4
      %s70 = int_to_ptr.vmem [resolvable:$true] %s69
      %75 = dma.hbm_to_vmem [thread:$0]  %s5, 20480, %s70, [#allocation9], 64, 64, 4
    $region25: #{tpu_custom_call.1} parent=1 // pred_fallthru
      _
    // Predicated region
    $region26: #{tpu_custom_call.1} parent=1 // pred_check
      _
    $region27: #{tpu_custom_call.1} parent=1 // pred_check_branch
      %77 = sbr.rel (0) target = $region29
    $region28: #{tpu_custom_call.1} parent=1 // pred_region
      _
    $region29: #{tpu_custom_call.1} parent=1 // pred_fallthru
      _
    // Predicated region
    $region30: #{tpu_custom_call.1} parent=1 // pred_check
      _
    $region31: #{tpu_custom_call.1} parent=1 // pred_check_branch
      %79 = sbr.rel (0) target = $region33
    $region32: #{tpu_custom_call.1} parent=1 // pred_region
      %80 = dma.done [#allocation3], 1024
    $region33: #{tpu_custom_call.1} parent=1 // pred_fallthru
      _
    // Predicated region
    $region34: #{tpu_custom_call.1} parent=1 // pred_check
      _
    $region35: #{tpu_custom_call.1} parent=1 // pred_check_branch
      %82 = sbr.rel (0) target = $region37
    $region36: #{tpu_custom_call.1} parent=1 // pred_region
      %83 = dma.done [#allocation6], 8192
    $region37: #{tpu_custom_call.1} parent=1 // pred_fallthru
      _
    // Predicated region
    $region38: #{tpu_custom_call.1} parent=1 // pred_check
      _
    $region39: #{tpu_custom_call.1} parent=1 // pred_check_branch
      %85 = sbr.rel (0) target = $region41
    $region40: #{tpu_custom_call.1} parent=1 // pred_region
      %86 = dma.done [#allocation6], 20480
    $region41: #{tpu_custom_call.1} parent=1 // pred_fallthru
      _
    // Predicated region
    $region42: #{tpu_custom_call.1} parent=1 // pred_check
      _
    $region43: #{tpu_custom_call.1} parent=1 // pred_check_branch
      %88 = sbr.rel (0) target = $region45
    $region44: #{tpu_custom_call.1} parent=1 // pred_region
      %89 = dma.done [#allocation9], 320
    $region45: #{tpu_custom_call.1} parent=1 // pred_fallthru
      _
    // Predicated region
    $region46: #{tpu_custom_call.1} parent=1 // pred_check
      _
    $region47: #{tpu_custom_call.1} parent=1 // pred_check_branch
      %91 = sbr.rel (0) target = $region49
    $region48: #{tpu_custom_call.1} parent=1 // pred_region
      %92 = dma.done [#allocation9], 20480
    $region49: #{tpu_custom_call.1} parent=1 // pred_fallthru
      _
    %v94 = vld [vmem:[#allocation2] sm:$0xff]
    %v95 = vld [vmem:[#allocation2 + $0x8] sm:$0xff]
    %v96 = vld [vmem:[#allocation2 + $0x10] sm:$0xff]
    %v97 = vld [vmem:[#allocation2 + $0x18] sm:$0xff]
    %v98 = vld [vmem:[#allocation2 + $0x20] sm:$0xff]
    %v99 = vld [vmem:[#allocation2 + $0x28] sm:$0xff]
    %v100 = vld [vmem:[#allocation2 + $0x30] sm:$0xff]
    %v101 = vld [vmem:[#allocation2 + $0x38] sm:$0xff]
    %v102 = vld [vmem:[#allocation5] sm:$0xf]
    %v103 = vld [vmem:[#allocation5 + $0x4] sm:$0xf]
    %v104 = vld [vmem:[#allocation5 + $0x8] sm:$0xf]
    %v105 = vld [vmem:[#allocation5 + $0xc] sm:$0xf]
    %v106 = vld [vmem:[#allocation5 + $0x10] sm:$0xf]
    %v107 = vld [vmem:[#allocation5 + $0x14] sm:$0xf]
    %v108 = vld [vmem:[#allocation5 + $0x18] sm:$0xf]
    %v109 = vld [vmem:[#allocation5 + $0x1c] sm:$0xf]
    %v110 = vld [vmem:[#allocation5 + $0x20] sm:$0xf]
    %v111 = vld [vmem:[#allocation5 + $0x24] sm:$0xf]
    %v112 = vld [vmem:[#allocation5 + $0x28] sm:$0xf]
    %v113 = vld [vmem:[#allocation5 + $0x2c] sm:$0xf]
    %v114 = vld [vmem:[#allocation5 + $0x30] sm:$0xf]
    %v115 = vld [vmem:[#allocation5 + $0x34] sm:$0xf]
    %v116 = vld [vmem:[#allocation5 + $0x38] sm:$0xf]
    %v117 = vld [vmem:[#allocation5 + $0x3c] sm:$0xf]
    %v118 = vld [vmem:[#allocation5 + $0x40] sm:$0xf]
    %v119 = vld [vmem:[#allocation5 + $0x44] sm:$0xf]
    %v120 = vld [vmem:[#allocation5 + $0x48] sm:$0xf]
    %v121 = vld [vmem:[#allocation5 + $0x4c] sm:$0xf]
    %v122 = vld [vmem:[#allocation5 + $0x50] sm:$0xf]
    %v123 = vld [vmem:[#allocation5 + $0x54] sm:$0xf]
    %v124 = vld [vmem:[#allocation5 + $0x58] sm:$0xf]
    %v125 = vld [vmem:[#allocation5 + $0x5c] sm:$0xf]
    %v126 = vld [vmem:[#allocation5 + $0x60] sm:$0xf]
    %v127 = vld [vmem:[#allocation5 + $0x64] sm:$0xf]
    %v128 = vld [vmem:[#allocation5 + $0x68] sm:$0xf]
    %v129 = vld [vmem:[#allocation5 + $0x6c] sm:$0xf]
    %v130 = vld [vmem:[#allocation5 + $0x70] sm:$0xf]
    %v131 = vld [vmem:[#allocation5 + $0x74] sm:$0xf]
    %v132 = vld [vmem:[#allocation5 + $0x78] sm:$0xf]
    %v133 = vld [vmem:[#allocation5 + $0x7c] sm:$0xf]
    %v134 = vld [vmem:[#allocation5 + $0x80] sm:$0xf]
    %v135 = vld [vmem:[#allocation5 + $0x84] sm:$0xf]
    %v136 = vld [vmem:[#allocation5 + $0x88] sm:$0xf]
    %v137 = vld [vmem:[#allocation5 + $0x8c] sm:$0xf]
    %v138 = vld [vmem:[#allocation5 + $0x90] sm:$0xf]
    %v139 = vld [vmem:[#allocation5 + $0x94] sm:$0xf]
    %v140 = vld [vmem:[#allocation5 + $0x98] sm:$0xf]
    %v141 = vld [vmem:[#allocation5 + $0x9c] sm:$0xf]
    %v142 = vld [vmem:[#allocation5 + $0xa0] sm:$0xf]
    %v143 = vld [vmem:[#allocation5 + $0xa4] sm:$0xf]
    %v144 = vld [vmem:[#allocation5 + $0xa8] sm:$0xf]
    %v145 = vld [vmem:[#allocation5 + $0xac] sm:$0xf]
    %v146 = vld [vmem:[#allocation5 + $0xb0] sm:$0xf]
    %v147 = vld [vmem:[#allocation5 + $0xb4] sm:$0xf]
    %v148 = vld [vmem:[#allocation5 + $0xb8] sm:$0xf]
    %v149 = vld [vmem:[#allocation5 + $0xbc] sm:$0xf]
    %v150 = vld [vmem:[#allocation5 + $0xc0] sm:$0xf]
    %v151 = vld [vmem:[#allocation5 + $0xc4] sm:$0xf]
    %v152 = vld [vmem:[#allocation5 + $0xc8] sm:$0xf]
    %v153 = vld [vmem:[#allocation5 + $0xcc] sm:$0xf]
    %v154 = vld [vmem:[#allocation5 + $0xd0] sm:$0xf]
    %v155 = vld [vmem:[#allocation5 + $0xd4] sm:$0xf]
    %v156 = vld [vmem:[#allocation5 + $0xd8] sm:$0xf]
    %v157 = vld [vmem:[#allocation5 + $0xdc] sm:$0xf]
    %v158 = vld [vmem:[#allocation5 + $0xe0] sm:$0xf]
    %v159 = vld [vmem:[#allocation5 + $0xe4] sm:$0xf]
    %v160 = vld [vmem:[#allocation5 + $0xe8] sm:$0xf]
    %v161 = vld [vmem:[#allocation5 + $0xec] sm:$0xf]
    %v162 = vld [vmem:[#allocation5 + $0xf0] sm:$0xf]
    %v163 = vld [vmem:[#allocation5 + $0xf4] sm:$0xf]
    %v164 = vld [vmem:[#allocation5 + $0xf8] sm:$0xf]
    %v165 = vld [vmem:[#allocation5 + $0xfc] sm:$0xf]
    %v166 = vld [vmem:[#allocation5 + $0x100] sm:$0xf]
    %v167 = vld [vmem:[#allocation5 + $0x104] sm:$0xf]
    %v168 = vld [vmem:[#allocation5 + $0x108] sm:$0xf]
    %v169 = vld [vmem:[#allocation5 + $0x10c] sm:$0xf]
    %v170 = vld [vmem:[#allocation5 + $0x110] sm:$0xf]
    %v171 = vld [vmem:[#allocation5 + $0x114] sm:$0xf]
    %v172 = vld [vmem:[#allocation5 + $0x118] sm:$0xf]
    %v173 = vld [vmem:[#allocation5 + $0x11c] sm:$0xf]
    %v174 = vld [vmem:[#allocation5 + $0x120] sm:$0xf]
    %v175 = vld [vmem:[#allocation5 + $0x124] sm:$0xf]
    %v176 = vld [vmem:[#allocation5 + $0x128] sm:$0xf]
    %v177 = vld [vmem:[#allocation5 + $0x12c] sm:$0xf]
    %v178 = vld [vmem:[#allocation5 + $0x130] sm:$0xf]
    %v179 = vld [vmem:[#allocation5 + $0x134] sm:$0xf]
    %v180 = vld [vmem:[#allocation5 + $0x138] sm:$0xf]
    %v181 = vld [vmem:[#allocation5 + $0x13c] sm:$0xf]
    %v182 = vld [vmem:[#allocation5 + $0x140] sm:$0xf]
    %v183 = vld [vmem:[#allocation5 + $0x144] sm:$0xf]
    %v184 = vld [vmem:[#allocation5 + $0x148] sm:$0xf]
    %v185 = vld [vmem:[#allocation5 + $0x14c] sm:$0xf]
    %v186 = vld [vmem:[#allocation5 + $0x150] sm:$0xf]
    %v187 = vld [vmem:[#allocation5 + $0x154] sm:$0xf]
    %v188 = vld [vmem:[#allocation5 + $0x158] sm:$0xf]
    %v189 = vld [vmem:[#allocation5 + $0x15c] sm:$0xf]
    %v190 = vld [vmem:[#allocation5 + $0x160] sm:$0xf]
    %v191 = vld [vmem:[#allocation5 + $0x164] sm:$0xf]
    %v192 = vld [vmem:[#allocation5 + $0x168] sm:$0xf]
    %v193 = vld [vmem:[#allocation5 + $0x16c] sm:$0xf]
    %v194 = vld [vmem:[#allocation5 + $0x170] sm:$0xf]
    %v195 = vld [vmem:[#allocation5 + $0x174] sm:$0xf]
    %v196 = vld [vmem:[#allocation5 + $0x178] sm:$0xf]
    %v197 = vld [vmem:[#allocation5 + $0x17c] sm:$0xf]
    %v198 = vld [vmem:[#allocation5 + $0x180] sm:$0xf]
    %v199 = vld [vmem:[#allocation5 + $0x184] sm:$0xf]
    %v200 = vld [vmem:[#allocation5 + $0x188] sm:$0xf]
    %v201 = vld [vmem:[#allocation5 + $0x18c] sm:$0xf]
    %v202 = vld [vmem:[#allocation5 + $0x190] sm:$0xf]
    %v203 = vld [vmem:[#allocation5 + $0x194] sm:$0xf]
    %v204 = vld [vmem:[#allocation5 + $0x198] sm:$0xf]
    %v205 = vld [vmem:[#allocation5 + $0x19c] sm:$0xf]
    %v206 = vld [vmem:[#allocation5 + $0x1a0] sm:$0xf]
    %v207 = vld [vmem:[#allocation5 + $0x1a4] sm:$0xf]
    %v208 = vld [vmem:[#allocation5 + $0x1a8] sm:$0xf]
    %v209 = vld [vmem:[#allocation5 + $0x1ac] sm:$0xf]
    %v210 = vld [vmem:[#allocation5 + $0x1b0] sm:$0xf]
    %v211 = vld [vmem:[#allocation5 + $0x1b4] sm:$0xf]
    %v212 = vld [vmem:[#allocation5 + $0x1b8] sm:$0xf]
    %v213 = vld [vmem:[#allocation5 + $0x1bc] sm:$0xf]
    %v214 = vld [vmem:[#allocation5 + $0x1c0] sm:$0xf]
    %v215 = vld [vmem:[#allocation5 + $0x1c4] sm:$0xf]
    %v216 = vld [vmem:[#allocation5 + $0x1c8] sm:$0xf]
    %v217 = vld [vmem:[#allocation5 + $0x1cc] sm:$0xf]
    %v218 = vld [vmem:[#allocation5 + $0x1d0] sm:$0xf]
    %v219 = vld [vmem:[#allocation5 + $0x1d4] sm:$0xf]
    %v220 = vld [vmem:[#allocation5 + $0x1d8] sm:$0xf]
    %v221 = vld [vmem:[#allocation5 + $0x1dc] sm:$0xf]
    %v222 = vld [vmem:[#allocation5 + $0x1e0] sm:$0xf]
    %v223 = vld [vmem:[#allocation5 + $0x1e4] sm:$0xf]
    %v224 = vld [vmem:[#allocation5 + $0x1e8] sm:$0xf]
    %v225 = vld [vmem:[#allocation5 + $0x1ec] sm:$0xf]
    %v226 = vld [vmem:[#allocation5 + $0x1f0] sm:$0xf]
    %v227 = vld [vmem:[#allocation5 + $0x1f4] sm:$0xf]
    %v228 = vld [vmem:[#allocation5 + $0x1f8] sm:$0xf]
    %v229 = vld [vmem:[#allocation5 + $0x1fc] sm:$0xf]
    %v230 = vld [vmem:[%s2] sm:$0x1]
    %v232 = vlaneseq
    %v233 = vshrl.u32 %v232, 7
    %v234 = vsub.s32 0, %v233
    %v235 = vrot.slane %v230, %v234
    %v245 = vunpack.c.l.b16 %v94
    %v246 = vunpack.c.h.b16 %v94
    %v247 = vunpack.c.l.b16 %v95
    %v248 = vunpack.c.h.b16 %v95
    %v249 = vunpack.c.l.b16 %v96
    %v250 = vunpack.c.h.b16 %v96
    %v251 = vunpack.c.l.b16 %v97
    %v252 = vunpack.c.h.b16 %v97
    %v253 = vunpack.c.l.b16 %v98
    %v254 = vunpack.c.h.b16 %v98
    %v255 = vunpack.c.l.b16 %v99
    %v256 = vunpack.c.h.b16 %v99
    %v257 = vunpack.c.l.b16 %v100
    %v258 = vunpack.c.h.b16 %v100
    %v259 = vunpack.c.l.b16 %v101
    %v260 = vunpack.c.h.b16 %v101
    %v261 = vpack.c.b16 %v253, %v245
    %v262 = vpack.c.b16 %v254, %v246
    %v263 = vpack.c.b16 %v255, %v247
    %v264 = vpack.c.b16 %v256, %v248
    %v265 = vpack.c.b16 %v257, %v249
    %v266 = vpack.c.b16 %v258, %v250
    %v267 = vpack.c.b16 %v259, %v251
    %v268 = vpack.c.b16 %v260, %v252
    %v405 = vunpack.c.l.b16 %v102
    %v406 = vunpack.c.l.b16 %v103
    %v407 = vunpack.c.l.b16 %v104
    %v408 = vunpack.c.l.b16 %v105
    %v409 = vunpack.c.l.b16 %v106
    %v410 = vunpack.c.l.b16 %v107
    %v411 = vunpack.c.l.b16 %v108
    %v412 = vunpack.c.l.b16 %v109
    %v413 = vunpack.c.l.b16 %v110
    %v414 = vunpack.c.l.b16 %v111
    %v415 = vunpack.c.l.b16 %v112
    %v416 = vunpack.c.l.b16 %v113
    %v417 = vunpack.c.l.b16 %v114
    %v418 = vunpack.c.l.b16 %v115
    %v419 = vunpack.c.l.b16 %v116
    %v420 = vunpack.c.l.b16 %v117
    %v421 = vunpack.c.l.b16 %v118
    %v422 = vunpack.c.l.b16 %v119
    %v423 = vunpack.c.l.b16 %v120
    %v424 = vunpack.c.l.b16 %v121
    %v425 = vunpack.c.l.b16 %v122
    %v426 = vunpack.c.l.b16 %v123
    %v427 = vunpack.c.l.b16 %v124
    %v428 = vunpack.c.l.b16 %v125
    %v429 = vunpack.c.l.b16 %v126
    %v430 = vunpack.c.l.b16 %v127
    %v431 = vunpack.c.l.b16 %v128
    %v432 = vunpack.c.l.b16 %v129
    %v433 = vunpack.c.l.b16 %v130
    %v434 = vunpack.c.l.b16 %v131
    %v435 = vunpack.c.l.b16 %v132
    %v436 = vunpack.c.l.b16 %v133
    %v437 = vunpack.c.l.b16 %v134
    %v438 = vunpack.c.l.b16 %v135
    %v439 = vunpack.c.l.b16 %v136
    %v440 = vunpack.c.l.b16 %v137
    %v441 = vunpack.c.l.b16 %v138
    %v442 = vunpack.c.l.b16 %v139
    %v443 = vunpack.c.l.b16 %v140
    %v444 = vunpack.c.l.b16 %v141
    %v445 = vunpack.c.l.b16 %v142
    %v446 = vunpack.c.l.b16 %v143
    %v447 = vunpack.c.l.b16 %v144
    %v448 = vunpack.c.l.b16 %v145
    %v449 = vunpack.c.l.b16 %v146
    %v450 = vunpack.c.l.b16 %v147
    %v451 = vunpack.c.l.b16 %v148
    %v452 = vunpack.c.l.b16 %v149
    %v453 = vunpack.c.l.b16 %v150
    %v454 = vunpack.c.l.b16 %v151
    %v455 = vunpack.c.l.b16 %v152
    %v456 = vunpack.c.l.b16 %v153
    %v457 = vunpack.c.l.b16 %v154
    %v458 = vunpack.c.l.b16 %v155
    %v459 = vunpack.c.l.b16 %v156
    %v460 = vunpack.c.l.b16 %v157
    %v461 = vunpack.c.l.b16 %v158
    %v462 = vunpack.c.l.b16 %v159
    %v463 = vunpack.c.l.b16 %v160
    %v464 = vunpack.c.l.b16 %v161
    %v465 = vunpack.c.l.b16 %v162
    %v466 = vunpack.c.l.b16 %v163
    %v467 = vunpack.c.l.b16 %v164
    %v468 = vunpack.c.l.b16 %v165
    %v469 = vunpack.c.l.b16 %v166
    %v470 = vunpack.c.l.b16 %v167
    %v471 = vunpack.c.l.b16 %v168
    %v472 = vunpack.c.l.b16 %v169
    %v473 = vunpack.c.l.b16 %v170
    %v474 = vunpack.c.l.b16 %v171
    %v475 = vunpack.c.l.b16 %v172
    %v476 = vunpack.c.l.b16 %v173
    %v477 = vunpack.c.l.b16 %v174
    %v478 = vunpack.c.l.b16 %v175
    %v479 = vunpack.c.l.b16 %v176
    %v480 = vunpack.c.l.b16 %v177
    %v481 = vunpack.c.l.b16 %v178
    %v482 = vunpack.c.l.b16 %v179
    %v483 = vunpack.c.l.b16 %v180
    %v484 = vunpack.c.l.b16 %v181
    %v485 = vunpack.c.l.b16 %v182
    %v486 = vunpack.c.l.b16 %v183
    %v487 = vunpack.c.l.b16 %v184
    %v488 = vunpack.c.l.b16 %v185
    %v489 = vunpack.c.l.b16 %v186
    %v490 = vunpack.c.l.b16 %v187
    %v491 = vunpack.c.l.b16 %v188
    %v492 = vunpack.c.l.b16 %v189
    %v493 = vunpack.c.l.b16 %v190
    %v494 = vunpack.c.l.b16 %v191
    %v495 = vunpack.c.l.b16 %v192
    %v496 = vunpack.c.l.b16 %v193
    %v497 = vunpack.c.l.b16 %v194
    %v498 = vunpack.c.l.b16 %v195
    %v499 = vunpack.c.l.b16 %v196
    %v500 = vunpack.c.l.b16 %v197
    %v501 = vunpack.c.l.b16 %v198
    %v502 = vunpack.c.l.b16 %v199
    %v503 = vunpack.c.l.b16 %v200
    %v504 = vunpack.c.l.b16 %v201
    %v505 = vunpack.c.l.b16 %v202
    %v506 = vunpack.c.l.b16 %v203
    %v507 = vunpack.c.l.b16 %v204
    %v508 = vunpack.c.l.b16 %v205
    %v509 = vunpack.c.l.b16 %v206
    %v510 = vunpack.c.l.b16 %v207
    %v511 = vunpack.c.l.b16 %v208
    %v512 = vunpack.c.l.b16 %v209
    %v513 = vunpack.c.l.b16 %v210
    %v514 = vunpack.c.l.b16 %v211
    %v515 = vunpack.c.l.b16 %v212
    %v516 = vunpack.c.l.b16 %v213
    %v517 = vunpack.c.l.b16 %v214
    %v518 = vunpack.c.l.b16 %v215
    %v519 = vunpack.c.l.b16 %v216
    %v520 = vunpack.c.l.b16 %v217
    %v521 = vunpack.c.l.b16 %v218
    %v522 = vunpack.c.l.b16 %v219
    %v523 = vunpack.c.l.b16 %v220
    %v524 = vunpack.c.l.b16 %v221
    %v525 = vunpack.c.l.b16 %v222
    %v526 = vunpack.c.l.b16 %v223
    %v527 = vunpack.c.l.b16 %v224
    %v528 = vunpack.c.l.b16 %v225
    %v529 = vunpack.c.l.b16 %v226
    %v530 = vunpack.c.l.b16 %v227
    %v531 = vunpack.c.l.b16 %v228
    %v532 = vunpack.c.l.b16 %v229
    %v533 = vpack.c.b16 %v406, %v405
    %v534 = vpack.c.b16 %v408, %v407
    %v535 = vpack.c.b16 %v410, %v409
    %v536 = vpack.c.b16 %v412, %v411
    %v537 = vpack.c.b16 %v414, %v413
    %v538 = vpack.c.b16 %v416, %v415
    %v539 = vpack.c.b16 %v418, %v417
    %v540 = vpack.c.b16 %v420, %v419
    %v541 = vpack.c.b16 %v422, %v421
    %v542 = vpack.c.b16 %v424, %v423
    %v543 = vpack.c.b16 %v426, %v425
    %v544 = vpack.c.b16 %v428, %v427
    %v545 = vpack.c.b16 %v430, %v429
    %v546 = vpack.c.b16 %v432, %v431
    %v547 = vpack.c.b16 %v434, %v433
    %v548 = vpack.c.b16 %v436, %v435
    %v549 = vpack.c.b16 %v438, %v437
    %v550 = vpack.c.b16 %v440, %v439
    %v551 = vpack.c.b16 %v442, %v441
    %v552 = vpack.c.b16 %v444, %v443
    %v553 = vpack.c.b16 %v446, %v445
    %v554 = vpack.c.b16 %v448, %v447
    %v555 = vpack.c.b16 %v450, %v449
    %v556 = vpack.c.b16 %v452, %v451
    %v557 = vpack.c.b16 %v454, %v453
    %v558 = vpack.c.b16 %v456, %v455
    %v559 = vpack.c.b16 %v458, %v457
    %v560 = vpack.c.b16 %v460, %v459
    %v561 = vpack.c.b16 %v462, %v461
    %v562 = vpack.c.b16 %v464, %v463
    %v563 = vpack.c.b16 %v466, %v465
    %v564 = vpack.c.b16 %v468, %v467
    %v565 = vpack.c.b16 %v470, %v469
    %v566 = vpack.c.b16 %v472, %v471
    %v567 = vpack.c.b16 %v474, %v473
    %v568 = vpack.c.b16 %v476, %v475
    %v569 = vpack.c.b16 %v478, %v477
    %v570 = vpack.c.b16 %v480, %v479
    %v571 = vpack.c.b16 %v482, %v481
    %v572 = vpack.c.b16 %v484, %v483
    %v573 = vpack.c.b16 %v486, %v485
    %v574 = vpack.c.b16 %v488, %v487
    %v575 = vpack.c.b16 %v490, %v489
    %v576 = vpack.c.b16 %v492, %v491
    %v577 = vpack.c.b16 %v494, %v493
    %v578 = vpack.c.b16 %v496, %v495
    %v579 = vpack.c.b16 %v498, %v497
    %v580 = vpack.c.b16 %v500, %v499
    %v581 = vpack.c.b16 %v502, %v501
    %v582 = vpack.c.b16 %v504, %v503
    %v583 = vpack.c.b16 %v506, %v505
    %v584 = vpack.c.b16 %v508, %v507
    %v585 = vpack.c.b16 %v510, %v509
    %v586 = vpack.c.b16 %v512, %v511
    %v587 = vpack.c.b16 %v514, %v513
    %v588 = vpack.c.b16 %v516, %v515
    %v589 = vpack.c.b16 %v518, %v517
    %v590 = vpack.c.b16 %v520, %v519
    %v591 = vpack.c.b16 %v522, %v521
    %v592 = vpack.c.b16 %v524, %v523
    %v593 = vpack.c.b16 %v526, %v525
    %v594 = vpack.c.b16 %v528, %v527
    %v595 = vpack.c.b16 %v530, %v529
    %v596 = vpack.c.b16 %v532, %v531
    %661 = vmatprep.subr.bf16.mxu0 0
    %662 = vmatpush1.bf16.msra.mxu0 %v533
    %663 = vmatprep.subr.bf16.mxu0 0
    %664 = vmatpush1.bf16.msra.mxu0 %v534
    %665 = vmatprep.subr.bf16.mxu0 0
    %666 = vmatpush1.bf16.msra.mxu0 %v535
    %667 = vmatprep.subr.bf16.mxu0 0
    %668 = vmatpush1.bf16.msra.mxu0 %v536
    %669 = vmatprep.subr.bf16.mxu0 0
    %670 = vmatpush1.bf16.msra.mxu0 %v537
    %671 = vmatprep.subr.bf16.mxu0 0
    %672 = vmatpush1.bf16.msra.mxu0 %v538
    %673 = vmatprep.subr.bf16.mxu0 0
    %674 = vmatpush1.bf16.msra.mxu0 %v539
    %675 = vmatprep.subr.bf16.mxu0 0
    %676 = vmatpush1.bf16.msra.mxu0 %v540
    %677 = vmatprep.subr.bf16.mxu0 0
    %678 = vmatpush1.bf16.msra.mxu0 %v541
    %679 = vmatprep.subr.bf16.mxu0 0
    %680 = vmatpush1.bf16.msra.mxu0 %v542
    %681 = vmatprep.subr.bf16.mxu0 0
    %682 = vmatpush1.bf16.msra.mxu0 %v543
    %683 = vmatprep.subr.bf16.mxu0 0
    %684 = vmatpush1.bf16.msra.mxu0 %v544
    %685 = vmatprep.subr.bf16.mxu0 0
    %686 = vmatpush1.bf16.msra.mxu0 %v545
    %687 = vmatprep.subr.bf16.mxu0 0
    %688 = vmatpush1.bf16.msra.mxu0 %v546
    %689 = vmatprep.subr.bf16.mxu0 0
    %690 = vmatpush1.bf16.msra.mxu0 %v547
    %691 = vmatprep.subr.bf16.mxu0 0
    %692 = vmatpush1.bf16.msra.mxu0 %v548
    %693 = vmatprep.mubr.bf16.mxu0 %v262
    %694 = vmatmul.mubr.bf16.gmra.mrb[0].mxu0 %v261
    %v695 = vpop.f32.mrb[0].mxu0
    %v696 = vadd.f32 %v235, %v695
    %v697 = vpop.f32.mrb[0].mxu0
    %v698 = vpop.f32.mrb[0].mxu0
    %v699 = vadd.f32 %v235, %v698
    %v700 = vpop.f32.mrb[0].mxu0
    %701 = vdwg.mxu0
    %702 = vmatprep.subr.bf16.mxu0 0
    %703 = vmatpush1.bf16.msra.mxu0 %v549
    %704 = vmatprep.subr.bf16.mxu0 0
    %705 = vmatpush1.bf16.msra.mxu0 %v550
    %706 = vmatprep.subr.bf16.mxu0 0
    %707 = vmatpush1.bf16.msra.mxu0 %v551
    %708 = vmatprep.subr.bf16.mxu0 0
    %709 = vmatpush1.bf16.msra.mxu0 %v552
    %710 = vmatprep.subr.bf16.mxu0 0
    %711 = vmatpush1.bf16.msra.mxu0 %v553
    %712 = vmatprep.subr.bf16.mxu0 0
    %713 = vmatpush1.bf16.msra.mxu0 %v554
    %714 = vmatprep.subr.bf16.mxu0 0
    %715 = vmatpush1.bf16.msra.mxu0 %v555
    %716 = vmatprep.subr.bf16.mxu0 0
    %717 = vmatpush1.bf16.msra.mxu0 %v556
    %718 = vmatprep.subr.bf16.mxu0 0
    %719 = vmatpush1.bf16.msra.mxu0 %v557
    %720 = vmatprep.subr.bf16.mxu0 0
    %721 = vmatpush1.bf16.msra.mxu0 %v558
    %722 = vmatprep.subr.bf16.mxu0 0
    %723 = vmatpush1.bf16.msra.mxu0 %v559
    %724 = vmatprep.subr.bf16.mxu0 0
    %725 = vmatpush1.bf16.msra.mxu0 %v560
    %726 = vmatprep.subr.bf16.mxu0 0
    %727 = vmatpush1.bf16.msra.mxu0 %v561
    %728 = vmatprep.subr.bf16.mxu0 0
    %729 = vmatpush1.bf16.msra.mxu0 %v562
    %730 = vmatprep.subr.bf16.mxu0 0
    %731 = vmatpush1.bf16.msra.mxu0 %v563
    %732 = vmatprep.subr.bf16.mxu0 0
    %733 = vmatpush1.bf16.msra.mxu0 %v564
    %734 = vmatprep.mubr.bf16.mxu0 %v264
    %735 = vmatmul.mubr.bf16.gmra.mrb[0].mxu0 %v263
    %v736 = vpop.f32.mrb[0].mxu0
    %v737 = vadd.f32 %v696, %v736
    %v738 = vpop.f32.mrb[0].mxu0
    %v739 = vpop.f32.mrb[0].mxu0
    %v740 = vadd.f32 %v699, %v739
    %v741 = vpop.f32.mrb[0].mxu0
    %742 = vdwg.mxu0
    %743 = vmatprep.subr.bf16.mxu0 0
    %744 = vmatpush1.bf16.msra.mxu0 %v565
    %745 = vmatprep.subr.bf16.mxu0 0
    %746 = vmatpush1.bf16.msra.mxu0 %v566
    %747 = vmatprep.subr.bf16.mxu0 0
    %748 = vmatpush1.bf16.msra.mxu0 %v567
    %749 = vmatprep.subr.bf16.mxu0 0
    %750 = vmatpush1.bf16.msra.mxu0 %v568
    %751 = vmatprep.subr.bf16.mxu0 0
    %752 = vmatpush1.bf16.msra.mxu0 %v569
    %753 = vmatprep.subr.bf16.mxu0 0
    %754 = vmatpush1.bf16.msra.mxu0 %v570
    %755 = vmatprep.subr.bf16.mxu0 0
    %756 = vmatpush1.bf16.msra.mxu0 %v571
    %757 = vmatprep.subr.bf16.mxu0 0
    %758 = vmatpush1.bf16.msra.mxu0 %v572
    %759 = vmatprep.subr.bf16.mxu0 0
    %760 = vmatpush1.bf16.msra.mxu0 %v573
    %761 = vmatprep.subr.bf16.mxu0 0
    %762 = vmatpush1.bf16.msra.mxu0 %v574
    %763 = vmatprep.subr.bf16.mxu0 0
    %764 = vmatpush1.bf16.msra.mxu0 %v575
    %765 = vmatprep.subr.bf16.mxu0 0
    %766 = vmatpush1.bf16.msra.mxu0 %v576
    %767 = vmatprep.subr.bf16.mxu0 0
    %768 = vmatpush1.bf16.msra.mxu0 %v577
    %769 = vmatprep.subr.bf16.mxu0 0
    %770 = vmatpush1.bf16.msra.mxu0 %v578
    %771 = vmatprep.subr.bf16.mxu0 0
    %772 = vmatpush1.bf16.msra.mxu0 %v579
    %773 = vmatprep.subr.bf16.mxu0 0
    %774 = vmatpush1.bf16.msra.mxu0 %v580
    %775 = vmatprep.mubr.bf16.mxu0 %v266
    %776 = vmatmul.mubr.bf16.gmra.mrb[0].mxu0 %v265
    %v777 = vpop.f32.mrb[0].mxu0
    %v778 = vadd.f32 %v737, %v777
    %v779 = vpop.f32.mrb[0].mxu0
    %v780 = vpop.f32.mrb[0].mxu0
    %v781 = vadd.f32 %v740, %v780
    %v782 = vpop.f32.mrb[0].mxu0
    %783 = vdwg.mxu0
    %784 = vmatprep.subr.bf16.mxu0 0
    %785 = vmatpush1.bf16.msra.mxu0 %v581
    %786 = vmatprep.subr.bf16.mxu0 0
    %787 = vmatpush1.bf16.msra.mxu0 %v582
    %788 = vmatprep.subr.bf16.mxu0 0
    %789 = vmatpush1.bf16.msra.mxu0 %v583
    %790 = vmatprep.subr.bf16.mxu0 0
    %791 = vmatpush1.bf16.msra.mxu0 %v584
    %792 = vmatprep.subr.bf16.mxu0 0
    %793 = vmatpush1.bf16.msra.mxu0 %v585
    %794 = vmatprep.subr.bf16.mxu0 0
    %795 = vmatpush1.bf16.msra.mxu0 %v586
    %796 = vmatprep.subr.bf16.mxu0 0
    %797 = vmatpush1.bf16.msra.mxu0 %v587
    %798 = vmatprep.subr.bf16.mxu0 0
    %799 = vmatpush1.bf16.msra.mxu0 %v588
    %800 = vmatprep.subr.bf16.mxu0 0
    %801 = vmatpush1.bf16.msra.mxu0 %v589
    %802 = vmatprep.subr.bf16.mxu0 0
    %803 = vmatpush1.bf16.msra.mxu0 %v590
    %804 = vmatprep.subr.bf16.mxu0 0
    %805 = vmatpush1.bf16.msra.mxu0 %v591
    %806 = vmatprep.subr.bf16.mxu0 0
    %807 = vmatpush1.bf16.msra.mxu0 %v592
    %808 = vmatprep.subr.bf16.mxu0 0
    %809 = vmatpush1.bf16.msra.mxu0 %v593
    %810 = vmatprep.subr.bf16.mxu0 0
    %811 = vmatpush1.bf16.msra.mxu0 %v594
    %812 = vmatprep.subr.bf16.mxu0 0
    %813 = vmatpush1.bf16.msra.mxu0 %v595
    %814 = vmatprep.subr.bf16.mxu0 0
    %815 = vmatpush1.bf16.msra.mxu0 %v596
    %816 = vmatprep.mubr.bf16.mxu0 %v268
    %817 = vmatmul.mubr.bf16.gmra.mrb[0].mxu0 %v267
    %v818 = vpop.f32.mrb[0].mxu0
    %v819 = vadd.f32 %v778, %v818
    %v820 = vpop.f32.mrb[0].mxu0
    %v821 = vpop.f32.mrb[0].mxu0
    %v822 = vadd.f32 %v781, %v821
    %v823 = vpop.f32.mrb[0].mxu0
    %824 = vdwg.mxu0
    %v825 = vmax.f32 %v819, 0.0
    %v826 = vmax.f32 %v822, 0.0
    %v827 = vpack.c.bf16 %v826, %v825
    %v828 = vld [vmem:[#allocation7] sm:$0xff]
    %v829 = vld [vmem:[#allocation7 + $0x8] sm:$0xff]
    %v830 = vld [vmem:[#allocation7 + $0x10] sm:$0xff]
    %v831 = vld [vmem:[#allocation7 + $0x18] sm:$0xff]
    %v832 = vld [vmem:[#allocation7 + $0x20] sm:$0xff]
    %v833 = vld [vmem:[#allocation7 + $0x28] sm:$0xff]
    %v834 = vld [vmem:[#allocation7 + $0x30] sm:$0xff]
    %v835 = vld [vmem:[#allocation7 + $0x38] sm:$0xff]
    %v836 = vld [vmem:[#allocation7 + $0x40] sm:$0xff]
    %v837 = vld [vmem:[#allocation7 + $0x48] sm:$0xff]
    %v838 = vld [vmem:[#allocation7 + $0x50] sm:$0xff]
    %v839 = vld [vmem:[#allocation7 + $0x58] sm:$0xff]
    %v840 = vld [vmem:[#allocation7 + $0x60] sm:$0xff]
    %v841 = vld [vmem:[#allocation7 + $0x68] sm:$0xff]
    %v842 = vld [vmem:[#allocation7 + $0x70] sm:$0xff]
    %v843 = vld [vmem:[#allocation7 + $0x78] sm:$0xff]
    %v844 = vld [vmem:[#allocation7 + $0x80] sm:$0xff]
    %v845 = vld [vmem:[#allocation7 + $0x88] sm:$0xff]
    %v846 = vld [vmem:[#allocation7 + $0x90] sm:$0xff]
    %v847 = vld [vmem:[#allocation7 + $0x98] sm:$0xff]
    %v848 = vld [vmem:[#allocation7 + $0xa0] sm:$0xff]
    %v849 = vld [vmem:[#allocation7 + $0xa8] sm:$0xff]
    %v850 = vld [vmem:[#allocation7 + $0xb0] sm:$0xff]
    %v851 = vld [vmem:[#allocation7 + $0xb8] sm:$0xff]
    %v852 = vld [vmem:[#allocation7 + $0xc0] sm:$0xff]
    %v853 = vld [vmem:[#allocation7 + $0xc8] sm:$0xff]
    %v854 = vld [vmem:[#allocation7 + $0xd0] sm:$0xff]
    %v855 = vld [vmem:[#allocation7 + $0xd8] sm:$0xff]
    %v856 = vld [vmem:[#allocation7 + $0xe0] sm:$0xff]
    %v857 = vld [vmem:[#allocation7 + $0xe8] sm:$0xff]
    %v858 = vld [vmem:[#allocation7 + $0xf0] sm:$0xff]
    %v859 = vld [vmem:[#allocation7 + $0xf8] sm:$0xff]
    %v860 = vld [vmem:[#allocation7 + $0x100] sm:$0xff]
    %v861 = vld [vmem:[#allocation7 + $0x108] sm:$0xff]
    %v862 = vld [vmem:[#allocation7 + $0x110] sm:$0xff]
    %v863 = vld [vmem:[#allocation7 + $0x118] sm:$0xff]
    %v864 = vld [vmem:[#allocation7 + $0x120] sm:$0xff]
    %v865 = vld [vmem:[#allocation7 + $0x128] sm:$0xff]
    %v866 = vld [vmem:[#allocation7 + $0x130] sm:$0xff]
    %v867 = vld [vmem:[#allocation7 + $0x138] sm:$0xff]
    %v868 = vld [vmem:[#allocation7 + $0x140] sm:$0xff]
    %v869 = vld [vmem:[#allocation7 + $0x148] sm:$0xff]
    %v870 = vld [vmem:[#allocation7 + $0x150] sm:$0xff]
    %v871 = vld [vmem:[#allocation7 + $0x158] sm:$0xff]
    %v872 = vld [vmem:[#allocation7 + $0x160] sm:$0xff]
    %v873 = vld [vmem:[#allocation7 + $0x168] sm:$0xff]
    %v874 = vld [vmem:[#allocation7 + $0x170] sm:$0xff]
    %v875 = vld [vmem:[#allocation7 + $0x178] sm:$0xff]
    %v876 = vld [vmem:[#allocation7 + $0x180] sm:$0xff]
    %v877 = vld [vmem:[#allocation7 + $0x188] sm:$0xff]
    %v878 = vld [vmem:[#allocation7 + $0x190] sm:$0xff]
    %v879 = vld [vmem:[#allocation7 + $0x198] sm:$0xff]
    %v880 = vld [vmem:[#allocation7 + $0x1a0] sm:$0xff]
    %v881 = vld [vmem:[#allocation7 + $0x1a8] sm:$0xff]
    %v882 = vld [vmem:[#allocation7 + $0x1b0] sm:$0xff]
    %v883 = vld [vmem:[#allocation7 + $0x1b8] sm:$0xff]
    %v884 = vld [vmem:[#allocation7 + $0x1c0] sm:$0xff]
    %v885 = vld [vmem:[#allocation7 + $0x1c8] sm:$0xff]
    %v886 = vld [vmem:[#allocation7 + $0x1d0] sm:$0xff]
    %v887 = vld [vmem:[#allocation7 + $0x1d8] sm:$0xff]
    %v888 = vld [vmem:[#allocation7 + $0x1e0] sm:$0xff]
    %v889 = vld [vmem:[#allocation7 + $0x1e8] sm:$0xff]
    %v890 = vld [vmem:[#allocation7 + $0x1f0] sm:$0xff]
    %v891 = vld [vmem:[#allocation7 + $0x1f8] sm:$0xff]
    %v892 = vld [vmem:[#allocation7 + $0x200] sm:$0xff]
    %v893 = vld [vmem:[#allocation7 + $0x208] sm:$0xff]
    %v894 = vld [vmem:[#allocation7 + $0x210] sm:$0xff]
    %v895 = vld [vmem:[#allocation7 + $0x218] sm:$0xff]
    %v896 = vld [vmem:[#allocation7 + $0x220] sm:$0xff]
    %v897 = vld [vmem:[#allocation7 + $0x228] sm:$0xff]
    %v898 = vld [vmem:[#allocation7 + $0x230] sm:$0xff]
    %v899 = vld [vmem:[#allocation7 + $0x238] sm:$0xff]
    %v900 = vld [vmem:[#allocation7 + $0x240] sm:$0xff]
    %v901 = vld [vmem:[#allocation7 + $0x248] sm:$0xff]
    %v902 = vld [vmem:[#allocation7 + $0x250] sm:$0xff]
    %v903 = vld [vmem:[#allocation7 + $0x258] sm:$0xff]
    %v904 = vld [vmem:[#allocation7 + $0x260] sm:$0xff]
    %v905 = vld [vmem:[#allocation7 + $0x268] sm:$0xff]
    %v906 = vld [vmem:[#allocation7 + $0x270] sm:$0xff]
    %v907 = vld [vmem:[#allocation7 + $0x278] sm:$0xff]
    %v908 = vld [vmem:[#allocation7 + $0x280] sm:$0xff]
    %v909 = vld [vmem:[#allocation7 + $0x288] sm:$0xff]
    %v910 = vld [vmem:[#allocation7 + $0x290] sm:$0xff]
    %v911 = vld [vmem:[#allocation7 + $0x298] sm:$0xff]
    %v912 = vld [vmem:[#allocation7 + $0x2a0] sm:$0xff]
    %v913 = vld [vmem:[#allocation7 + $0x2a8] sm:$0xff]
    %v914 = vld [vmem:[#allocation7 + $0x2b0] sm:$0xff]
    %v915 = vld [vmem:[#allocation7 + $0x2b8] sm:$0xff]
    %v916 = vld [vmem:[#allocation7 + $0x2c0] sm:$0xff]
    %v917 = vld [vmem:[#allocation7 + $0x2c8] sm:$0xff]
    %v918 = vld [vmem:[#allocation7 + $0x2d0] sm:$0xff]
    %v919 = vld [vmem:[#allocation7 + $0x2d8] sm:$0xff]
    %v920 = vld [vmem:[#allocation7 + $0x2e0] sm:$0xff]
    %v921 = vld [vmem:[#allocation7 + $0x2e8] sm:$0xff]
    %v922 = vld [vmem:[#allocation7 + $0x2f0] sm:$0xff]
    %v923 = vld [vmem:[#allocation7 + $0x2f8] sm:$0xff]
    %v924 = vld [vmem:[#allocation7 + $0x300] sm:$0xff]
    %v925 = vld [vmem:[#allocation7 + $0x308] sm:$0xff]
    %v926 = vld [vmem:[#allocation7 + $0x310] sm:$0xff]
    %v927 = vld [vmem:[#allocation7 + $0x318] sm:$0xff]
    %v928 = vld [vmem:[#allocation7 + $0x320] sm:$0xff]
    %v929 = vld [vmem:[#allocation7 + $0x328] sm:$0xff]
    %v930 = vld [vmem:[#allocation7 + $0x330] sm:$0xff]
    %v931 = vld [vmem:[#allocation7 + $0x338] sm:$0xff]
    %v932 = vld [vmem:[#allocation7 + $0x340] sm:$0xff]
    %v933 = vld [vmem:[#allocation7 + $0x348] sm:$0xff]
    %v934 = vld [vmem:[#allocation7 + $0x350] sm:$0xff]
    %v935 = vld [vmem:[#allocation7 + $0x358] sm:$0xff]
    %v936 = vld [vmem:[#allocation7 + $0x360] sm:$0xff]
    %v937 = vld [vmem:[#allocation7 + $0x368] sm:$0xff]
    %v938 = vld [vmem:[#allocation7 + $0x370] sm:$0xff]
    %v939 = vld [vmem:[#allocation7 + $0x378] sm:$0xff]
    %v940 = vld [vmem:[#allocation7 + $0x380] sm:$0xff]
    %v941 = vld [vmem:[#allocation7 + $0x388] sm:$0xff]
    %v942 = vld [vmem:[#allocation7 + $0x390] sm:$0xff]
    %v943 = vld [vmem:[#allocation7 + $0x398] sm:$0xff]
    %v944 = vld [vmem:[#allocation7 + $0x3a0] sm:$0xff]
    %v945 = vld [vmem:[#allocation7 + $0x3a8] sm:$0xff]
    %v946 = vld [vmem:[#allocation7 + $0x3b0] sm:$0xff]
    %v947 = vld [vmem:[#allocation7 + $0x3b8] sm:$0xff]
    %v948 = vld [vmem:[#allocation7 + $0x3c0] sm:$0xff]
    %v949 = vld [vmem:[#allocation7 + $0x3c8] sm:$0xff]
    %v950 = vld [vmem:[#allocation7 + $0x3d0] sm:$0xff]
    %v951 = vld [vmem:[#allocation7 + $0x3d8] sm:$0xff]
    %v952 = vld [vmem:[#allocation7 + $0x3e0] sm:$0xff]
    %v953 = vld [vmem:[#allocation7 + $0x3e8] sm:$0xff]
    %v954 = vld [vmem:[#allocation7 + $0x3f0] sm:$0xff]
    %v955 = vld [vmem:[#allocation7 + $0x3f8] sm:$0xff]
    %v956 = vld [vmem:[#allocation7 + $0x400] sm:$0xff]
    %v957 = vld [vmem:[#allocation7 + $0x408] sm:$0xff]
    %v958 = vld [vmem:[#allocation7 + $0x410] sm:$0xff]
    %v959 = vld [vmem:[#allocation7 + $0x418] sm:$0xff]
    %v960 = vld [vmem:[#allocation7 + $0x420] sm:$0xff]
    %v961 = vld [vmem:[#allocation7 + $0x428] sm:$0xff]
    %v962 = vld [vmem:[#allocation7 + $0x430] sm:$0xff]
    %v963 = vld [vmem:[#allocation7 + $0x438] sm:$0xff]
    %v964 = vld [vmem:[#allocation7 + $0x440] sm:$0xff]
    %v965 = vld [vmem:[#allocation7 + $0x448] sm:$0xff]
    %v966 = vld [vmem:[#allocation7 + $0x450] sm:$0xff]
    %v967 = vld [vmem:[#allocation7 + $0x458] sm:$0xff]
    %v968 = vld [vmem:[#allocation7 + $0x460] sm:$0xff]
    %v969 = vld [vmem:[#allocation7 + $0x468] sm:$0xff]
    %v970 = vld [vmem:[#allocation7 + $0x470] sm:$0xff]
    %v971 = vld [vmem:[#allocation7 + $0x478] sm:$0xff]
    %v972 = vld [vmem:[#allocation7 + $0x480] sm:$0xff]
    %v973 = vld [vmem:[#allocation7 + $0x488] sm:$0xff]
    %v974 = vld [vmem:[#allocation7 + $0x490] sm:$0xff]
    %v975 = vld [vmem:[#allocation7 + $0x498] sm:$0xff]
    %v976 = vld [vmem:[#allocation7 + $0x4a0] sm:$0xff]
    %v977 = vld [vmem:[#allocation7 + $0x4a8] sm:$0xff]
    %v978 = vld [vmem:[#allocation7 + $0x4b0] sm:$0xff]
    %v979 = vld [vmem:[#allocation7 + $0x4b8] sm:$0xff]
    %v980 = vld [vmem:[#allocation7 + $0x4c0] sm:$0xff]
    %v981 = vld [vmem:[#allocation7 + $0x4c8] sm:$0xff]
    %v982 = vld [vmem:[#allocation7 + $0x4d0] sm:$0xff]
    %v983 = vld [vmem:[#allocation7 + $0x4d8] sm:$0xff]
    %v984 = vld [vmem:[#allocation7 + $0x4e0] sm:$0xff]
    %v985 = vld [vmem:[#allocation7 + $0x4e8] sm:$0xff]
    %v986 = vld [vmem:[#allocation7 + $0x4f0] sm:$0xff]
    %v987 = vld [vmem:[#allocation7 + $0x4f8] sm:$0xff]
    %v988 = vld [vmem:[#allocation8] sm:$0xff]
    %v989 = vld [vmem:[#allocation8 + $0x8] sm:$0xff]
    %v990 = vld [vmem:[#allocation8 + $0x10] sm:$0xf]
    %v994 = vlaneseq
    %v995 = vshrl.u32 %v994, 7
    %v996 = vsub.s32 0, %v995
    %v997 = vrot.slane %v988, %v996
    %v998 = vlaneseq
    %v999 = vshrl.u32 %v998, 7
    %v1000 = vsub.s32 1, %v999
    %v1001 = vrot.slane %v988, %v1000
    %v1002 = vlaneseq
    %v1003 = vshrl.u32 %v1002, 7
    %v1004 = vsub.s32 2, %v1003
    %v1005 = vrot.slane %v988, %v1004
    %v1006 = vlaneseq
    %v1007 = vshrl.u32 %v1006, 7
    %v1008 = vsub.s32 3, %v1007
    %v1009 = vrot.slane %v988, %v1008
    %v1010 = vlaneseq
    %v1011 = vshrl.u32 %v1010, 7
    %v1012 = vsub.s32 4, %v1011
    %v1013 = vrot.slane %v988, %v1012
    %v1014 = vlaneseq
    %v1015 = vshrl.u32 %v1014, 7
    %v1016 = vsub.s32 5, %v1015
    %v1017 = vrot.slane %v988, %v1016
    %v1018 = vlaneseq
    %v1019 = vshrl.u32 %v1018, 7
    %v1020 = vsub.s32 6, %v1019
    %v1021 = vrot.slane %v988, %v1020
    %v1022 = vlaneseq
    %v1023 = vshrl.u32 %v1022, 7
    %v1024 = vsub.s32 7, %v1023
    %v1025 = vrot.slane %v988, %v1024
    %v1026 = vlaneseq
    %v1027 = vshrl.u32 %v1026, 7
    %v1028 = vsub.s32 0, %v1027
    %v1029 = vrot.slane %v989, %v1028
    %v1030 = vlaneseq
    %v1031 = vshrl.u32 %v1030, 7
    %v1032 = vsub.s32 1, %v1031
    %v1033 = vrot.slane %v989, %v1032
    %v1034 = vlaneseq
    %v1035 = vshrl.u32 %v1034, 7
    %v1036 = vsub.s32 2, %v1035
    %v1037 = vrot.slane %v989, %v1036
    %v1038 = vlaneseq
    %v1039 = vshrl.u32 %v1038, 7
    %v1040 = vsub.s32 3, %v1039
    %v1041 = vrot.slane %v989, %v1040
    %v1042 = vlaneseq
    %v1043 = vshrl.u32 %v1042, 7
    %v1044 = vsub.s32 4, %v1043
    %v1045 = vrot.slane %v989, %v1044
    %v1046 = vlaneseq
    %v1047 = vshrl.u32 %v1046, 7
    %v1048 = vsub.s32 5, %v1047
    %v1049 = vrot.slane %v989, %v1048
    %v1050 = vlaneseq
    %v1051 = vshrl.u32 %v1050, 7
    %v1052 = vsub.s32 6, %v1051
    %v1053 = vrot.slane %v989, %v1052
    %v1054 = vlaneseq
    %v1055 = vshrl.u32 %v1054, 7
    %v1056 = vsub.s32 7, %v1055
    %v1057 = vrot.slane %v989, %v1056
    %v1058 = vlaneseq
    %v1059 = vshrl.u32 %v1058, 7
    %v1060 = vsub.s32 0, %v1059
    %v1061 = vrot.slane %v990, %v1060
    %v1062 = vlaneseq
    %v1063 = vshrl.u32 %v1062, 7
    %v1064 = vsub.s32 1, %v1063
    %v1065 = vrot.slane %v990, %v1064
    %v1066 = vlaneseq
    %v1067 = vshrl.u32 %v1066, 7
    %v1068 = vsub.s32 2, %v1067
    %v1069 = vrot.slane %v990, %v1068
    %v1070 = vlaneseq
    %v1071 = vshrl.u32 %v1070, 7
    %v1072 = vsub.s32 3, %v1071
    %v1073 = vrot.slane %v990, %v1072
    %v1254 = vunpack.c.l.b16 %v828
    %v1255 = vunpack.c.h.b16 %v828
    %v1256 = vunpack.c.l.b16 %v829
    %v1257 = vunpack.c.h.b16 %v829
    %v1258 = vunpack.c.l.b16 %v830
    %v1259 = vunpack.c.h.b16 %v830
    %v1260 = vunpack.c.l.b16 %v831
    %v1261 = vunpack.c.h.b16 %v831
    %v1262 = vunpack.c.l.b16 %v832
    %v1263 = vunpack.c.h.b16 %v832
    %v1264 = vunpack.c.l.b16 %v833
    %v1265 = vunpack.c.h.b16 %v833
    %v1266 = vunpack.c.l.b16 %v834
    %v1267 = vunpack.c.h.b16 %v834
    %v1268 = vunpack.c.l.b16 %v835
    %v1269 = vunpack.c.h.b16 %v835
    %v1270 = vunpack.c.l.b16 %v836
    %v1271 = vunpack.c.h.b16 %v836
    %v1272 = vunpack.c.l.b16 %v837
    %v1273 = vunpack.c.h.b16 %v837
    %v1274 = vunpack.c.l.b16 %v838
    %v1275 = vunpack.c.h.b16 %v838
    %v1276 = vunpack.c.l.b16 %v839
    %v1277 = vunpack.c.h.b16 %v839
    %v1278 = vunpack.c.l.b16 %v840
    %v1279 = vunpack.c.h.b16 %v840
    %v1280 = vunpack.c.l.b16 %v841
    %v1281 = vunpack.c.h.b16 %v841
    %v1282 = vunpack.c.l.b16 %v842
    %v1283 = vunpack.c.h.b16 %v842
    %v1284 = vunpack.c.l.b16 %v843
    %v1285 = vunpack.c.h.b16 %v843
    %v1286 = vunpack.c.l.b16 %v844
    %v1287 = vunpack.c.h.b16 %v844
    %v1288 = vunpack.c.l.b16 %v845
    %v1289 = vunpack.c.h.b16 %v845
    %v1290 = vunpack.c.l.b16 %v846
    %v1291 = vunpack.c.h.b16 %v846
    %v1292 = vunpack.c.l.b16 %v847
    %v1293 = vunpack.c.h.b16 %v847
    %v1294 = vunpack.c.l.b16 %v848
    %v1295 = vunpack.c.h.b16 %v848
    %v1296 = vunpack.c.l.b16 %v849
    %v1297 = vunpack.c.h.b16 %v849
    %v1298 = vunpack.c.l.b16 %v850
    %v1299 = vunpack.c.h.b16 %v850
    %v1300 = vunpack.c.l.b16 %v851
    %v1301 = vunpack.c.h.b16 %v851
    %v1302 = vunpack.c.l.b16 %v852
    %v1303 = vunpack.c.h.b16 %v852
    %v1304 = vunpack.c.l.b16 %v853
    %v1305 = vunpack.c.h.b16 %v853
    %v1306 = vunpack.c.l.b16 %v854
    %v1307 = vunpack.c.h.b16 %v854
    %v1308 = vunpack.c.l.b16 %v855
    %v1309 = vunpack.c.h.b16 %v855
    %v1310 = vunpack.c.l.b16 %v856
    %v1311 = vunpack.c.h.b16 %v856
    %v1312 = vunpack.c.l.b16 %v857
    %v1313 = vunpack.c.h.b16 %v857
    %v1314 = vunpack.c.l.b16 %v858
    %v1315 = vunpack.c.h.b16 %v858
    %v1316 = vunpack.c.l.b16 %v859
    %v1317 = vunpack.c.h.b16 %v859
    %v1318 = vunpack.c.l.b16 %v860
    %v1319 = vunpack.c.h.b16 %v860
    %v1320 = vunpack.c.l.b16 %v861
    %v1321 = vunpack.c.h.b16 %v861
    %v1322 = vunpack.c.l.b16 %v862
    %v1323 = vunpack.c.h.b16 %v862
    %v1324 = vunpack.c.l.b16 %v863
    %v1325 = vunpack.c.h.b16 %v863
    %v1326 = vunpack.c.l.b16 %v864
    %v1327 = vunpack.c.h.b16 %v864
    %v1328 = vunpack.c.l.b16 %v865
    %v1329 = vunpack.c.h.b16 %v865
    %v1330 = vunpack.c.l.b16 %v866
    %v1331 = vunpack.c.h.b16 %v866
    %v1332 = vunpack.c.l.b16 %v867
    %v1333 = vunpack.c.h.b16 %v867
    %v1334 = vunpack.c.l.b16 %v868
    %v1335 = vunpack.c.h.b16 %v868
    %v1336 = vunpack.c.l.b16 %v869
    %v1337 = vunpack.c.h.b16 %v869
    %v1338 = vunpack.c.l.b16 %v870
    %v1339 = vunpack.c.h.b16 %v870
    %v1340 = vunpack.c.l.b16 %v871
    %v1341 = vunpack.c.h.b16 %v871
    %v1342 = vunpack.c.l.b16 %v872
    %v1343 = vunpack.c.h.b16 %v872
    %v1344 = vunpack.c.l.b16 %v873
    %v1345 = vunpack.c.h.b16 %v873
    %v1346 = vunpack.c.l.b16 %v874
    %v1347 = vunpack.c.h.b16 %v874
    %v1348 = vunpack.c.l.b16 %v875
    %v1349 = vunpack.c.h.b16 %v875
    %v1350 = vunpack.c.l.b16 %v876
    %v1351 = vunpack.c.h.b16 %v876
    %v1352 = vunpack.c.l.b16 %v877
    %v1353 = vunpack.c.h.b16 %v877
    %v1354 = vunpack.c.l.b16 %v878
    %v1355 = vunpack.c.h.b16 %v878
    %v1356 = vunpack.c.l.b16 %v879
    %v1357 = vunpack.c.h.b16 %v879
    %v1358 = vunpack.c.l.b16 %v880
    %v1359 = vunpack.c.h.b16 %v880
    %v1360 = vunpack.c.l.b16 %v881
    %v1361 = vunpack.c.h.b16 %v881
    %v1362 = vunpack.c.l.b16 %v882
    %v1363 = vunpack.c.h.b16 %v882
    %v1364 = vunpack.c.l.b16 %v883
    %v1365 = vunpack.c.h.b16 %v883
    %v1366 = vunpack.c.l.b16 %v884
    %v1367 = vunpack.c.h.b16 %v884
    %v1368 = vunpack.c.l.b16 %v885
    %v1369 = vunpack.c.h.b16 %v885
    %v1370 = vunpack.c.l.b16 %v886
    %v1371 = vunpack.c.h.b16 %v886
    %v1372 = vunpack.c.l.b16 %v887
    %v1373 = vunpack.c.h.b16 %v887
    %v1374 = vunpack.c.l.b16 %v888
    %v1375 = vunpack.c.h.b16 %v888
    %v1376 = vunpack.c.l.b16 %v889
    %v1377 = vunpack.c.h.b16 %v889
    %v1378 = vunpack.c.l.b16 %v890
    %v1379 = vunpack.c.h.b16 %v890
    %v1380 = vunpack.c.l.b16 %v891
    %v1381 = vunpack.c.h.b16 %v891
    %v1382 = vunpack.c.l.b16 %v892
    %v1383 = vunpack.c.h.b16 %v892
    %v1384 = vunpack.c.l.b16 %v893
    %v1385 = vunpack.c.h.b16 %v893
    %v1386 = vunpack.c.l.b16 %v894
    %v1387 = vunpack.c.h.b16 %v894
    %v1388 = vunpack.c.l.b16 %v895
    %v1389 = vunpack.c.h.b16 %v895
    %v1390 = vunpack.c.l.b16 %v896
    %v1391 = vunpack.c.h.b16 %v896
    %v1392 = vunpack.c.l.b16 %v897
    %v1393 = vunpack.c.h.b16 %v897
    %v1394 = vunpack.c.l.b16 %v898
    %v1395 = vunpack.c.h.b16 %v898
    %v1396 = vunpack.c.l.b16 %v899
    %v1397 = vunpack.c.h.b16 %v899
    %v1398 = vunpack.c.l.b16 %v900
    %v1399 = vunpack.c.h.b16 %v900
    %v1400 = vunpack.c.l.b16 %v901
    %v1401 = vunpack.c.h.b16 %v901
    %v1402 = vunpack.c.l.b16 %v902
    %v1403 = vunpack.c.h.b16 %v902
    %v1404 = vunpack.c.l.b16 %v903
    %v1405 = vunpack.c.h.b16 %v903
    %v1406 = vunpack.c.l.b16 %v904
    %v1407 = vunpack.c.h.b16 %v904
    %v1408 = vunpack.c.l.b16 %v905
    %v1409 = vunpack.c.h.b16 %v905
    %v1410 = vunpack.c.l.b16 %v906
    %v1411 = vunpack.c.h.b16 %v906
    %v1412 = vunpack.c.l.b16 %v907
    %v1413 = vunpack.c.h.b16 %v907
    %v1414 = vunpack.c.l.b16 %v908
    %v1415 = vunpack.c.h.b16 %v908
    %v1416 = vunpack.c.l.b16 %v909
    %v1417 = vunpack.c.h.b16 %v909
    %v1418 = vunpack.c.l.b16 %v910
    %v1419 = vunpack.c.h.b16 %v910
    %v1420 = vunpack.c.l.b16 %v911
    %v1421 = vunpack.c.h.b16 %v911
    %v1422 = vunpack.c.l.b16 %v912
    %v1423 = vunpack.c.h.b16 %v912
    %v1424 = vunpack.c.l.b16 %v913
    %v1425 = vunpack.c.h.b16 %v913
    %v1426 = vunpack.c.l.b16 %v914
    %v1427 = vunpack.c.h.b16 %v914
    %v1428 = vunpack.c.l.b16 %v915
    %v1429 = vunpack.c.h.b16 %v915
    %v1430 = vunpack.c.l.b16 %v916
    %v1431 = vunpack.c.h.b16 %v916
    %v1432 = vunpack.c.l.b16 %v917
    %v1433 = vunpack.c.h.b16 %v917
    %v1434 = vunpack.c.l.b16 %v918
    %v1435 = vunpack.c.h.b16 %v918
    %v1436 = vunpack.c.l.b16 %v919
    %v1437 = vunpack.c.h.b16 %v919
    %v1438 = vunpack.c.l.b16 %v920
    %v1439 = vunpack.c.h.b16 %v920
    %v1440 = vunpack.c.l.b16 %v921
    %v1441 = vunpack.c.h.b16 %v921
    %v1442 = vunpack.c.l.b16 %v922
    %v1443 = vunpack.c.h.b16 %v922
    %v1444 = vunpack.c.l.b16 %v923
    %v1445 = vunpack.c.h.b16 %v923
    %v1446 = vunpack.c.l.b16 %v924
    %v1447 = vunpack.c.h.b16 %v924
    %v1448 = vunpack.c.l.b16 %v925
    %v1449 = vunpack.c.h.b16 %v925
    %v1450 = vunpack.c.l.b16 %v926
    %v1451 = vunpack.c.h.b16 %v926
    %v1452 = vunpack.c.l.b16 %v927
    %v1453 = vunpack.c.h.b16 %v927
    %v1454 = vunpack.c.l.b16 %v928
    %v1455 = vunpack.c.h.b16 %v928
    %v1456 = vunpack.c.l.b16 %v929
    %v1457 = vunpack.c.h.b16 %v929
    %v1458 = vunpack.c.l.b16 %v930
    %v1459 = vunpack.c.h.b16 %v930
    %v1460 = vunpack.c.l.b16 %v931
    %v1461 = vunpack.c.h.b16 %v931
    %v1462 = vunpack.c.l.b16 %v932
    %v1463 = vunpack.c.h.b16 %v932
    %v1464 = vunpack.c.l.b16 %v933
    %v1465 = vunpack.c.h.b16 %v933
    %v1466 = vunpack.c.l.b16 %v934
    %v1467 = vunpack.c.h.b16 %v934
    %v1468 = vunpack.c.l.b16 %v935
    %v1469 = vunpack.c.h.b16 %v935
    %v1470 = vunpack.c.l.b16 %v936
    %v1471 = vunpack.c.h.b16 %v936
    %v1472 = vunpack.c.l.b16 %v937
    %v1473 = vunpack.c.h.b16 %v937
    %v1474 = vunpack.c.l.b16 %v938
    %v1475 = vunpack.c.h.b16 %v938
    %v1476 = vunpack.c.l.b16 %v939
    %v1477 = vunpack.c.h.b16 %v939
    %v1478 = vunpack.c.l.b16 %v940
    %v1479 = vunpack.c.h.b16 %v940
    %v1480 = vunpack.c.l.b16 %v941
    %v1481 = vunpack.c.h.b16 %v941
    %v1482 = vunpack.c.l.b16 %v942
    %v1483 = vunpack.c.h.b16 %v942
    %v1484 = vunpack.c.l.b16 %v943
    %v1485 = vunpack.c.h.b16 %v943
    %v1486 = vunpack.c.l.b16 %v944
    %v1487 = vunpack.c.h.b16 %v944
    %v1488 = vunpack.c.l.b16 %v945
    %v1489 = vunpack.c.h.b16 %v945
    %v1490 = vunpack.c.l.b16 %v946
    %v1491 = vunpack.c.h.b16 %v946
    %v1492 = vunpack.c.l.b16 %v947
    %v1493 = vunpack.c.h.b16 %v947
    %v1494 = vunpack.c.l.b16 %v948
    %v1495 = vunpack.c.h.b16 %v948
    %v1496 = vunpack.c.l.b16 %v949
    %v1497 = vunpack.c.h.b16 %v949
    %v1498 = vunpack.c.l.b16 %v950
    %v1499 = vunpack.c.h.b16 %v950
    %v1500 = vunpack.c.l.b16 %v951
    %v1501 = vunpack.c.h.b16 %v951
    %v1502 = vunpack.c.l.b16 %v952
    %v1503 = vunpack.c.h.b16 %v952
    %v1504 = vunpack.c.l.b16 %v953
    %v1505 = vunpack.c.h.b16 %v953
    %v1506 = vunpack.c.l.b16 %v954
    %v1507 = vunpack.c.h.b16 %v954
    %v1508 = vunpack.c.l.b16 %v955
    %v1509 = vunpack.c.h.b16 %v955
    %v1510 = vunpack.c.l.b16 %v956
    %v1511 = vunpack.c.h.b16 %v956
    %v1512 = vunpack.c.l.b16 %v957
    %v1513 = vunpack.c.h.b16 %v957
    %v1514 = vunpack.c.l.b16 %v958
    %v1515 = vunpack.c.h.b16 %v958
    %v1516 = vunpack.c.l.b16 %v959
    %v1517 = vunpack.c.h.b16 %v959
    %v1518 = vunpack.c.l.b16 %v960
    %v1519 = vunpack.c.h.b16 %v960
    %v1520 = vunpack.c.l.b16 %v961
    %v1521 = vunpack.c.h.b16 %v961
    %v1522 = vunpack.c.l.b16 %v962
    %v1523 = vunpack.c.h.b16 %v962
    %v1524 = vunpack.c.l.b16 %v963
    %v1525 = vunpack.c.h.b16 %v963
    %v1526 = vunpack.c.l.b16 %v964
    %v1527 = vunpack.c.h.b16 %v964
    %v1528 = vunpack.c.l.b16 %v965
    %v1529 = vunpack.c.h.b16 %v965
    %v1530 = vunpack.c.l.b16 %v966
    %v1531 = vunpack.c.h.b16 %v966
    %v1532 = vunpack.c.l.b16 %v967
    %v1533 = vunpack.c.h.b16 %v967
    %v1534 = vunpack.c.l.b16 %v968
    %v1535 = vunpack.c.h.b16 %v968
    %v1536 = vunpack.c.l.b16 %v969
    %v1537 = vunpack.c.h.b16 %v969
    %v1538 = vunpack.c.l.b16 %v970
    %v1539 = vunpack.c.h.b16 %v970
    %v1540 = vunpack.c.l.b16 %v971
    %v1541 = vunpack.c.h.b16 %v971
    %v1542 = vunpack.c.l.b16 %v972
    %v1543 = vunpack.c.h.b16 %v972
    %v1544 = vunpack.c.l.b16 %v973
    %v1545 = vunpack.c.h.b16 %v973
    %v1546 = vunpack.c.l.b16 %v974
    %v1547 = vunpack.c.h.b16 %v974
    %v1548 = vunpack.c.l.b16 %v975
    %v1549 = vunpack.c.h.b16 %v975
    %v1550 = vunpack.c.l.b16 %v976
    %v1551 = vunpack.c.h.b16 %v976
    %v1552 = vunpack.c.l.b16 %v977
    %v1553 = vunpack.c.h.b16 %v977
    %v1554 = vunpack.c.l.b16 %v978
    %v1555 = vunpack.c.h.b16 %v978
    %v1556 = vunpack.c.l.b16 %v979
    %v1557 = vunpack.c.h.b16 %v979
    %v1558 = vunpack.c.l.b16 %v980
    %v1559 = vunpack.c.h.b16 %v980
    %v1560 = vunpack.c.l.b16 %v981
    %v1561 = vunpack.c.h.b16 %v981
    %v1562 = vunpack.c.l.b16 %v982
    %v1563 = vunpack.c.h.b16 %v982
    %v1564 = vunpack.c.l.b16 %v983
    %v1565 = vunpack.c.h.b16 %v983
    %v1566 = vunpack.c.l.b16 %v984
    %v1567 = vunpack.c.h.b16 %v984
    %v1568 = vunpack.c.l.b16 %v985
    %v1569 = vunpack.c.h.b16 %v985
    %v1570 = vunpack.c.l.b16 %v986
    %v1571 = vunpack.c.h.b16 %v986
    %v1572 = vunpack.c.l.b16 %v987
    %v1573 = vunpack.c.h.b16 %v987
    %v1574 = vpack.c.b16 %v1274, %v1254
    %v1575 = vpack.c.b16 %v1275, %v1255
    %v1576 = vpack.c.b16 %v1276, %v1256
    %v1577 = vpack.c.b16 %v1277, %v1257
    %v1578 = vpack.c.b16 %v1278, %v1258
    %v1579 = vpack.c.b16 %v1279, %v1259
    %v1580 = vpack.c.b16 %v1280, %v1260
    %v1581 = vpack.c.b16 %v1281, %v1261
    %v1582 = vpack.c.b16 %v1282, %v1262
    %v1583 = vpack.c.b16 %v1283, %v1263
    %v1584 = vpack.c.b16 %v1284, %v1264
    %v1585 = vpack.c.b16 %v1285, %v1265
    %v1586 = vpack.c.b16 %v1286, %v1266
    %v1587 = vpack.c.b16 %v1287, %v1267
    %v1588 = vpack.c.b16 %v1288, %v1268
    %v1589 = vpack.c.b16 %v1289, %v1269
    %v1590 = vpack.c.b16 %v1290, %v1270
    %v1591 = vpack.c.b16 %v1291, %v1271
    %v1592 = vpack.c.b16 %v1292, %v1272
    %v1593 = vpack.c.b16 %v1293, %v1273
    %v1594 = vpack.c.b16 %v1314, %v1294
    %v1595 = vpack.c.b16 %v1315, %v1295
    %v1596 = vpack.c.b16 %v1316, %v1296
    %v1597 = vpack.c.b16 %v1317, %v1297
    %v1598 = vpack.c.b16 %v1318, %v1298
    %v1599 = vpack.c.b16 %v1319, %v1299
    %v1600 = vpack.c.b16 %v1320, %v1300
    %v1601 = vpack.c.b16 %v1321, %v1301
    %v1602 = vpack.c.b16 %v1322, %v1302
    %v1603 = vpack.c.b16 %v1323, %v1303
    %v1604 = vpack.c.b16 %v1324, %v1304
    %v1605 = vpack.c.b16 %v1325, %v1305
    %v1606 = vpack.c.b16 %v1326, %v1306
    %v1607 = vpack.c.b16 %v1327, %v1307
    %v1608 = vpack.c.b16 %v1328, %v1308
    %v1609 = vpack.c.b16 %v1329, %v1309
    %v1610 = vpack.c.b16 %v1330, %v1310
    %v1611 = vpack.c.b16 %v1331, %v1311
    %v1612 = vpack.c.b16 %v1332, %v1312
    %v1613 = vpack.c.b16 %v1333, %v1313
    %v1614 = vpack.c.b16 %v1354, %v1334
    %v1615 = vpack.c.b16 %v1355, %v1335
    %v1616 = vpack.c.b16 %v1356, %v1336
    %v1617 = vpack.c.b16 %v1357, %v1337
    %v1618 = vpack.c.b16 %v1358, %v1338
    %v1619 = vpack.c.b16 %v1359, %v1339
    %v1620 = vpack.c.b16 %v1360, %v1340
    %v1621 = vpack.c.b16 %v1361, %v1341
    %v1622 = vpack.c.b16 %v1362, %v1342
    %v1623 = vpack.c.b16 %v1363, %v1343
    %v1624 = vpack.c.b16 %v1364, %v1344
    %v1625 = vpack.c.b16 %v1365, %v1345
    %v1626 = vpack.c.b16 %v1366, %v1346
    %v1627 = vpack.c.b16 %v1367, %v1347
    %v1628 = vpack.c.b16 %v1368, %v1348
    %v1629 = vpack.c.b16 %v1369, %v1349
    %v1630 = vpack.c.b16 %v1370, %v1350
    %v1631 = vpack.c.b16 %v1371, %v1351
    %v1632 = vpack.c.b16 %v1372, %v1352
    %v1633 = vpack.c.b16 %v1373, %v1353
    %v1634 = vpack.c.b16 %v1394, %v1374
    %v1635 = vpack.c.b16 %v1395, %v1375
    %v1636 = vpack.c.b16 %v1396, %v1376
    %v1637 = vpack.c.b16 %v1397, %v1377
    %v1638 = vpack.c.b16 %v1398, %v1378
    %v1639 = vpack.c.b16 %v1399, %v1379
    %v1640 = vpack.c.b16 %v1400, %v1380
    %v1641 = vpack.c.b16 %v1401, %v1381
    %v1642 = vpack.c.b16 %v1402, %v1382
    %v1643 = vpack.c.b16 %v1403, %v1383
    %v1644 = vpack.c.b16 %v1404, %v1384
    %v1645 = vpack.c.b16 %v1405, %v1385
    %v1646 = vpack.c.b16 %v1406, %v1386
    %v1647 = vpack.c.b16 %v1407, %v1387
    %v1648 = vpack.c.b16 %v1408, %v1388
    %v1649 = vpack.c.b16 %v1409, %v1389
    %v1650 = vpack.c.b16 %v1410, %v1390
    %v1651 = vpack.c.b16 %v1411, %v1391
    %v1652 = vpack.c.b16 %v1412, %v1392
    %v1653 = vpack.c.b16 %v1413, %v1393
    %v1654 = vpack.c.b16 %v1434, %v1414
    %v1655 = vpack.c.b16 %v1435, %v1415
    %v1656 = vpack.c.b16 %v1436, %v1416
    %v1657 = vpack.c.b16 %v1437, %v1417
    %v1658 = vpack.c.b16 %v1438, %v1418
    %v1659 = vpack.c.b16 %v1439, %v1419
    %v1660 = vpack.c.b16 %v1440, %v1420
    %v1661 = vpack.c.b16 %v1441, %v1421
    %v1662 = vpack.c.b16 %v1442, %v1422
    %v1663 = vpack.c.b16 %v1443, %v1423
    %v1664 = vpack.c.b16 %v1444, %v1424
    %v1665 = vpack.c.b16 %v1445, %v1425
    %v1666 = vpack.c.b16 %v1446, %v1426
    %v1667 = vpack.c.b16 %v1447, %v1427
    %v1668 = vpack.c.b16 %v1448, %v1428
    %v1669 = vpack.c.b16 %v1449, %v1429
    %v1670 = vpack.c.b16 %v1450, %v1430
    %v1671 = vpack.c.b16 %v1451, %v1431
    %v1672 = vpack.c.b16 %v1452, %v1432
    %v1673 = vpack.c.b16 %v1453, %v1433
    %v1674 = vpack.c.b16 %v1474, %v1454
    %v1675 = vpack.c.b16 %v1475, %v1455
    %v1676 = vpack.c.b16 %v1476, %v1456
    %v1677 = vpack.c.b16 %v1477, %v1457
    %v1678 = vpack.c.b16 %v1478, %v1458
    %v1679 = vpack.c.b16 %v1479, %v1459
    %v1680 = vpack.c.b16 %v1480, %v1460
    %v1681 = vpack.c.b16 %v1481, %v1461
    %v1682 = vpack.c.b16 %v1482, %v1462
    %v1683 = vpack.c.b16 %v1483, %v1463
    %v1684 = vpack.c.b16 %v1484, %v1464
    %v1685 = vpack.c.b16 %v1485, %v1465
    %v1686 = vpack.c.b16 %v1486, %v1466
    %v1687 = vpack.c.b16 %v1487, %v1467
    %v1688 = vpack.c.b16 %v1488, %v1468
    %v1689 = vpack.c.b16 %v1489, %v1469
    %v1690 = vpack.c.b16 %v1490, %v1470
    %v1691 = vpack.c.b16 %v1491, %v1471
    %v1692 = vpack.c.b16 %v1492, %v1472
    %v1693 = vpack.c.b16 %v1493, %v1473
    %v1694 = vpack.c.b16 %v1514, %v1494
    %v1695 = vpack.c.b16 %v1515, %v1495
    %v1696 = vpack.c.b16 %v1516, %v1496
    %v1697 = vpack.c.b16 %v1517, %v1497
    %v1698 = vpack.c.b16 %v1518, %v1498
    %v1699 = vpack.c.b16 %v1519, %v1499
    %v1700 = vpack.c.b16 %v1520, %v1500
    %v1701 = vpack.c.b16 %v1521, %v1501
    %v1702 = vpack.c.b16 %v1522, %v1502
    %v1703 = vpack.c.b16 %v1523, %v1503
    %v1704 = vpack.c.b16 %v1524, %v1504
    %v1705 = vpack.c.b16 %v1525, %v1505
    %v1706 = vpack.c.b16 %v1526, %v1506
    %v1707 = vpack.c.b16 %v1527, %v1507
    %v1708 = vpack.c.b16 %v1528, %v1508
    %v1709 = vpack.c.b16 %v1529, %v1509
    %v1710 = vpack.c.b16 %v1530, %v1510
    %v1711 = vpack.c.b16 %v1531, %v1511
    %v1712 = vpack.c.b16 %v1532, %v1512
    %v1713 = vpack.c.b16 %v1533, %v1513
    %v1714 = vpack.c.b16 %v1554, %v1534
    %v1715 = vpack.c.b16 %v1555, %v1535
    %v1716 = vpack.c.b16 %v1556, %v1536
    %v1717 = vpack.c.b16 %v1557, %v1537
    %v1718 = vpack.c.b16 %v1558, %v1538
    %v1719 = vpack.c.b16 %v1559, %v1539
    %v1720 = vpack.c.b16 %v1560, %v1540
    %v1721 = vpack.c.b16 %v1561, %v1541
    %v1722 = vpack.c.b16 %v1562, %v1542
    %v1723 = vpack.c.b16 %v1563, %v1543
    %v1724 = vpack.c.b16 %v1564, %v1544
    %v1725 = vpack.c.b16 %v1565, %v1545
    %v1726 = vpack.c.b16 %v1566, %v1546
    %v1727 = vpack.c.b16 %v1567, %v1547
    %v1728 = vpack.c.b16 %v1568, %v1548
    %v1729 = vpack.c.b16 %v1569, %v1549
    %v1730 = vpack.c.b16 %v1570, %v1550
    %v1731 = vpack.c.b16 %v1571, %v1551
    %v1732 = vpack.c.b16 %v1572, %v1552
    %v1733 = vpack.c.b16 %v1573, %v1553
    %1894 = vmatprep.subr.bf16.mxu0 %v1575
    %1895 = vmatpush1.bf16.msra.mxu0 %v1574
    %1896 = vmatprep.subr.bf16.mxu0 %v1595
    %1897 = vmatpush1.bf16.msra.mxu0 %v1594
    %1898 = vmatprep.subr.bf16.mxu0 %v1615
    %1899 = vmatpush1.bf16.msra.mxu0 %v1614
    %1900 = vmatprep.subr.bf16.mxu0 %v1635
    %1901 = vmatpush1.bf16.msra.mxu0 %v1634
    %1902 = vmatprep.subr.bf16.mxu0 %v1655
    %1903 = vmatpush1.bf16.msra.mxu0 %v1654
    %1904 = vmatprep.subr.bf16.mxu0 %v1675
    %1905 = vmatpush1.bf16.msra.mxu0 %v1674
    %1906 = vmatprep.subr.bf16.mxu0 %v1695
    %1907 = vmatpush1.bf16.msra.mxu0 %v1694
    %1908 = vmatprep.subr.bf16.mxu0 %v1715
    %1909 = vmatpush1.bf16.msra.mxu0 %v1714
    %1910 = vmatprep.subr.bf16.mxu0 0
    %1911 = vmatpush1.bf16.msra.mxu0 0
    %1912 = vmatprep.subr.bf16.mxu0 0
    %1913 = vmatpush1.bf16.msra.mxu0 0
    %1914 = vmatprep.subr.bf16.mxu0 0
    %1915 = vmatpush1.bf16.msra.mxu0 0
    %1916 = vmatprep.subr.bf16.mxu0 0
    %1917 = vmatpush1.bf16.msra.mxu0 0
    %1918 = vmatprep.subr.bf16.mxu0 0
    %1919 = vmatpush1.bf16.msra.mxu0 0
    %1920 = vmatprep.subr.bf16.mxu0 0
    %1921 = vmatpush1.bf16.msra.mxu0 0
    %1922 = vmatprep.subr.bf16.mxu0 0
    %1923 = vmatpush1.bf16.msra.mxu0 0
    %1924 = vmatprep.subr.bf16.mxu0 0
    %1925 = vmatpush1.bf16.msra.mxu0 0
    %1926 = vmatprep.mubr.bf16.mxu0 0
    %1927 = vmatmul.mubr.bf16.gmra.mrb[0].mxu0 %v827
    %v1928 = vpop.f32.mrb[0].mxu0
    %v1929 = vadd.f32 %v997, %v1928
    %v1930 = vpop.f32.mrb[0].mxu0
    %v1931 = vadd.f32 %v1001, %v1930
    %v1932 = vpop.f32.mrb[0].mxu0
    %v1933 = vadd.f32 %v997, %v1932
    %v1934 = vpop.f32.mrb[0].mxu0
    %v1935 = vadd.f32 %v1001, %v1934
    %1936 = vdwg.mxu0
    %1937 = vmatprep.subr.bf16.mxu0 %v1577
    %1938 = vmatpush1.bf16.msra.mxu0 %v1576
    %1939 = vmatprep.subr.bf16.mxu0 %v1597
    %1940 = vmatpush1.bf16.msra.mxu0 %v1596
    %1941 = vmatprep.subr.bf16.mxu0 %v1617
    %1942 = vmatpush1.bf16.msra.mxu0 %v1616
    %1943 = vmatprep.subr.bf16.mxu0 %v1637
    %1944 = vmatpush1.bf16.msra.mxu0 %v1636
    %1945 = vmatprep.subr.bf16.mxu0 %v1657
    %1946 = vmatpush1.bf16.msra.mxu0 %v1656
    %1947 = vmatprep.subr.bf16.mxu0 %v1677
    %1948 = vmatpush1.bf16.msra.mxu0 %v1676
    %1949 = vmatprep.subr.bf16.mxu0 %v1697
    %1950 = vmatpush1.bf16.msra.mxu0 %v1696
    %1951 = vmatprep.subr.bf16.mxu0 %v1717
    %1952 = vmatpush1.bf16.msra.mxu0 %v1716
    %1953 = vmatprep.subr.bf16.mxu0 0
    %1954 = vmatpush1.bf16.msra.mxu0 0
    %1955 = vmatprep.subr.bf16.mxu0 0
    %1956 = vmatpush1.bf16.msra.mxu0 0
    %1957 = vmatprep.subr.bf16.mxu0 0
    %1958 = vmatpush1.bf16.msra.mxu0 0
    %1959 = vmatprep.subr.bf16.mxu0 0
    %1960 = vmatpush1.bf16.msra.mxu0 0
    %1961 = vmatprep.subr.bf16.mxu0 0
    %1962 = vmatpush1.bf16.msra.mxu0 0
    %1963 = vmatprep.subr.bf16.mxu0 0
    %1964 = vmatpush1.bf16.msra.mxu0 0
    %1965 = vmatprep.subr.bf16.mxu0 0
    %1966 = vmatpush1.bf16.msra.mxu0 0
    %1967 = vmatprep.subr.bf16.mxu0 0
    %1968 = vmatpush1.bf16.msra.mxu0 0
    %1969 = vmatprep.mubr.bf16.mxu0 0
    %1970 = vmatmul.mubr.bf16.gmra.mrb[0].mxu0 %v827
    %v1971 = vpop.f32.mrb[0].mxu0
    %v1972 = vadd.f32 %v1005, %v1971
    %v1973 = vpop.f32.mrb[0].mxu0
    %v1974 = vadd.f32 %v1009, %v1973
    %v1975 = vpop.f32.mrb[0].mxu0
    %v1976 = vadd.f32 %v1005, %v1975
    %v1977 = vpop.f32.mrb[0].mxu0
    %v1978 = vadd.f32 %v1009, %v1977
    %1979 = vdwg.mxu0
    %1980 = vmatprep.subr.bf16.mxu0 %v1579
    %1981 = vmatpush1.bf16.msra.mxu0 %v1578
    %1982 = vmatprep.subr.bf16.mxu0 %v1599
    %1983 = vmatpush1.bf16.msra.mxu0 %v1598
    %1984 = vmatprep.subr.bf16.mxu0 %v1619
    %1985 = vmatpush1.bf16.msra.mxu0 %v1618
    %1986 = vmatprep.subr.bf16.mxu0 %v1639
    %1987 = vmatpush1.bf16.msra.mxu0 %v1638
    %1988 = vmatprep.subr.bf16.mxu0 %v1659
    %1989 = vmatpush1.bf16.msra.mxu0 %v1658
    %1990 = vmatprep.subr.bf16.mxu0 %v1679
    %1991 = vmatpush1.bf16.msra.mxu0 %v1678
    %1992 = vmatprep.subr.bf16.mxu0 %v1699
    %1993 = vmatpush1.bf16.msra.mxu0 %v1698
    %1994 = vmatprep.subr.bf16.mxu0 %v1719
    %1995 = vmatpush1.bf16.msra.mxu0 %v1718
    %1996 = vmatprep.subr.bf16.mxu0 0
    %1997 = vmatpush1.bf16.msra.mxu0 0
    %1998 = vmatprep.subr.bf16.mxu0 0
    %1999 = vmatpush1.bf16.msra.mxu0 0
    %2000 = vmatprep.subr.bf16.mxu0 0
    %2001 = vmatpush1.bf16.msra.mxu0 0
    %2002 = vmatprep.subr.bf16.mxu0 0
    %2003 = vmatpush1.bf16.msra.mxu0 0
    %2004 = vmatprep.subr.bf16.mxu0 0
    %2005 = vmatpush1.bf16.msra.mxu0 0
    %2006 = vmatprep.subr.bf16.mxu0 0
    %2007 = vmatpush1.bf16.msra.mxu0 0
    %2008 = vmatprep.subr.bf16.mxu0 0
    %2009 = vmatpush1.bf16.msra.mxu0 0
    %2010 = vmatprep.subr.bf16.mxu0 0
    %2011 = vmatpush1.bf16.msra.mxu0 0
    %2012 = vmatprep.mubr.bf16.mxu0 0
    %2013 = vmatmul.mubr.bf16.gmra.mrb[0].mxu0 %v827
    %v2014 = vpop.f32.mrb[0].mxu0
    %v2015 = vadd.f32 %v1013, %v2014
    %v2016 = vpop.f32.mrb[0].mxu0
    %v2017 = vadd.f32 %v1017, %v2016
    %v2018 = vpop.f32.mrb[0].mxu0
    %v2019 = vadd.f32 %v1013, %v2018
    %v2020 = vpop.f32.mrb[0].mxu0
    %v2021 = vadd.f32 %v1017, %v2020
    %2022 = vdwg.mxu0
    %2023 = vmatprep.subr.bf16.mxu0 %v1581
    %2024 = vmatpush1.bf16.msra.mxu0 %v1580
    %2025 = vmatprep.subr.bf16.mxu0 %v1601
    %2026 = vmatpush1.bf16.msra.mxu0 %v1600
    %2027 = vmatprep.subr.bf16.mxu0 %v1621
    %2028 = vmatpush1.bf16.msra.mxu0 %v1620
    %2029 = vmatprep.subr.bf16.mxu0 %v1641
    %2030 = vmatpush1.bf16.msra.mxu0 %v1640
    %2031 = vmatprep.subr.bf16.mxu0 %v1661
    %2032 = vmatpush1.bf16.msra.mxu0 %v1660
    %2033 = vmatprep.subr.bf16.mxu0 %v1681
    %2034 = vmatpush1.bf16.msra.mxu0 %v1680
    %2035 = vmatprep.subr.bf16.mxu0 %v1701
    %2036 = vmatpush1.bf16.msra.mxu0 %v1700
    %2037 = vmatprep.subr.bf16.mxu0 %v1721
    %2038 = vmatpush1.bf16.msra.mxu0 %v1720
    %2039 = vmatprep.subr.bf16.mxu0 0
    %2040 = vmatpush1.bf16.msra.mxu0 0
    %2041 = vmatprep.subr.bf16.mxu0 0
    %2042 = vmatpush1.bf16.msra.mxu0 0
    %2043 = vmatprep.subr.bf16.mxu0 0
    %2044 = vmatpush1.bf16.msra.mxu0 0
    %2045 = vmatprep.subr.bf16.mxu0 0
    %2046 = vmatpush1.bf16.msra.mxu0 0
    %2047 = vmatprep.subr.bf16.mxu0 0
    %2048 = vmatpush1.bf16.msra.mxu0 0
    %2049 = vmatprep.subr.bf16.mxu0 0
    %2050 = vmatpush1.bf16.msra.mxu0 0
    %2051 = vmatprep.subr.bf16.mxu0 0
    %2052 = vmatpush1.bf16.msra.mxu0 0
    %2053 = vmatprep.subr.bf16.mxu0 0
    %2054 = vmatpush1.bf16.msra.mxu0 0
    %2055 = vmatprep.mubr.bf16.mxu0 0
    %2056 = vmatmul.mubr.bf16.gmra.mrb[0].mxu0 %v827
    %v2057 = vpop.f32.mrb[0].mxu0
    %v2058 = vadd.f32 %v1021, %v2057
    %v2059 = vpop.f32.mrb[0].mxu0
    %v2060 = vadd.f32 %v1025, %v2059
    %v2061 = vpop.f32.mrb[0].mxu0
    %v2062 = vadd.f32 %v1021, %v2061
    %v2063 = vpop.f32.mrb[0].mxu0
    %v2064 = vadd.f32 %v1025, %v2063
    %2065 = vdwg.mxu0
    %2066 = vmatprep.subr.bf16.mxu0 %v1583
    %2067 = vmatpush1.bf16.msra.mxu0 %v1582
    %2068 = vmatprep.subr.bf16.mxu0 %v1603
    %2069 = vmatpush1.bf16.msra.mxu0 %v1602
    %2070 = vmatprep.subr.bf16.mxu0 %v1623
    %2071 = vmatpush1.bf16.msra.mxu0 %v1622
    %2072 = vmatprep.subr.bf16.mxu0 %v1643
    %2073 = vmatpush1.bf16.msra.mxu0 %v1642
    %2074 = vmatprep.subr.bf16.mxu0 %v1663
    %2075 = vmatpush1.bf16.msra.mxu0 %v1662
    %2076 = vmatprep.subr.bf16.mxu0 %v1683
    %2077 = vmatpush1.bf16.msra.mxu0 %v1682
    %2078 = vmatprep.subr.bf16.mxu0 %v1703
    %2079 = vmatpush1.bf16.msra.mxu0 %v1702
    %2080 = vmatprep.subr.bf16.mxu0 %v1723
    %2081 = vmatpush1.bf16.msra.mxu0 %v1722
    %2082 = vmatprep.subr.bf16.mxu0 0
    %2083 = vmatpush1.bf16.msra.mxu0 0
    %2084 = vmatprep.subr.bf16.mxu0 0
    %2085 = vmatpush1.bf16.msra.mxu0 0
    %2086 = vmatprep.subr.bf16.mxu0 0
    %2087 = vmatpush1.bf16.msra.mxu0 0
    %2088 = vmatprep.subr.bf16.mxu0 0
    %2089 = vmatpush1.bf16.msra.mxu0 0
    %2090 = vmatprep.subr.bf16.mxu0 0
    %2091 = vmatpush1.bf16.msra.mxu0 0
    %2092 = vmatprep.subr.bf16.mxu0 0
    %2093 = vmatpush1.bf16.msra.mxu0 0
    %2094 = vmatprep.subr.bf16.mxu0 0
    %2095 = vmatpush1.bf16.msra.mxu0 0
    %2096 = vmatprep.subr.bf16.mxu0 0
    %2097 = vmatpush1.bf16.msra.mxu0 0
    %2098 = vmatprep.mubr.bf16.mxu0 0
    %2099 = vmatmul.mubr.bf16.gmra.mrb[0].mxu0 %v827
    %v2100 = vpop.f32.mrb[0].mxu0
    %v2101 = vadd.f32 %v1029, %v2100
    %v2102 = vpop.f32.mrb[0].mxu0
    %v2103 = vadd.f32 %v1033, %v2102
    %v2104 = vpop.f32.mrb[0].mxu0
    %v2105 = vadd.f32 %v1029, %v2104
    %v2106 = vpop.f32.mrb[0].mxu0
    %v2107 = vadd.f32 %v1033, %v2106
    %2108 = vdwg.mxu0
    %2109 = vmatprep.subr.bf16.mxu0 %v1585
    %2110 = vmatpush1.bf16.msra.mxu0 %v1584
    %2111 = vmatprep.subr.bf16.mxu0 %v1605
    %2112 = vmatpush1.bf16.msra.mxu0 %v1604
    %2113 = vmatprep.subr.bf16.mxu0 %v1625
    %2114 = vmatpush1.bf16.msra.mxu0 %v1624
    %2115 = vmatprep.subr.bf16.mxu0 %v1645
    %2116 = vmatpush1.bf16.msra.mxu0 %v1644
    %2117 = vmatprep.subr.bf16.mxu0 %v1665
    %2118 = vmatpush1.bf16.msra.mxu0 %v1664
    %2119 = vmatprep.subr.bf16.mxu0 %v1685
    %2120 = vmatpush1.bf16.msra.mxu0 %v1684
    %2121 = vmatprep.subr.bf16.mxu0 %v1705
    %2122 = vmatpush1.bf16.msra.mxu0 %v1704
    %2123 = vmatprep.subr.bf16.mxu0 %v1725
    %2124 = vmatpush1.bf16.msra.mxu0 %v1724
    %2125 = vmatprep.subr.bf16.mxu0 0
    %2126 = vmatpush1.bf16.msra.mxu0 0
    %2127 = vmatprep.subr.bf16.mxu0 0
    %2128 = vmatpush1.bf16.msra.mxu0 0
    %2129 = vmatprep.subr.bf16.mxu0 0
    %2130 = vmatpush1.bf16.msra.mxu0 0
    %2131 = vmatprep.subr.bf16.mxu0 0
    %2132 = vmatpush1.bf16.msra.mxu0 0
    %2133 = vmatprep.subr.bf16.mxu0 0
    %2134 = vmatpush1.bf16.msra.mxu0 0
    %2135 = vmatprep.subr.bf16.mxu0 0
    %2136 = vmatpush1.bf16.msra.mxu0 0
    %2137 = vmatprep.subr.bf16.mxu0 0
    %2138 = vmatpush1.bf16.msra.mxu0 0
    %2139 = vmatprep.subr.bf16.mxu0 0
    %2140 = vmatpush1.bf16.msra.mxu0 0
    %2141 = vmatprep.mubr.bf16.mxu0 0
    %2142 = vmatmul.mubr.bf16.gmra.mrb[0].mxu0 %v827
    %v2143 = vpop.f32.mrb[0].mxu0
    %v2144 = vadd.f32 %v1037, %v2143
    %v2145 = vpop.f32.mrb[0].mxu0
    %v2146 = vadd.f32 %v1041, %v2145
    %v2147 = vpop.f32.mrb[0].mxu0
    %v2148 = vadd.f32 %v1037, %v2147
    %v2149 = vpop.f32.mrb[0].mxu0
    %v2150 = vadd.f32 %v1041, %v2149
    %2151 = vdwg.mxu0
    %2152 = vmatprep.subr.bf16.mxu0 %v1587
    %2153 = vmatpush1.bf16.msra.mxu0 %v1586
    %2154 = vmatprep.subr.bf16.mxu0 %v1607
    %2155 = vmatpush1.bf16.msra.mxu0 %v1606
    %2156 = vmatprep.subr.bf16.mxu0 %v1627
    %2157 = vmatpush1.bf16.msra.mxu0 %v1626
    %2158 = vmatprep.subr.bf16.mxu0 %v1647
    %2159 = vmatpush1.bf16.msra.mxu0 %v1646
    %2160 = vmatprep.subr.bf16.mxu0 %v1667
    %2161 = vmatpush1.bf16.msra.mxu0 %v1666
    %2162 = vmatprep.subr.bf16.mxu0 %v1687
    %2163 = vmatpush1.bf16.msra.mxu0 %v1686
    %2164 = vmatprep.subr.bf16.mxu0 %v1707
    %2165 = vmatpush1.bf16.msra.mxu0 %v1706
    %2166 = vmatprep.subr.bf16.mxu0 %v1727
    %2167 = vmatpush1.bf16.msra.mxu0 %v1726
    %2168 = vmatprep.subr.bf16.mxu0 0
    %2169 = vmatpush1.bf16.msra.mxu0 0
    %2170 = vmatprep.subr.bf16.mxu0 0
    %2171 = vmatpush1.bf16.msra.mxu0 0
    %2172 = vmatprep.subr.bf16.mxu0 0
    %2173 = vmatpush1.bf16.msra.mxu0 0
    %2174 = vmatprep.subr.bf16.mxu0 0
    %2175 = vmatpush1.bf16.msra.mxu0 0
    %2176 = vmatprep.subr.bf16.mxu0 0
    %2177 = vmatpush1.bf16.msra.mxu0 0
    %2178 = vmatprep.subr.bf16.mxu0 0
    %2179 = vmatpush1.bf16.msra.mxu0 0
    %2180 = vmatprep.subr.bf16.mxu0 0
    %2181 = vmatpush1.bf16.msra.mxu0 0
    %2182 = vmatprep.subr.bf16.mxu0 0
    %2183 = vmatpush1.bf16.msra.mxu0 0
    %2184 = vmatprep.mubr.bf16.mxu0 0
    %2185 = vmatmul.mubr.bf16.gmra.mrb[0].mxu0 %v827
    %v2186 = vpop.f32.mrb[0].mxu0
    %v2187 = vadd.f32 %v1045, %v2186
    %v2188 = vpop.f32.mrb[0].mxu0
    %v2189 = vadd.f32 %v1049, %v2188
    %v2190 = vpop.f32.mrb[0].mxu0
    %v2191 = vadd.f32 %v1045, %v2190
    %v2192 = vpop.f32.mrb[0].mxu0
    %v2193 = vadd.f32 %v1049, %v2192
    %2194 = vdwg.mxu0
    %2195 = vmatprep.subr.bf16.mxu0 %v1589
    %2196 = vmatpush1.bf16.msra.mxu0 %v1588
    %2197 = vmatprep.subr.bf16.mxu0 %v1609
    %2198 = vmatpush1.bf16.msra.mxu0 %v1608
    %2199 = vmatprep.subr.bf16.mxu0 %v1629
    %2200 = vmatpush1.bf16.msra.mxu0 %v1628
    %2201 = vmatprep.subr.bf16.mxu0 %v1649
    %2202 = vmatpush1.bf16.msra.mxu0 %v1648
    %2203 = vmatprep.subr.bf16.mxu0 %v1669
    %2204 = vmatpush1.bf16.msra.mxu0 %v1668
    %2205 = vmatprep.subr.bf16.mxu0 %v1689
    %2206 = vmatpush1.bf16.msra.mxu0 %v1688
    %2207 = vmatprep.subr.bf16.mxu0 %v1709
    %2208 = vmatpush1.bf16.msra.mxu0 %v1708
    %2209 = vmatprep.subr.bf16.mxu0 %v1729
    %2210 = vmatpush1.bf16.msra.mxu0 %v1728
    %2211 = vmatprep.subr.bf16.mxu0 0
    %2212 = vmatpush1.bf16.msra.mxu0 0
    %2213 = vmatprep.subr.bf16.mxu0 0
    %2214 = vmatpush1.bf16.msra.mxu0 0
    %2215 = vmatprep.subr.bf16.mxu0 0
    %2216 = vmatpush1.bf16.msra.mxu0 0
    %2217 = vmatprep.subr.bf16.mxu0 0
    %2218 = vmatpush1.bf16.msra.mxu0 0
    %2219 = vmatprep.subr.bf16.mxu0 0
    %2220 = vmatpush1.bf16.msra.mxu0 0
    %2221 = vmatprep.subr.bf16.mxu0 0
    %2222 = vmatpush1.bf16.msra.mxu0 0
    %2223 = vmatprep.subr.bf16.mxu0 0
    %2224 = vmatpush1.bf16.msra.mxu0 0
    %2225 = vmatprep.subr.bf16.mxu0 0
    %2226 = vmatpush1.bf16.msra.mxu0 0
    %2227 = vmatprep.mubr.bf16.mxu0 0
    %2228 = vmatmul.mubr.bf16.gmra.mrb[0].mxu0 %v827
    %v2229 = vpop.f32.mrb[0].mxu0
    %v2230 = vadd.f32 %v1053, %v2229
    %v2231 = vpop.f32.mrb[0].mxu0
    %v2232 = vadd.f32 %v1057, %v2231
    %v2233 = vpop.f32.mrb[0].mxu0
    %v2234 = vadd.f32 %v1053, %v2233
    %v2235 = vpop.f32.mrb[0].mxu0
    %v2236 = vadd.f32 %v1057, %v2235
    %2237 = vdwg.mxu0
    %2238 = vmatprep.subr.bf16.mxu0 %v1591
    %2239 = vmatpush1.bf16.msra.mxu0 %v1590
    %2240 = vmatprep.subr.bf16.mxu0 %v1611
    %2241 = vmatpush1.bf16.msra.mxu0 %v1610
    %2242 = vmatprep.subr.bf16.mxu0 %v1631
    %2243 = vmatpush1.bf16.msra.mxu0 %v1630
    %2244 = vmatprep.subr.bf16.mxu0 %v1651
    %2245 = vmatpush1.bf16.msra.mxu0 %v1650
    %2246 = vmatprep.subr.bf16.mxu0 %v1671
    %2247 = vmatpush1.bf16.msra.mxu0 %v1670
    %2248 = vmatprep.subr.bf16.mxu0 %v1691
    %2249 = vmatpush1.bf16.msra.mxu0 %v1690
    %2250 = vmatprep.subr.bf16.mxu0 %v1711
    %2251 = vmatpush1.bf16.msra.mxu0 %v1710
    %2252 = vmatprep.subr.bf16.mxu0 %v1731
    %2253 = vmatpush1.bf16.msra.mxu0 %v1730
    %2254 = vmatprep.subr.bf16.mxu0 0
    %2255 = vmatpush1.bf16.msra.mxu0 0
    %2256 = vmatprep.subr.bf16.mxu0 0
    %2257 = vmatpush1.bf16.msra.mxu0 0
    %2258 = vmatprep.subr.bf16.mxu0 0
    %2259 = vmatpush1.bf16.msra.mxu0 0
    %2260 = vmatprep.subr.bf16.mxu0 0
    %2261 = vmatpush1.bf16.msra.mxu0 0
    %2262 = vmatprep.subr.bf16.mxu0 0
    %2263 = vmatpush1.bf16.msra.mxu0 0
    %2264 = vmatprep.subr.bf16.mxu0 0
    %2265 = vmatpush1.bf16.msra.mxu0 0
    %2266 = vmatprep.subr.bf16.mxu0 0
    %2267 = vmatpush1.bf16.msra.mxu0 0
    %2268 = vmatprep.subr.bf16.mxu0 0
    %2269 = vmatpush1.bf16.msra.mxu0 0
    %2270 = vmatprep.mubr.bf16.mxu0 0
    %2271 = vmatmul.mubr.bf16.gmra.mrb[0].mxu0 %v827
    %v2272 = vpop.f32.mrb[0].mxu0
    %v2273 = vadd.f32 %v1061, %v2272
    %v2274 = vpop.f32.mrb[0].mxu0
    %v2275 = vadd.f32 %v1065, %v2274
    %v2276 = vpop.f32.mrb[0].mxu0
    %v2277 = vadd.f32 %v1061, %v2276
    %v2278 = vpop.f32.mrb[0].mxu0
    %v2279 = vadd.f32 %v1065, %v2278
    %2280 = vdwg.mxu0
    %2281 = vmatprep.subr.bf16.mxu0 %v1593
    %2282 = vmatpush1.bf16.msra.mxu0 %v1592
    %2283 = vmatprep.subr.bf16.mxu0 %v1613
    %2284 = vmatpush1.bf16.msra.mxu0 %v1612
    %2285 = vmatprep.subr.bf16.mxu0 %v1633
    %2286 = vmatpush1.bf16.msra.mxu0 %v1632
    %2287 = vmatprep.subr.bf16.mxu0 %v1653
    %2288 = vmatpush1.bf16.msra.mxu0 %v1652
    %2289 = vmatprep.subr.bf16.mxu0 %v1673
    %2290 = vmatpush1.bf16.msra.mxu0 %v1672
    %2291 = vmatprep.subr.bf16.mxu0 %v1693
    %2292 = vmatpush1.bf16.msra.mxu0 %v1692
    %2293 = vmatprep.subr.bf16.mxu0 %v1713
    %2294 = vmatpush1.bf16.msra.mxu0 %v1712
    %2295 = vmatprep.subr.bf16.mxu0 %v1733
    %2296 = vmatpush1.bf16.msra.mxu0 %v1732
    %2297 = vmatprep.subr.bf16.mxu0 0
    %2298 = vmatpush1.bf16.msra.mxu0 0
    %2299 = vmatprep.subr.bf16.mxu0 0
    %2300 = vmatpush1.bf16.msra.mxu0 0
    %2301 = vmatprep.subr.bf16.mxu0 0
    %2302 = vmatpush1.bf16.msra.mxu0 0
    %2303 = vmatprep.subr.bf16.mxu0 0
    %2304 = vmatpush1.bf16.msra.mxu0 0
    %2305 = vmatprep.subr.bf16.mxu0 0
    %2306 = vmatpush1.bf16.msra.mxu0 0
    %2307 = vmatprep.subr.bf16.mxu0 0
    %2308 = vmatpush1.bf16.msra.mxu0 0
    %2309 = vmatprep.subr.bf16.mxu0 0
    %2310 = vmatpush1.bf16.msra.mxu0 0
    %2311 = vmatprep.subr.bf16.mxu0 0
    %2312 = vmatpush1.bf16.msra.mxu0 0
    %2313 = vmatprep.mubr.bf16.mxu0 0
    %2314 = vmatmul.mubr.bf16.gmra.mrb[0].mxu0 %v827
    %v2315 = vpop.f32.mrb[0].mxu0
    %v2316 = vadd.f32 %v1069, %v2315
    %v2317 = vpop.f32.mrb[0].mxu0
    %v2318 = vadd.f32 %v1073, %v2317
    %v2319 = vpop.f32.mrb[0].mxu0
    %v2320 = vadd.f32 %v1069, %v2319
    %v2321 = vpop.f32.mrb[0].mxu0
    %v2322 = vadd.f32 %v1073, %v2321
    %2323 = vdwg.mxu0
    %v2324 = vmax.f32 %v1929, 0.0
    %v2325 = vmax.f32 %v1931, 0.0
    %v2326 = vmax.f32 %v1972, 0.0
    %v2327 = vmax.f32 %v1974, 0.0
    %v2328 = vmax.f32 %v2015, 0.0
    %v2329 = vmax.f32 %v2017, 0.0
    %v2330 = vmax.f32 %v2058, 0.0
    %v2331 = vmax.f32 %v2060, 0.0
    %v2332 = vmax.f32 %v2101, 0.0
    %v2333 = vmax.f32 %v2103, 0.0
    %v2334 = vmax.f32 %v2144, 0.0
    %v2335 = vmax.f32 %v2146, 0.0
    %v2336 = vmax.f32 %v2187, 0.0
    %v2337 = vmax.f32 %v2189, 0.0
    %v2338 = vmax.f32 %v2230, 0.0
    %v2339 = vmax.f32 %v2232, 0.0
    %v2340 = vmax.f32 %v2273, 0.0
    %v2341 = vmax.f32 %v2275, 0.0
    %v2342 = vmax.f32 %v2316, 0.0
    %v2343 = vmax.f32 %v2318, 0.0
    %v2344 = vmax.f32 %v1933, 0.0
    %v2345 = vmax.f32 %v1935, 0.0
    %v2346 = vmax.f32 %v1976, 0.0
    %v2347 = vmax.f32 %v1978, 0.0
    %v2348 = vmax.f32 %v2019, 0.0
    %v2349 = vmax.f32 %v2021, 0.0
    %v2350 = vmax.f32 %v2062, 0.0
    %v2351 = vmax.f32 %v2064, 0.0
    %v2352 = vmax.f32 %v2105, 0.0
    %v2353 = vmax.f32 %v2107, 0.0
    %v2354 = vmax.f32 %v2148, 0.0
    %v2355 = vmax.f32 %v2150, 0.0
    %v2356 = vmax.f32 %v2191, 0.0
    %v2357 = vmax.f32 %v2193, 0.0
    %v2358 = vmax.f32 %v2234, 0.0
    %v2359 = vmax.f32 %v2236, 0.0
    %v2360 = vmax.f32 %v2277, 0.0
    %v2361 = vmax.f32 %v2279, 0.0
    %v2362 = vmax.f32 %v2320, 0.0
    %v2363 = vmax.f32 %v2322, 0.0
    %v2364 = vpack.c.bf16 %v2344, %v2324
    %v2365 = vpack.c.bf16 %v2345, %v2325
    %v2366 = vpack.c.bf16 %v2346, %v2326
    %v2367 = vpack.c.bf16 %v2347, %v2327
    %v2368 = vpack.c.bf16 %v2348, %v2328
    %v2369 = vpack.c.bf16 %v2349, %v2329
    %v2370 = vpack.c.bf16 %v2350, %v2330
    %v2371 = vpack.c.bf16 %v2351, %v2331
    %v2372 = vpack.c.bf16 %v2352, %v2332
    %v2373 = vpack.c.bf16 %v2353, %v2333
    %v2374 = vpack.c.bf16 %v2354, %v2334
    %v2375 = vpack.c.bf16 %v2355, %v2335
    %v2376 = vpack.c.bf16 %v2356, %v2336
    %v2377 = vpack.c.bf16 %v2357, %v2337
    %v2378 = vpack.c.bf16 %v2358, %v2338
    %v2379 = vpack.c.bf16 %v2359, %v2339
    %v2380 = vpack.c.bf16 %v2360, %v2340
    %v2381 = vpack.c.bf16 %v2361, %v2341
    %v2382 = vpack.c.bf16 %v2362, %v2342
    %v2383 = vpack.c.bf16 %v2363, %v2343
    %v2384 = vld [vmem:[#allocation10] sm:$0xf]
    %v2385 = vld [vmem:[#allocation10 + $0x4] sm:$0xf]
    %v2386 = vld [vmem:[#allocation10 + $0x8] sm:$0xf]
    %v2387 = vld [vmem:[#allocation10 + $0xc] sm:$0xf]
    %v2388 = vld [vmem:[#allocation10 + $0x10] sm:$0xf]
    %v2389 = vld [vmem:[#allocation10 + $0x14] sm:$0xf]
    %v2390 = vld [vmem:[#allocation10 + $0x18] sm:$0xf]
    %v2391 = vld [vmem:[#allocation10 + $0x1c] sm:$0xf]
    %v2392 = vld [vmem:[#allocation10 + $0x20] sm:$0xf]
    %v2393 = vld [vmem:[#allocation10 + $0x24] sm:$0xf]
    %v2394 = vld [vmem:[#allocation10 + $0x28] sm:$0xf]
    %v2395 = vld [vmem:[#allocation10 + $0x2c] sm:$0xf]
    %v2396 = vld [vmem:[#allocation10 + $0x30] sm:$0xf]
    %v2397 = vld [vmem:[#allocation10 + $0x34] sm:$0xf]
    %v2398 = vld [vmem:[#allocation10 + $0x38] sm:$0xf]
    %v2399 = vld [vmem:[#allocation10 + $0x3c] sm:$0xf]
    %v2400 = vld [vmem:[#allocation10 + $0x40] sm:$0xf]
    %v2401 = vld [vmem:[#allocation10 + $0x44] sm:$0xf]
    %v2402 = vld [vmem:[#allocation10 + $0x48] sm:$0xf]
    %v2403 = vld [vmem:[#allocation10 + $0x4c] sm:$0xf]
    %v2404 = vld [vmem:[#allocation10 + $0x50] sm:$0xf]
    %v2405 = vld [vmem:[#allocation10 + $0x54] sm:$0xf]
    %v2406 = vld [vmem:[#allocation10 + $0x58] sm:$0xf]
    %v2407 = vld [vmem:[#allocation10 + $0x5c] sm:$0xf]
    %v2408 = vld [vmem:[#allocation10 + $0x60] sm:$0xf]
    %v2409 = vld [vmem:[#allocation10 + $0x64] sm:$0xf]
    %v2410 = vld [vmem:[#allocation10 + $0x68] sm:$0xf]
    %v2411 = vld [vmem:[#allocation10 + $0x6c] sm:$0xf]
    %v2412 = vld [vmem:[#allocation10 + $0x70] sm:$0xf]
    %v2413 = vld [vmem:[#allocation10 + $0x74] sm:$0xf]
    %v2414 = vld [vmem:[#allocation10 + $0x78] sm:$0xf]
    %v2415 = vld [vmem:[#allocation10 + $0x7c] sm:$0xf]
    %v2416 = vld [vmem:[#allocation10 + $0x80] sm:$0xf]
    %v2417 = vld [vmem:[#allocation10 + $0x84] sm:$0xf]
    %v2418 = vld [vmem:[#allocation10 + $0x88] sm:$0xf]
    %v2419 = vld [vmem:[#allocation10 + $0x8c] sm:$0xf]
    %v2420 = vld [vmem:[#allocation10 + $0x90] sm:$0xf]
    %v2421 = vld [vmem:[#allocation10 + $0x94] sm:$0xf]
    %v2422 = vld [vmem:[#allocation10 + $0x98] sm:$0xf]
    %v2423 = vld [vmem:[#allocation10 + $0x9c] sm:$0xf]
    %v2424 = vld [vmem:[#allocation10 + $0xa0] sm:$0xf]
    %v2425 = vld [vmem:[#allocation10 + $0xa4] sm:$0xf]
    %v2426 = vld [vmem:[#allocation10 + $0xa8] sm:$0xf]
    %v2427 = vld [vmem:[#allocation10 + $0xac] sm:$0xf]
    %v2428 = vld [vmem:[#allocation10 + $0xb0] sm:$0xf]
    %v2429 = vld [vmem:[#allocation10 + $0xb4] sm:$0xf]
    %v2430 = vld [vmem:[#allocation10 + $0xb8] sm:$0xf]
    %v2431 = vld [vmem:[#allocation10 + $0xbc] sm:$0xf]
    %v2432 = vld [vmem:[#allocation10 + $0xc0] sm:$0xf]
    %v2433 = vld [vmem:[#allocation10 + $0xc4] sm:$0xf]
    %v2434 = vld [vmem:[#allocation10 + $0xc8] sm:$0xf]
    %v2435 = vld [vmem:[#allocation10 + $0xcc] sm:$0xf]
    %v2436 = vld [vmem:[#allocation10 + $0xd0] sm:$0xf]
    %v2437 = vld [vmem:[#allocation10 + $0xd4] sm:$0xf]
    %v2438 = vld [vmem:[#allocation10 + $0xd8] sm:$0xf]
    %v2439 = vld [vmem:[#allocation10 + $0xdc] sm:$0xf]
    %v2440 = vld [vmem:[#allocation10 + $0xe0] sm:$0xf]
    %v2441 = vld [vmem:[#allocation10 + $0xe4] sm:$0xf]
    %v2442 = vld [vmem:[#allocation10 + $0xe8] sm:$0xf]
    %v2443 = vld [vmem:[#allocation10 + $0xec] sm:$0xf]
    %v2444 = vld [vmem:[#allocation10 + $0xf0] sm:$0xf]
    %v2445 = vld [vmem:[#allocation10 + $0xf4] sm:$0xf]
    %v2446 = vld [vmem:[#allocation10 + $0xf8] sm:$0xf]
    %v2447 = vld [vmem:[#allocation10 + $0xfc] sm:$0xf]
    %v2448 = vld [vmem:[#allocation10 + $0x100] sm:$0xf]
    %v2449 = vld [vmem:[#allocation10 + $0x104] sm:$0xf]
    %v2450 = vld [vmem:[#allocation10 + $0x108] sm:$0xf]
    %v2451 = vld [vmem:[#allocation10 + $0x10c] sm:$0xf]
    %v2452 = vld [vmem:[#allocation10 + $0x110] sm:$0xf]
    %v2453 = vld [vmem:[#allocation10 + $0x114] sm:$0xf]
    %v2454 = vld [vmem:[#allocation10 + $0x118] sm:$0xf]
    %v2455 = vld [vmem:[#allocation10 + $0x11c] sm:$0xf]
    %v2456 = vld [vmem:[#allocation10 + $0x120] sm:$0xf]
    %v2457 = vld [vmem:[#allocation10 + $0x124] sm:$0xf]
    %v2458 = vld [vmem:[#allocation10 + $0x128] sm:$0xf]
    %v2459 = vld [vmem:[#allocation10 + $0x12c] sm:$0xf]
    %v2460 = vld [vmem:[#allocation10 + $0x130] sm:$0xf]
    %v2461 = vld [vmem:[#allocation10 + $0x134] sm:$0xf]
    %v2462 = vld [vmem:[#allocation10 + $0x138] sm:$0xf]
    %v2463 = vld [vmem:[#allocation10 + $0x13c] sm:$0xf]
    %v2464 = vld [vmem:[#allocation10 + $0x140] sm:$0xf]
    %v2465 = vld [vmem:[#allocation10 + $0x144] sm:$0xf]
    %v2466 = vld [vmem:[#allocation10 + $0x148] sm:$0xf]
    %v2467 = vld [vmem:[#allocation10 + $0x14c] sm:$0xf]
    %v2468 = vld [vmem:[#allocation10 + $0x150] sm:$0xf]
    %v2469 = vld [vmem:[#allocation10 + $0x154] sm:$0xf]
    %v2470 = vld [vmem:[#allocation10 + $0x158] sm:$0xf]
    %v2471 = vld [vmem:[#allocation10 + $0x15c] sm:$0xf]
    %v2472 = vld [vmem:[#allocation10 + $0x160] sm:$0xf]
    %v2473 = vld [vmem:[#allocation10 + $0x164] sm:$0xf]
    %v2474 = vld [vmem:[#allocation10 + $0x168] sm:$0xf]
    %v2475 = vld [vmem:[#allocation10 + $0x16c] sm:$0xf]
    %v2476 = vld [vmem:[#allocation10 + $0x170] sm:$0xf]
    %v2477 = vld [vmem:[#allocation10 + $0x174] sm:$0xf]
    %v2478 = vld [vmem:[#allocation10 + $0x178] sm:$0xf]
    %v2479 = vld [vmem:[#allocation10 + $0x17c] sm:$0xf]
    %v2480 = vld [vmem:[#allocation10 + $0x180] sm:$0xf]
    %v2481 = vld [vmem:[#allocation10 + $0x184] sm:$0xf]
    %v2482 = vld [vmem:[#allocation10 + $0x188] sm:$0xf]
    %v2483 = vld [vmem:[#allocation10 + $0x18c] sm:$0xf]
    %v2484 = vld [vmem:[#allocation10 + $0x190] sm:$0xf]
    %v2485 = vld [vmem:[#allocation10 + $0x194] sm:$0xf]
    %v2486 = vld [vmem:[#allocation10 + $0x198] sm:$0xf]
    %v2487 = vld [vmem:[#allocation10 + $0x19c] sm:$0xf]
    %v2488 = vld [vmem:[#allocation10 + $0x1a0] sm:$0xf]
    %v2489 = vld [vmem:[#allocation10 + $0x1a4] sm:$0xf]
    %v2490 = vld [vmem:[#allocation10 + $0x1a8] sm:$0xf]
    %v2491 = vld [vmem:[#allocation10 + $0x1ac] sm:$0xf]
    %v2492 = vld [vmem:[#allocation10 + $0x1b0] sm:$0xf]
    %v2493 = vld [vmem:[#allocation10 + $0x1b4] sm:$0xf]
    %v2494 = vld [vmem:[#allocation10 + $0x1b8] sm:$0xf]
    %v2495 = vld [vmem:[#allocation10 + $0x1bc] sm:$0xf]
    %v2496 = vld [vmem:[#allocation10 + $0x1c0] sm:$0xf]
    %v2497 = vld [vmem:[#allocation10 + $0x1c4] sm:$0xf]
    %v2498 = vld [vmem:[#allocation10 + $0x1c8] sm:$0xf]
    %v2499 = vld [vmem:[#allocation10 + $0x1cc] sm:$0xf]
    %v2500 = vld [vmem:[#allocation10 + $0x1d0] sm:$0xf]
    %v2501 = vld [vmem:[#allocation10 + $0x1d4] sm:$0xf]
    %v2502 = vld [vmem:[#allocation10 + $0x1d8] sm:$0xf]
    %v2503 = vld [vmem:[#allocation10 + $0x1dc] sm:$0xf]
    %v2504 = vld [vmem:[#allocation10 + $0x1e0] sm:$0xf]
    %v2505 = vld [vmem:[#allocation10 + $0x1e4] sm:$0xf]
    %v2506 = vld [vmem:[#allocation10 + $0x1e8] sm:$0xf]
    %v2507 = vld [vmem:[#allocation10 + $0x1ec] sm:$0xf]
    %v2508 = vld [vmem:[#allocation10 + $0x1f0] sm:$0xf]
    %v2509 = vld [vmem:[#allocation10 + $0x1f4] sm:$0xf]
    %v2510 = vld [vmem:[#allocation10 + $0x1f8] sm:$0xf]
    %v2511 = vld [vmem:[#allocation10 + $0x1fc] sm:$0xf]
    %v2512 = vld [vmem:[#allocation10 + $0x200] sm:$0xf]
    %v2513 = vld [vmem:[#allocation10 + $0x204] sm:$0xf]
    %v2514 = vld [vmem:[#allocation10 + $0x208] sm:$0xf]
    %v2515 = vld [vmem:[#allocation10 + $0x20c] sm:$0xf]
    %v2516 = vld [vmem:[#allocation10 + $0x210] sm:$0xf]
    %v2517 = vld [vmem:[#allocation10 + $0x214] sm:$0xf]
    %v2518 = vld [vmem:[#allocation10 + $0x218] sm:$0xf]
    %v2519 = vld [vmem:[#allocation10 + $0x21c] sm:$0xf]
    %v2520 = vld [vmem:[#allocation10 + $0x220] sm:$0xf]
    %v2521 = vld [vmem:[#allocation10 + $0x224] sm:$0xf]
    %v2522 = vld [vmem:[#allocation10 + $0x228] sm:$0xf]
    %v2523 = vld [vmem:[#allocation10 + $0x22c] sm:$0xf]
    %v2524 = vld [vmem:[#allocation10 + $0x230] sm:$0xf]
    %v2525 = vld [vmem:[#allocation10 + $0x234] sm:$0xf]
    %v2526 = vld [vmem:[#allocation10 + $0x238] sm:$0xf]
    %v2527 = vld [vmem:[#allocation10 + $0x23c] sm:$0xf]
    %v2528 = vld [vmem:[#allocation10 + $0x240] sm:$0xf]
    %v2529 = vld [vmem:[#allocation10 + $0x244] sm:$0xf]
    %v2530 = vld [vmem:[#allocation10 + $0x248] sm:$0xf]
    %v2531 = vld [vmem:[#allocation10 + $0x24c] sm:$0xf]
    %v2532 = vld [vmem:[#allocation10 + $0x250] sm:$0xf]
    %v2533 = vld [vmem:[#allocation10 + $0x254] sm:$0xf]
    %v2534 = vld [vmem:[#allocation10 + $0x258] sm:$0xf]
    %v2535 = vld [vmem:[#allocation10 + $0x25c] sm:$0xf]
    %v2536 = vld [vmem:[#allocation10 + $0x260] sm:$0xf]
    %v2537 = vld [vmem:[#allocation10 + $0x264] sm:$0xf]
    %v2538 = vld [vmem:[#allocation10 + $0x268] sm:$0xf]
    %v2539 = vld [vmem:[#allocation10 + $0x26c] sm:$0xf]
    %v2540 = vld [vmem:[#allocation10 + $0x270] sm:$0xf]
    %v2541 = vld [vmem:[#allocation10 + $0x274] sm:$0xf]
    %v2542 = vld [vmem:[#allocation10 + $0x278] sm:$0xf]
    %v2543 = vld [vmem:[#allocation10 + $0x27c] sm:$0xf]
    %v2544 = vld [vmem:[#allocation10 + $0x280] sm:$0xf]
    %v2545 = vld [vmem:[#allocation10 + $0x284] sm:$0xf]
    %v2546 = vld [vmem:[#allocation10 + $0x288] sm:$0xf]
    %v2547 = vld [vmem:[#allocation10 + $0x28c] sm:$0xf]
    %v2548 = vld [vmem:[#allocation10 + $0x290] sm:$0xf]
    %v2549 = vld [vmem:[#allocation10 + $0x294] sm:$0xf]
    %v2550 = vld [vmem:[#allocation10 + $0x298] sm:$0xf]
    %v2551 = vld [vmem:[#allocation10 + $0x29c] sm:$0xf]
    %v2552 = vld [vmem:[#allocation10 + $0x2a0] sm:$0xf]
    %v2553 = vld [vmem:[#allocation10 + $0x2a4] sm:$0xf]
    %v2554 = vld [vmem:[#allocation10 + $0x2a8] sm:$0xf]
    %v2555 = vld [vmem:[#allocation10 + $0x2ac] sm:$0xf]
    %v2556 = vld [vmem:[#allocation10 + $0x2b0] sm:$0xf]
    %v2557 = vld [vmem:[#allocation10 + $0x2b4] sm:$0xf]
    %v2558 = vld [vmem:[#allocation10 + $0x2b8] sm:$0xf]
    %v2559 = vld [vmem:[#allocation10 + $0x2bc] sm:$0xf]
    %v2560 = vld [vmem:[#allocation10 + $0x2c0] sm:$0xf]
    %v2561 = vld [vmem:[#allocation10 + $0x2c4] sm:$0xf]
    %v2562 = vld [vmem:[#allocation10 + $0x2c8] sm:$0xf]
    %v2563 = vld [vmem:[#allocation10 + $0x2cc] sm:$0xf]
    %v2564 = vld [vmem:[#allocation10 + $0x2d0] sm:$0xf]
    %v2565 = vld [vmem:[#allocation10 + $0x2d4] sm:$0xf]
    %v2566 = vld [vmem:[#allocation10 + $0x2d8] sm:$0xf]
    %v2567 = vld [vmem:[#allocation10 + $0x2dc] sm:$0xf]
    %v2568 = vld [vmem:[#allocation10 + $0x2e0] sm:$0xf]
    %v2569 = vld [vmem:[#allocation10 + $0x2e4] sm:$0xf]
    %v2570 = vld [vmem:[#allocation10 + $0x2e8] sm:$0xf]
    %v2571 = vld [vmem:[#allocation10 + $0x2ec] sm:$0xf]
    %v2572 = vld [vmem:[#allocation10 + $0x2f0] sm:$0xf]
    %v2573 = vld [vmem:[#allocation10 + $0x2f4] sm:$0xf]
    %v2574 = vld [vmem:[#allocation10 + $0x2f8] sm:$0xf]
    %v2575 = vld [vmem:[#allocation10 + $0x2fc] sm:$0xf]
    %v2576 = vld [vmem:[#allocation10 + $0x300] sm:$0xf]
    %v2577 = vld [vmem:[#allocation10 + $0x304] sm:$0xf]
    %v2578 = vld [vmem:[#allocation10 + $0x308] sm:$0xf]
    %v2579 = vld [vmem:[#allocation10 + $0x30c] sm:$0xf]
    %v2580 = vld [vmem:[#allocation10 + $0x310] sm:$0xf]
    %v2581 = vld [vmem:[#allocation10 + $0x314] sm:$0xf]
    %v2582 = vld [vmem:[#allocation10 + $0x318] sm:$0xf]
    %v2583 = vld [vmem:[#allocation10 + $0x31c] sm:$0xf]
    %v2584 = vld [vmem:[#allocation10 + $0x320] sm:$0xf]
    %v2585 = vld [vmem:[#allocation10 + $0x324] sm:$0xf]
    %v2586 = vld [vmem:[#allocation10 + $0x328] sm:$0xf]
    %v2587 = vld [vmem:[#allocation10 + $0x32c] sm:$0xf]
    %v2588 = vld [vmem:[#allocation10 + $0x330] sm:$0xf]
    %v2589 = vld [vmem:[#allocation10 + $0x334] sm:$0xf]
    %v2590 = vld [vmem:[#allocation10 + $0x338] sm:$0xf]
    %v2591 = vld [vmem:[#allocation10 + $0x33c] sm:$0xf]
    %v2592 = vld [vmem:[#allocation10 + $0x340] sm:$0xf]
    %v2593 = vld [vmem:[#allocation10 + $0x344] sm:$0xf]
    %v2594 = vld [vmem:[#allocation10 + $0x348] sm:$0xf]
    %v2595 = vld [vmem:[#allocation10 + $0x34c] sm:$0xf]
    %v2596 = vld [vmem:[#allocation10 + $0x350] sm:$0xf]
    %v2597 = vld [vmem:[#allocation10 + $0x354] sm:$0xf]
    %v2598 = vld [vmem:[#allocation10 + $0x358] sm:$0xf]
    %v2599 = vld [vmem:[#allocation10 + $0x35c] sm:$0xf]
    %v2600 = vld [vmem:[#allocation10 + $0x360] sm:$0xf]
    %v2601 = vld [vmem:[#allocation10 + $0x364] sm:$0xf]
    %v2602 = vld [vmem:[#allocation10 + $0x368] sm:$0xf]
    %v2603 = vld [vmem:[#allocation10 + $0x36c] sm:$0xf]
    %v2604 = vld [vmem:[#allocation10 + $0x370] sm:$0xf]
    %v2605 = vld [vmem:[#allocation10 + $0x374] sm:$0xf]
    %v2606 = vld [vmem:[#allocation10 + $0x378] sm:$0xf]
    %v2607 = vld [vmem:[#allocation10 + $0x37c] sm:$0xf]
    %v2608 = vld [vmem:[#allocation10 + $0x380] sm:$0xf]
    %v2609 = vld [vmem:[#allocation10 + $0x384] sm:$0xf]
    %v2610 = vld [vmem:[#allocation10 + $0x388] sm:$0xf]
    %v2611 = vld [vmem:[#allocation10 + $0x38c] sm:$0xf]
    %v2612 = vld [vmem:[#allocation10 + $0x390] sm:$0xf]
    %v2613 = vld [vmem:[#allocation10 + $0x394] sm:$0xf]
    %v2614 = vld [vmem:[#allocation10 + $0x398] sm:$0xf]
    %v2615 = vld [vmem:[#allocation10 + $0x39c] sm:$0xf]
    %v2616 = vld [vmem:[#allocation10 + $0x3a0] sm:$0xf]
    %v2617 = vld [vmem:[#allocation10 + $0x3a4] sm:$0xf]
    %v2618 = vld [vmem:[#allocation10 + $0x3a8] sm:$0xf]
    %v2619 = vld [vmem:[#allocation10 + $0x3ac] sm:$0xf]
    %v2620 = vld [vmem:[#allocation10 + $0x3b0] sm:$0xf]
    %v2621 = vld [vmem:[#allocation10 + $0x3b4] sm:$0xf]
    %v2622 = vld [vmem:[#allocation10 + $0x3b8] sm:$0xf]
    %v2623 = vld [vmem:[#allocation10 + $0x3bc] sm:$0xf]
    %v2624 = vld [vmem:[#allocation10 + $0x3c0] sm:$0xf]
    %v2625 = vld [vmem:[#allocation10 + $0x3c4] sm:$0xf]
    %v2626 = vld [vmem:[#allocation10 + $0x3c8] sm:$0xf]
    %v2627 = vld [vmem:[#allocation10 + $0x3cc] sm:$0xf]
    %v2628 = vld [vmem:[#allocation10 + $0x3d0] sm:$0xf]
    %v2629 = vld [vmem:[#allocation10 + $0x3d4] sm:$0xf]
    %v2630 = vld [vmem:[#allocation10 + $0x3d8] sm:$0xf]
    %v2631 = vld [vmem:[#allocation10 + $0x3dc] sm:$0xf]
    %v2632 = vld [vmem:[#allocation10 + $0x3e0] sm:$0xf]
    %v2633 = vld [vmem:[#allocation10 + $0x3e4] sm:$0xf]
    %v2634 = vld [vmem:[#allocation10 + $0x3e8] sm:$0xf]
    %v2635 = vld [vmem:[#allocation10 + $0x3ec] sm:$0xf]
    %v2636 = vld [vmem:[#allocation10 + $0x3f0] sm:$0xf]
    %v2637 = vld [vmem:[#allocation10 + $0x3f4] sm:$0xf]
    %v2638 = vld [vmem:[#allocation10 + $0x3f8] sm:$0xf]
    %v2639 = vld [vmem:[#allocation10 + $0x3fc] sm:$0xf]
    %v2640 = vld [vmem:[#allocation10 + $0x400] sm:$0xf]
    %v2641 = vld [vmem:[#allocation10 + $0x404] sm:$0xf]
    %v2642 = vld [vmem:[#allocation10 + $0x408] sm:$0xf]
    %v2643 = vld [vmem:[#allocation10 + $0x40c] sm:$0xf]
    %v2644 = vld [vmem:[#allocation10 + $0x410] sm:$0xf]
    %v2645 = vld [vmem:[#allocation10 + $0x414] sm:$0xf]
    %v2646 = vld [vmem:[#allocation10 + $0x418] sm:$0xf]
    %v2647 = vld [vmem:[#allocation10 + $0x41c] sm:$0xf]
    %v2648 = vld [vmem:[#allocation10 + $0x420] sm:$0xf]
    %v2649 = vld [vmem:[#allocation10 + $0x424] sm:$0xf]
    %v2650 = vld [vmem:[#allocation10 + $0x428] sm:$0xf]
    %v2651 = vld [vmem:[#allocation10 + $0x42c] sm:$0xf]
    %v2652 = vld [vmem:[#allocation10 + $0x430] sm:$0xf]
    %v2653 = vld [vmem:[#allocation10 + $0x434] sm:$0xf]
    %v2654 = vld [vmem:[#allocation10 + $0x438] sm:$0xf]
    %v2655 = vld [vmem:[#allocation10 + $0x43c] sm:$0xf]
    %v2656 = vld [vmem:[#allocation10 + $0x440] sm:$0xf]
    %v2657 = vld [vmem:[#allocation10 + $0x444] sm:$0xf]
    %v2658 = vld [vmem:[#allocation10 + $0x448] sm:$0xf]
    %v2659 = vld [vmem:[#allocation10 + $0x44c] sm:$0xf]
    %v2660 = vld [vmem:[#allocation10 + $0x450] sm:$0xf]
    %v2661 = vld [vmem:[#allocation10 + $0x454] sm:$0xf]
    %v2662 = vld [vmem:[#allocation10 + $0x458] sm:$0xf]
    %v2663 = vld [vmem:[#allocation10 + $0x45c] sm:$0xf]
    %v2664 = vld [vmem:[#allocation10 + $0x460] sm:$0xf]
    %v2665 = vld [vmem:[#allocation10 + $0x464] sm:$0xf]
    %v2666 = vld [vmem:[#allocation10 + $0x468] sm:$0xf]
    %v2667 = vld [vmem:[#allocation10 + $0x46c] sm:$0xf]
    %v2668 = vld [vmem:[#allocation10 + $0x470] sm:$0xf]
    %v2669 = vld [vmem:[#allocation10 + $0x474] sm:$0xf]
    %v2670 = vld [vmem:[#allocation10 + $0x478] sm:$0xf]
    %v2671 = vld [vmem:[#allocation10 + $0x47c] sm:$0xf]
    %v2672 = vld [vmem:[#allocation10 + $0x480] sm:$0xf]
    %v2673 = vld [vmem:[#allocation10 + $0x484] sm:$0xf]
    %v2674 = vld [vmem:[#allocation10 + $0x488] sm:$0xf]
    %v2675 = vld [vmem:[#allocation10 + $0x48c] sm:$0xf]
    %v2676 = vld [vmem:[#allocation10 + $0x490] sm:$0xf]
    %v2677 = vld [vmem:[#allocation10 + $0x494] sm:$0xf]
    %v2678 = vld [vmem:[#allocation10 + $0x498] sm:$0xf]
    %v2679 = vld [vmem:[#allocation10 + $0x49c] sm:$0xf]
    %v2680 = vld [vmem:[#allocation10 + $0x4a0] sm:$0xf]
    %v2681 = vld [vmem:[#allocation10 + $0x4a4] sm:$0xf]
    %v2682 = vld [vmem:[#allocation10 + $0x4a8] sm:$0xf]
    %v2683 = vld [vmem:[#allocation10 + $0x4ac] sm:$0xf]
    %v2684 = vld [vmem:[#allocation10 + $0x4b0] sm:$0xf]
    %v2685 = vld [vmem:[#allocation10 + $0x4b4] sm:$0xf]
    %v2686 = vld [vmem:[#allocation10 + $0x4b8] sm:$0xf]
    %v2687 = vld [vmem:[#allocation10 + $0x4bc] sm:$0xf]
    %v2688 = vld [vmem:[#allocation10 + $0x4c0] sm:$0xf]
    %v2689 = vld [vmem:[#allocation10 + $0x4c4] sm:$0xf]
    %v2690 = vld [vmem:[#allocation10 + $0x4c8] sm:$0xf]
    %v2691 = vld [vmem:[#allocation10 + $0x4cc] sm:$0xf]
    %v2692 = vld [vmem:[#allocation10 + $0x4d0] sm:$0xf]
    %v2693 = vld [vmem:[#allocation10 + $0x4d4] sm:$0xf]
    %v2694 = vld [vmem:[#allocation10 + $0x4d8] sm:$0xf]
    %v2695 = vld [vmem:[#allocation10 + $0x4dc] sm:$0xf]
    %v2696 = vld [vmem:[#allocation10 + $0x4e0] sm:$0xf]
    %v2697 = vld [vmem:[#allocation10 + $0x4e4] sm:$0xf]
    %v2698 = vld [vmem:[#allocation10 + $0x4e8] sm:$0xf]
    %v2699 = vld [vmem:[#allocation10 + $0x4ec] sm:$0xf]
    %v2700 = vld [vmem:[#allocation10 + $0x4f0] sm:$0xf]
    %v2701 = vld [vmem:[#allocation10 + $0x4f4] sm:$0xf]
    %v2702 = vld [vmem:[#allocation10 + $0x4f8] sm:$0xf]
    %v2703 = vld [vmem:[#allocation10 + $0x4fc] sm:$0xf]
    %v2704 = vld [vmem:[%s6] sm:$0x1]
    %v2706 = vlaneseq
    %v2707 = vshrl.u32 %v2706, 7
    %v2708 = vsub.s32 0, %v2707
    %v2709 = vrot.slane %v2704, %v2708
    %v3031 = vunpack.c.l.b16 %v2384
    %v3032 = vunpack.c.l.b16 %v2385
    %v3033 = vunpack.c.l.b16 %v2386
    %v3034 = vunpack.c.l.b16 %v2387
    %v3035 = vunpack.c.l.b16 %v2388
    %v3036 = vunpack.c.l.b16 %v2389
    %v3037 = vunpack.c.l.b16 %v2390
    %v3038 = vunpack.c.l.b16 %v2391
    %v3039 = vunpack.c.l.b16 %v2392
    %v3040 = vunpack.c.l.b16 %v2393
    %v3041 = vunpack.c.l.b16 %v2394
    %v3042 = vunpack.c.l.b16 %v2395
    %v3043 = vunpack.c.l.b16 %v2396
    %v3044 = vunpack.c.l.b16 %v2397
    %v3045 = vunpack.c.l.b16 %v2398
    %v3046 = vunpack.c.l.b16 %v2399
    %v3047 = vunpack.c.l.b16 %v2400
    %v3048 = vunpack.c.l.b16 %v2401
    %v3049 = vunpack.c.l.b16 %v2402
    %v3050 = vunpack.c.l.b16 %v2403
    %v3051 = vunpack.c.l.b16 %v2404
    %v3052 = vunpack.c.l.b16 %v2405
    %v3053 = vunpack.c.l.b16 %v2406
    %v3054 = vunpack.c.l.b16 %v2407
    %v3055 = vunpack.c.l.b16 %v2408
    %v3056 = vunpack.c.l.b16 %v2409
    %v3057 = vunpack.c.l.b16 %v2410
    %v3058 = vunpack.c.l.b16 %v2411
    %v3059 = vunpack.c.l.b16 %v2412
    %v3060 = vunpack.c.l.b16 %v2413
    %v3061 = vunpack.c.l.b16 %v2414
    %v3062 = vunpack.c.l.b16 %v2415
    %v3063 = vunpack.c.l.b16 %v2416
    %v3064 = vunpack.c.l.b16 %v2417
    %v3065 = vunpack.c.l.b16 %v2418
    %v3066 = vunpack.c.l.b16 %v2419
    %v3067 = vunpack.c.l.b16 %v2420
    %v3068 = vunpack.c.l.b16 %v2421
    %v3069 = vunpack.c.l.b16 %v2422
    %v3070 = vunpack.c.l.b16 %v2423
    %v3071 = vunpack.c.l.b16 %v2424
    %v3072 = vunpack.c.l.b16 %v2425
    %v3073 = vunpack.c.l.b16 %v2426
    %v3074 = vunpack.c.l.b16 %v2427
    %v3075 = vunpack.c.l.b16 %v2428
    %v3076 = vunpack.c.l.b16 %v2429
    %v3077 = vunpack.c.l.b16 %v2430
    %v3078 = vunpack.c.l.b16 %v2431
    %v3079 = vunpack.c.l.b16 %v2432
    %v3080 = vunpack.c.l.b16 %v2433
    %v3081 = vunpack.c.l.b16 %v2434
    %v3082 = vunpack.c.l.b16 %v2435
    %v3083 = vunpack.c.l.b16 %v2436
    %v3084 = vunpack.c.l.b16 %v2437
    %v3085 = vunpack.c.l.b16 %v2438
    %v3086 = vunpack.c.l.b16 %v2439
    %v3087 = vunpack.c.l.b16 %v2440
    %v3088 = vunpack.c.l.b16 %v2441
    %v3089 = vunpack.c.l.b16 %v2442
    %v3090 = vunpack.c.l.b16 %v2443
    %v3091 = vunpack.c.l.b16 %v2444
    %v3092 = vunpack.c.l.b16 %v2445
    %v3093 = vunpack.c.l.b16 %v2446
    %v3094 = vunpack.c.l.b16 %v2447
    %v3095 = vunpack.c.l.b16 %v2448
    %v3096 = vunpack.c.l.b16 %v2449
    %v3097 = vunpack.c.l.b16 %v2450
    %v3098 = vunpack.c.l.b16 %v2451
    %v3099 = vunpack.c.l.b16 %v2452
    %v3100 = vunpack.c.l.b16 %v2453
    %v3101 = vunpack.c.l.b16 %v2454
    %v3102 = vunpack.c.l.b16 %v2455
    %v3103 = vunpack.c.l.b16 %v2456
    %v3104 = vunpack.c.l.b16 %v2457
    %v3105 = vunpack.c.l.b16 %v2458
    %v3106 = vunpack.c.l.b16 %v2459
    %v3107 = vunpack.c.l.b16 %v2460
    %v3108 = vunpack.c.l.b16 %v2461
    %v3109 = vunpack.c.l.b16 %v2462
    %v3110 = vunpack.c.l.b16 %v2463
    %v3111 = vunpack.c.l.b16 %v2464
    %v3112 = vunpack.c.l.b16 %v2465
    %v3113 = vunpack.c.l.b16 %v2466
    %v3114 = vunpack.c.l.b16 %v2467
    %v3115 = vunpack.c.l.b16 %v2468
    %v3116 = vunpack.c.l.b16 %v2469
    %v3117 = vunpack.c.l.b16 %v2470
    %v3118 = vunpack.c.l.b16 %v2471
    %v3119 = vunpack.c.l.b16 %v2472
    %v3120 = vunpack.c.l.b16 %v2473
    %v3121 = vunpack.c.l.b16 %v2474
    %v3122 = vunpack.c.l.b16 %v2475
    %v3123 = vunpack.c.l.b16 %v2476
    %v3124 = vunpack.c.l.b16 %v2477
    %v3125 = vunpack.c.l.b16 %v2478
    %v3126 = vunpack.c.l.b16 %v2479
    %v3127 = vunpack.c.l.b16 %v2480
    %v3128 = vunpack.c.l.b16 %v2481
    %v3129 = vunpack.c.l.b16 %v2482
    %v3130 = vunpack.c.l.b16 %v2483
    %v3131 = vunpack.c.l.b16 %v2484
    %v3132 = vunpack.c.l.b16 %v2485
    %v3133 = vunpack.c.l.b16 %v2486
    %v3134 = vunpack.c.l.b16 %v2487
    %v3135 = vunpack.c.l.b16 %v2488
    %v3136 = vunpack.c.l.b16 %v2489
    %v3137 = vunpack.c.l.b16 %v2490
    %v3138 = vunpack.c.l.b16 %v2491
    %v3139 = vunpack.c.l.b16 %v2492
    %v3140 = vunpack.c.l.b16 %v2493
    %v3141 = vunpack.c.l.b16 %v2494
    %v3142 = vunpack.c.l.b16 %v2495
    %v3143 = vunpack.c.l.b16 %v2496
    %v3144 = vunpack.c.l.b16 %v2497
    %v3145 = vunpack.c.l.b16 %v2498
    %v3146 = vunpack.c.l.b16 %v2499
    %v3147 = vunpack.c.l.b16 %v2500
    %v3148 = vunpack.c.l.b16 %v2501
    %v3149 = vunpack.c.l.b16 %v2502
    %v3150 = vunpack.c.l.b16 %v2503
    %v3151 = vunpack.c.l.b16 %v2504
    %v3152 = vunpack.c.l.b16 %v2505
    %v3153 = vunpack.c.l.b16 %v2506
    %v3154 = vunpack.c.l.b16 %v2507
    %v3155 = vunpack.c.l.b16 %v2508
    %v3156 = vunpack.c.l.b16 %v2509
    %v3157 = vunpack.c.l.b16 %v2510
    %v3158 = vunpack.c.l.b16 %v2511
    %v3159 = vunpack.c.l.b16 %v2512
    %v3160 = vunpack.c.l.b16 %v2513
    %v3161 = vunpack.c.l.b16 %v2514
    %v3162 = vunpack.c.l.b16 %v2515
    %v3163 = vunpack.c.l.b16 %v2516
    %v3164 = vunpack.c.l.b16 %v2517
    %v3165 = vunpack.c.l.b16 %v2518
    %v3166 = vunpack.c.l.b16 %v2519
    %v3167 = vunpack.c.l.b16 %v2520
    %v3168 = vunpack.c.l.b16 %v2521
    %v3169 = vunpack.c.l.b16 %v2522
    %v3170 = vunpack.c.l.b16 %v2523
    %v3171 = vunpack.c.l.b16 %v2524
    %v3172 = vunpack.c.l.b16 %v2525
    %v3173 = vunpack.c.l.b16 %v2526
    %v3174 = vunpack.c.l.b16 %v2527
    %v3175 = vunpack.c.l.b16 %v2528
    %v3176 = vunpack.c.l.b16 %v2529
    %v3177 = vunpack.c.l.b16 %v2530
    %v3178 = vunpack.c.l.b16 %v2531
    %v3179 = vunpack.c.l.b16 %v2532
    %v3180 = vunpack.c.l.b16 %v2533
    %v3181 = vunpack.c.l.b16 %v2534
    %v3182 = vunpack.c.l.b16 %v2535
    %v3183 = vunpack.c.l.b16 %v2536
    %v3184 = vunpack.c.l.b16 %v2537
    %v3185 = vunpack.c.l.b16 %v2538
    %v3186 = vunpack.c.l.b16 %v2539
    %v3187 = vunpack.c.l.b16 %v2540
    %v3188 = vunpack.c.l.b16 %v2541
    %v3189 = vunpack.c.l.b16 %v2542
    %v3190 = vunpack.c.l.b16 %v2543
    %v3191 = vunpack.c.l.b16 %v2544
    %v3192 = vunpack.c.l.b16 %v2545
    %v3193 = vunpack.c.l.b16 %v2546
    %v3194 = vunpack.c.l.b16 %v2547
    %v3195 = vunpack.c.l.b16 %v2548
    %v3196 = vunpack.c.l.b16 %v2549
    %v3197 = vunpack.c.l.b16 %v2550
    %v3198 = vunpack.c.l.b16 %v2551
    %v3199 = vunpack.c.l.b16 %v2552
    %v3200 = vunpack.c.l.b16 %v2553
    %v3201 = vunpack.c.l.b16 %v2554
    %v3202 = vunpack.c.l.b16 %v2555
    %v3203 = vunpack.c.l.b16 %v2556
    %v3204 = vunpack.c.l.b16 %v2557
    %v3205 = vunpack.c.l.b16 %v2558
    %v3206 = vunpack.c.l.b16 %v2559
    %v3207 = vunpack.c.l.b16 %v2560
    %v3208 = vunpack.c.l.b16 %v2561
    %v3209 = vunpack.c.l.b16 %v2562
    %v3210 = vunpack.c.l.b16 %v2563
    %v3211 = vunpack.c.l.b16 %v2564
    %v3212 = vunpack.c.l.b16 %v2565
    %v3213 = vunpack.c.l.b16 %v2566
    %v3214 = vunpack.c.l.b16 %v2567
    %v3215 = vunpack.c.l.b16 %v2568
    %v3216 = vunpack.c.l.b16 %v2569
    %v3217 = vunpack.c.l.b16 %v2570
    %v3218 = vunpack.c.l.b16 %v2571
    %v3219 = vunpack.c.l.b16 %v2572
    %v3220 = vunpack.c.l.b16 %v2573
    %v3221 = vunpack.c.l.b16 %v2574
    %v3222 = vunpack.c.l.b16 %v2575
    %v3223 = vunpack.c.l.b16 %v2576
    %v3224 = vunpack.c.l.b16 %v2577
    %v3225 = vunpack.c.l.b16 %v2578
    %v3226 = vunpack.c.l.b16 %v2579
    %v3227 = vunpack.c.l.b16 %v2580
    %v3228 = vunpack.c.l.b16 %v2581
    %v3229 = vunpack.c.l.b16 %v2582
    %v3230 = vunpack.c.l.b16 %v2583
    %v3231 = vunpack.c.l.b16 %v2584
    %v3232 = vunpack.c.l.b16 %v2585
    %v3233 = vunpack.c.l.b16 %v2586
    %v3234 = vunpack.c.l.b16 %v2587
    %v3235 = vunpack.c.l.b16 %v2588
    %v3236 = vunpack.c.l.b16 %v2589
    %v3237 = vunpack.c.l.b16 %v2590
    %v3238 = vunpack.c.l.b16 %v2591
    %v3239 = vunpack.c.l.b16 %v2592
    %v3240 = vunpack.c.l.b16 %v2593
    %v3241 = vunpack.c.l.b16 %v2594
    %v3242 = vunpack.c.l.b16 %v2595
    %v3243 = vunpack.c.l.b16 %v2596
    %v3244 = vunpack.c.l.b16 %v2597
    %v3245 = vunpack.c.l.b16 %v2598
    %v3246 = vunpack.c.l.b16 %v2599
    %v3247 = vunpack.c.l.b16 %v2600
    %v3248 = vunpack.c.l.b16 %v2601
    %v3249 = vunpack.c.l.b16 %v2602
    %v3250 = vunpack.c.l.b16 %v2603
    %v3251 = vunpack.c.l.b16 %v2604
    %v3252 = vunpack.c.l.b16 %v2605
    %v3253 = vunpack.c.l.b16 %v2606
    %v3254 = vunpack.c.l.b16 %v2607
    %v3255 = vunpack.c.l.b16 %v2608
    %v3256 = vunpack.c.l.b16 %v2609
    %v3257 = vunpack.c.l.b16 %v2610
    %v3258 = vunpack.c.l.b16 %v2611
    %v3259 = vunpack.c.l.b16 %v2612
    %v3260 = vunpack.c.l.b16 %v2613
    %v3261 = vunpack.c.l.b16 %v2614
    %v3262 = vunpack.c.l.b16 %v2615
    %v3263 = vunpack.c.l.b16 %v2616
    %v3264 = vunpack.c.l.b16 %v2617
    %v3265 = vunpack.c.l.b16 %v2618
    %v3266 = vunpack.c.l.b16 %v2619
    %v3267 = vunpack.c.l.b16 %v2620
    %v3268 = vunpack.c.l.b16 %v2621
    %v3269 = vunpack.c.l.b16 %v2622
    %v3270 = vunpack.c.l.b16 %v2623
    %v3271 = vunpack.c.l.b16 %v2624
    %v3272 = vunpack.c.l.b16 %v2625
    %v3273 = vunpack.c.l.b16 %v2626
    %v3274 = vunpack.c.l.b16 %v2627
    %v3275 = vunpack.c.l.b16 %v2628
    %v3276 = vunpack.c.l.b16 %v2629
    %v3277 = vunpack.c.l.b16 %v2630
    %v3278 = vunpack.c.l.b16 %v2631
    %v3279 = vunpack.c.l.b16 %v2632
    %v3280 = vunpack.c.l.b16 %v2633
    %v3281 = vunpack.c.l.b16 %v2634
    %v3282 = vunpack.c.l.b16 %v2635
    %v3283 = vunpack.c.l.b16 %v2636
    %v3284 = vunpack.c.l.b16 %v2637
    %v3285 = vunpack.c.l.b16 %v2638
    %v3286 = vunpack.c.l.b16 %v2639
    %v3287 = vunpack.c.l.b16 %v2640
    %v3288 = vunpack.c.l.b16 %v2641
    %v3289 = vunpack.c.l.b16 %v2642
    %v3290 = vunpack.c.l.b16 %v2643
    %v3291 = vunpack.c.l.b16 %v2644
    %v3292 = vunpack.c.l.b16 %v2645
    %v3293 = vunpack.c.l.b16 %v2646
    %v3294 = vunpack.c.l.b16 %v2647
    %v3295 = vunpack.c.l.b16 %v2648
    %v3296 = vunpack.c.l.b16 %v2649
    %v3297 = vunpack.c.l.b16 %v2650
    %v3298 = vunpack.c.l.b16 %v2651
    %v3299 = vunpack.c.l.b16 %v2652
    %v3300 = vunpack.c.l.b16 %v2653
    %v3301 = vunpack.c.l.b16 %v2654
    %v3302 = vunpack.c.l.b16 %v2655
    %v3303 = vunpack.c.l.b16 %v2656
    %v3304 = vunpack.c.l.b16 %v2657
    %v3305 = vunpack.c.l.b16 %v2658
    %v3306 = vunpack.c.l.b16 %v2659
    %v3307 = vunpack.c.l.b16 %v2660
    %v3308 = vunpack.c.l.b16 %v2661
    %v3309 = vunpack.c.l.b16 %v2662
    %v3310 = vunpack.c.l.b16 %v2663
    %v3311 = vunpack.c.l.b16 %v2664
    %v3312 = vunpack.c.l.b16 %v2665
    %v3313 = vunpack.c.l.b16 %v2666
    %v3314 = vunpack.c.l.b16 %v2667
    %v3315 = vunpack.c.l.b16 %v2668
    %v3316 = vunpack.c.l.b16 %v2669
    %v3317 = vunpack.c.l.b16 %v2670
    %v3318 = vunpack.c.l.b16 %v2671
    %v3319 = vunpack.c.l.b16 %v2672
    %v3320 = vunpack.c.l.b16 %v2673
    %v3321 = vunpack.c.l.b16 %v2674
    %v3322 = vunpack.c.l.b16 %v2675
    %v3323 = vunpack.c.l.b16 %v2676
    %v3324 = vunpack.c.l.b16 %v2677
    %v3325 = vunpack.c.l.b16 %v2678
    %v3326 = vunpack.c.l.b16 %v2679
    %v3327 = vunpack.c.l.b16 %v2680
    %v3328 = vunpack.c.l.b16 %v2681
    %v3329 = vunpack.c.l.b16 %v2682
    %v3330 = vunpack.c.l.b16 %v2683
    %v3331 = vunpack.c.l.b16 %v2684
    %v3332 = vunpack.c.l.b16 %v2685
    %v3333 = vunpack.c.l.b16 %v2686
    %v3334 = vunpack.c.l.b16 %v2687
    %v3335 = vunpack.c.l.b16 %v2688
    %v3336 = vunpack.c.l.b16 %v2689
    %v3337 = vunpack.c.l.b16 %v2690
    %v3338 = vunpack.c.l.b16 %v2691
    %v3339 = vunpack.c.l.b16 %v2692
    %v3340 = vunpack.c.l.b16 %v2693
    %v3341 = vunpack.c.l.b16 %v2694
    %v3342 = vunpack.c.l.b16 %v2695
    %v3343 = vunpack.c.l.b16 %v2696
    %v3344 = vunpack.c.l.b16 %v2697
    %v3345 = vunpack.c.l.b16 %v2698
    %v3346 = vunpack.c.l.b16 %v2699
    %v3347 = vunpack.c.l.b16 %v2700
    %v3348 = vunpack.c.l.b16 %v2701
    %v3349 = vunpack.c.l.b16 %v2702
    %v3350 = vunpack.c.l.b16 %v2703
    %v3351 = vpack.c.b16 %v3032, %v3031
    %v3352 = vpack.c.b16 %v3034, %v3033
    %v3353 = vpack.c.b16 %v3036, %v3035
    %v3354 = vpack.c.b16 %v3038, %v3037
    %v3355 = vpack.c.b16 %v3040, %v3039
    %v3356 = vpack.c.b16 %v3042, %v3041
    %v3357 = vpack.c.b16 %v3044, %v3043
    %v3358 = vpack.c.b16 %v3046, %v3045
    %v3359 = vpack.c.b16 %v3048, %v3047
    %v3360 = vpack.c.b16 %v3050, %v3049
    %v3361 = vpack.c.b16 %v3052, %v3051
    %v3362 = vpack.c.b16 %v3054, %v3053
    %v3363 = vpack.c.b16 %v3056, %v3055
    %v3364 = vpack.c.b16 %v3058, %v3057
    %v3365 = vpack.c.b16 %v3060, %v3059
    %v3366 = vpack.c.b16 %v3062, %v3061
    %v3367 = vpack.c.b16 %v3064, %v3063
    %v3368 = vpack.c.b16 %v3066, %v3065
    %v3369 = vpack.c.b16 %v3068, %v3067
    %v3370 = vpack.c.b16 %v3070, %v3069
    %v3371 = vpack.c.b16 %v3072, %v3071
    %v3372 = vpack.c.b16 %v3074, %v3073
    %v3373 = vpack.c.b16 %v3076, %v3075
    %v3374 = vpack.c.b16 %v3078, %v3077
    %v3375 = vpack.c.b16 %v3080, %v3079
    %v3376 = vpack.c.b16 %v3082, %v3081
    %v3377 = vpack.c.b16 %v3084, %v3083
    %v3378 = vpack.c.b16 %v3086, %v3085
    %v3379 = vpack.c.b16 %v3088, %v3087
    %v3380 = vpack.c.b16 %v3090, %v3089
    %v3381 = vpack.c.b16 %v3092, %v3091
    %v3382 = vpack.c.b16 %v3094, %v3093
    %v3383 = vpack.c.b16 %v3096, %v3095
    %v3384 = vpack.c.b16 %v3098, %v3097
    %v3385 = vpack.c.b16 %v3100, %v3099
    %v3386 = vpack.c.b16 %v3102, %v3101
    %v3387 = vpack.c.b16 %v3104, %v3103
    %v3388 = vpack.c.b16 %v3106, %v3105
    %v3389 = vpack.c.b16 %v3108, %v3107
    %v3390 = vpack.c.b16 %v3110, %v3109
    %v3391 = vpack.c.b16 %v3112, %v3111
    %v3392 = vpack.c.b16 %v3114, %v3113
    %v3393 = vpack.c.b16 %v3116, %v3115
    %v3394 = vpack.c.b16 %v3118, %v3117
    %v3395 = vpack.c.b16 %v3120, %v3119
    %v3396 = vpack.c.b16 %v3122, %v3121
    %v3397 = vpack.c.b16 %v3124, %v3123
    %v3398 = vpack.c.b16 %v3126, %v3125
    %v3399 = vpack.c.b16 %v3128, %v3127
    %v3400 = vpack.c.b16 %v3130, %v3129
    %v3401 = vpack.c.b16 %v3132, %v3131
    %v3402 = vpack.c.b16 %v3134, %v3133
    %v3403 = vpack.c.b16 %v3136, %v3135
    %v3404 = vpack.c.b16 %v3138, %v3137
    %v3405 = vpack.c.b16 %v3140, %v3139
    %v3406 = vpack.c.b16 %v3142, %v3141
    %v3407 = vpack.c.b16 %v3144, %v3143
    %v3408 = vpack.c.b16 %v3146, %v3145
    %v3409 = vpack.c.b16 %v3148, %v3147
    %v3410 = vpack.c.b16 %v3150, %v3149
    %v3411 = vpack.c.b16 %v3152, %v3151
    %v3412 = vpack.c.b16 %v3154, %v3153
    %v3413 = vpack.c.b16 %v3156, %v3155
    %v3414 = vpack.c.b16 %v3158, %v3157
    %v3415 = vpack.c.b16 %v3160, %v3159
    %v3416 = vpack.c.b16 %v3162, %v3161
    %v3417 = vpack.c.b16 %v3164, %v3163
    %v3418 = vpack.c.b16 %v3166, %v3165
    %v3419 = vpack.c.b16 %v3168, %v3167
    %v3420 = vpack.c.b16 %v3170, %v3169
    %v3421 = vpack.c.b16 %v3172, %v3171
    %v3422 = vpack.c.b16 %v3174, %v3173
    %v3423 = vpack.c.b16 %v3176, %v3175
    %v3424 = vpack.c.b16 %v3178, %v3177
    %v3425 = vpack.c.b16 %v3180, %v3179
    %v3426 = vpack.c.b16 %v3182, %v3181
    %v3427 = vpack.c.b16 %v3184, %v3183
    %v3428 = vpack.c.b16 %v3186, %v3185
    %v3429 = vpack.c.b16 %v3188, %v3187
    %v3430 = vpack.c.b16 %v3190, %v3189
    %v3431 = vpack.c.b16 %v3192, %v3191
    %v3432 = vpack.c.b16 %v3194, %v3193
    %v3433 = vpack.c.b16 %v3196, %v3195
    %v3434 = vpack.c.b16 %v3198, %v3197
    %v3435 = vpack.c.b16 %v3200, %v3199
    %v3436 = vpack.c.b16 %v3202, %v3201
    %v3437 = vpack.c.b16 %v3204, %v3203
    %v3438 = vpack.c.b16 %v3206, %v3205
    %v3439 = vpack.c.b16 %v3208, %v3207
    %v3440 = vpack.c.b16 %v3210, %v3209
    %v3441 = vpack.c.b16 %v3212, %v3211
    %v3442 = vpack.c.b16 %v3214, %v3213
    %v3443 = vpack.c.b16 %v3216, %v3215
    %v3444 = vpack.c.b16 %v3218, %v3217
    %v3445 = vpack.c.b16 %v3220, %v3219
    %v3446 = vpack.c.b16 %v3222, %v3221
    %v3447 = vpack.c.b16 %v3224, %v3223
    %v3448 = vpack.c.b16 %v3226, %v3225
    %v3449 = vpack.c.b16 %v3228, %v3227
    %v3450 = vpack.c.b16 %v3230, %v3229
    %v3451 = vpack.c.b16 %v3232, %v3231
    %v3452 = vpack.c.b16 %v3234, %v3233
    %v3453 = vpack.c.b16 %v3236, %v3235
    %v3454 = vpack.c.b16 %v3238, %v3237
    %v3455 = vpack.c.b16 %v3240, %v3239
    %v3456 = vpack.c.b16 %v3242, %v3241
    %v3457 = vpack.c.b16 %v3244, %v3243
    %v3458 = vpack.c.b16 %v3246, %v3245
    %v3459 = vpack.c.b16 %v3248, %v3247
    %v3460 = vpack.c.b16 %v3250, %v3249
    %v3461 = vpack.c.b16 %v3252, %v3251
    %v3462 = vpack.c.b16 %v3254, %v3253
    %v3463 = vpack.c.b16 %v3256, %v3255
    %v3464 = vpack.c.b16 %v3258, %v3257
    %v3465 = vpack.c.b16 %v3260, %v3259
    %v3466 = vpack.c.b16 %v3262, %v3261
    %v3467 = vpack.c.b16 %v3264, %v3263
    %v3468 = vpack.c.b16 %v3266, %v3265
    %v3469 = vpack.c.b16 %v3268, %v3267
    %v3470 = vpack.c.b16 %v3270, %v3269
    %v3471 = vpack.c.b16 %v3272, %v3271
    %v3472 = vpack.c.b16 %v3274, %v3273
    %v3473 = vpack.c.b16 %v3276, %v3275
    %v3474 = vpack.c.b16 %v3278, %v3277
    %v3475 = vpack.c.b16 %v3280, %v3279
    %v3476 = vpack.c.b16 %v3282, %v3281
    %v3477 = vpack.c.b16 %v3284, %v3283
    %v3478 = vpack.c.b16 %v3286, %v3285
    %v3479 = vpack.c.b16 %v3288, %v3287
    %v3480 = vpack.c.b16 %v3290, %v3289
    %v3481 = vpack.c.b16 %v3292, %v3291
    %v3482 = vpack.c.b16 %v3294, %v3293
    %v3483 = vpack.c.b16 %v3296, %v3295
    %v3484 = vpack.c.b16 %v3298, %v3297
    %v3485 = vpack.c.b16 %v3300, %v3299
    %v3486 = vpack.c.b16 %v3302, %v3301
    %v3487 = vpack.c.b16 %v3304, %v3303
    %v3488 = vpack.c.b16 %v3306, %v3305
    %v3489 = vpack.c.b16 %v3308, %v3307
    %v3490 = vpack.c.b16 %v3310, %v3309
    %v3491 = vpack.c.b16 %v3312, %v3311
    %v3492 = vpack.c.b16 %v3314, %v3313
    %v3493 = vpack.c.b16 %v3316, %v3315
    %v3494 = vpack.c.b16 %v3318, %v3317
    %v3495 = vpack.c.b16 %v3320, %v3319
    %v3496 = vpack.c.b16 %v3322, %v3321
    %v3497 = vpack.c.b16 %v3324, %v3323
    %v3498 = vpack.c.b16 %v3326, %v3325
    %v3499 = vpack.c.b16 %v3328, %v3327
    %v3500 = vpack.c.b16 %v3330, %v3329
    %v3501 = vpack.c.b16 %v3332, %v3331
    %v3502 = vpack.c.b16 %v3334, %v3333
    %v3503 = vpack.c.b16 %v3336, %v3335
    %v3504 = vpack.c.b16 %v3338, %v3337
    %v3505 = vpack.c.b16 %v3340, %v3339
    %v3506 = vpack.c.b16 %v3342, %v3341
    %v3507 = vpack.c.b16 %v3344, %v3343
    %v3508 = vpack.c.b16 %v3346, %v3345
    %v3509 = vpack.c.b16 %v3348, %v3347
    %v3510 = vpack.c.b16 %v3350, %v3349
    %3671 = vmatprep.subr.bf16.mxu0 0
    %3672 = vmatpush1.bf16.msra.mxu0 %v3351
    %3673 = vmatprep.subr.bf16.mxu0 0
    %3674 = vmatpush1.bf16.msra.mxu0 %v3352
    %3675 = vmatprep.subr.bf16.mxu0 0
    %3676 = vmatpush1.bf16.msra.mxu0 %v3353
    %3677 = vmatprep.subr.bf16.mxu0 0
    %3678 = vmatpush1.bf16.msra.mxu0 %v3354
    %3679 = vmatprep.subr.bf16.mxu0 0
    %3680 = vmatpush1.bf16.msra.mxu0 %v3355
    %3681 = vmatprep.subr.bf16.mxu0 0
    %3682 = vmatpush1.bf16.msra.mxu0 %v3356
    %3683 = vmatprep.subr.bf16.mxu0 0
    %3684 = vmatpush1.bf16.msra.mxu0 %v3357
    %3685 = vmatprep.subr.bf16.mxu0 0
    %3686 = vmatpush1.bf16.msra.mxu0 %v3358
    %3687 = vmatprep.subr.bf16.mxu0 0
    %3688 = vmatpush1.bf16.msra.mxu0 %v3359
    %3689 = vmatprep.subr.bf16.mxu0 0
    %3690 = vmatpush1.bf16.msra.mxu0 %v3360
    %3691 = vmatprep.subr.bf16.mxu0 0
    %3692 = vmatpush1.bf16.msra.mxu0 %v3361
    %3693 = vmatprep.subr.bf16.mxu0 0
    %3694 = vmatpush1.bf16.msra.mxu0 %v3362
    %3695 = vmatprep.subr.bf16.mxu0 0
    %3696 = vmatpush1.bf16.msra.mxu0 %v3363
    %3697 = vmatprep.subr.bf16.mxu0 0
    %3698 = vmatpush1.bf16.msra.mxu0 %v3364
    %3699 = vmatprep.subr.bf16.mxu0 0
    %3700 = vmatpush1.bf16.msra.mxu0 %v3365
    %3701 = vmatprep.subr.bf16.mxu0 0
    %3702 = vmatpush1.bf16.msra.mxu0 %v3366
    %3703 = vmatprep.mubr.bf16.mxu0 %v2365
    %3704 = vmatmul.mubr.bf16.gmra.mrb[0].mxu0 %v2364
    %v3705 = vpop.f32.mrb[0].mxu0
    %v3706 = vadd.f32 %v2709, %v3705
    %v3707 = vpop.f32.mrb[0].mxu0
    %v3708 = vpop.f32.mrb[0].mxu0
    %v3709 = vadd.f32 %v2709, %v3708
    %v3710 = vpop.f32.mrb[0].mxu0
    %3711 = vdwg.mxu0
    %3712 = vmatprep.subr.bf16.mxu0 0
    %3713 = vmatpush1.bf16.msra.mxu0 %v3367
    %3714 = vmatprep.subr.bf16.mxu0 0
    %3715 = vmatpush1.bf16.msra.mxu0 %v3368
    %3716 = vmatprep.subr.bf16.mxu0 0
    %3717 = vmatpush1.bf16.msra.mxu0 %v3369
    %3718 = vmatprep.subr.bf16.mxu0 0
    %3719 = vmatpush1.bf16.msra.mxu0 %v3370
    %3720 = vmatprep.subr.bf16.mxu0 0
    %3721 = vmatpush1.bf16.msra.mxu0 %v3371
    %3722 = vmatprep.subr.bf16.mxu0 0
    %3723 = vmatpush1.bf16.msra.mxu0 %v3372
    %3724 = vmatprep.subr.bf16.mxu0 0
    %3725 = vmatpush1.bf16.msra.mxu0 %v3373
    %3726 = vmatprep.subr.bf16.mxu0 0
    %3727 = vmatpush1.bf16.msra.mxu0 %v3374
    %3728 = vmatprep.subr.bf16.mxu0 0
    %3729 = vmatpush1.bf16.msra.mxu0 %v3375
    %3730 = vmatprep.subr.bf16.mxu0 0
    %3731 = vmatpush1.bf16.msra.mxu0 %v3376
    %3732 = vmatprep.subr.bf16.mxu0 0
    %3733 = vmatpush1.bf16.msra.mxu0 %v3377
    %3734 = vmatprep.subr.bf16.mxu0 0
    %3735 = vmatpush1.bf16.msra.mxu0 %v3378
    %3736 = vmatprep.subr.bf16.mxu0 0
    %3737 = vmatpush1.bf16.msra.mxu0 %v3379
    %3738 = vmatprep.subr.bf16.mxu0 0
    %3739 = vmatpush1.bf16.msra.mxu0 %v3380
    %3740 = vmatprep.subr.bf16.mxu0 0
    %3741 = vmatpush1.bf16.msra.mxu0 %v3381
    %3742 = vmatprep.subr.bf16.mxu0 0
    %3743 = vmatpush1.bf16.msra.mxu0 %v3382
    %3744 = vmatprep.mubr.bf16.mxu0 %v2367
    %3745 = vmatmul.mubr.bf16.gmra.mrb[0].mxu0 %v2366
    %v3746 = vpop.f32.mrb[0].mxu0
    %v3747 = vadd.f32 %v3706, %v3746
    %v3748 = vpop.f32.mrb[0].mxu0
    %v3749 = vpop.f32.mrb[0].mxu0
    %v3750 = vadd.f32 %v3709, %v3749
    %v3751 = vpop.f32.mrb[0].mxu0
    %3752 = vdwg.mxu0
    %3753 = vmatprep.subr.bf16.mxu0 0
    %3754 = vmatpush1.bf16.msra.mxu0 %v3383
    %3755 = vmatprep.subr.bf16.mxu0 0
    %3756 = vmatpush1.bf16.msra.mxu0 %v3384
    %3757 = vmatprep.subr.bf16.mxu0 0
    %3758 = vmatpush1.bf16.msra.mxu0 %v3385
    %3759 = vmatprep.subr.bf16.mxu0 0
    %3760 = vmatpush1.bf16.msra.mxu0 %v3386
    %3761 = vmatprep.subr.bf16.mxu0 0
    %3762 = vmatpush1.bf16.msra.mxu0 %v3387
    %3763 = vmatprep.subr.bf16.mxu0 0
    %3764 = vmatpush1.bf16.msra.mxu0 %v3388
    %3765 = vmatprep.subr.bf16.mxu0 0
    %3766 = vmatpush1.bf16.msra.mxu0 %v3389
    %3767 = vmatprep.subr.bf16.mxu0 0
    %3768 = vmatpush1.bf16.msra.mxu0 %v3390
    %3769 = vmatprep.subr.bf16.mxu0 0
    %3770 = vmatpush1.bf16.msra.mxu0 %v3391
    %3771 = vmatprep.subr.bf16.mxu0 0
    %3772 = vmatpush1.bf16.msra.mxu0 %v3392
    %3773 = vmatprep.subr.bf16.mxu0 0
    %3774 = vmatpush1.bf16.msra.mxu0 %v3393
    %3775 = vmatprep.subr.bf16.mxu0 0
    %3776 = vmatpush1.bf16.msra.mxu0 %v3394
    %3777 = vmatprep.subr.bf16.mxu0 0
    %3778 = vmatpush1.bf16.msra.mxu0 %v3395
    %3779 = vmatprep.subr.bf16.mxu0 0
    %3780 = vmatpush1.bf16.msra.mxu0 %v3396
    %3781 = vmatprep.subr.bf16.mxu0 0
    %3782 = vmatpush1.bf16.msra.mxu0 %v3397
    %3783 = vmatprep.subr.bf16.mxu0 0
    %3784 = vmatpush1.bf16.msra.mxu0 %v3398
    %3785 = vmatprep.mubr.bf16.mxu0 %v2369
    %3786 = vmatmul.mubr.bf16.gmra.mrb[0].mxu0 %v2368
    %v3787 = vpop.f32.mrb[0].mxu0
    %v3788 = vadd.f32 %v3747, %v3787
    %v3789 = vpop.f32.mrb[0].mxu0
    %v3790 = vpop.f32.mrb[0].mxu0
    %v3791 = vadd.f32 %v3750, %v3790
    %v3792 = vpop.f32.mrb[0].mxu0
    %3793 = vdwg.mxu0
    %3794 = vmatprep.subr.bf16.mxu0 0
    %3795 = vmatpush1.bf16.msra.mxu0 %v3399
    %3796 = vmatprep.subr.bf16.mxu0 0
    %3797 = vmatpush1.bf16.msra.mxu0 %v3400
    %3798 = vmatprep.subr.bf16.mxu0 0
    %3799 = vmatpush1.bf16.msra.mxu0 %v3401
    %3800 = vmatprep.subr.bf16.mxu0 0
    %3801 = vmatpush1.bf16.msra.mxu0 %v3402
    %3802 = vmatprep.subr.bf16.mxu0 0
    %3803 = vmatpush1.bf16.msra.mxu0 %v3403
    %3804 = vmatprep.subr.bf16.mxu0 0
    %3805 = vmatpush1.bf16.msra.mxu0 %v3404
    %3806 = vmatprep.subr.bf16.mxu0 0
    %3807 = vmatpush1.bf16.msra.mxu0 %v3405
    %3808 = vmatprep.subr.bf16.mxu0 0
    %3809 = vmatpush1.bf16.msra.mxu0 %v3406
    %3810 = vmatprep.subr.bf16.mxu0 0
    %3811 = vmatpush1.bf16.msra.mxu0 %v3407
    %3812 = vmatprep.subr.bf16.mxu0 0
    %3813 = vmatpush1.bf16.msra.mxu0 %v3408
    %3814 = vmatprep.subr.bf16.mxu0 0
    %3815 = vmatpush1.bf16.msra.mxu0 %v3409
    %3816 = vmatprep.subr.bf16.mxu0 0
    %3817 = vmatpush1.bf16.msra.mxu0 %v3410
    %3818 = vmatprep.subr.bf16.mxu0 0
    %3819 = vmatpush1.bf16.msra.mxu0 %v3411
    %3820 = vmatprep.subr.bf16.mxu0 0
    %3821 = vmatpush1.bf16.msra.mxu0 %v3412
    %3822 = vmatprep.subr.bf16.mxu0 0
    %3823 = vmatpush1.bf16.msra.mxu0 %v3413
    %3824 = vmatprep.subr.bf16.mxu0 0
    %3825 = vmatpush1.bf16.msra.mxu0 %v3414
    %3826 = vmatprep.mubr.bf16.mxu0 %v2371
    %3827 = vmatmul.mubr.bf16.gmra.mrb[0].mxu0 %v2370
    %v3828 = vpop.f32.mrb[0].mxu0
    %v3829 = vadd.f32 %v3788, %v3828
    %v3830 = vpop.f32.mrb[0].mxu0
    %v3831 = vpop.f32.mrb[0].mxu0
    %v3832 = vadd.f32 %v3791, %v3831
    %v3833 = vpop.f32.mrb[0].mxu0
    %3834 = vdwg.mxu0
    %3835 = vmatprep.subr.bf16.mxu0 0
    %3836 = vmatpush1.bf16.msra.mxu0 %v3415
    %3837 = vmatprep.subr.bf16.mxu0 0
    %3838 = vmatpush1.bf16.msra.mxu0 %v3416
    %3839 = vmatprep.subr.bf16.mxu0 0
    %3840 = vmatpush1.bf16.msra.mxu0 %v3417
    %3841 = vmatprep.subr.bf16.mxu0 0
    %3842 = vmatpush1.bf16.msra.mxu0 %v3418
    %3843 = vmatprep.subr.bf16.mxu0 0
    %3844 = vmatpush1.bf16.msra.mxu0 %v3419
    %3845 = vmatprep.subr.bf16.mxu0 0
    %3846 = vmatpush1.bf16.msra.mxu0 %v3420
    %3847 = vmatprep.subr.bf16.mxu0 0
    %3848 = vmatpush1.bf16.msra.mxu0 %v3421
    %3849 = vmatprep.subr.bf16.mxu0 0
    %3850 = vmatpush1.bf16.msra.mxu0 %v3422
    %3851 = vmatprep.subr.bf16.mxu0 0
    %3852 = vmatpush1.bf16.msra.mxu0 %v3423
    %3853 = vmatprep.subr.bf16.mxu0 0
    %3854 = vmatpush1.bf16.msra.mxu0 %v3424
    %3855 = vmatprep.subr.bf16.mxu0 0
    %3856 = vmatpush1.bf16.msra.mxu0 %v3425
    %3857 = vmatprep.subr.bf16.mxu0 0
    %3858 = vmatpush1.bf16.msra.mxu0 %v3426
    %3859 = vmatprep.subr.bf16.mxu0 0
    %3860 = vmatpush1.bf16.msra.mxu0 %v3427
    %3861 = vmatprep.subr.bf16.mxu0 0
    %3862 = vmatpush1.bf16.msra.mxu0 %v3428
    %3863 = vmatprep.subr.bf16.mxu0 0
    %3864 = vmatpush1.bf16.msra.mxu0 %v3429
    %3865 = vmatprep.subr.bf16.mxu0 0
    %3866 = vmatpush1.bf16.msra.mxu0 %v3430
    %3867 = vmatprep.mubr.bf16.mxu0 %v2373
    %3868 = vmatmul.mubr.bf16.gmra.mrb[0].mxu0 %v2372
    %v3869 = vpop.f32.mrb[0].mxu0
    %v3870 = vadd.f32 %v3829, %v3869
    %v3871 = vpop.f32.mrb[0].mxu0
    %v3872 = vpop.f32.mrb[0].mxu0
    %v3873 = vadd.f32 %v3832, %v3872
    %v3874 = vpop.f32.mrb[0].mxu0
    %3875 = vdwg.mxu0
    %3876 = vmatprep.subr.bf16.mxu0 0
    %3877 = vmatpush1.bf16.msra.mxu0 %v3431
    %3878 = vmatprep.subr.bf16.mxu0 0
    %3879 = vmatpush1.bf16.msra.mxu0 %v3432
    %3880 = vmatprep.subr.bf16.mxu0 0
    %3881 = vmatpush1.bf16.msra.mxu0 %v3433
    %3882 = vmatprep.subr.bf16.mxu0 0
    %3883 = vmatpush1.bf16.msra.mxu0 %v3434
    %3884 = vmatprep.subr.bf16.mxu0 0
    %3885 = vmatpush1.bf16.msra.mxu0 %v3435
    %3886 = vmatprep.subr.bf16.mxu0 0
    %3887 = vmatpush1.bf16.msra.mxu0 %v3436
    %3888 = vmatprep.subr.bf16.mxu0 0
    %3889 = vmatpush1.bf16.msra.mxu0 %v3437
    %3890 = vmatprep.subr.bf16.mxu0 0
    %3891 = vmatpush1.bf16.msra.mxu0 %v3438
    %3892 = vmatprep.subr.bf16.mxu0 0
    %3893 = vmatpush1.bf16.msra.mxu0 %v3439
    %3894 = vmatprep.subr.bf16.mxu0 0
    %3895 = vmatpush1.bf16.msra.mxu0 %v3440
    %3896 = vmatprep.subr.bf16.mxu0 0
    %3897 = vmatpush1.bf16.msra.mxu0 %v3441
    %3898 = vmatprep.subr.bf16.mxu0 0
    %3899 = vmatpush1.bf16.msra.mxu0 %v3442
    %3900 = vmatprep.subr.bf16.mxu0 0
    %3901 = vmatpush1.bf16.msra.mxu0 %v3443
    %3902 = vmatprep.subr.bf16.mxu0 0
    %3903 = vmatpush1.bf16.msra.mxu0 %v3444
    %3904 = vmatprep.subr.bf16.mxu0 0
    %3905 = vmatpush1.bf16.msra.mxu0 %v3445
    %3906 = vmatprep.subr.bf16.mxu0 0
    %3907 = vmatpush1.bf16.msra.mxu0 %v3446
    %3908 = vmatprep.mubr.bf16.mxu0 %v2375
    %3909 = vmatmul.mubr.bf16.gmra.mrb[0].mxu0 %v2374
    %v3910 = vpop.f32.mrb[0].mxu0
    %v3911 = vadd.f32 %v3870, %v3910
    %v3912 = vpop.f32.mrb[0].mxu0
    %v3913 = vpop.f32.mrb[0].mxu0
    %v3914 = vadd.f32 %v3873, %v3913
    %v3915 = vpop.f32.mrb[0].mxu0
    %3916 = vdwg.mxu0
    %3917 = vmatprep.subr.bf16.mxu0 0
    %3918 = vmatpush1.bf16.msra.mxu0 %v3447
    %3919 = vmatprep.subr.bf16.mxu0 0
    %3920 = vmatpush1.bf16.msra.mxu0 %v3448
    %3921 = vmatprep.subr.bf16.mxu0 0
    %3922 = vmatpush1.bf16.msra.mxu0 %v3449
    %3923 = vmatprep.subr.bf16.mxu0 0
    %3924 = vmatpush1.bf16.msra.mxu0 %v3450
    %3925 = vmatprep.subr.bf16.mxu0 0
    %3926 = vmatpush1.bf16.msra.mxu0 %v3451
    %3927 = vmatprep.subr.bf16.mxu0 0
    %3928 = vmatpush1.bf16.msra.mxu0 %v3452
    %3929 = vmatprep.subr.bf16.mxu0 0
    %3930 = vmatpush1.bf16.msra.mxu0 %v3453
    %3931 = vmatprep.subr.bf16.mxu0 0
    %3932 = vmatpush1.bf16.msra.mxu0 %v3454
    %3933 = vmatprep.subr.bf16.mxu0 0
    %3934 = vmatpush1.bf16.msra.mxu0 %v3455
    %3935 = vmatprep.subr.bf16.mxu0 0
    %3936 = vmatpush1.bf16.msra.mxu0 %v3456
    %3937 = vmatprep.subr.bf16.mxu0 0
    %3938 = vmatpush1.bf16.msra.mxu0 %v3457
    %3939 = vmatprep.subr.bf16.mxu0 0
    %3940 = vmatpush1.bf16.msra.mxu0 %v3458
    %3941 = vmatprep.subr.bf16.mxu0 0
    %3942 = vmatpush1.bf16.msra.mxu0 %v3459
    %3943 = vmatprep.subr.bf16.mxu0 0
    %3944 = vmatpush1.bf16.msra.mxu0 %v3460
    %3945 = vmatprep.subr.bf16.mxu0 0
    %3946 = vmatpush1.bf16.msra.mxu0 %v3461
    %3947 = vmatprep.subr.bf16.mxu0 0
    %3948 = vmatpush1.bf16.msra.mxu0 %v3462
    %3949 = vmatprep.mubr.bf16.mxu0 %v2377
    %3950 = vmatmul.mubr.bf16.gmra.mrb[0].mxu0 %v2376
    %v3951 = vpop.f32.mrb[0].mxu0
    %v3952 = vadd.f32 %v3911, %v3951
    %v3953 = vpop.f32.mrb[0].mxu0
    %v3954 = vpop.f32.mrb[0].mxu0
    %v3955 = vadd.f32 %v3914, %v3954
    %v3956 = vpop.f32.mrb[0].mxu0
    %3957 = vdwg.mxu0
    %3958 = vmatprep.subr.bf16.mxu0 0
    %3959 = vmatpush1.bf16.msra.mxu0 %v3463
    %3960 = vmatprep.subr.bf16.mxu0 0
    %3961 = vmatpush1.bf16.msra.mxu0 %v3464
    %3962 = vmatprep.subr.bf16.mxu0 0
    %3963 = vmatpush1.bf16.msra.mxu0 %v3465
    %3964 = vmatprep.subr.bf16.mxu0 0
    %3965 = vmatpush1.bf16.msra.mxu0 %v3466
    %3966 = vmatprep.subr.bf16.mxu0 0
    %3967 = vmatpush1.bf16.msra.mxu0 %v3467
    %3968 = vmatprep.subr.bf16.mxu0 0
    %3969 = vmatpush1.bf16.msra.mxu0 %v3468
    %3970 = vmatprep.subr.bf16.mxu0 0
    %3971 = vmatpush1.bf16.msra.mxu0 %v3469
    %3972 = vmatprep.subr.bf16.mxu0 0
    %3973 = vmatpush1.bf16.msra.mxu0 %v3470
    %3974 = vmatprep.subr.bf16.mxu0 0
    %3975 = vmatpush1.bf16.msra.mxu0 %v3471
    %3976 = vmatprep.subr.bf16.mxu0 0
    %3977 = vmatpush1.bf16.msra.mxu0 %v3472
    %3978 = vmatprep.subr.bf16.mxu0 0
    %3979 = vmatpush1.bf16.msra.mxu0 %v3473
    %3980 = vmatprep.subr.bf16.mxu0 0
    %3981 = vmatpush1.bf16.msra.mxu0 %v3474
    %3982 = vmatprep.subr.bf16.mxu0 0
    %3983 = vmatpush1.bf16.msra.mxu0 %v3475
    %3984 = vmatprep.subr.bf16.mxu0 0
    %3985 = vmatpush1.bf16.msra.mxu0 %v3476
    %3986 = vmatprep.subr.bf16.mxu0 0
    %3987 = vmatpush1.bf16.msra.mxu0 %v3477
    %3988 = vmatprep.subr.bf16.mxu0 0
    %3989 = vmatpush1.bf16.msra.mxu0 %v3478
    %3990 = vmatprep.mubr.bf16.mxu0 %v2379
    %3991 = vmatmul.mubr.bf16.gmra.mrb[0].mxu0 %v2378
    %v3992 = vpop.f32.mrb[0].mxu0
    %v3993 = vadd.f32 %v3952, %v3992
    %v3994 = vpop.f32.mrb[0].mxu0
    %v3995 = vpop.f32.mrb[0].mxu0
    %v3996 = vadd.f32 %v3955, %v3995
    %v3997 = vpop.f32.mrb[0].mxu0
    %3998 = vdwg.mxu0
    %3999 = vmatprep.subr.bf16.mxu0 0
    %4000 = vmatpush1.bf16.msra.mxu0 %v3479
    %4001 = vmatprep.subr.bf16.mxu0 0
    %4002 = vmatpush1.bf16.msra.mxu0 %v3480
    %4003 = vmatprep.subr.bf16.mxu0 0
    %4004 = vmatpush1.bf16.msra.mxu0 %v3481
    %4005 = vmatprep.subr.bf16.mxu0 0
    %4006 = vmatpush1.bf16.msra.mxu0 %v3482
    %4007 = vmatprep.subr.bf16.mxu0 0
    %4008 = vmatpush1.bf16.msra.mxu0 %v3483
    %4009 = vmatprep.subr.bf16.mxu0 0
    %4010 = vmatpush1.bf16.msra.mxu0 %v3484
    %4011 = vmatprep.subr.bf16.mxu0 0
    %4012 = vmatpush1.bf16.msra.mxu0 %v3485
    %4013 = vmatprep.subr.bf16.mxu0 0
    %4014 = vmatpush1.bf16.msra.mxu0 %v3486
    %4015 = vmatprep.subr.bf16.mxu0 0
    %4016 = vmatpush1.bf16.msra.mxu0 %v3487
    %4017 = vmatprep.subr.bf16.mxu0 0
    %4018 = vmatpush1.bf16.msra.mxu0 %v3488
    %4019 = vmatprep.subr.bf16.mxu0 0
    %4020 = vmatpush1.bf16.msra.mxu0 %v3489
    %4021 = vmatprep.subr.bf16.mxu0 0
    %4022 = vmatpush1.bf16.msra.mxu0 %v3490
    %4023 = vmatprep.subr.bf16.mxu0 0
    %4024 = vmatpush1.bf16.msra.mxu0 %v3491
    %4025 = vmatprep.subr.bf16.mxu0 0
    %4026 = vmatpush1.bf16.msra.mxu0 %v3492
    %4027 = vmatprep.subr.bf16.mxu0 0
    %4028 = vmatpush1.bf16.msra.mxu0 %v3493
    %4029 = vmatprep.subr.bf16.mxu0 0
    %4030 = vmatpush1.bf16.msra.mxu0 %v3494
    %4031 = vmatprep.mubr.bf16.mxu0 %v2381
    %4032 = vmatmul.mubr.bf16.gmra.mrb[0].mxu0 %v2380
    %v4033 = vpop.f32.mrb[0].mxu0
    %v4034 = vadd.f32 %v3993, %v4033
    %v4035 = vpop.f32.mrb[0].mxu0
    %v4036 = vpop.f32.mrb[0].mxu0
    %v4037 = vadd.f32 %v3996, %v4036
    %v4038 = vpop.f32.mrb[0].mxu0
    %4039 = vdwg.mxu0
    %4040 = vmatprep.subr.bf16.mxu0 0
    %4041 = vmatpush1.bf16.msra.mxu0 %v3495
    %4042 = vmatprep.subr.bf16.mxu0 0
    %4043 = vmatpush1.bf16.msra.mxu0 %v3496
    %4044 = vmatprep.subr.bf16.mxu0 0
    %4045 = vmatpush1.bf16.msra.mxu0 %v3497
    %4046 = vmatprep.subr.bf16.mxu0 0
    %4047 = vmatpush1.bf16.msra.mxu0 %v3498
    %4048 = vmatprep.subr.bf16.mxu0 0
    %4049 = vmatpush1.bf16.msra.mxu0 %v3499
    %4050 = vmatprep.subr.bf16.mxu0 0
    %4051 = vmatpush1.bf16.msra.mxu0 %v3500
    %4052 = vmatprep.subr.bf16.mxu0 0
    %4053 = vmatpush1.bf16.msra.mxu0 %v3501
    %4054 = vmatprep.subr.bf16.mxu0 0
    %4055 = vmatpush1.bf16.msra.mxu0 %v3502
    %4056 = vmatprep.subr.bf16.mxu0 0
    %4057 = vmatpush1.bf16.msra.mxu0 %v3503
    %4058 = vmatprep.subr.bf16.mxu0 0
    %4059 = vmatpush1.bf16.msra.mxu0 %v3504
    %4060 = vmatprep.subr.bf16.mxu0 0
    %4061 = vmatpush1.bf16.msra.mxu0 %v3505
    %4062 = vmatprep.subr.bf16.mxu0 0
    %4063 = vmatpush1.bf16.msra.mxu0 %v3506
    %4064 = vmatprep.subr.bf16.mxu0 0
    %4065 = vmatpush1.bf16.msra.mxu0 %v3507
    %4066 = vmatprep.subr.bf16.mxu0 0
    %4067 = vmatpush1.bf16.msra.mxu0 %v3508
    %4068 = vmatprep.subr.bf16.mxu0 0
    %4069 = vmatpush1.bf16.msra.mxu0 %v3509
    %4070 = vmatprep.subr.bf16.mxu0 0
    %4071 = vmatpush1.bf16.msra.mxu0 %v3510
    %4072 = vmatprep.mubr.bf16.mxu0 %v2383
    %4073 = vmatmul.mubr.bf16.gmra.mrb[0].mxu0 %v2382
    %v4074 = vpop.f32.mrb[0].mxu0
    %v4075 = vadd.f32 %v4034, %v4074
    %v4076 = vpop.f32.mrb[0].mxu0
    %v4077 = vpop.f32.mrb[0].mxu0
    %v4078 = vadd.f32 %v4037, %v4077
    %v4079 = vpop.f32.mrb[0].mxu0
    %4080 = vdwg.mxu0
    %4081 = vst [vmem:[#allocation11] sm:$0xff] %v4075
    %4082 = vst [vmem:[#allocation11 + $0x8] sm:$0xff] %v4078
    // Predicated region
    $region50: #{tpu_custom_call.1} parent=1 // pred_check
      _
    $region51: #{tpu_custom_call.1} parent=1 // pred_check_branch
      %4084 = sbr.rel (0) target = $region53
    $region52: #{tpu_custom_call.1} parent=1 // pred_region
      %s4086 = ssub.s32 256, 256
      %4087 = vsyncadd [#allocation4], %s4086
      %s4088 = sshll.u32 [#allocation11], 4
      %s4089 = int_to_ptr.vmem [resolvable:$true] %s4088
      %4094 = dma.vmem_to_hbm [thread:$0]  %s4089, 256, %s7, [#allocation4], 128, 128, 8
    $region53: #{tpu_custom_call.1} parent=1 // pred_fallthru
      _
    // Predicated region
    $region54: #{tpu_custom_call.1} parent=1 // pred_check
      _
    $region55: #{tpu_custom_call.1} parent=1 // pred_check_branch
      %4096 = sbr.rel (0) target = $region57
    $region56: #{tpu_custom_call.1} parent=1 // pred_region
      %4097 = dma.done [#allocation4], 256
    $region57: #{tpu_custom_call.1} parent=1 // pred_fallthru
      _
    %4098 = vsyncpa [#allocation3], 1
    %4099 = vsyncpa [#allocation6], 1
    %4100 = vsyncpa [#allocation9], 1
    %4101 = vsyncpa [#allocation4], 1

</llo_original>
